<compile_context>
chip_gen: v7x
topology: tpu7x:2x2x1
jax: 0.10.0
libtpu: 0.0.40
codegen_flags: <defaults>
</compile_context>

<pallas_src>
import math

import jax
import jax.numpy as jnp
from jax.experimental import pallas as pl
from jax.experimental.pallas import tpu as pltpu


# ----------------------------- time_proj glue ------------------------------ #
def get_timestep_embeddings(timesteps, embed_dim=256, max_period=10000):
    """JAX port of get_timestep_embeddings: (B,) -> (B, embed_dim) = cos || sin."""
    half = embed_dim // 2
    exponent = -math.log(max_period) * jnp.arange(half, dtype=jnp.float32) / half
    freqs = jnp.exp(exponent)                                          # (half,)
    args = timesteps.astype(jnp.float32)[:, None] * freqs[None, :]     # (B, half)
    return jnp.concatenate([jnp.cos(args), jnp.sin(args)], axis=-1)    # (B, 2*half)


# ------------------------------- Pallas kernel ------------------------------ #
def _combined_embed_kernel(temb_ref, pooled_ref,
                           wt1_ref, bt1_ref, wx1_ref, bx1_ref,
                           wt2_ref, wx2_ref, b2_ref, o_ref):
    # temb_ref:   (B, T_IN)   resident
    # pooled_ref: (B, X_IN)   resident
    # wt1_ref:    (T_IN, TK)  hidden chunk of timestep_embedder.linear_1 (transposed)
    # bt1_ref:    (1, TK)
    # wx1_ref:    (X_IN, TK)  hidden chunk of text_embedder.linear_1 (transposed)
    # bx1_ref:    (1, TK)
    # wt2_ref:    (TK, H)     matching K-chunk of timestep_embedder.linear_2
    # wx2_ref:    (TK, H)     matching K-chunk of text_embedder.linear_2
    # b2_ref:     (1, H)      bt2 + bx2 (pre-summed in glue), resident
    # o_ref:      (B, H)      f32, resident accumulator across the reduction grid
    k = pl.program_id(0)

    # First linears (bias + SiLU) for the current TK-wide hidden chunk.
    ht = jnp.dot(temb_ref[...], wt1_ref[...], preferred_element_type=jnp.float32)
    ht = ht + bt1_ref[...]
    ht = ht / (1.0 + jnp.exp(-ht))            # SiLU (exact, f32, EUP exp)

    hx = jnp.dot(pooled_ref[...], wx1_ref[...], preferred_element_type=jnp.float32)
    hx = hx + bx1_ref[...]
    hx = hx / (1.0 + jnp.exp(-hx))            # SiLU

    # Partial second linears contracted over this hidden chunk.
    part = (jnp.dot(ht, wt2_ref[...], preferred_element_type=jnp.float32)
            + jnp.dot(hx, wx2_ref[...], preferred_element_type=jnp.float32))

    @pl.when(k == 0)
    def _():
        o_ref[...] = jnp.broadcast_to(b2_ref[...], o_ref.shape)

    o_ref[...] += part


# --------------------------------- wrapper ---------------------------------- #
def combined_timestep_text_proj_embeddings(timestep, pooled_projection, params,
                                           *, tk=512):
    """Fused forward of CombinedTimestepTextProjEmbeddings.

    params (math layout, i.e. already-transposed nn.Linear weights):
      wt1 (T_IN, H), bt1 (H,), wt2 (H, H), bt2 (H,)   -- timestep_embedder
      wx1 (X_IN, H), bx1 (H,), wx2 (H, H), bx2 (H,)   -- text_embedder
    Returns (B, H) f32 conditioning.
    """
    wt1, bt1, wt2, bt2 = params["wt1"], params["bt1"], params["wt2"], params["bt2"]
    wx1, bx1, wx2, bx2 = params["wx1"], params["bx1"], params["wx2"], params["bx2"]

    B = timestep.shape[0]
    t_in, H = wt1.shape
    x_in = wx1.shape[0]
    assert pooled_projection.shape == (B, x_in)
    assert wt2.shape == (H, H) and wx2.shape == (H, H)

    # time_proj (parameter-free sin/cos table) -- trivial size, plain-JAX glue.
    temb = get_timestep_embeddings(timestep, embed_dim=t_in)
    temb = temb.astype(pooled_projection.dtype)

    # Hidden-chunk size for the reduction grid: must divide H and (when < H) be
    # a multiple of 128 for lane-aligned blocks.  Small configs collapse to a
    # single grid step (tk = H) to avoid per-step overhead.
    if tk >= H or H % tk != 0 or tk % 128 != 0:
        tk = H
    num_k = H // tk

    # Lane-dense bias rows; pre-sum the two second-layer biases (one less input).
    bt1_r = bt1.reshape(1, H).astype(jnp.float32)
    bx1_r = bx1.reshape(1, H).astype(jnp.float32)
    b2_r = (bt2.astype(jnp.float32) + bx2.astype(jnp.float32)).reshape(1, H)

    grid_spec = pltpu.PrefetchScalarGridSpec(
        num_scalar_prefetch=0,
        grid=(num_k,),
        in_specs=[
            pl.BlockSpec((B, t_in), lambda k: (0, 0)),     # temb   (resident)
            pl.BlockSpec((B, x_in), lambda k: (0, 0)),     # pooled (resident)
            pl.BlockSpec((t_in, tk), lambda k: (0, k)),    # wt1 chunk
            pl.BlockSpec((1, tk), lambda k: (0, k)),       # bt1 chunk
            pl.BlockSpec((x_in, tk), lambda k: (0, k)),    # wx1 chunk
            pl.BlockSpec((1, tk), lambda k: (0, k)),       # bx1 chunk
            pl.BlockSpec((tk, H), lambda k: (k, 0)),       # wt2 chunk
            pl.BlockSpec((tk, H), lambda k: (k, 0)),       # wx2 chunk
            pl.BlockSpec((1, H), lambda k: (0, 0)),        # bt2+bx2 (resident)
        ],
        out_specs=pl.BlockSpec((B, H), lambda k: (0, 0)),  # resident accumulator
    )

    out = pl.pallas_call(
        _combined_embed_kernel,
        out_shape=jax.ShapeDtypeStruct((B, H), jnp.float32),
        grid_spec=grid_spec,
        compiler_params=pltpu.CompilerParams(
            dimension_semantics=("arbitrary",),        # reduction axis
            vmem_limit_bytes=48 * 1024 * 1024,         # ~21 MiB working set + headroom (v7x-safe)
        ),
    )(temb, pooled_projection.astype(jnp.float32),
      wt1.astype(jnp.float32), bt1_r, wx1.astype(jnp.float32), bx1_r,
      wt2.astype(jnp.float32), wx2.astype(jnp.float32), b2_r)
    return out


# ----------------------------------- main ----------------------------------- #
if __name__ == "__main__":
    # Module's own dimensions (hardcoded in the PyTorch spec), small batch.
    B = 2
    T_EMBED = 256    # Timesteps() uses embed_dim=256
    HIDDEN = 1536    # TimeStepEmbeddings out_features
    TEXT_IN = 2048   # PixArtAlphaTextProjection: linear_1 = Linear(2048, 1536)

    key = jax.random.PRNGKey(0)
    ks = jax.random.split(key, 10)

    timestep = jax.random.uniform(ks[0], (B,), minval=0.0, maxval=1000.0,
                                  dtype=jnp.float32)
    pooled = jax.random.normal(ks[1], (B, TEXT_IN), dtype=jnp.float32)

    s = 0.02  # synthetic nn.Linear params, stored in (in, out) math layout
    params = dict(
        wt1=jax.random.normal(ks[2], (T_EMBED, HIDDEN), jnp.float32) * s,
        bt1=jax.random.normal(ks[3], (HIDDEN,), jnp.float32) * s,
        wt2=jax.random.normal(ks[4], (HIDDEN, HIDDEN), jnp.float32) * s,
        bt2=jax.random.normal(ks[5], (HIDDEN,), jnp.float32) * s,
        wx1=jax.random.normal(ks[6], (TEXT_IN, HIDDEN), jnp.float32) * s,
        bx1=jax.random.normal(ks[7], (HIDDEN,), jnp.float32) * s,
        wx2=jax.random.normal(ks[8], (HIDDEN, HIDDEN), jnp.float32) * s,
        bx2=jax.random.normal(ks[9], (HIDDEN,), jnp.float32) * s,
    )

    out = combined_timestep_text_proj_embeddings(timestep, pooled, params, tk=512)
    out = jax.block_until_ready(out)

    # Pure-JAX reference (high-precision matmuls), mirrors the PyTorch forward.
    def silu(v):
        return v * jax.nn.sigmoid(v)

    hp = jax.lax.Precision.HIGHEST
    temb = get_timestep_embeddings(timestep, T_EMBED)
    t_out = jnp.dot(silu(jnp.dot(temb, params["wt1"], precision=hp) + params["bt1"]),
                    params["wt2"], precision=hp) + params["bt2"]
    x_out = jnp.dot(silu(jnp.dot(pooled, params["wx1"], precision=hp) + params["bx1"]),
                    params["wx2"], precision=hp) + params["bx2"]
    ref = t_out + x_out

    assert out.shape == (B, HIDDEN)
    max_err = float(jnp.max(jnp.abs(out - ref)))
    # Tolerance allows for MXU f32-pass / accumulation-order differences; real
    # bugs (wrong transpose, wrong cos/sin order, missing bias) are O(0.1+).
    assert jnp.allclose(out, ref, atol=2e-2, rtol=2e-2), f"max abs err {max_err}"
    print("KERNEL_OK")
</pallas_src>

<mosaic_0001>
module attributes {stable_mosaic.version = 11 : i64} {
  func.func @_combined_embed_kernel(%arg0: i32, %arg1: memref<2x256xf32, #tpu.memory_space<vmem>>, %arg2: memref<2x2048xf32, #tpu.memory_space<vmem>>, %arg3: memref<256x512xf32, #tpu.memory_space<vmem>>, %arg4: memref<1x512xf32, #tpu.memory_space<vmem>>, %arg5: memref<2048x512xf32, #tpu.memory_space<vmem>>, %arg6: memref<1x512xf32, #tpu.memory_space<vmem>>, %arg7: memref<512x1536xf32, #tpu.memory_space<vmem>>, %arg8: memref<512x1536xf32, #tpu.memory_space<vmem>>, %arg9: memref<1x1536xf32, #tpu.memory_space<vmem>>, %arg10: memref<2x1536xf32, #tpu.memory_space<vmem>>) attributes {dimension_semantics = [#tpu.dimension_semantics<arbitrary>], iteration_bounds = array<i64: 3>, scalar_prefetch = 0 : i64, scratch_operands = 0 : i64, tpu.core_type = #tpu.core_type<tc>, window_params = [{pipeline_mode = #tpu.pipeline_mode<synchronous>, transform_indices = @transform_0, window_bounds = array<i64: 2, 256>}, {pipeline_mode = #tpu.pipeline_mode<synchronous>, transform_indices = @transform_1, window_bounds = array<i64: 2, 2048>}, {transform_indices = @transform_2, window_bounds = array<i64: 256, 512>}, {transform_indices = @transform_3, window_bounds = array<i64: 1, 512>}, {transform_indices = @transform_4, window_bounds = array<i64: 2048, 512>}, {transform_indices = @transform_5, window_bounds = array<i64: 1, 512>}, {transform_indices = @transform_6, window_bounds = array<i64: 512, 1536>}, {transform_indices = @transform_7, window_bounds = array<i64: 512, 1536>}, {pipeline_mode = #tpu.pipeline_mode<synchronous>, transform_indices = @transform_8, window_bounds = array<i64: 1, 1536>}, {pipeline_mode = #tpu.pipeline_mode<synchronous>, transform_indices = @transform_9, window_bounds = array<i64: 2, 1536>}]} {
    %c0 = arith.constant 0 : index
    %c0_0 = arith.constant 0 : index
    %0 = vector.load %arg1[%c0, %c0_0] : memref<2x256xf32, #tpu.memory_space<vmem>>, vector<2x256xf32>
    %c0_1 = arith.constant 0 : index
    %c0_2 = arith.constant 0 : index
    %1 = vector.load %arg3[%c0_1, %c0_2] : memref<256x512xf32, #tpu.memory_space<vmem>>, vector<256x512xf32>
    %cst = arith.constant dense<0.000000e+00> : vector<2x512xf32>
    %2 = tpu.matmul %0, %1, %cst {dimension_numbers = #tpu.dot_dimension_numbers<[1], [0], [0], [1], [0, 0, 1, 1], [], []>} : vector<2x256xf32>, vector<256x512xf32>, vector<2x512xf32> -> vector<2x512xf32>
    %c0_3 = arith.constant 0 : index
    %c0_4 = arith.constant 0 : index
    %3 = vector.load %arg4[%c0_3, %c0_4] : memref<1x512xf32, #tpu.memory_space<vmem>>, vector<1x512xf32>
    %4 = vector.broadcast %3 : vector<1x512xf32> to vector<2x512xf32>
    %5 = arith.addf %2, %4 : vector<2x512xf32>
    %cst_5 = arith.constant 0.000000e+00 : f32
    %6 = vector.broadcast %cst_5 : f32 to vector<2x512xf32>
    %7 = arith.subf %6, %5 : vector<2x512xf32>
    %8 = math.exp %7 : vector<2x512xf32>
    %cst_6 = arith.constant 1.000000e+00 : f32
    %9 = vector.broadcast %cst_6 : f32 to vector<2x512xf32>
    %10 = arith.addf %9, %8 : vector<2x512xf32>
    %11 = arith.divf %5, %10 : vector<2x512xf32>
    %c0_7 = arith.constant 0 : index
    %c0_8 = arith.constant 0 : index
    %12 = vector.load %arg2[%c0_7, %c0_8] : memref<2x2048xf32, #tpu.memory_space<vmem>>, vector<2x2048xf32>
    %c0_9 = arith.constant 0 : index
    %c0_10 = arith.constant 0 : index
    %13 = vector.load %arg5[%c0_9, %c0_10] : memref<2048x512xf32, #tpu.memory_space<vmem>>, vector<2048x512xf32>
    %cst_11 = arith.constant dense<0.000000e+00> : vector<2x512xf32>
    %14 = tpu.matmul %12, %13, %cst_11 {dimension_numbers = #tpu.dot_dimension_numbers<[1], [0], [0], [1], [0, 0, 1, 1], [], []>} : vector<2x2048xf32>, vector<2048x512xf32>, vector<2x512xf32> -> vector<2x512xf32>
    %c0_12 = arith.constant 0 : index
    %c0_13 = arith.constant 0 : index
    %15 = vector.load %arg6[%c0_12, %c0_13] : memref<1x512xf32, #tpu.memory_space<vmem>>, vector<1x512xf32>
    %16 = vector.broadcast %15 : vector<1x512xf32> to vector<2x512xf32>
    %17 = arith.addf %14, %16 : vector<2x512xf32>
    %cst_14 = arith.constant 0.000000e+00 : f32
    %18 = vector.broadcast %cst_14 : f32 to vector<2x512xf32>
    %19 = arith.subf %18, %17 : vector<2x512xf32>
    %20 = math.exp %19 : vector<2x512xf32>
    %cst_15 = arith.constant 1.000000e+00 : f32
    %21 = vector.broadcast %cst_15 : f32 to vector<2x512xf32>
    %22 = arith.addf %21, %20 : vector<2x512xf32>
    %23 = arith.divf %17, %22 : vector<2x512xf32>
    %c0_16 = arith.constant 0 : index
    %c0_17 = arith.constant 0 : index
    %24 = vector.load %arg7[%c0_16, %c0_17] : memref<512x1536xf32, #tpu.memory_space<vmem>>, vector<512x1536xf32>
    %cst_18 = arith.constant dense<0.000000e+00> : vector<2x1536xf32>
    %25 = tpu.matmul %11, %24, %cst_18 {dimension_numbers = #tpu.dot_dimension_numbers<[1], [0], [0], [1], [0, 0, 1, 1], [], []>} : vector<2x512xf32>, vector<512x1536xf32>, vector<2x1536xf32> -> vector<2x1536xf32>
    %c0_19 = arith.constant 0 : index
    %c0_20 = arith.constant 0 : index
    %26 = vector.load %arg8[%c0_19, %c0_20] : memref<512x1536xf32, #tpu.memory_space<vmem>>, vector<512x1536xf32>
    %cst_21 = arith.constant dense<0.000000e+00> : vector<2x1536xf32>
    %27 = tpu.matmul %23, %26, %cst_21 {dimension_numbers = #tpu.dot_dimension_numbers<[1], [0], [0], [1], [0, 0, 1, 1], [], []>} : vector<2x512xf32>, vector<512x1536xf32>, vector<2x1536xf32> -> vector<2x1536xf32>
    %28 = arith.addf %25, %27 : vector<2x1536xf32>
    %c0_i32 = arith.constant 0 : i32
    %29 = arith.cmpi eq, %arg0, %c0_i32 : i32
    %30 = arith.extui %29 : i1 to i32
    %c0_i32_22 = arith.constant 0 : i32
    %31 = arith.cmpi ne, %30, %c0_i32_22 : i32
    scf.if %31 {
      %c0_27 = arith.constant 0 : index
      %c0_28 = arith.constant 0 : index
      %35 = vector.load %arg9[%c0_27, %c0_28] : memref<1x1536xf32, #tpu.memory_space<vmem>>, vector<1x1536xf32>
      %36 = vector.shape_cast %35 : vector<1x1536xf32> to vector<1x1536xf32>
      %37 = vector.broadcast %36 : vector<1x1536xf32> to vector<2x1536xf32>
      %c0_29 = arith.constant 0 : index
      %c0_30 = arith.constant 0 : index
      %38 = vector.load %arg10[%c0_29, %c0_30] : memref<2x1536xf32, #tpu.memory_space<vmem>>, vector<2x1536xf32>
      tpu.vector_store %arg10[%c0_29, %c0_30], %37 {strides = array<i32>} : memref<2x1536xf32, #tpu.memory_space<vmem>>, vector<2x1536xf32>,
    } else {
    }
    %c0_23 = arith.constant 0 : index
    %c0_24 = arith.constant 0 : index
    %32 = vector.load %arg10[%c0_23, %c0_24] : memref<2x1536xf32, #tpu.memory_space<vmem>>, vector<2x1536xf32>
    %33 = arith.addf %32, %28 : vector<2x1536xf32>
    %c0_25 = arith.constant 0 : index
    %c0_26 = arith.constant 0 : index
    %34 = vector.load %arg10[%c0_25, %c0_26] : memref<2x1536xf32, #tpu.memory_space<vmem>>, vector<2x1536xf32>
    tpu.vector_store %arg10[%c0_25, %c0_26], %33 {strides = array<i32>} : memref<2x1536xf32, #tpu.memory_space<vmem>>, vector<2x1536xf32>,
    return
  }
  func.func @transform_0(%arg0: i32) -> (i32, i32) {
    %c0_i32 = arith.constant 0 : i32
    %c0_i32_0 = arith.constant 0 : i32
    %c0_i32_1 = arith.constant 0 : i32
    return %c0_i32, %c0_i32_0 : i32, i32
  }
  func.func @transform_1(%arg0: i32) -> (i32, i32) {
    %c0_i32 = arith.constant 0 : i32
    %c0_i32_0 = arith.constant 0 : i32
    %c0_i32_1 = arith.constant 0 : i32
    return %c0_i32, %c0_i32_0 : i32, i32
  }
  func.func @transform_2(%arg0: i32) -> (i32, i32) {
    %c0_i32 = arith.constant 0 : i32
    %c0_i32_0 = arith.constant 0 : i32
    return %c0_i32, %arg0 : i32, i32
  }
  func.func @transform_3(%arg0: i32) -> (i32, i32) {
    %c0_i32 = arith.constant 0 : i32
    %c0_i32_0 = arith.constant 0 : i32
    return %c0_i32, %arg0 : i32, i32
  }
  func.func @transform_4(%arg0: i32) -> (i32, i32) {
    %c0_i32 = arith.constant 0 : i32
    %c0_i32_0 = arith.constant 0 : i32
    return %c0_i32, %arg0 : i32, i32
  }
  func.func @transform_5(%arg0: i32) -> (i32, i32) {
    %c0_i32 = arith.constant 0 : i32
    %c0_i32_0 = arith.constant 0 : i32
    return %c0_i32, %arg0 : i32, i32
  }
  func.func @transform_6(%arg0: i32) -> (i32, i32) {
    %c0_i32 = arith.constant 0 : i32
    %c0_i32_0 = arith.constant 0 : i32
    return %arg0, %c0_i32 : i32, i32
  }
  func.func @transform_7(%arg0: i32) -> (i32, i32) {
    %c0_i32 = arith.constant 0 : i32
    %c0_i32_0 = arith.constant 0 : i32
    return %arg0, %c0_i32 : i32, i32
  }
  func.func @transform_8(%arg0: i32) -> (i32, i32) {
    %c0_i32 = arith.constant 0 : i32
    %c0_i32_0 = arith.constant 0 : i32
    %c0_i32_1 = arith.constant 0 : i32
    return %c0_i32, %c0_i32_0 : i32, i32
  }
  func.func @transform_9(%arg0: i32) -> (i32, i32) {
    %c0_i32 = arith.constant 0 : i32
    %c0_i32_0 = arith.constant 0 : i32
    %c0_i32_1 = arith.constant 0 : i32
    return %c0_i32, %c0_i32_0 : i32, i32
  }
}

</mosaic_0001>

<llo_original>
// kernel: tpu_custom_call.1
$region0: #{tpu_custom_call.1}
  #allocation0 [shape = 'u32[]', space=smem, size = 0x4, offset = 0x4, fixed_abs, tag = 'smem constant byte address 0x4 - core index']
  #allocation1 [shape = 'u32[144,128]{1,0:T(1,128)}', space=vmem, size = 0x12000, scoped, tag = 'internal scratch']
  %s0 = inlined_call_operand.hbm [shape: f32[2,256], index: 0, kind: input, shape index: {}]
  %s1 = inlined_call_operand.hbm [shape: f32[2,2048], index: 1, kind: input, shape index: {}]
  %s2 = inlined_call_operand.hbm [shape: f32[256,1536], index: 2, kind: input, shape index: {}]
  %s3 = inlined_call_operand.hbm [shape: f32[1,1536], index: 3, kind: input, shape index: {}]
  %s4 = inlined_call_operand.hbm [shape: f32[2048,1536], index: 4, kind: input, shape index: {}]
  %s5 = inlined_call_operand.hbm [shape: f32[1,1536], index: 5, kind: input, shape index: {}]
  %s6 = inlined_call_operand.hbm [shape: f32[1536,1536], index: 6, kind: input, shape index: {}]
  %s7 = inlined_call_operand.hbm [shape: f32[1536,1536], index: 7, kind: input, shape index: {}]
  %s8 = inlined_call_operand.hbm [shape: f32[1,1536], index: 8, kind: input, shape index: {}]
  %s9 = inlined_call_operand.hbm [shape: f32[2,1536], index: 9, kind: output, shape index: {}]
  %s10 = sld [smem:[#allocation0]]
  $region109: #{tpu_custom_call.1} parent=0
    _
  %s12 = ssub.s32 1, %s10
  %s13 = scalar_select 0, %s12, %s10
  $region1: #{tpu_custom_call.1} parent=0
    #allocation2 [shape = 'u8[2048]{0}', space=vmem, size = 0x800, scoped, tag = 'input window, operand 0, single buffered']
    #allocation3 [shape = 's32[2]{0}', space=sflag, size = 0x8, scoped, tag = 'scoped memory for tpu_custom_call.1']
    #allocation4 [shape = 's32[2]{0}', space=sflag, size = 0x8, scoped, tag = 'scoped memory for tpu_custom_call.1']
    #allocation5 [shape = 'u8[16384]{0}', space=vmem, size = 0x4000, scoped, tag = 'input window, operand 1, single buffered']
    #allocation6 [shape = 's32[1]{0}', space=sflag, size = 0x4, scoped, tag = 'scoped memory for tpu_custom_call.1']
    #allocation7 [shape = 'u8[1048576]{0}', space=vmem, size = 0x100000, scoped, tag = 'input window, operand 2']
    #allocation8 [shape = 'u8[4096]{0}', space=vmem, size = 0x1000, scoped, tag = 'input window, operand 3']
    #allocation9 [shape = 'u8[8388608]{0}', space=vmem, size = 0x800000, scoped, tag = 'input window, operand 4']
    #allocation10 [shape = 'u8[4096]{0}', space=vmem, size = 0x1000, scoped, tag = 'input window, operand 5']
    #allocation11 [shape = 'u8[6291456]{0}', space=vmem, size = 0x600000, scoped, tag = 'input window, operand 6']
    #allocation12 [shape = 'u8[6291456]{0}', space=vmem, size = 0x600000, scoped, tag = 'input window, operand 7']
    #allocation13 [shape = 'u8[6144]{0}', space=vmem, size = 0x1800, scoped, tag = 'input window, operand 8, single buffered']
    #allocation14 [shape = 'u8[12288]{0}', space=vmem, size = 0x3000, scoped, tag = 'output window, operand 0, single buffered']
    %14 = vsyncpa [#allocation3], 0
    %15 = vsyncpa [#allocation6], 0
    %16 = vsyncpa [#allocation4], 0
    loop: start=0, step=1, limit=5
    $region2: #{tpu_custom_call.1} parent=1 // loop_pre_header
      _
    $region3: #{tpu_custom_call.1} parent=1 // loop_header
      %s18 = sphi 0, %s22
      %p19 = scmp.ge.s32.totalorder %s18, 5
      %s26 = sphi 0, %s26
      %s28 = sphi 0, %s26
      %s29 = sphi 0, %s28
      %s43 = sphi 0, %s29
      %s47 = sphi 0, %s47
      %s49 = sphi 0, %s47
      %s50 = sphi 0, %s49
      %s64 = sphi 0, %s50
      %s70 = sphi 0, %s72
      %s73 = sphi 0, %s70
      %s74 = sphi 0, %s73
      %s90 = sphi 0, %s74
      %s96 = sphi 0, %s98
      %s99 = sphi 0, %s96
      %s100 = sphi 0, %s99
      %s116 = sphi 0, %s100
      %s122 = sphi 0, %s124
      %s125 = sphi 0, %s122
      %s126 = sphi 0, %s125
      %s142 = sphi 0, %s126
      %s148 = sphi 0, %s150
      %s151 = sphi 0, %s148
      %s152 = sphi 0, %s151
      %s168 = sphi 0, %s152
      %s174 = sphi 0, %s176
      %s177 = sphi 0, %s174
      %s178 = sphi 0, %s177
      %s194 = sphi 0, %s178
      %s200 = sphi 0, %s202
      %s203 = sphi 0, %s200
      %s204 = sphi 0, %s203
      %s220 = sphi 0, %s204
      %s224 = sphi 0, %s224
      %s226 = sphi 0, %s224
      %s227 = sphi 0, %s226
      %s241 = sphi 0, %s227
      %s245 = sphi 0, %s245
      %s247 = sphi 0, %s245
      %s248 = sphi 0, %s247
      %s262 = sphi 0, %s248
    $region4: #{tpu_custom_call.1} parent=1 // loop_header_branch
      %21 = sbr.rel (%p19) target = $region8
    $region5: #{tpu_custom_call.1} parent=1 // loop_body
      %s23 = ssub.s32 %s18, 1
      %s24 = ssub.s32 %s18, 2
      %s25 = sadd.s32 %s18, 1
      %s27 = sadd.s32 %s26, 1
      %p30 = scmp.eq.s32.totalorder %s18, 2
      %p31 = scmp.ne.s32.totalorder %s26, %s28
      %p32 = scmp.eq.s32.totalorder %s18, 0
      %p33 = por %p31, %p32
      %p34 = scmp.ne.s32.totalorder %s26, %s28
      %p35 = scmp.eq.s32.totalorder %s23, 2
      %p36 = por %p34, %p35
      %p37 = scmp.ne.s32.totalorder %s28, %s29
      %p38 = scmp.eq.s32.totalorder %s23, 0
      %p39 = por %p37, %p38
      %p40 = scmp.ne.s32.totalorder %s28, %s29
      %p41 = scmp.eq.s32.totalorder %s24, 2
      %p42 = por %p40, %p41
      %p44 = scmp.ne.s32.totalorder %s29, %s43
      %p45 = scmp.eq.s32.totalorder %s24, 0
      %p46 = por %p44, %p45
      %s48 = sadd.s32 %s47, 1
      %p51 = scmp.eq.s32.totalorder %s18, 2
      %p52 = scmp.ne.s32.totalorder %s47, %s49
      %p53 = scmp.eq.s32.totalorder %s18, 0
      %p54 = por %p52, %p53
      %p55 = scmp.ne.s32.totalorder %s47, %s49
      %p56 = scmp.eq.s32.totalorder %s23, 2
      %p57 = por %p55, %p56
      %p58 = scmp.ne.s32.totalorder %s49, %s50
      %p59 = scmp.eq.s32.totalorder %s23, 0
      %p60 = por %p58, %p59
      %p61 = scmp.ne.s32.totalorder %s49, %s50
      %p62 = scmp.eq.s32.totalorder %s24, 2
      %p63 = por %p61, %p62
      %p65 = scmp.ne.s32.totalorder %s50, %s64
      %p66 = scmp.eq.s32.totalorder %s24, 0
      %p67 = por %p65, %p66
      %s68 = ssub.s32 %s18, %s25
      %p69 = scmp.eq.s32.totalorder %s68, 0
      %s71 = sadd.s32 %s70, 1
      %s72 = scalar_select %p69, %s70, %s71
      %p75 = pneg %p69
      %p76 = scmp.eq.s32.totalorder %s18, 2
      %p77 = por %p75, %p76
      %p78 = scmp.ne.s32.totalorder %s70, %s73
      %p79 = scmp.eq.s32.totalorder %s18, 0
      %p80 = por %p78, %p79
      %p81 = scmp.ne.s32.totalorder %s70, %s73
      %p82 = scmp.eq.s32.totalorder %s23, 2
      %p83 = por %p81, %p82
      %p84 = scmp.ne.s32.totalorder %s73, %s74
      %p85 = scmp.eq.s32.totalorder %s23, 0
      %p86 = por %p84, %p85
      %p87 = scmp.ne.s32.totalorder %s73, %s74
      %p88 = scmp.eq.s32.totalorder %s24, 2
      %p89 = por %p87, %p88
      %p91 = scmp.ne.s32.totalorder %s74, %s90
      %p92 = scmp.eq.s32.totalorder %s24, 0
      %p93 = por %p91, %p92
      %s94 = ssub.s32 %s18, %s25
      %p95 = scmp.eq.s32.totalorder %s94, 0
      %s97 = sadd.s32 %s96, 1
      %s98 = scalar_select %p95, %s96, %s97
      %p101 = pneg %p95
      %p102 = scmp.eq.s32.totalorder %s18, 2
      %p103 = por %p101, %p102
      %p104 = scmp.ne.s32.totalorder %s96, %s99
      %p105 = scmp.eq.s32.totalorder %s18, 0
      %p106 = por %p104, %p105
      %p107 = scmp.ne.s32.totalorder %s96, %s99
      %p108 = scmp.eq.s32.totalorder %s23, 2
      %p109 = por %p107, %p108
      %p110 = scmp.ne.s32.totalorder %s99, %s100
      %p111 = scmp.eq.s32.totalorder %s23, 0
      %p112 = por %p110, %p111
      %p113 = scmp.ne.s32.totalorder %s99, %s100
      %p114 = scmp.eq.s32.totalorder %s24, 2
      %p115 = por %p113, %p114
      %p117 = scmp.ne.s32.totalorder %s100, %s116
      %p118 = scmp.eq.s32.totalorder %s24, 0
      %p119 = por %p117, %p118
      %s120 = ssub.s32 %s18, %s25
      %p121 = scmp.eq.s32.totalorder %s120, 0
      %s123 = sadd.s32 %s122, 1
      %s124 = scalar_select %p121, %s122, %s123
      %p127 = pneg %p121
      %p128 = scmp.eq.s32.totalorder %s18, 2
      %p129 = por %p127, %p128
      %p130 = scmp.ne.s32.totalorder %s122, %s125
      %p131 = scmp.eq.s32.totalorder %s18, 0
      %p132 = por %p130, %p131
      %p133 = scmp.ne.s32.totalorder %s122, %s125
      %p134 = scmp.eq.s32.totalorder %s23, 2
      %p135 = por %p133, %p134
      %p136 = scmp.ne.s32.totalorder %s125, %s126
      %p137 = scmp.eq.s32.totalorder %s23, 0
      %p138 = por %p136, %p137
      %p139 = scmp.ne.s32.totalorder %s125, %s126
      %p140 = scmp.eq.s32.totalorder %s24, 2
      %p141 = por %p139, %p140
      %p143 = scmp.ne.s32.totalorder %s126, %s142
      %p144 = scmp.eq.s32.totalorder %s24, 0
      %p145 = por %p143, %p144
      %s146 = ssub.s32 %s18, %s25
      %p147 = scmp.eq.s32.totalorder %s146, 0
      %s149 = sadd.s32 %s148, 1
      %s150 = scalar_select %p147, %s148, %s149
      %p153 = pneg %p147
      %p154 = scmp.eq.s32.totalorder %s18, 2
      %p155 = por %p153, %p154
      %p156 = scmp.ne.s32.totalorder %s148, %s151
      %p157 = scmp.eq.s32.totalorder %s18, 0
      %p158 = por %p156, %p157
      %p159 = scmp.ne.s32.totalorder %s148, %s151
      %p160 = scmp.eq.s32.totalorder %s23, 2
      %p161 = por %p159, %p160
      %p162 = scmp.ne.s32.totalorder %s151, %s152
      %p163 = scmp.eq.s32.totalorder %s23, 0
      %p164 = por %p162, %p163
      %p165 = scmp.ne.s32.totalorder %s151, %s152
      %p166 = scmp.eq.s32.totalorder %s24, 2
      %p167 = por %p165, %p166
      %p169 = scmp.ne.s32.totalorder %s152, %s168
      %p170 = scmp.eq.s32.totalorder %s24, 0
      %p171 = por %p169, %p170
      %s172 = ssub.s32 %s18, %s25
      %p173 = scmp.eq.s32.totalorder %s172, 0
      %s175 = sadd.s32 %s174, 1
      %s176 = scalar_select %p173, %s174, %s175
      %p179 = pneg %p173
      %p180 = scmp.eq.s32.totalorder %s18, 2
      %p181 = por %p179, %p180
      %p182 = scmp.ne.s32.totalorder %s174, %s177
      %p183 = scmp.eq.s32.totalorder %s18, 0
      %p184 = por %p182, %p183
      %p185 = scmp.ne.s32.totalorder %s174, %s177
      %p186 = scmp.eq.s32.totalorder %s23, 2
      %p187 = por %p185, %p186
      %p188 = scmp.ne.s32.totalorder %s177, %s178
      %p189 = scmp.eq.s32.totalorder %s23, 0
      %p190 = por %p188, %p189
      %p191 = scmp.ne.s32.totalorder %s177, %s178
      %p192 = scmp.eq.s32.totalorder %s24, 2
      %p193 = por %p191, %p192
      %p195 = scmp.ne.s32.totalorder %s178, %s194
      %p196 = scmp.eq.s32.totalorder %s24, 0
      %p197 = por %p195, %p196
      %s198 = ssub.s32 %s18, %s25
      %p199 = scmp.eq.s32.totalorder %s198, 0
      %s201 = sadd.s32 %s200, 1
      %s202 = scalar_select %p199, %s200, %s201
      %p205 = pneg %p199
      %p206 = scmp.eq.s32.totalorder %s18, 2
      %p207 = por %p205, %p206
      %p208 = scmp.ne.s32.totalorder %s200, %s203
      %p209 = scmp.eq.s32.totalorder %s18, 0
      %p210 = por %p208, %p209
      %p211 = scmp.ne.s32.totalorder %s200, %s203
      %p212 = scmp.eq.s32.totalorder %s23, 2
      %p213 = por %p211, %p212
      %p214 = scmp.ne.s32.totalorder %s203, %s204
      %p215 = scmp.eq.s32.totalorder %s23, 0
      %p216 = por %p214, %p215
      %p217 = scmp.ne.s32.totalorder %s203, %s204
      %p218 = scmp.eq.s32.totalorder %s24, 2
      %p219 = por %p217, %p218
      %p221 = scmp.ne.s32.totalorder %s204, %s220
      %p222 = scmp.eq.s32.totalorder %s24, 0
      %p223 = por %p221, %p222
      %s225 = sadd.s32 %s224, 1
      %p228 = scmp.eq.s32.totalorder %s18, 2
      %p229 = scmp.ne.s32.totalorder %s224, %s226
      %p230 = scmp.eq.s32.totalorder %s18, 0
      %p231 = por %p229, %p230
      %p232 = scmp.ne.s32.totalorder %s224, %s226
      %p233 = scmp.eq.s32.totalorder %s23, 2
      %p234 = por %p232, %p233
      %p235 = scmp.ne.s32.totalorder %s226, %s227
      %p236 = scmp.eq.s32.totalorder %s23, 0
      %p237 = por %p235, %p236
      %p238 = scmp.ne.s32.totalorder %s226, %s227
      %p239 = scmp.eq.s32.totalorder %s24, 2
      %p240 = por %p238, %p239
      %p242 = scmp.ne.s32.totalorder %s227, %s241
      %p243 = scmp.eq.s32.totalorder %s24, 0
      %p244 = por %p242, %p243
      %s246 = sadd.s32 %s245, 1
      %p249 = scmp.eq.s32.totalorder %s18, 2
      %p250 = scmp.ne.s32.totalorder %s245, %s247
      %p251 = scmp.eq.s32.totalorder %s18, 0
      %p252 = por %p250, %p251
      %p253 = scmp.ne.s32.totalorder %s245, %s247
      %p254 = scmp.eq.s32.totalorder %s23, 2
      %p255 = por %p253, %p254
      %p256 = scmp.ne.s32.totalorder %s247, %s248
      %p257 = scmp.eq.s32.totalorder %s23, 0
      %p258 = por %p256, %p257
      %p259 = scmp.ne.s32.totalorder %s247, %s248
      %p260 = scmp.eq.s32.totalorder %s24, 2
      %p261 = por %p259, %p260
      %p263 = scmp.ne.s32.totalorder %s248, %s262
      %p264 = scmp.eq.s32.totalorder %s24, 0
      %p265 = por %p263, %p264
      %p266 = scmp.le.s32.totalorder 1, %s18
      %p267 = scmp.lt.s32.totalorder %s18, 4
      %p268 = pnand %p266, %p267
      %p269 = pneg %p268
      // Predicated region
      $region9: #{tpu_custom_call.1} parent=5 // pred_check
        _
      $region10: #{tpu_custom_call.1} parent=5 // pred_check_branch
        %271 = sbr.rel (%p268) target = $region12
      $region11: #{tpu_custom_call.1} parent=5 // pred_region
        %s272 = ssub.s32 %s18, 1
        // Predicated region
        $region13: #{tpu_custom_call.1} parent=11 // pred_check
          %p273 = pneg %p39
        $region14: #{tpu_custom_call.1} parent=11 // pred_check_branch
          %275 = sbr.rel (%p273) target = $region16
        $region15: #{tpu_custom_call.1} parent=11 // pred_region
          %s277 = ssub.s32 64, 64
          %278 = vsyncadd [#allocation3], %s277
          %s280 = sshll.u32 [#allocation2], 4
          %s281 = int_to_ptr.vmem [resolvable:$true] %s280
          %283 = dma.hbm_to_vmem [thread:$0]  %s0, 64, %s281, [#allocation3]
        $region16: #{tpu_custom_call.1} parent=11 // pred_fallthru
          _
        // Predicated region
        $region17: #{tpu_custom_call.1} parent=11 // pred_check
          %p284 = pneg %p60
        $region18: #{tpu_custom_call.1} parent=11 // pred_check_branch
          %286 = sbr.rel (%p284) target = $region20
        $region19: #{tpu_custom_call.1} parent=11 // pred_region
          %s288 = ssub.s32 512, 512
          %289 = vsyncadd [#allocation6], %s288
          %s291 = sshll.u32 [#allocation5], 4
          %s292 = int_to_ptr.vmem [resolvable:$true] %s291
          %294 = dma.hbm_to_vmem [thread:$0]  %s1, 512, %s292, [#allocation6]
        $region20: #{tpu_custom_call.1} parent=11 // pred_fallthru
          _
        // Predicated region
        $region21: #{tpu_custom_call.1} parent=11 // pred_check
          %p295 = pneg %p237
        $region22: #{tpu_custom_call.1} parent=11 // pred_check_branch
          %297 = sbr.rel (%p295) target = $region24
        $region23: #{tpu_custom_call.1} parent=11 // pred_region
          %s299 = ssub.s32 192, 192
          %300 = vsyncadd [#allocation6], %s299
          %s302 = sshll.u32 [#allocation13], 4
          %s303 = int_to_ptr.vmem [resolvable:$true] %s302
          %305 = dma.hbm_to_vmem [thread:$0]  %s8, 192, %s303, [#allocation6]
        $region24: #{tpu_custom_call.1} parent=11 // pred_fallthru
          _
      $region12: #{tpu_custom_call.1} parent=5 // pred_fallthru
        _
      %p306 = scmp.lt.s32.totalorder %s18, 3
      // Predicated region
      $region25: #{tpu_custom_call.1} parent=5 // pred_check
        %p307 = pneg %p306
      $region26: #{tpu_custom_call.1} parent=5 // pred_check_branch
        %309 = sbr.rel (%p307) target = $region28
      $region27: #{tpu_custom_call.1} parent=5 // pred_region
        // Predicated region
        $region29: #{tpu_custom_call.1} parent=27 // pred_check
          %p310 = pneg %p80
        $region30: #{tpu_custom_call.1} parent=27 // pred_check_branch
          %312 = sbr.rel (%p310) target = $region32
        $region31: #{tpu_custom_call.1} parent=27 // pred_region
          %s313 = sand.u32 %s18, 1
          %s314 = scalar_lea.sflag [#allocation3], %s313
          %s315 = sand.u32 %s70, 1
          %s316 = smul.addr %s315, 1024
          %s317 = scalar_lea.vmem [#allocation7], %s316
          %s318 = smul.u32 4, %s18
          %s320 = ssub.s32 16384, 16384
          %321 = vsyncadd %s314, %s320
          %s322 = smul.addr %s318, 128
          %s323 = scalar_lea.hbm %s2, %s322
          %s324 = sshll.u32 %s317, 4
          %s325 = int_to_ptr.vmem [resolvable:$true] %s324
          %330 = dma.hbm_to_vmem [thread:$0]  %s323, 16384, %s325, %s314, 1536, 512, 32
        $region32: #{tpu_custom_call.1} parent=27 // pred_fallthru
          _
        // Predicated region
        $region33: #{tpu_custom_call.1} parent=27 // pred_check
          %p331 = pneg %p106
        $region34: #{tpu_custom_call.1} parent=27 // pred_check_branch
          %333 = sbr.rel (%p331) target = $region36
        $region35: #{tpu_custom_call.1} parent=27 // pred_region
          %s334 = sand.u32 %s18, 1
          %s335 = scalar_lea.sflag [#allocation3], %s334
          %s336 = sand.u32 %s96, 1
          %s337 = smul.addr %s336, 4
          %s338 = scalar_lea.vmem [#allocation8], %s337
          %s339 = smul.u32 4, %s18
          %s341 = ssub.s32 64, 64
          %342 = vsyncadd %s335, %s341
          %s343 = smul.addr %s339, 16
          %s344 = scalar_lea.hbm %s3, %s343
          %s346 = sshll.u32 %s338, 4
          %s347 = int_to_ptr.vmem [resolvable:$true] %s346
          %349 = dma.hbm_to_vmem [thread:$0]  %s344, 64, %s347, %s335
        $region36: #{tpu_custom_call.1} parent=27 // pred_fallthru
          _
        // Predicated region
        $region37: #{tpu_custom_call.1} parent=27 // pred_check
          %p350 = pneg %p132
        $region38: #{tpu_custom_call.1} parent=27 // pred_check_branch
          %352 = sbr.rel (%p350) target = $region40
        $region39: #{tpu_custom_call.1} parent=27 // pred_region
          %s353 = sand.u32 %s18, 1
          %s354 = scalar_lea.sflag [#allocation3], %s353
          %s355 = sand.u32 %s122, 1
          %s356 = smul.addr %s355, 8192
          %s357 = scalar_lea.vmem [#allocation9], %s356
          %s358 = smul.u32 4, %s18
          %s360 = ssub.s32 131072, 131072
          %361 = vsyncadd %s354, %s360
          %s362 = smul.addr %s358, 128
          %s363 = scalar_lea.hbm %s4, %s362
          %s364 = sshll.u32 %s357, 4
          %s365 = int_to_ptr.vmem [resolvable:$true] %s364
          %370 = dma.hbm_to_vmem [thread:$0]  %s363, 131072, %s365, %s354, 1536, 512, 32
        $region40: #{tpu_custom_call.1} parent=27 // pred_fallthru
          _
        // Predicated region
        $region41: #{tpu_custom_call.1} parent=27 // pred_check
          %p371 = pneg %p158
        $region42: #{tpu_custom_call.1} parent=27 // pred_check_branch
          %373 = sbr.rel (%p371) target = $region44
        $region43: #{tpu_custom_call.1} parent=27 // pred_region
          %s374 = sand.u32 %s18, 1
          %s375 = scalar_lea.sflag [#allocation3], %s374
          %s376 = sand.u32 %s148, 1
          %s377 = smul.addr %s376, 4
          %s378 = scalar_lea.vmem [#allocation10], %s377
          %s379 = smul.u32 4, %s18
          %s381 = ssub.s32 64, 64
          %382 = vsyncadd %s375, %s381
          %s383 = smul.addr %s379, 16
          %s384 = scalar_lea.hbm %s5, %s383
          %s386 = sshll.u32 %s378, 4
          %s387 = int_to_ptr.vmem [resolvable:$true] %s386
          %389 = dma.hbm_to_vmem [thread:$0]  %s384, 64, %s387, %s375
        $region44: #{tpu_custom_call.1} parent=27 // pred_fallthru
          _
        // Predicated region
        $region45: #{tpu_custom_call.1} parent=27 // pred_check
          %p390 = pneg %p184
        $region46: #{tpu_custom_call.1} parent=27 // pred_check_branch
          %392 = sbr.rel (%p390) target = $region48
        $region47: #{tpu_custom_call.1} parent=27 // pred_region
          %s393 = sand.u32 %s18, 1
          %s394 = scalar_lea.sflag [#allocation3], %s393
          %s395 = sand.u32 %s174, 1
          %s396 = smul.addr %s395, 6144
          %s397 = scalar_lea.vmem [#allocation11], %s396
          %s398 = smul.u32 64, %s18
          %s400 = ssub.s32 98304, 98304
          %401 = vsyncadd %s394, %s400
          %s402 = smul.addr %s398, 12
          %s403 = smul.addr %s402, 128
          %s404 = scalar_lea.hbm %s6, %s403
          %s405 = sshll.u32 %s397, 4
          %s406 = int_to_ptr.vmem [resolvable:$true] %s405
          %411 = dma.hbm_to_vmem [thread:$0]  %s404, 98304, %s406, %s394, 1536, 1536, 96
        $region48: #{tpu_custom_call.1} parent=27 // pred_fallthru
          _
        // Predicated region
        $region49: #{tpu_custom_call.1} parent=27 // pred_check
          %p412 = pneg %p210
        $region50: #{tpu_custom_call.1} parent=27 // pred_check_branch
          %414 = sbr.rel (%p412) target = $region52
        $region51: #{tpu_custom_call.1} parent=27 // pred_region
          %s415 = sand.u32 %s18, 1
          %s416 = scalar_lea.sflag [#allocation3], %s415
          %s417 = sand.u32 %s200, 1
          %s418 = smul.addr %s417, 6144
          %s419 = scalar_lea.vmem [#allocation12], %s418
          %s420 = smul.u32 64, %s18
          %s422 = ssub.s32 98304, 98304
          %423 = vsyncadd %s416, %s422
          %s424 = smul.addr %s420, 12
          %s425 = smul.addr %s424, 128
          %s426 = scalar_lea.hbm %s7, %s425
          %s427 = sshll.u32 %s419, 4
          %s428 = int_to_ptr.vmem [resolvable:$true] %s427
          %433 = dma.hbm_to_vmem [thread:$0]  %s426, 98304, %s428, %s416, 1536, 1536, 96
        $region52: #{tpu_custom_call.1} parent=27 // pred_fallthru
          _
      $region28: #{tpu_custom_call.1} parent=5 // pred_fallthru
        _
      %p434 = scmp.le.s32.totalorder 1, %s18
      %p435 = scmp.lt.s32.totalorder %s18, 4
      %p436 = pnand %p434, %p435
      %p437 = pneg %p436
      // Predicated region
      $region53: #{tpu_custom_call.1} parent=5 // pred_check
        _
      $region54: #{tpu_custom_call.1} parent=5 // pred_check_branch
        %439 = sbr.rel (%p436) target = $region56
      $region55: #{tpu_custom_call.1} parent=5 // pred_region
        %s440 = ssub.s32 %s18, 1
        // Predicated region
        $region57: #{tpu_custom_call.1} parent=55 // pred_check
          %p441 = pneg %p39
        $region58: #{tpu_custom_call.1} parent=55 // pred_check_branch
          %443 = sbr.rel (%p441) target = $region60
        $region59: #{tpu_custom_call.1} parent=55 // pred_region
          %444 = dma.done [#allocation3], 64
        $region60: #{tpu_custom_call.1} parent=55 // pred_fallthru
          _
        // Predicated region
        $region61: #{tpu_custom_call.1} parent=55 // pred_check
          %p445 = pneg %p60
        $region62: #{tpu_custom_call.1} parent=55 // pred_check_branch
          %447 = sbr.rel (%p445) target = $region64
        $region63: #{tpu_custom_call.1} parent=55 // pred_region
          %448 = dma.done [#allocation6], 512
        $region64: #{tpu_custom_call.1} parent=55 // pred_fallthru
          _
        %s449 = sand.u32 %s23, 1
        %s450 = scalar_lea.sflag [#allocation3], %s449
        %s451 = sand.u32 %s73, 1
        %s452 = smul.addr %s451, 1024
        %s453 = scalar_lea.vmem [#allocation7], %s452
        // Predicated region
        $region65: #{tpu_custom_call.1} parent=55 // pred_check
          %p454 = pneg %p86
        $region66: #{tpu_custom_call.1} parent=55 // pred_check_branch
          %456 = sbr.rel (%p454) target = $region68
        $region67: #{tpu_custom_call.1} parent=55 // pred_region
          %457 = dma.done %s450, 16384
        $region68: #{tpu_custom_call.1} parent=55 // pred_fallthru
          _
        %s458 = sand.u32 %s23, 1
        %s459 = scalar_lea.sflag [#allocation3], %s458
        %s460 = sand.u32 %s99, 1
        %s461 = smul.addr %s460, 4
        %s462 = scalar_lea.vmem [#allocation8], %s461
        // Predicated region
        $region69: #{tpu_custom_call.1} parent=55 // pred_check
          %p463 = pneg %p112
        $region70: #{tpu_custom_call.1} parent=55 // pred_check_branch
          %465 = sbr.rel (%p463) target = $region72
        $region71: #{tpu_custom_call.1} parent=55 // pred_region
          %466 = dma.done %s459, 64
        $region72: #{tpu_custom_call.1} parent=55 // pred_fallthru
          _
        %s467 = sand.u32 %s23, 1
        %s468 = scalar_lea.sflag [#allocation3], %s467
        %s469 = sand.u32 %s125, 1
        %s470 = smul.addr %s469, 8192
        %s471 = scalar_lea.vmem [#allocation9], %s470
        // Predicated region
        $region73: #{tpu_custom_call.1} parent=55 // pred_check
          %p472 = pneg %p138
        $region74: #{tpu_custom_call.1} parent=55 // pred_check_branch
          %474 = sbr.rel (%p472) target = $region76
        $region75: #{tpu_custom_call.1} parent=55 // pred_region
          %475 = dma.done %s468, 131072
        $region76: #{tpu_custom_call.1} parent=55 // pred_fallthru
          _
        %s476 = sand.u32 %s23, 1
        %s477 = scalar_lea.sflag [#allocation3], %s476
        %s478 = sand.u32 %s151, 1
        %s479 = smul.addr %s478, 4
        %s480 = scalar_lea.vmem [#allocation10], %s479
        // Predicated region
        $region77: #{tpu_custom_call.1} parent=55 // pred_check
          %p481 = pneg %p164
        $region78: #{tpu_custom_call.1} parent=55 // pred_check_branch
          %483 = sbr.rel (%p481) target = $region80
        $region79: #{tpu_custom_call.1} parent=55 // pred_region
          %484 = dma.done %s477, 64
        $region80: #{tpu_custom_call.1} parent=55 // pred_fallthru
          _
        %s485 = sand.u32 %s23, 1
        %s486 = scalar_lea.sflag [#allocation3], %s485
        %s487 = sand.u32 %s177, 1
        %s488 = smul.addr %s487, 6144
        %s489 = scalar_lea.vmem [#allocation11], %s488
        // Predicated region
        $region81: #{tpu_custom_call.1} parent=55 // pred_check
          %p490 = pneg %p190
        $region82: #{tpu_custom_call.1} parent=55 // pred_check_branch
          %492 = sbr.rel (%p490) target = $region84
        $region83: #{tpu_custom_call.1} parent=55 // pred_region
          %493 = dma.done %s486, 98304
        $region84: #{tpu_custom_call.1} parent=55 // pred_fallthru
          _
        %s494 = sand.u32 %s23, 1
        %s495 = scalar_lea.sflag [#allocation3], %s494
        %s496 = sand.u32 %s203, 1
        %s497 = smul.addr %s496, 6144
        %s498 = scalar_lea.vmem [#allocation12], %s497
        // Predicated region
        $region85: #{tpu_custom_call.1} parent=55 // pred_check
          %p499 = pneg %p216
        $region86: #{tpu_custom_call.1} parent=55 // pred_check_branch
          %501 = sbr.rel (%p499) target = $region88
        $region87: #{tpu_custom_call.1} parent=55 // pred_region
          %502 = dma.done %s495, 98304
        $region88: #{tpu_custom_call.1} parent=55 // pred_fallthru
          _
        // Predicated region
        $region89: #{tpu_custom_call.1} parent=55 // pred_check
          %p503 = pneg %p237
        $region90: #{tpu_custom_call.1} parent=55 // pred_check_branch
          %505 = sbr.rel (%p503) target = $region92
        $region91: #{tpu_custom_call.1} parent=55 // pred_region
          %506 = dma.done [#allocation6], 192
        $region92: #{tpu_custom_call.1} parent=55 // pred_fallthru
          _
        %p507 = pneg %p39
        %p508 = pneg %p36
        %p509 = pneg %p60
        %p510 = pneg %p57
        %s511 = sand.u32 %s23, 1
        %s512 = scalar_lea.sflag [#allocation3], %s511
        %s513 = sand.u32 %s73, 1
        %s514 = smul.addr %s513, 1024
        %s515 = scalar_lea.vmem [#allocation7], %s514
        %p516 = pneg %p86
        %p517 = pneg %p83
        %s518 = sand.u32 %s23, 1
        %s519 = scalar_lea.sflag [#allocation3], %s518
        %s520 = sand.u32 %s99, 1
        %s521 = smul.addr %s520, 4
        %s522 = scalar_lea.vmem [#allocation8], %s521
        %p523 = pneg %p112
        %p524 = pneg %p109
        %s525 = sand.u32 %s23, 1
        %s526 = scalar_lea.sflag [#allocation3], %s525
        %s527 = sand.u32 %s125, 1
        %s528 = smul.addr %s527, 8192
        %s529 = scalar_lea.vmem [#allocation9], %s528
        %p530 = pneg %p138
        %p531 = pneg %p135
        %s532 = sand.u32 %s23, 1
        %s533 = scalar_lea.sflag [#allocation3], %s532
        %s534 = sand.u32 %s151, 1
        %s535 = smul.addr %s534, 4
        %s536 = scalar_lea.vmem [#allocation10], %s535
        %p537 = pneg %p164
        %p538 = pneg %p161
        %s539 = sand.u32 %s23, 1
        %s540 = scalar_lea.sflag [#allocation3], %s539
        %s541 = sand.u32 %s177, 1
        %s542 = smul.addr %s541, 6144
        %s543 = scalar_lea.vmem [#allocation11], %s542
        %p544 = pneg %p190
        %p545 = pneg %p187
        %s546 = sand.u32 %s23, 1
        %s547 = scalar_lea.sflag [#allocation3], %s546
        %s548 = sand.u32 %s203, 1
        %s549 = smul.addr %s548, 6144
        %s550 = scalar_lea.vmem [#allocation12], %s549
        %p551 = pneg %p216
        %p552 = pneg %p213
        %p553 = pneg %p237
        %p554 = pneg %p234
        %p555 = pneg %p258
        %p556 = pneg %p255
        %s557 = smul.u32 4, %s23
        %s558 = smul.u32 4, %s23
        %s559 = smul.u32 4, %s23
        %s560 = smul.u32 4, %s23
        %s561 = smul.u32 64, %s23
        %s562 = smul.u32 64, %s23
        %v563 = vld [vmem:[#allocation2] sm:$0xf]
        %v564 = vld [vmem:[%s453] sm:$0xff]
        %v565 = vld [vmem:[%s453 + $0x8] sm:$0xff]
        %v566 = vld [vmem:[%s453 + $0x10] sm:$0xff]
        %v567 = vld [vmem:[%s453 + $0x18] sm:$0xff]
        %v568 = vld [vmem:[%s453 + $0x20] sm:$0xff]
        %v569 = vld [vmem:[%s453 + $0x28] sm:$0xff]
        %v570 = vld [vmem:[%s453 + $0x30] sm:$0xff]
        %v571 = vld [vmem:[%s453 + $0x38] sm:$0xff]
        %v572 = vld [vmem:[%s453 + $0x40] sm:$0xff]
        %v573 = vld [vmem:[%s453 + $0x48] sm:$0xff]
        %v574 = vld [vmem:[%s453 + $0x50] sm:$0xff]
        %v575 = vld [vmem:[%s453 + $0x58] sm:$0xff]
        %v576 = vld [vmem:[%s453 + $0x60] sm:$0xff]
        %v577 = vld [vmem:[%s453 + $0x68] sm:$0xff]
        %v578 = vld [vmem:[%s453 + $0x70] sm:$0xff]
        %v579 = vld [vmem:[%s453 + $0x78] sm:$0xff]
        %v580 = vld [vmem:[%s453 + $0x80] sm:$0xff]
        %v581 = vld [vmem:[%s453 + $0x88] sm:$0xff]
        %v582 = vld [vmem:[%s453 + $0x90] sm:$0xff]
        %v583 = vld [vmem:[%s453 + $0x98] sm:$0xff]
        %v584 = vld [vmem:[%s453 + $0xa0] sm:$0xff]
        %v585 = vld [vmem:[%s453 + $0xa8] sm:$0xff]
        %v586 = vld [vmem:[%s453 + $0xb0] sm:$0xff]
        %v587 = vld [vmem:[%s453 + $0xb8] sm:$0xff]
        %v588 = vld [vmem:[%s453 + $0xc0] sm:$0xff]
        %v589 = vld [vmem:[%s453 + $0xc8] sm:$0xff]
        %v590 = vld [vmem:[%s453 + $0xd0] sm:$0xff]
        %v591 = vld [vmem:[%s453 + $0xd8] sm:$0xff]
        %v592 = vld [vmem:[%s453 + $0xe0] sm:$0xff]
        %v593 = vld [vmem:[%s453 + $0xe8] sm:$0xff]
        %v594 = vld [vmem:[%s453 + $0xf0] sm:$0xff]
        %v595 = vld [vmem:[%s453 + $0xf8] sm:$0xff]
        %v596 = vld [vmem:[%s453 + $0x100] sm:$0xff]
        %v597 = vld [vmem:[%s453 + $0x108] sm:$0xff]
        %v598 = vld [vmem:[%s453 + $0x110] sm:$0xff]
        %v599 = vld [vmem:[%s453 + $0x118] sm:$0xff]
        %v600 = vld [vmem:[%s453 + $0x120] sm:$0xff]
        %v601 = vld [vmem:[%s453 + $0x128] sm:$0xff]
        %v602 = vld [vmem:[%s453 + $0x130] sm:$0xff]
        %v603 = vld [vmem:[%s453 + $0x138] sm:$0xff]
        %v604 = vld [vmem:[%s453 + $0x140] sm:$0xff]
        %v605 = vld [vmem:[%s453 + $0x148] sm:$0xff]
        %v606 = vld [vmem:[%s453 + $0x150] sm:$0xff]
        %v607 = vld [vmem:[%s453 + $0x158] sm:$0xff]
        %v608 = vld [vmem:[%s453 + $0x160] sm:$0xff]
        %v609 = vld [vmem:[%s453 + $0x168] sm:$0xff]
        %v610 = vld [vmem:[%s453 + $0x170] sm:$0xff]
        %v611 = vld [vmem:[%s453 + $0x178] sm:$0xff]
        %v612 = vld [vmem:[%s453 + $0x180] sm:$0xff]
        %v613 = vld [vmem:[%s453 + $0x188] sm:$0xff]
        %v614 = vld [vmem:[%s453 + $0x190] sm:$0xff]
        %v615 = vld [vmem:[%s453 + $0x198] sm:$0xff]
        %v616 = vld [vmem:[%s453 + $0x1a0] sm:$0xff]
        %v617 = vld [vmem:[%s453 + $0x1a8] sm:$0xff]
        %v618 = vld [vmem:[%s453 + $0x1b0] sm:$0xff]
        %v619 = vld [vmem:[%s453 + $0x1b8] sm:$0xff]
        %v620 = vld [vmem:[%s453 + $0x1c0] sm:$0xff]
        %v621 = vld [vmem:[%s453 + $0x1c8] sm:$0xff]
        %v622 = vld [vmem:[%s453 + $0x1d0] sm:$0xff]
        %v623 = vld [vmem:[%s453 + $0x1d8] sm:$0xff]
        %v624 = vld [vmem:[%s453 + $0x1e0] sm:$0xff]
        %v625 = vld [vmem:[%s453 + $0x1e8] sm:$0xff]
        %v626 = vld [vmem:[%s453 + $0x1f0] sm:$0xff]
        %v627 = vld [vmem:[%s453 + $0x1f8] sm:$0xff]
        %v628 = vld [vmem:[%s453 + $0x200] sm:$0xff]
        %v629 = vld [vmem:[%s453 + $0x208] sm:$0xff]
        %v630 = vld [vmem:[%s453 + $0x210] sm:$0xff]
        %v631 = vld [vmem:[%s453 + $0x218] sm:$0xff]
        %v632 = vld [vmem:[%s453 + $0x220] sm:$0xff]
        %v633 = vld [vmem:[%s453 + $0x228] sm:$0xff]
        %v634 = vld [vmem:[%s453 + $0x230] sm:$0xff]
        %v635 = vld [vmem:[%s453 + $0x238] sm:$0xff]
        %v636 = vld [vmem:[%s453 + $0x240] sm:$0xff]
        %v637 = vld [vmem:[%s453 + $0x248] sm:$0xff]
        %v638 = vld [vmem:[%s453 + $0x250] sm:$0xff]
        %v639 = vld [vmem:[%s453 + $0x258] sm:$0xff]
        %v640 = vld [vmem:[%s453 + $0x260] sm:$0xff]
        %v641 = vld [vmem:[%s453 + $0x268] sm:$0xff]
        %v642 = vld [vmem:[%s453 + $0x270] sm:$0xff]
        %v643 = vld [vmem:[%s453 + $0x278] sm:$0xff]
        %v644 = vld [vmem:[%s453 + $0x280] sm:$0xff]
        %v645 = vld [vmem:[%s453 + $0x288] sm:$0xff]
        %v646 = vld [vmem:[%s453 + $0x290] sm:$0xff]
        %v647 = vld [vmem:[%s453 + $0x298] sm:$0xff]
        %v648 = vld [vmem:[%s453 + $0x2a0] sm:$0xff]
        %v649 = vld [vmem:[%s453 + $0x2a8] sm:$0xff]
        %v650 = vld [vmem:[%s453 + $0x2b0] sm:$0xff]
        %v651 = vld [vmem:[%s453 + $0x2b8] sm:$0xff]
        %v652 = vld [vmem:[%s453 + $0x2c0] sm:$0xff]
        %v653 = vld [vmem:[%s453 + $0x2c8] sm:$0xff]
        %v654 = vld [vmem:[%s453 + $0x2d0] sm:$0xff]
        %v655 = vld [vmem:[%s453 + $0x2d8] sm:$0xff]
        %v656 = vld [vmem:[%s453 + $0x2e0] sm:$0xff]
        %v657 = vld [vmem:[%s453 + $0x2e8] sm:$0xff]
        %v658 = vld [vmem:[%s453 + $0x2f0] sm:$0xff]
        %v659 = vld [vmem:[%s453 + $0x2f8] sm:$0xff]
        %v660 = vld [vmem:[%s453 + $0x300] sm:$0xff]
        %v661 = vld [vmem:[%s453 + $0x308] sm:$0xff]
        %v662 = vld [vmem:[%s453 + $0x310] sm:$0xff]
        %v663 = vld [vmem:[%s453 + $0x318] sm:$0xff]
        %v664 = vld [vmem:[%s453 + $0x320] sm:$0xff]
        %v665 = vld [vmem:[%s453 + $0x328] sm:$0xff]
        %v666 = vld [vmem:[%s453 + $0x330] sm:$0xff]
        %v667 = vld [vmem:[%s453 + $0x338] sm:$0xff]
        %v668 = vld [vmem:[%s453 + $0x340] sm:$0xff]
        %v669 = vld [vmem:[%s453 + $0x348] sm:$0xff]
        %v670 = vld [vmem:[%s453 + $0x350] sm:$0xff]
        %v671 = vld [vmem:[%s453 + $0x358] sm:$0xff]
        %v672 = vld [vmem:[%s453 + $0x360] sm:$0xff]
        %v673 = vld [vmem:[%s453 + $0x368] sm:$0xff]
        %v674 = vld [vmem:[%s453 + $0x370] sm:$0xff]
        %v675 = vld [vmem:[%s453 + $0x378] sm:$0xff]
        %v676 = vld [vmem:[%s453 + $0x380] sm:$0xff]
        %v677 = vld [vmem:[%s453 + $0x388] sm:$0xff]
        %v678 = vld [vmem:[%s453 + $0x390] sm:$0xff]
        %v679 = vld [vmem:[%s453 + $0x398] sm:$0xff]
        %v680 = vld [vmem:[%s453 + $0x3a0] sm:$0xff]
        %v681 = vld [vmem:[%s453 + $0x3a8] sm:$0xff]
        %v682 = vld [vmem:[%s453 + $0x3b0] sm:$0xff]
        %v683 = vld [vmem:[%s453 + $0x3b8] sm:$0xff]
        %v684 = vld [vmem:[%s453 + $0x3c0] sm:$0xff]
        %v685 = vld [vmem:[%s453 + $0x3c8] sm:$0xff]
        %v686 = vld [vmem:[%s453 + $0x3d0] sm:$0xff]
        %v687 = vld [vmem:[%s453 + $0x3d8] sm:$0xff]
        %v688 = vld [vmem:[%s453 + $0x3e0] sm:$0xff]
        %v689 = vld [vmem:[%s453 + $0x3e8] sm:$0xff]
        %v690 = vld [vmem:[%s453 + $0x3f0] sm:$0xff]
        %v691 = vld [vmem:[%s453 + $0x3f8] sm:$0xff]
        %v692 = vld [vmem:[%s462] sm:$0xf]
        %v694 = vlaneseq
        %v695 = vshrl.u32 %v694, 7
        %v696 = vsub.s32 0, %v695
        %v697 = vrot.slane %v692, %v696
        %v698 = vlaneseq
        %v699 = vshrl.u32 %v698, 7
        %v700 = vsub.s32 1, %v699
        %v701 = vrot.slane %v692, %v700
        %v702 = vlaneseq
        %v703 = vshrl.u32 %v702, 7
        %v704 = vsub.s32 2, %v703
        %v705 = vrot.slane %v692, %v704
        %v706 = vlaneseq
        %v707 = vshrl.u32 %v706, 7
        %v708 = vsub.s32 3, %v707
        %v709 = vrot.slane %v692, %v708
        %v716 = vunpack.c.l.s4 1983009808
        %v717 = vunpack.c.0.s8 %v716
        %v718 = vlaneseq
        %v719 = vshrl.u32 %v718, 7
        %v720 = vsub.s32 %v717, %v719
        %v721 = vrot.slane %v563, %v720
        %v722 = vcombine.high %v721, %v721
        %725 = vmatprep.subr.mxu0 %v565
        %726 = vmatpush1.msra.mxu0 %v564
        %727 = vmatprep.subr.mxu0 %v569
        %728 = vmatpush1.msra.mxu0 %v568
        %729 = vmatprep.subr.mxu0 %v573
        %730 = vmatpush1.msra.mxu0 %v572
        %731 = vmatprep.subr.mxu0 %v577
        %732 = vmatpush1.msra.mxu0 %v576
        %733 = vmatprep.subr.mxu0 %v581
        %734 = vmatpush1.msra.mxu0 %v580
        %735 = vmatprep.subr.mxu0 %v585
        %736 = vmatpush1.msra.mxu0 %v584
        %737 = vmatprep.subr.mxu0 %v589
        %738 = vmatpush1.msra.mxu0 %v588
        %739 = vmatprep.subr.mxu0 %v593
        %740 = vmatpush1.msra.mxu0 %v592
        %741 = vmatprep.subr.mxu0 %v597
        %742 = vmatpush1.msra.mxu0 %v596
        %743 = vmatprep.subr.mxu0 %v601
        %744 = vmatpush1.msra.mxu0 %v600
        %745 = vmatprep.subr.mxu0 %v605
        %746 = vmatpush1.msra.mxu0 %v604
        %747 = vmatprep.subr.mxu0 %v609
        %748 = vmatpush1.msra.mxu0 %v608
        %749 = vmatprep.subr.mxu0 %v613
        %750 = vmatpush1.msra.mxu0 %v612
        %751 = vmatprep.subr.mxu0 %v617
        %752 = vmatpush1.msra.mxu0 %v616
        %753 = vmatprep.subr.mxu0 %v621
        %754 = vmatpush1.msra.mxu0 %v620
        %755 = vmatprep.subr.mxu0 %v625
        %756 = vmatpush1.msra.mxu0 %v624
        %757 = vmatprep.subr.mxu0 %v629
        %758 = vmatpush1.msra.mxu0 %v628
        %759 = vmatprep.subr.mxu0 %v633
        %760 = vmatpush1.msra.mxu0 %v632
        %761 = vmatprep.subr.mxu0 %v637
        %762 = vmatpush1.msra.mxu0 %v636
        %763 = vmatprep.subr.mxu0 %v641
        %764 = vmatpush1.msra.mxu0 %v640
        %765 = vmatprep.subr.mxu0 %v645
        %766 = vmatpush1.msra.mxu0 %v644
        %767 = vmatprep.subr.mxu0 %v649
        %768 = vmatpush1.msra.mxu0 %v648
        %769 = vmatprep.subr.mxu0 %v653
        %770 = vmatpush1.msra.mxu0 %v652
        %771 = vmatprep.subr.mxu0 %v657
        %772 = vmatpush1.msra.mxu0 %v656
        %773 = vmatprep.subr.mxu0 %v661
        %774 = vmatpush1.msra.mxu0 %v660
        %775 = vmatprep.subr.mxu0 %v665
        %776 = vmatpush1.msra.mxu0 %v664
        %777 = vmatprep.subr.mxu0 %v669
        %778 = vmatpush1.msra.mxu0 %v668
        %779 = vmatprep.subr.mxu0 %v673
        %780 = vmatpush1.msra.mxu0 %v672
        %781 = vmatprep.subr.mxu0 %v677
        %782 = vmatpush1.msra.mxu0 %v676
        %783 = vmatprep.subr.mxu0 %v681
        %784 = vmatpush1.msra.mxu0 %v680
        %785 = vmatprep.subr.mxu0 %v685
        %786 = vmatpush1.msra.mxu0 %v684
        %787 = vmatprep.subr.mxu0 %v689
        %788 = vmatpush1.msra.mxu0 %v688
        %789 = vmatprep.mubr.f32.mxu0 %v722
        %790 = vmatmul.mubr.f32.gmra.mrb[0].mxu0 %v721
        %v791 = vpop.f32.mrb[0].mxu0
        %v792 = vadd.f32 %v697, %v791
        %v793 = vpop.f32.mrb[0].mxu0
        %v794 = vadd.f32 %v701, %v793
        %795 = vdwg.mxu0
        %796 = vmatprep.subr.mxu0 %v567
        %797 = vmatpush1.msra.mxu0 %v566
        %798 = vmatprep.subr.mxu0 %v571
        %799 = vmatpush1.msra.mxu0 %v570
        %800 = vmatprep.subr.mxu0 %v575
        %801 = vmatpush1.msra.mxu0 %v574
        %802 = vmatprep.subr.mxu0 %v579
        %803 = vmatpush1.msra.mxu0 %v578
        %804 = vmatprep.subr.mxu0 %v583
        %805 = vmatpush1.msra.mxu0 %v582
        %806 = vmatprep.subr.mxu0 %v587
        %807 = vmatpush1.msra.mxu0 %v586
        %808 = vmatprep.subr.mxu0 %v591
        %809 = vmatpush1.msra.mxu0 %v590
        %810 = vmatprep.subr.mxu0 %v595
        %811 = vmatpush1.msra.mxu0 %v594
        %812 = vmatprep.subr.mxu0 %v599
        %813 = vmatpush1.msra.mxu0 %v598
        %814 = vmatprep.subr.mxu0 %v603
        %815 = vmatpush1.msra.mxu0 %v602
        %816 = vmatprep.subr.mxu0 %v607
        %817 = vmatpush1.msra.mxu0 %v606
        %818 = vmatprep.subr.mxu0 %v611
        %819 = vmatpush1.msra.mxu0 %v610
        %820 = vmatprep.subr.mxu0 %v615
        %821 = vmatpush1.msra.mxu0 %v614
        %822 = vmatprep.subr.mxu0 %v619
        %823 = vmatpush1.msra.mxu0 %v618
        %824 = vmatprep.subr.mxu0 %v623
        %825 = vmatpush1.msra.mxu0 %v622
        %826 = vmatprep.subr.mxu0 %v627
        %827 = vmatpush1.msra.mxu0 %v626
        %828 = vmatprep.subr.mxu0 %v631
        %829 = vmatpush1.msra.mxu0 %v630
        %830 = vmatprep.subr.mxu0 %v635
        %831 = vmatpush1.msra.mxu0 %v634
        %832 = vmatprep.subr.mxu0 %v639
        %833 = vmatpush1.msra.mxu0 %v638
        %834 = vmatprep.subr.mxu0 %v643
        %835 = vmatpush1.msra.mxu0 %v642
        %836 = vmatprep.subr.mxu0 %v647
        %837 = vmatpush1.msra.mxu0 %v646
        %838 = vmatprep.subr.mxu0 %v651
        %839 = vmatpush1.msra.mxu0 %v650
        %840 = vmatprep.subr.mxu0 %v655
        %841 = vmatpush1.msra.mxu0 %v654
        %842 = vmatprep.subr.mxu0 %v659
        %843 = vmatpush1.msra.mxu0 %v658
        %844 = vmatprep.subr.mxu0 %v663
        %845 = vmatpush1.msra.mxu0 %v662
        %846 = vmatprep.subr.mxu0 %v667
        %847 = vmatpush1.msra.mxu0 %v666
        %848 = vmatprep.subr.mxu0 %v671
        %849 = vmatpush1.msra.mxu0 %v670
        %850 = vmatprep.subr.mxu0 %v675
        %851 = vmatpush1.msra.mxu0 %v674
        %852 = vmatprep.subr.mxu0 %v679
        %853 = vmatpush1.msra.mxu0 %v678
        %854 = vmatprep.subr.mxu0 %v683
        %855 = vmatpush1.msra.mxu0 %v682
        %856 = vmatprep.subr.mxu0 %v687
        %857 = vmatpush1.msra.mxu0 %v686
        %858 = vmatprep.subr.mxu0 %v691
        %859 = vmatpush1.msra.mxu0 %v690
        %860 = vmatprep.mubr.f32.mxu0 %v722
        %861 = vmatmul.mubr.f32.gmra.mrb[0].mxu0 %v721
        %v862 = vpop.f32.mrb[0].mxu0
        %v863 = vadd.f32 %v705, %v862
        %v864 = vpop.f32.mrb[0].mxu0
        %v865 = vadd.f32 %v709, %v864
        %866 = vdwg.mxu0
        %v867 = vsub.f32 0.0, %v792
        %v868 = vsub.f32 0.0, %v794
        %v869 = vsub.f32 0.0, %v863
        %v870 = vsub.f32 0.0, %v865
        %v871 = vmul.f32 %v867, 1.442695
        %v872 = vpow.pop %v871
        %v873 = vmul.f32 %v868, 1.442695
        %v874 = vpow.pop %v873
        %v875 = vmul.f32 %v869, 1.442695
        %v876 = vpow.pop %v875
        %v877 = vmul.f32 %v870, 1.442695
        %v878 = vpow.pop %v877
        %v879 = vadd.f32 %v872, 1.0
        %v880 = vadd.f32 %v874, 1.0
        %v881 = vadd.f32 %v876, 1.0
        %v882 = vadd.f32 %v878, 1.0
        %v883 = vrcp.pop %v879
        %v884 = vmul.f32 %v792, %v883
        %v885 = vrcp.pop %v880
        %v886 = vmul.f32 %v794, %v885
        %v887 = vrcp.pop %v881
        %v888 = vmul.f32 %v863, %v887
        %v889 = vrcp.pop %v882
        %v890 = vmul.f32 %v865, %v889
        %v891 = vld [vmem:[#allocation5] sm:$0xff]
        %v892 = vld [vmem:[#allocation5 + $0x8] sm:$0xff]
        %v893 = vld [vmem:[#allocation5 + $0x10] sm:$0xff]
        %v894 = vld [vmem:[#allocation5 + $0x18] sm:$0xff]
        %v895 = vld [vmem:[%s471] sm:$0xff]
        %v896 = vld [vmem:[%s471 + $0x8] sm:$0xff]
        %v897 = vld [vmem:[%s471 + $0x10] sm:$0xff]
        %v898 = vld [vmem:[%s471 + $0x18] sm:$0xff]
        %v899 = vld [vmem:[%s471 + $0x20] sm:$0xff]
        %v900 = vld [vmem:[%s471 + $0x28] sm:$0xff]
        %v901 = vld [vmem:[%s471 + $0x30] sm:$0xff]
        %v902 = vld [vmem:[%s471 + $0x38] sm:$0xff]
        %v903 = vld [vmem:[%s471 + $0x40] sm:$0xff]
        %v904 = vld [vmem:[%s471 + $0x48] sm:$0xff]
        %v905 = vld [vmem:[%s471 + $0x50] sm:$0xff]
        %v906 = vld [vmem:[%s471 + $0x58] sm:$0xff]
        %v907 = vld [vmem:[%s471 + $0x60] sm:$0xff]
        %v908 = vld [vmem:[%s471 + $0x68] sm:$0xff]
        %v909 = vld [vmem:[%s471 + $0x70] sm:$0xff]
        %v910 = vld [vmem:[%s471 + $0x78] sm:$0xff]
        %v911 = vld [vmem:[%s471 + $0x80] sm:$0xff]
        %v912 = vld [vmem:[%s471 + $0x88] sm:$0xff]
        %v913 = vld [vmem:[%s471 + $0x90] sm:$0xff]
        %v914 = vld [vmem:[%s471 + $0x98] sm:$0xff]
        %v915 = vld [vmem:[%s471 + $0xa0] sm:$0xff]
        %v916 = vld [vmem:[%s471 + $0xa8] sm:$0xff]
        %v917 = vld [vmem:[%s471 + $0xb0] sm:$0xff]
        %v918 = vld [vmem:[%s471 + $0xb8] sm:$0xff]
        %v919 = vld [vmem:[%s471 + $0xc0] sm:$0xff]
        %v920 = vld [vmem:[%s471 + $0xc8] sm:$0xff]
        %v921 = vld [vmem:[%s471 + $0xd0] sm:$0xff]
        %v922 = vld [vmem:[%s471 + $0xd8] sm:$0xff]
        %v923 = vld [vmem:[%s471 + $0xe0] sm:$0xff]
        %v924 = vld [vmem:[%s471 + $0xe8] sm:$0xff]
        %v925 = vld [vmem:[%s471 + $0xf0] sm:$0xff]
        %v926 = vld [vmem:[%s471 + $0xf8] sm:$0xff]
        %v927 = vld [vmem:[%s471 + $0x100] sm:$0xff]
        %v928 = vld [vmem:[%s471 + $0x108] sm:$0xff]
        %v929 = vld [vmem:[%s471 + $0x110] sm:$0xff]
        %v930 = vld [vmem:[%s471 + $0x118] sm:$0xff]
        %v931 = vld [vmem:[%s471 + $0x120] sm:$0xff]
        %v932 = vld [vmem:[%s471 + $0x128] sm:$0xff]
        %v933 = vld [vmem:[%s471 + $0x130] sm:$0xff]
        %v934 = vld [vmem:[%s471 + $0x138] sm:$0xff]
        %v935 = vld [vmem:[%s471 + $0x140] sm:$0xff]
        %v936 = vld [vmem:[%s471 + $0x148] sm:$0xff]
        %v937 = vld [vmem:[%s471 + $0x150] sm:$0xff]
        %v938 = vld [vmem:[%s471 + $0x158] sm:$0xff]
        %v939 = vld [vmem:[%s471 + $0x160] sm:$0xff]
        %v940 = vld [vmem:[%s471 + $0x168] sm:$0xff]
        %v941 = vld [vmem:[%s471 + $0x170] sm:$0xff]
        %v942 = vld [vmem:[%s471 + $0x178] sm:$0xff]
        %v943 = vld [vmem:[%s471 + $0x180] sm:$0xff]
        %v944 = vld [vmem:[%s471 + $0x188] sm:$0xff]
        %v945 = vld [vmem:[%s471 + $0x190] sm:$0xff]
        %v946 = vld [vmem:[%s471 + $0x198] sm:$0xff]
        %v947 = vld [vmem:[%s471 + $0x1a0] sm:$0xff]
        %v948 = vld [vmem:[%s471 + $0x1a8] sm:$0xff]
        %v949 = vld [vmem:[%s471 + $0x1b0] sm:$0xff]
        %v950 = vld [vmem:[%s471 + $0x1b8] sm:$0xff]
        %v951 = vld [vmem:[%s471 + $0x1c0] sm:$0xff]
        %v952 = vld [vmem:[%s471 + $0x1c8] sm:$0xff]
        %v953 = vld [vmem:[%s471 + $0x1d0] sm:$0xff]
        %v954 = vld [vmem:[%s471 + $0x1d8] sm:$0xff]
        %v955 = vld [vmem:[%s471 + $0x1e0] sm:$0xff]
        %v956 = vld [vmem:[%s471 + $0x1e8] sm:$0xff]
        %v957 = vld [vmem:[%s471 + $0x1f0] sm:$0xff]
        %v958 = vld [vmem:[%s471 + $0x1f8] sm:$0xff]
        %v959 = vld [vmem:[%s471 + $0x200] sm:$0xff]
        %v960 = vld [vmem:[%s471 + $0x208] sm:$0xff]
        %v961 = vld [vmem:[%s471 + $0x210] sm:$0xff]
        %v962 = vld [vmem:[%s471 + $0x218] sm:$0xff]
        %v963 = vld [vmem:[%s471 + $0x220] sm:$0xff]
        %v964 = vld [vmem:[%s471 + $0x228] sm:$0xff]
        %v965 = vld [vmem:[%s471 + $0x230] sm:$0xff]
        %v966 = vld [vmem:[%s471 + $0x238] sm:$0xff]
        %v967 = vld [vmem:[%s471 + $0x240] sm:$0xff]
        %v968 = vld [vmem:[%s471 + $0x248] sm:$0xff]
        %v969 = vld [vmem:[%s471 + $0x250] sm:$0xff]
        %v970 = vld [vmem:[%s471 + $0x258] sm:$0xff]
        %v971 = vld [vmem:[%s471 + $0x260] sm:$0xff]
        %v972 = vld [vmem:[%s471 + $0x268] sm:$0xff]
        %v973 = vld [vmem:[%s471 + $0x270] sm:$0xff]
        %v974 = vld [vmem:[%s471 + $0x278] sm:$0xff]
        %v975 = vld [vmem:[%s471 + $0x280] sm:$0xff]
        %v976 = vld [vmem:[%s471 + $0x288] sm:$0xff]
        %v977 = vld [vmem:[%s471 + $0x290] sm:$0xff]
        %v978 = vld [vmem:[%s471 + $0x298] sm:$0xff]
        %v979 = vld [vmem:[%s471 + $0x2a0] sm:$0xff]
        %v980 = vld [vmem:[%s471 + $0x2a8] sm:$0xff]
        %v981 = vld [vmem:[%s471 + $0x2b0] sm:$0xff]
        %v982 = vld [vmem:[%s471 + $0x2b8] sm:$0xff]
        %v983 = vld [vmem:[%s471 + $0x2c0] sm:$0xff]
        %v984 = vld [vmem:[%s471 + $0x2c8] sm:$0xff]
        %v985 = vld [vmem:[%s471 + $0x2d0] sm:$0xff]
        %v986 = vld [vmem:[%s471 + $0x2d8] sm:$0xff]
        %v987 = vld [vmem:[%s471 + $0x2e0] sm:$0xff]
        %v988 = vld [vmem:[%s471 + $0x2e8] sm:$0xff]
        %v989 = vld [vmem:[%s471 + $0x2f0] sm:$0xff]
        %v990 = vld [vmem:[%s471 + $0x2f8] sm:$0xff]
        %v991 = vld [vmem:[%s471 + $0x300] sm:$0xff]
        %v992 = vld [vmem:[%s471 + $0x308] sm:$0xff]
        %v993 = vld [vmem:[%s471 + $0x310] sm:$0xff]
        %v994 = vld [vmem:[%s471 + $0x318] sm:$0xff]
        %v995 = vld [vmem:[%s471 + $0x320] sm:$0xff]
        %v996 = vld [vmem:[%s471 + $0x328] sm:$0xff]
        %v997 = vld [vmem:[%s471 + $0x330] sm:$0xff]
        %v998 = vld [vmem:[%s471 + $0x338] sm:$0xff]
        %v999 = vld [vmem:[%s471 + $0x340] sm:$0xff]
        %v1000 = vld [vmem:[%s471 + $0x348] sm:$0xff]
        %v1001 = vld [vmem:[%s471 + $0x350] sm:$0xff]
        %v1002 = vld [vmem:[%s471 + $0x358] sm:$0xff]
        %v1003 = vld [vmem:[%s471 + $0x360] sm:$0xff]
        %v1004 = vld [vmem:[%s471 + $0x368] sm:$0xff]
        %v1005 = vld [vmem:[%s471 + $0x370] sm:$0xff]
        %v1006 = vld [vmem:[%s471 + $0x378] sm:$0xff]
        %v1007 = vld [vmem:[%s471 + $0x380] sm:$0xff]
        %v1008 = vld [vmem:[%s471 + $0x388] sm:$0xff]
        %v1009 = vld [vmem:[%s471 + $0x390] sm:$0xff]
        %v1010 = vld [vmem:[%s471 + $0x398] sm:$0xff]
        %v1011 = vld [vmem:[%s471 + $0x3a0] sm:$0xff]
        %v1012 = vld [vmem:[%s471 + $0x3a8] sm:$0xff]
        %v1013 = vld [vmem:[%s471 + $0x3b0] sm:$0xff]
        %v1014 = vld [vmem:[%s471 + $0x3b8] sm:$0xff]
        %v1015 = vld [vmem:[%s471 + $0x3c0] sm:$0xff]
        %v1016 = vld [vmem:[%s471 + $0x3c8] sm:$0xff]
        %v1017 = vld [vmem:[%s471 + $0x3d0] sm:$0xff]
        %v1018 = vld [vmem:[%s471 + $0x3d8] sm:$0xff]
        %v1019 = vld [vmem:[%s471 + $0x3e0] sm:$0xff]
        %v1020 = vld [vmem:[%s471 + $0x3e8] sm:$0xff]
        %v1021 = vld [vmem:[%s471 + $0x3f0] sm:$0xff]
        %v1022 = vld [vmem:[%s471 + $0x3f8] sm:$0xff]
        %v1023 = vld [vmem:[%s471 + $0x400] sm:$0xff]
        %v1024 = vld [vmem:[%s471 + $0x408] sm:$0xff]
        %v1025 = vld [vmem:[%s471 + $0x410] sm:$0xff]
        %v1026 = vld [vmem:[%s471 + $0x418] sm:$0xff]
        %v1027 = vld [vmem:[%s471 + $0x420] sm:$0xff]
        %v1028 = vld [vmem:[%s471 + $0x428] sm:$0xff]
        %v1029 = vld [vmem:[%s471 + $0x430] sm:$0xff]
        %v1030 = vld [vmem:[%s471 + $0x438] sm:$0xff]
        %v1031 = vld [vmem:[%s471 + $0x440] sm:$0xff]
        %v1032 = vld [vmem:[%s471 + $0x448] sm:$0xff]
        %v1033 = vld [vmem:[%s471 + $0x450] sm:$0xff]
        %v1034 = vld [vmem:[%s471 + $0x458] sm:$0xff]
        %v1035 = vld [vmem:[%s471 + $0x460] sm:$0xff]
        %v1036 = vld [vmem:[%s471 + $0x468] sm:$0xff]
        %v1037 = vld [vmem:[%s471 + $0x470] sm:$0xff]
        %v1038 = vld [vmem:[%s471 + $0x478] sm:$0xff]
        %v1039 = vld [vmem:[%s471 + $0x480] sm:$0xff]
        %v1040 = vld [vmem:[%s471 + $0x488] sm:$0xff]
        %v1041 = vld [vmem:[%s471 + $0x490] sm:$0xff]
        %v1042 = vld [vmem:[%s471 + $0x498] sm:$0xff]
        %v1043 = vld [vmem:[%s471 + $0x4a0] sm:$0xff]
        %v1044 = vld [vmem:[%s471 + $0x4a8] sm:$0xff]
        %v1045 = vld [vmem:[%s471 + $0x4b0] sm:$0xff]
        %v1046 = vld [vmem:[%s471 + $0x4b8] sm:$0xff]
        %v1047 = vld [vmem:[%s471 + $0x4c0] sm:$0xff]
        %v1048 = vld [vmem:[%s471 + $0x4c8] sm:$0xff]
        %v1049 = vld [vmem:[%s471 + $0x4d0] sm:$0xff]
        %v1050 = vld [vmem:[%s471 + $0x4d8] sm:$0xff]
        %v1051 = vld [vmem:[%s471 + $0x4e0] sm:$0xff]
        %v1052 = vld [vmem:[%s471 + $0x4e8] sm:$0xff]
        %v1053 = vld [vmem:[%s471 + $0x4f0] sm:$0xff]
        %v1054 = vld [vmem:[%s471 + $0x4f8] sm:$0xff]
        %v1055 = vld [vmem:[%s471 + $0x500] sm:$0xff]
        %v1056 = vld [vmem:[%s471 + $0x508] sm:$0xff]
        %v1057 = vld [vmem:[%s471 + $0x510] sm:$0xff]
        %v1058 = vld [vmem:[%s471 + $0x518] sm:$0xff]
        %v1059 = vld [vmem:[%s471 + $0x520] sm:$0xff]
        %v1060 = vld [vmem:[%s471 + $0x528] sm:$0xff]
        %v1061 = vld [vmem:[%s471 + $0x530] sm:$0xff]
        %v1062 = vld [vmem:[%s471 + $0x538] sm:$0xff]
        %v1063 = vld [vmem:[%s471 + $0x540] sm:$0xff]
        %v1064 = vld [vmem:[%s471 + $0x548] sm:$0xff]
        %v1065 = vld [vmem:[%s471 + $0x550] sm:$0xff]
        %v1066 = vld [vmem:[%s471 + $0x558] sm:$0xff]
        %v1067 = vld [vmem:[%s471 + $0x560] sm:$0xff]
        %v1068 = vld [vmem:[%s471 + $0x568] sm:$0xff]
        %v1069 = vld [vmem:[%s471 + $0x570] sm:$0xff]
        %v1070 = vld [vmem:[%s471 + $0x578] sm:$0xff]
        %v1071 = vld [vmem:[%s471 + $0x580] sm:$0xff]
        %v1072 = vld [vmem:[%s471 + $0x588] sm:$0xff]
        %v1073 = vld [vmem:[%s471 + $0x590] sm:$0xff]
        %v1074 = vld [vmem:[%s471 + $0x598] sm:$0xff]
        %v1075 = vld [vmem:[%s471 + $0x5a0] sm:$0xff]
        %v1076 = vld [vmem:[%s471 + $0x5a8] sm:$0xff]
        %v1077 = vld [vmem:[%s471 + $0x5b0] sm:$0xff]
        %v1078 = vld [vmem:[%s471 + $0x5b8] sm:$0xff]
        %v1079 = vld [vmem:[%s471 + $0x5c0] sm:$0xff]
        %v1080 = vld [vmem:[%s471 + $0x5c8] sm:$0xff]
        %v1081 = vld [vmem:[%s471 + $0x5d0] sm:$0xff]
        %v1082 = vld [vmem:[%s471 + $0x5d8] sm:$0xff]
        %v1083 = vld [vmem:[%s471 + $0x5e0] sm:$0xff]
        %v1084 = vld [vmem:[%s471 + $0x5e8] sm:$0xff]
        %v1085 = vld [vmem:[%s471 + $0x5f0] sm:$0xff]
        %v1086 = vld [vmem:[%s471 + $0x5f8] sm:$0xff]
        %v1087 = vld [vmem:[%s471 + $0x600] sm:$0xff]
        %v1088 = vld [vmem:[%s471 + $0x608] sm:$0xff]
        %v1089 = vld [vmem:[%s471 + $0x610] sm:$0xff]
        %v1090 = vld [vmem:[%s471 + $0x618] sm:$0xff]
        %v1091 = vld [vmem:[%s471 + $0x620] sm:$0xff]
        %v1092 = vld [vmem:[%s471 + $0x628] sm:$0xff]
        %v1093 = vld [vmem:[%s471 + $0x630] sm:$0xff]
        %v1094 = vld [vmem:[%s471 + $0x638] sm:$0xff]
        %v1095 = vld [vmem:[%s471 + $0x640] sm:$0xff]
        %v1096 = vld [vmem:[%s471 + $0x648] sm:$0xff]
        %v1097 = vld [vmem:[%s471 + $0x650] sm:$0xff]
        %v1098 = vld [vmem:[%s471 + $0x658] sm:$0xff]
        %v1099 = vld [vmem:[%s471 + $0x660] sm:$0xff]
        %v1100 = vld [vmem:[%s471 + $0x668] sm:$0xff]
        %v1101 = vld [vmem:[%s471 + $0x670] sm:$0xff]
        %v1102 = vld [vmem:[%s471 + $0x678] sm:$0xff]
        %v1103 = vld [vmem:[%s471 + $0x680] sm:$0xff]
        %v1104 = vld [vmem:[%s471 + $0x688] sm:$0xff]
        %v1105 = vld [vmem:[%s471 + $0x690] sm:$0xff]
        %v1106 = vld [vmem:[%s471 + $0x698] sm:$0xff]
        %v1107 = vld [vmem:[%s471 + $0x6a0] sm:$0xff]
        %v1108 = vld [vmem:[%s471 + $0x6a8] sm:$0xff]
        %v1109 = vld [vmem:[%s471 + $0x6b0] sm:$0xff]
        %v1110 = vld [vmem:[%s471 + $0x6b8] sm:$0xff]
        %v1111 = vld [vmem:[%s471 + $0x6c0] sm:$0xff]
        %v1112 = vld [vmem:[%s471 + $0x6c8] sm:$0xff]
        %v1113 = vld [vmem:[%s471 + $0x6d0] sm:$0xff]
        %v1114 = vld [vmem:[%s471 + $0x6d8] sm:$0xff]
        %v1115 = vld [vmem:[%s471 + $0x6e0] sm:$0xff]
        %v1116 = vld [vmem:[%s471 + $0x6e8] sm:$0xff]
        %v1117 = vld [vmem:[%s471 + $0x6f0] sm:$0xff]
        %v1118 = vld [vmem:[%s471 + $0x6f8] sm:$0xff]
        %v1119 = vld [vmem:[%s471 + $0x700] sm:$0xff]
        %v1120 = vld [vmem:[%s471 + $0x708] sm:$0xff]
        %v1121 = vld [vmem:[%s471 + $0x710] sm:$0xff]
        %v1122 = vld [vmem:[%s471 + $0x718] sm:$0xff]
        %v1123 = vld [vmem:[%s471 + $0x720] sm:$0xff]
        %v1124 = vld [vmem:[%s471 + $0x728] sm:$0xff]
        %v1125 = vld [vmem:[%s471 + $0x730] sm:$0xff]
        %v1126 = vld [vmem:[%s471 + $0x738] sm:$0xff]
        %v1127 = vld [vmem:[%s471 + $0x740] sm:$0xff]
        %v1128 = vld [vmem:[%s471 + $0x748] sm:$0xff]
        %v1129 = vld [vmem:[%s471 + $0x750] sm:$0xff]
        %v1130 = vld [vmem:[%s471 + $0x758] sm:$0xff]
        %v1131 = vld [vmem:[%s471 + $0x760] sm:$0xff]
        %v1132 = vld [vmem:[%s471 + $0x768] sm:$0xff]
        %v1133 = vld [vmem:[%s471 + $0x770] sm:$0xff]
        %v1134 = vld [vmem:[%s471 + $0x778] sm:$0xff]
        %v1135 = vld [vmem:[%s471 + $0x780] sm:$0xff]
        %v1136 = vld [vmem:[%s471 + $0x788] sm:$0xff]
        %v1137 = vld [vmem:[%s471 + $0x790] sm:$0xff]
        %v1138 = vld [vmem:[%s471 + $0x798] sm:$0xff]
        %v1139 = vld [vmem:[%s471 + $0x7a0] sm:$0xff]
        %v1140 = vld [vmem:[%s471 + $0x7a8] sm:$0xff]
        %v1141 = vld [vmem:[%s471 + $0x7b0] sm:$0xff]
        %v1142 = vld [vmem:[%s471 + $0x7b8] sm:$0xff]
        %v1143 = vld [vmem:[%s471 + $0x7c0] sm:$0xff]
        %v1144 = vld [vmem:[%s471 + $0x7c8] sm:$0xff]
        %v1145 = vld [vmem:[%s471 + $0x7d0] sm:$0xff]
        %v1146 = vld [vmem:[%s471 + $0x7d8] sm:$0xff]
        %v1147 = vld [vmem:[%s471 + $0x7e0] sm:$0xff]
        %v1148 = vld [vmem:[%s471 + $0x7e8] sm:$0xff]
        %v1149 = vld [vmem:[%s471 + $0x7f0] sm:$0xff]
        %v1150 = vld [vmem:[%s471 + $0x7f8] sm:$0xff]
        %v1151 = vld [vmem:[%s471 + $0x800] sm:$0xff]
        %v1152 = vld [vmem:[%s471 + $0x808] sm:$0xff]
        %v1153 = vld [vmem:[%s471 + $0x810] sm:$0xff]
        %v1154 = vld [vmem:[%s471 + $0x818] sm:$0xff]
        %v1155 = vld [vmem:[%s471 + $0x820] sm:$0xff]
        %v1156 = vld [vmem:[%s471 + $0x828] sm:$0xff]
        %v1157 = vld [vmem:[%s471 + $0x830] sm:$0xff]
        %v1158 = vld [vmem:[%s471 + $0x838] sm:$0xff]
        %v1159 = vld [vmem:[%s471 + $0x840] sm:$0xff]
        %v1160 = vld [vmem:[%s471 + $0x848] sm:$0xff]
        %v1161 = vld [vmem:[%s471 + $0x850] sm:$0xff]
        %v1162 = vld [vmem:[%s471 + $0x858] sm:$0xff]
        %v1163 = vld [vmem:[%s471 + $0x860] sm:$0xff]
        %v1164 = vld [vmem:[%s471 + $0x868] sm:$0xff]
        %v1165 = vld [vmem:[%s471 + $0x870] sm:$0xff]
        %v1166 = vld [vmem:[%s471 + $0x878] sm:$0xff]
        %v1167 = vld [vmem:[%s471 + $0x880] sm:$0xff]
        %v1168 = vld [vmem:[%s471 + $0x888] sm:$0xff]
        %v1169 = vld [vmem:[%s471 + $0x890] sm:$0xff]
        %v1170 = vld [vmem:[%s471 + $0x898] sm:$0xff]
        %v1171 = vld [vmem:[%s471 + $0x8a0] sm:$0xff]
        %v1172 = vld [vmem:[%s471 + $0x8a8] sm:$0xff]
        %v1173 = vld [vmem:[%s471 + $0x8b0] sm:$0xff]
        %v1174 = vld [vmem:[%s471 + $0x8b8] sm:$0xff]
        %v1175 = vld [vmem:[%s471 + $0x8c0] sm:$0xff]
        %v1176 = vld [vmem:[%s471 + $0x8c8] sm:$0xff]
        %v1177 = vld [vmem:[%s471 + $0x8d0] sm:$0xff]
        %v1178 = vld [vmem:[%s471 + $0x8d8] sm:$0xff]
        %v1179 = vld [vmem:[%s471 + $0x8e0] sm:$0xff]
        %v1180 = vld [vmem:[%s471 + $0x8e8] sm:$0xff]
        %v1181 = vld [vmem:[%s471 + $0x8f0] sm:$0xff]
        %v1182 = vld [vmem:[%s471 + $0x8f8] sm:$0xff]
        %v1183 = vld [vmem:[%s471 + $0x900] sm:$0xff]
        %v1184 = vld [vmem:[%s471 + $0x908] sm:$0xff]
        %v1185 = vld [vmem:[%s471 + $0x910] sm:$0xff]
        %v1186 = vld [vmem:[%s471 + $0x918] sm:$0xff]
        %v1187 = vld [vmem:[%s471 + $0x920] sm:$0xff]
        %v1188 = vld [vmem:[%s471 + $0x928] sm:$0xff]
        %v1189 = vld [vmem:[%s471 + $0x930] sm:$0xff]
        %v1190 = vld [vmem:[%s471 + $0x938] sm:$0xff]
        %v1191 = vld [vmem:[%s471 + $0x940] sm:$0xff]
        %v1192 = vld [vmem:[%s471 + $0x948] sm:$0xff]
        %v1193 = vld [vmem:[%s471 + $0x950] sm:$0xff]
        %v1194 = vld [vmem:[%s471 + $0x958] sm:$0xff]
        %v1195 = vld [vmem:[%s471 + $0x960] sm:$0xff]
        %v1196 = vld [vmem:[%s471 + $0x968] sm:$0xff]
        %v1197 = vld [vmem:[%s471 + $0x970] sm:$0xff]
        %v1198 = vld [vmem:[%s471 + $0x978] sm:$0xff]
        %v1199 = vld [vmem:[%s471 + $0x980] sm:$0xff]
        %v1200 = vld [vmem:[%s471 + $0x988] sm:$0xff]
        %v1201 = vld [vmem:[%s471 + $0x990] sm:$0xff]
        %v1202 = vld [vmem:[%s471 + $0x998] sm:$0xff]
        %v1203 = vld [vmem:[%s471 + $0x9a0] sm:$0xff]
        %v1204 = vld [vmem:[%s471 + $0x9a8] sm:$0xff]
        %v1205 = vld [vmem:[%s471 + $0x9b0] sm:$0xff]
        %v1206 = vld [vmem:[%s471 + $0x9b8] sm:$0xff]
        %v1207 = vld [vmem:[%s471 + $0x9c0] sm:$0xff]
        %v1208 = vld [vmem:[%s471 + $0x9c8] sm:$0xff]
        %v1209 = vld [vmem:[%s471 + $0x9d0] sm:$0xff]
        %v1210 = vld [vmem:[%s471 + $0x9d8] sm:$0xff]
        %v1211 = vld [vmem:[%s471 + $0x9e0] sm:$0xff]
        %v1212 = vld [vmem:[%s471 + $0x9e8] sm:$0xff]
        %v1213 = vld [vmem:[%s471 + $0x9f0] sm:$0xff]
        %v1214 = vld [vmem:[%s471 + $0x9f8] sm:$0xff]
        %v1215 = vld [vmem:[%s471 + $0xa00] sm:$0xff]
        %v1216 = vld [vmem:[%s471 + $0xa08] sm:$0xff]
        %v1217 = vld [vmem:[%s471 + $0xa10] sm:$0xff]
        %v1218 = vld [vmem:[%s471 + $0xa18] sm:$0xff]
        %v1219 = vld [vmem:[%s471 + $0xa20] sm:$0xff]
        %v1220 = vld [vmem:[%s471 + $0xa28] sm:$0xff]
        %v1221 = vld [vmem:[%s471 + $0xa30] sm:$0xff]
        %v1222 = vld [vmem:[%s471 + $0xa38] sm:$0xff]
        %v1223 = vld [vmem:[%s471 + $0xa40] sm:$0xff]
        %v1224 = vld [vmem:[%s471 + $0xa48] sm:$0xff]
        %v1225 = vld [vmem:[%s471 + $0xa50] sm:$0xff]
        %v1226 = vld [vmem:[%s471 + $0xa58] sm:$0xff]
        %v1227 = vld [vmem:[%s471 + $0xa60] sm:$0xff]
        %v1228 = vld [vmem:[%s471 + $0xa68] sm:$0xff]
        %v1229 = vld [vmem:[%s471 + $0xa70] sm:$0xff]
        %v1230 = vld [vmem:[%s471 + $0xa78] sm:$0xff]
        %v1231 = vld [vmem:[%s471 + $0xa80] sm:$0xff]
        %v1232 = vld [vmem:[%s471 + $0xa88] sm:$0xff]
        %v1233 = vld [vmem:[%s471 + $0xa90] sm:$0xff]
        %v1234 = vld [vmem:[%s471 + $0xa98] sm:$0xff]
        %v1235 = vld [vmem:[%s471 + $0xaa0] sm:$0xff]
        %v1236 = vld [vmem:[%s471 + $0xaa8] sm:$0xff]
        %v1237 = vld [vmem:[%s471 + $0xab0] sm:$0xff]
        %v1238 = vld [vmem:[%s471 + $0xab8] sm:$0xff]
        %v1239 = vld [vmem:[%s471 + $0xac0] sm:$0xff]
        %v1240 = vld [vmem:[%s471 + $0xac8] sm:$0xff]
        %v1241 = vld [vmem:[%s471 + $0xad0] sm:$0xff]
        %v1242 = vld [vmem:[%s471 + $0xad8] sm:$0xff]
        %v1243 = vld [vmem:[%s471 + $0xae0] sm:$0xff]
        %v1244 = vld [vmem:[%s471 + $0xae8] sm:$0xff]
        %v1245 = vld [vmem:[%s471 + $0xaf0] sm:$0xff]
        %v1246 = vld [vmem:[%s471 + $0xaf8] sm:$0xff]
        %v1247 = vld [vmem:[%s471 + $0xb00] sm:$0xff]
        %v1248 = vld [vmem:[%s471 + $0xb08] sm:$0xff]
        %v1249 = vld [vmem:[%s471 + $0xb10] sm:$0xff]
        %v1250 = vld [vmem:[%s471 + $0xb18] sm:$0xff]
        %v1251 = vld [vmem:[%s471 + $0xb20] sm:$0xff]
        %v1252 = vld [vmem:[%s471 + $0xb28] sm:$0xff]
        %v1253 = vld [vmem:[%s471 + $0xb30] sm:$0xff]
        %v1254 = vld [vmem:[%s471 + $0xb38] sm:$0xff]
        %v1255 = vld [vmem:[%s471 + $0xb40] sm:$0xff]
        %v1256 = vld [vmem:[%s471 + $0xb48] sm:$0xff]
        %v1257 = vld [vmem:[%s471 + $0xb50] sm:$0xff]
        %v1258 = vld [vmem:[%s471 + $0xb58] sm:$0xff]
        %v1259 = vld [vmem:[%s471 + $0xb60] sm:$0xff]
        %v1260 = vld [vmem:[%s471 + $0xb68] sm:$0xff]
        %v1261 = vld [vmem:[%s471 + $0xb70] sm:$0xff]
        %v1262 = vld [vmem:[%s471 + $0xb78] sm:$0xff]
        %v1263 = vld [vmem:[%s471 + $0xb80] sm:$0xff]
        %v1264 = vld [vmem:[%s471 + $0xb88] sm:$0xff]
        %v1265 = vld [vmem:[%s471 + $0xb90] sm:$0xff]
        %v1266 = vld [vmem:[%s471 + $0xb98] sm:$0xff]
        %v1267 = vld [vmem:[%s471 + $0xba0] sm:$0xff]
        %v1268 = vld [vmem:[%s471 + $0xba8] sm:$0xff]
        %v1269 = vld [vmem:[%s471 + $0xbb0] sm:$0xff]
        %v1270 = vld [vmem:[%s471 + $0xbb8] sm:$0xff]
        %v1271 = vld [vmem:[%s471 + $0xbc0] sm:$0xff]
        %v1272 = vld [vmem:[%s471 + $0xbc8] sm:$0xff]
        %v1273 = vld [vmem:[%s471 + $0xbd0] sm:$0xff]
        %v1274 = vld [vmem:[%s471 + $0xbd8] sm:$0xff]
        %v1275 = vld [vmem:[%s471 + $0xbe0] sm:$0xff]
        %v1276 = vld [vmem:[%s471 + $0xbe8] sm:$0xff]
        %v1277 = vld [vmem:[%s471 + $0xbf0] sm:$0xff]
        %v1278 = vld [vmem:[%s471 + $0xbf8] sm:$0xff]
        %v1279 = vld [vmem:[%s471 + $0xc00] sm:$0xff]
        %v1280 = vld [vmem:[%s471 + $0xc08] sm:$0xff]
        %v1281 = vld [vmem:[%s471 + $0xc10] sm:$0xff]
        %v1282 = vld [vmem:[%s471 + $0xc18] sm:$0xff]
        %v1283 = vld [vmem:[%s471 + $0xc20] sm:$0xff]
        %v1284 = vld [vmem:[%s471 + $0xc28] sm:$0xff]
        %v1285 = vld [vmem:[%s471 + $0xc30] sm:$0xff]
        %v1286 = vld [vmem:[%s471 + $0xc38] sm:$0xff]
        %v1287 = vld [vmem:[%s471 + $0xc40] sm:$0xff]
        %v1288 = vld [vmem:[%s471 + $0xc48] sm:$0xff]
        %v1289 = vld [vmem:[%s471 + $0xc50] sm:$0xff]
        %v1290 = vld [vmem:[%s471 + $0xc58] sm:$0xff]
        %v1291 = vld [vmem:[%s471 + $0xc60] sm:$0xff]
        %v1292 = vld [vmem:[%s471 + $0xc68] sm:$0xff]
        %v1293 = vld [vmem:[%s471 + $0xc70] sm:$0xff]
        %v1294 = vld [vmem:[%s471 + $0xc78] sm:$0xff]
        %v1295 = vld [vmem:[%s471 + $0xc80] sm:$0xff]
        %v1296 = vld [vmem:[%s471 + $0xc88] sm:$0xff]
        %v1297 = vld [vmem:[%s471 + $0xc90] sm:$0xff]
        %v1298 = vld [vmem:[%s471 + $0xc98] sm:$0xff]
        %v1299 = vld [vmem:[%s471 + $0xca0] sm:$0xff]
        %v1300 = vld [vmem:[%s471 + $0xca8] sm:$0xff]
        %v1301 = vld [vmem:[%s471 + $0xcb0] sm:$0xff]
        %v1302 = vld [vmem:[%s471 + $0xcb8] sm:$0xff]
        %v1303 = vld [vmem:[%s471 + $0xcc0] sm:$0xff]
        %v1304 = vld [vmem:[%s471 + $0xcc8] sm:$0xff]
        %v1305 = vld [vmem:[%s471 + $0xcd0] sm:$0xff]
        %v1306 = vld [vmem:[%s471 + $0xcd8] sm:$0xff]
        %v1307 = vld [vmem:[%s471 + $0xce0] sm:$0xff]
        %v1308 = vld [vmem:[%s471 + $0xce8] sm:$0xff]
        %v1309 = vld [vmem:[%s471 + $0xcf0] sm:$0xff]
        %v1310 = vld [vmem:[%s471 + $0xcf8] sm:$0xff]
        %v1311 = vld [vmem:[%s471 + $0xd00] sm:$0xff]
        %v1312 = vld [vmem:[%s471 + $0xd08] sm:$0xff]
        %v1313 = vld [vmem:[%s471 + $0xd10] sm:$0xff]
        %v1314 = vld [vmem:[%s471 + $0xd18] sm:$0xff]
        %v1315 = vld [vmem:[%s471 + $0xd20] sm:$0xff]
        %v1316 = vld [vmem:[%s471 + $0xd28] sm:$0xff]
        %v1317 = vld [vmem:[%s471 + $0xd30] sm:$0xff]
        %v1318 = vld [vmem:[%s471 + $0xd38] sm:$0xff]
        %v1319 = vld [vmem:[%s471 + $0xd40] sm:$0xff]
        %v1320 = vld [vmem:[%s471 + $0xd48] sm:$0xff]
        %v1321 = vld [vmem:[%s471 + $0xd50] sm:$0xff]
        %v1322 = vld [vmem:[%s471 + $0xd58] sm:$0xff]
        %v1323 = vld [vmem:[%s471 + $0xd60] sm:$0xff]
        %v1324 = vld [vmem:[%s471 + $0xd68] sm:$0xff]
        %v1325 = vld [vmem:[%s471 + $0xd70] sm:$0xff]
        %v1326 = vld [vmem:[%s471 + $0xd78] sm:$0xff]
        %v1327 = vld [vmem:[%s471 + $0xd80] sm:$0xff]
        %v1328 = vld [vmem:[%s471 + $0xd88] sm:$0xff]
        %v1329 = vld [vmem:[%s471 + $0xd90] sm:$0xff]
        %v1330 = vld [vmem:[%s471 + $0xd98] sm:$0xff]
        %v1331 = vld [vmem:[%s471 + $0xda0] sm:$0xff]
        %v1332 = vld [vmem:[%s471 + $0xda8] sm:$0xff]
        %v1333 = vld [vmem:[%s471 + $0xdb0] sm:$0xff]
        %v1334 = vld [vmem:[%s471 + $0xdb8] sm:$0xff]
        %v1335 = vld [vmem:[%s471 + $0xdc0] sm:$0xff]
        %v1336 = vld [vmem:[%s471 + $0xdc8] sm:$0xff]
        %v1337 = vld [vmem:[%s471 + $0xdd0] sm:$0xff]
        %v1338 = vld [vmem:[%s471 + $0xdd8] sm:$0xff]
        %v1339 = vld [vmem:[%s471 + $0xde0] sm:$0xff]
        %v1340 = vld [vmem:[%s471 + $0xde8] sm:$0xff]
        %v1341 = vld [vmem:[%s471 + $0xdf0] sm:$0xff]
        %v1342 = vld [vmem:[%s471 + $0xdf8] sm:$0xff]
        %v1343 = vld [vmem:[%s471 + $0xe00] sm:$0xff]
        %v1344 = vld [vmem:[%s471 + $0xe08] sm:$0xff]
        %v1345 = vld [vmem:[%s471 + $0xe10] sm:$0xff]
        %v1346 = vld [vmem:[%s471 + $0xe18] sm:$0xff]
        %v1347 = vld [vmem:[%s471 + $0xe20] sm:$0xff]
        %v1348 = vld [vmem:[%s471 + $0xe28] sm:$0xff]
        %v1349 = vld [vmem:[%s471 + $0xe30] sm:$0xff]
        %v1350 = vld [vmem:[%s471 + $0xe38] sm:$0xff]
        %v1351 = vld [vmem:[%s471 + $0xe40] sm:$0xff]
        %v1352 = vld [vmem:[%s471 + $0xe48] sm:$0xff]
        %v1353 = vld [vmem:[%s471 + $0xe50] sm:$0xff]
        %v1354 = vld [vmem:[%s471 + $0xe58] sm:$0xff]
        %v1355 = vld [vmem:[%s471 + $0xe60] sm:$0xff]
        %v1356 = vld [vmem:[%s471 + $0xe68] sm:$0xff]
        %v1357 = vld [vmem:[%s471 + $0xe70] sm:$0xff]
        %v1358 = vld [vmem:[%s471 + $0xe78] sm:$0xff]
        %v1359 = vld [vmem:[%s471 + $0xe80] sm:$0xff]
        %v1360 = vld [vmem:[%s471 + $0xe88] sm:$0xff]
        %v1361 = vld [vmem:[%s471 + $0xe90] sm:$0xff]
        %v1362 = vld [vmem:[%s471 + $0xe98] sm:$0xff]
        %v1363 = vld [vmem:[%s471 + $0xea0] sm:$0xff]
        %v1364 = vld [vmem:[%s471 + $0xea8] sm:$0xff]
        %v1365 = vld [vmem:[%s471 + $0xeb0] sm:$0xff]
        %v1366 = vld [vmem:[%s471 + $0xeb8] sm:$0xff]
        %v1367 = vld [vmem:[%s471 + $0xec0] sm:$0xff]
        %v1368 = vld [vmem:[%s471 + $0xec8] sm:$0xff]
        %v1369 = vld [vmem:[%s471 + $0xed0] sm:$0xff]
        %v1370 = vld [vmem:[%s471 + $0xed8] sm:$0xff]
        %v1371 = vld [vmem:[%s471 + $0xee0] sm:$0xff]
        %v1372 = vld [vmem:[%s471 + $0xee8] sm:$0xff]
        %v1373 = vld [vmem:[%s471 + $0xef0] sm:$0xff]
        %v1374 = vld [vmem:[%s471 + $0xef8] sm:$0xff]
        %v1375 = vld [vmem:[%s471 + $0xf00] sm:$0xff]
        %v1376 = vld [vmem:[%s471 + $0xf08] sm:$0xff]
        %v1377 = vld [vmem:[%s471 + $0xf10] sm:$0xff]
        %v1378 = vld [vmem:[%s471 + $0xf18] sm:$0xff]
        %v1379 = vld [vmem:[%s471 + $0xf20] sm:$0xff]
        %v1380 = vld [vmem:[%s471 + $0xf28] sm:$0xff]
        %v1381 = vld [vmem:[%s471 + $0xf30] sm:$0xff]
        %v1382 = vld [vmem:[%s471 + $0xf38] sm:$0xff]
        %v1383 = vld [vmem:[%s471 + $0xf40] sm:$0xff]
        %v1384 = vld [vmem:[%s471 + $0xf48] sm:$0xff]
        %v1385 = vld [vmem:[%s471 + $0xf50] sm:$0xff]
        %v1386 = vld [vmem:[%s471 + $0xf58] sm:$0xff]
        %v1387 = vld [vmem:[%s471 + $0xf60] sm:$0xff]
        %v1388 = vld [vmem:[%s471 + $0xf68] sm:$0xff]
        %v1389 = vld [vmem:[%s471 + $0xf70] sm:$0xff]
        %v1390 = vld [vmem:[%s471 + $0xf78] sm:$0xff]
        %v1391 = vld [vmem:[%s471 + $0xf80] sm:$0xff]
        %v1392 = vld [vmem:[%s471 + $0xf88] sm:$0xff]
        %v1393 = vld [vmem:[%s471 + $0xf90] sm:$0xff]
        %v1394 = vld [vmem:[%s471 + $0xf98] sm:$0xff]
        %v1395 = vld [vmem:[%s471 + $0xfa0] sm:$0xff]
        %v1396 = vld [vmem:[%s471 + $0xfa8] sm:$0xff]
        %v1397 = vld [vmem:[%s471 + $0xfb0] sm:$0xff]
        %v1398 = vld [vmem:[%s471 + $0xfb8] sm:$0xff]
        %v1399 = vld [vmem:[%s471 + $0xfc0] sm:$0xff]
        %v1400 = vld [vmem:[%s471 + $0xfc8] sm:$0xff]
        %v1401 = vld [vmem:[%s471 + $0xfd0] sm:$0xff]
        %v1402 = vld [vmem:[%s471 + $0xfd8] sm:$0xff]
        %v1403 = vld [vmem:[%s471 + $0xfe0] sm:$0xff]
        %v1404 = vld [vmem:[%s471 + $0xfe8] sm:$0xff]
        %v1405 = vld [vmem:[%s471 + $0xff0] sm:$0xff]
        %v1406 = vld [vmem:[%s471 + $0xff8] sm:$0xff]
        %v1407 = vld [vmem:[%s471 + $0x1000] sm:$0xff]
        %v1408 = vld [vmem:[%s471 + $0x1008] sm:$0xff]
        %v1409 = vld [vmem:[%s471 + $0x1010] sm:$0xff]
        %v1410 = vld [vmem:[%s471 + $0x1018] sm:$0xff]
        %v1411 = vld [vmem:[%s471 + $0x1020] sm:$0xff]
        %v1412 = vld [vmem:[%s471 + $0x1028] sm:$0xff]
        %v1413 = vld [vmem:[%s471 + $0x1030] sm:$0xff]
        %v1414 = vld [vmem:[%s471 + $0x1038] sm:$0xff]
        %v1415 = vld [vmem:[%s471 + $0x1040] sm:$0xff]
        %v1416 = vld [vmem:[%s471 + $0x1048] sm:$0xff]
        %v1417 = vld [vmem:[%s471 + $0x1050] sm:$0xff]
        %v1418 = vld [vmem:[%s471 + $0x1058] sm:$0xff]
        %v1419 = vld [vmem:[%s471 + $0x1060] sm:$0xff]
        %v1420 = vld [vmem:[%s471 + $0x1068] sm:$0xff]
        %v1421 = vld [vmem:[%s471 + $0x1070] sm:$0xff]
        %v1422 = vld [vmem:[%s471 + $0x1078] sm:$0xff]
        %v1423 = vld [vmem:[%s471 + $0x1080] sm:$0xff]
        %v1424 = vld [vmem:[%s471 + $0x1088] sm:$0xff]
        %v1425 = vld [vmem:[%s471 + $0x1090] sm:$0xff]
        %v1426 = vld [vmem:[%s471 + $0x1098] sm:$0xff]
        %v1427 = vld [vmem:[%s471 + $0x10a0] sm:$0xff]
        %v1428 = vld [vmem:[%s471 + $0x10a8] sm:$0xff]
        %v1429 = vld [vmem:[%s471 + $0x10b0] sm:$0xff]
        %v1430 = vld [vmem:[%s471 + $0x10b8] sm:$0xff]
        %v1431 = vld [vmem:[%s471 + $0x10c0] sm:$0xff]
        %v1432 = vld [vmem:[%s471 + $0x10c8] sm:$0xff]
        %v1433 = vld [vmem:[%s471 + $0x10d0] sm:$0xff]
        %v1434 = vld [vmem:[%s471 + $0x10d8] sm:$0xff]
        %v1435 = vld [vmem:[%s471 + $0x10e0] sm:$0xff]
        %v1436 = vld [vmem:[%s471 + $0x10e8] sm:$0xff]
        %v1437 = vld [vmem:[%s471 + $0x10f0] sm:$0xff]
        %v1438 = vld [vmem:[%s471 + $0x10f8] sm:$0xff]
        %v1439 = vld [vmem:[%s471 + $0x1100] sm:$0xff]
        %v1440 = vld [vmem:[%s471 + $0x1108] sm:$0xff]
        %v1441 = vld [vmem:[%s471 + $0x1110] sm:$0xff]
        %v1442 = vld [vmem:[%s471 + $0x1118] sm:$0xff]
        %v1443 = vld [vmem:[%s471 + $0x1120] sm:$0xff]
        %v1444 = vld [vmem:[%s471 + $0x1128] sm:$0xff]
        %v1445 = vld [vmem:[%s471 + $0x1130] sm:$0xff]
        %v1446 = vld [vmem:[%s471 + $0x1138] sm:$0xff]
        %v1447 = vld [vmem:[%s471 + $0x1140] sm:$0xff]
        %v1448 = vld [vmem:[%s471 + $0x1148] sm:$0xff]
        %v1449 = vld [vmem:[%s471 + $0x1150] sm:$0xff]
        %v1450 = vld [vmem:[%s471 + $0x1158] sm:$0xff]
        %v1451 = vld [vmem:[%s471 + $0x1160] sm:$0xff]
        %v1452 = vld [vmem:[%s471 + $0x1168] sm:$0xff]
        %v1453 = vld [vmem:[%s471 + $0x1170] sm:$0xff]
        %v1454 = vld [vmem:[%s471 + $0x1178] sm:$0xff]
        %v1455 = vld [vmem:[%s471 + $0x1180] sm:$0xff]
        %v1456 = vld [vmem:[%s471 + $0x1188] sm:$0xff]
        %v1457 = vld [vmem:[%s471 + $0x1190] sm:$0xff]
        %v1458 = vld [vmem:[%s471 + $0x1198] sm:$0xff]
        %v1459 = vld [vmem:[%s471 + $0x11a0] sm:$0xff]
        %v1460 = vld [vmem:[%s471 + $0x11a8] sm:$0xff]
        %v1461 = vld [vmem:[%s471 + $0x11b0] sm:$0xff]
        %v1462 = vld [vmem:[%s471 + $0x11b8] sm:$0xff]
        %v1463 = vld [vmem:[%s471 + $0x11c0] sm:$0xff]
        %v1464 = vld [vmem:[%s471 + $0x11c8] sm:$0xff]
        %v1465 = vld [vmem:[%s471 + $0x11d0] sm:$0xff]
        %v1466 = vld [vmem:[%s471 + $0x11d8] sm:$0xff]
        %v1467 = vld [vmem:[%s471 + $0x11e0] sm:$0xff]
        %v1468 = vld [vmem:[%s471 + $0x11e8] sm:$0xff]
        %v1469 = vld [vmem:[%s471 + $0x11f0] sm:$0xff]
        %v1470 = vld [vmem:[%s471 + $0x11f8] sm:$0xff]
        %v1471 = vld [vmem:[%s471 + $0x1200] sm:$0xff]
        %v1472 = vld [vmem:[%s471 + $0x1208] sm:$0xff]
        %v1473 = vld [vmem:[%s471 + $0x1210] sm:$0xff]
        %v1474 = vld [vmem:[%s471 + $0x1218] sm:$0xff]
        %v1475 = vld [vmem:[%s471 + $0x1220] sm:$0xff]
        %v1476 = vld [vmem:[%s471 + $0x1228] sm:$0xff]
        %v1477 = vld [vmem:[%s471 + $0x1230] sm:$0xff]
        %v1478 = vld [vmem:[%s471 + $0x1238] sm:$0xff]
        %v1479 = vld [vmem:[%s471 + $0x1240] sm:$0xff]
        %v1480 = vld [vmem:[%s471 + $0x1248] sm:$0xff]
        %v1481 = vld [vmem:[%s471 + $0x1250] sm:$0xff]
        %v1482 = vld [vmem:[%s471 + $0x1258] sm:$0xff]
        %v1483 = vld [vmem:[%s471 + $0x1260] sm:$0xff]
        %v1484 = vld [vmem:[%s471 + $0x1268] sm:$0xff]
        %v1485 = vld [vmem:[%s471 + $0x1270] sm:$0xff]
        %v1486 = vld [vmem:[%s471 + $0x1278] sm:$0xff]
        %v1487 = vld [vmem:[%s471 + $0x1280] sm:$0xff]
        %v1488 = vld [vmem:[%s471 + $0x1288] sm:$0xff]
        %v1489 = vld [vmem:[%s471 + $0x1290] sm:$0xff]
        %v1490 = vld [vmem:[%s471 + $0x1298] sm:$0xff]
        %v1491 = vld [vmem:[%s471 + $0x12a0] sm:$0xff]
        %v1492 = vld [vmem:[%s471 + $0x12a8] sm:$0xff]
        %v1493 = vld [vmem:[%s471 + $0x12b0] sm:$0xff]
        %v1494 = vld [vmem:[%s471 + $0x12b8] sm:$0xff]
        %v1495 = vld [vmem:[%s471 + $0x12c0] sm:$0xff]
        %v1496 = vld [vmem:[%s471 + $0x12c8] sm:$0xff]
        %v1497 = vld [vmem:[%s471 + $0x12d0] sm:$0xff]
        %v1498 = vld [vmem:[%s471 + $0x12d8] sm:$0xff]
        %v1499 = vld [vmem:[%s471 + $0x12e0] sm:$0xff]
        %v1500 = vld [vmem:[%s471 + $0x12e8] sm:$0xff]
        %v1501 = vld [vmem:[%s471 + $0x12f0] sm:$0xff]
        %v1502 = vld [vmem:[%s471 + $0x12f8] sm:$0xff]
        %v1503 = vld [vmem:[%s471 + $0x1300] sm:$0xff]
        %v1504 = vld [vmem:[%s471 + $0x1308] sm:$0xff]
        %v1505 = vld [vmem:[%s471 + $0x1310] sm:$0xff]
        %v1506 = vld [vmem:[%s471 + $0x1318] sm:$0xff]
        %v1507 = vld [vmem:[%s471 + $0x1320] sm:$0xff]
        %v1508 = vld [vmem:[%s471 + $0x1328] sm:$0xff]
        %v1509 = vld [vmem:[%s471 + $0x1330] sm:$0xff]
        %v1510 = vld [vmem:[%s471 + $0x1338] sm:$0xff]
        %v1511 = vld [vmem:[%s471 + $0x1340] sm:$0xff]
        %v1512 = vld [vmem:[%s471 + $0x1348] sm:$0xff]
        %v1513 = vld [vmem:[%s471 + $0x1350] sm:$0xff]
        %v1514 = vld [vmem:[%s471 + $0x1358] sm:$0xff]
        %v1515 = vld [vmem:[%s471 + $0x1360] sm:$0xff]
        %v1516 = vld [vmem:[%s471 + $0x1368] sm:$0xff]
        %v1517 = vld [vmem:[%s471 + $0x1370] sm:$0xff]
        %v1518 = vld [vmem:[%s471 + $0x1378] sm:$0xff]
        %v1519 = vld [vmem:[%s471 + $0x1380] sm:$0xff]
        %v1520 = vld [vmem:[%s471 + $0x1388] sm:$0xff]
        %v1521 = vld [vmem:[%s471 + $0x1390] sm:$0xff]
        %v1522 = vld [vmem:[%s471 + $0x1398] sm:$0xff]
        %v1523 = vld [vmem:[%s471 + $0x13a0] sm:$0xff]
        %v1524 = vld [vmem:[%s471 + $0x13a8] sm:$0xff]
        %v1525 = vld [vmem:[%s471 + $0x13b0] sm:$0xff]
        %v1526 = vld [vmem:[%s471 + $0x13b8] sm:$0xff]
        %v1527 = vld [vmem:[%s471 + $0x13c0] sm:$0xff]
        %v1528 = vld [vmem:[%s471 + $0x13c8] sm:$0xff]
        %v1529 = vld [vmem:[%s471 + $0x13d0] sm:$0xff]
        %v1530 = vld [vmem:[%s471 + $0x13d8] sm:$0xff]
        %v1531 = vld [vmem:[%s471 + $0x13e0] sm:$0xff]
        %v1532 = vld [vmem:[%s471 + $0x13e8] sm:$0xff]
        %v1533 = vld [vmem:[%s471 + $0x13f0] sm:$0xff]
        %v1534 = vld [vmem:[%s471 + $0x13f8] sm:$0xff]
        %v1535 = vld [vmem:[%s471 + $0x1400] sm:$0xff]
        %v1536 = vld [vmem:[%s471 + $0x1408] sm:$0xff]
        %v1537 = vld [vmem:[%s471 + $0x1410] sm:$0xff]
        %v1538 = vld [vmem:[%s471 + $0x1418] sm:$0xff]
        %v1539 = vld [vmem:[%s471 + $0x1420] sm:$0xff]
        %v1540 = vld [vmem:[%s471 + $0x1428] sm:$0xff]
        %v1541 = vld [vmem:[%s471 + $0x1430] sm:$0xff]
        %v1542 = vld [vmem:[%s471 + $0x1438] sm:$0xff]
        %v1543 = vld [vmem:[%s471 + $0x1440] sm:$0xff]
        %v1544 = vld [vmem:[%s471 + $0x1448] sm:$0xff]
        %v1545 = vld [vmem:[%s471 + $0x1450] sm:$0xff]
        %v1546 = vld [vmem:[%s471 + $0x1458] sm:$0xff]
        %v1547 = vld [vmem:[%s471 + $0x1460] sm:$0xff]
        %v1548 = vld [vmem:[%s471 + $0x1468] sm:$0xff]
        %v1549 = vld [vmem:[%s471 + $0x1470] sm:$0xff]
        %v1550 = vld [vmem:[%s471 + $0x1478] sm:$0xff]
        %v1551 = vld [vmem:[%s471 + $0x1480] sm:$0xff]
        %v1552 = vld [vmem:[%s471 + $0x1488] sm:$0xff]
        %v1553 = vld [vmem:[%s471 + $0x1490] sm:$0xff]
        %v1554 = vld [vmem:[%s471 + $0x1498] sm:$0xff]
        %v1555 = vld [vmem:[%s471 + $0x14a0] sm:$0xff]
        %v1556 = vld [vmem:[%s471 + $0x14a8] sm:$0xff]
        %v1557 = vld [vmem:[%s471 + $0x14b0] sm:$0xff]
        %v1558 = vld [vmem:[%s471 + $0x14b8] sm:$0xff]
        %v1559 = vld [vmem:[%s471 + $0x14c0] sm:$0xff]
        %v1560 = vld [vmem:[%s471 + $0x14c8] sm:$0xff]
        %v1561 = vld [vmem:[%s471 + $0x14d0] sm:$0xff]
        %v1562 = vld [vmem:[%s471 + $0x14d8] sm:$0xff]
        %v1563 = vld [vmem:[%s471 + $0x14e0] sm:$0xff]
        %v1564 = vld [vmem:[%s471 + $0x14e8] sm:$0xff]
        %v1565 = vld [vmem:[%s471 + $0x14f0] sm:$0xff]
        %v1566 = vld [vmem:[%s471 + $0x14f8] sm:$0xff]
        %v1567 = vld [vmem:[%s471 + $0x1500] sm:$0xff]
        %v1568 = vld [vmem:[%s471 + $0x1508] sm:$0xff]
        %v1569 = vld [vmem:[%s471 + $0x1510] sm:$0xff]
        %v1570 = vld [vmem:[%s471 + $0x1518] sm:$0xff]
        %v1571 = vld [vmem:[%s471 + $0x1520] sm:$0xff]
        %v1572 = vld [vmem:[%s471 + $0x1528] sm:$0xff]
        %v1573 = vld [vmem:[%s471 + $0x1530] sm:$0xff]
        %v1574 = vld [vmem:[%s471 + $0x1538] sm:$0xff]
        %v1575 = vld [vmem:[%s471 + $0x1540] sm:$0xff]
        %v1576 = vld [vmem:[%s471 + $0x1548] sm:$0xff]
        %v1577 = vld [vmem:[%s471 + $0x1550] sm:$0xff]
        %v1578 = vld [vmem:[%s471 + $0x1558] sm:$0xff]
        %v1579 = vld [vmem:[%s471 + $0x1560] sm:$0xff]
        %v1580 = vld [vmem:[%s471 + $0x1568] sm:$0xff]
        %v1581 = vld [vmem:[%s471 + $0x1570] sm:$0xff]
        %v1582 = vld [vmem:[%s471 + $0x1578] sm:$0xff]
        %v1583 = vld [vmem:[%s471 + $0x1580] sm:$0xff]
        %v1584 = vld [vmem:[%s471 + $0x1588] sm:$0xff]
        %v1585 = vld [vmem:[%s471 + $0x1590] sm:$0xff]
        %v1586 = vld [vmem:[%s471 + $0x1598] sm:$0xff]
        %v1587 = vld [vmem:[%s471 + $0x15a0] sm:$0xff]
        %v1588 = vld [vmem:[%s471 + $0x15a8] sm:$0xff]
        %v1589 = vld [vmem:[%s471 + $0x15b0] sm:$0xff]
        %v1590 = vld [vmem:[%s471 + $0x15b8] sm:$0xff]
        %v1591 = vld [vmem:[%s471 + $0x15c0] sm:$0xff]
        %v1592 = vld [vmem:[%s471 + $0x15c8] sm:$0xff]
        %v1593 = vld [vmem:[%s471 + $0x15d0] sm:$0xff]
        %v1594 = vld [vmem:[%s471 + $0x15d8] sm:$0xff]
        %v1595 = vld [vmem:[%s471 + $0x15e0] sm:$0xff]
        %v1596 = vld [vmem:[%s471 + $0x15e8] sm:$0xff]
        %v1597 = vld [vmem:[%s471 + $0x15f0] sm:$0xff]
        %v1598 = vld [vmem:[%s471 + $0x15f8] sm:$0xff]
        %v1599 = vld [vmem:[%s471 + $0x1600] sm:$0xff]
        %v1600 = vld [vmem:[%s471 + $0x1608] sm:$0xff]
        %v1601 = vld [vmem:[%s471 + $0x1610] sm:$0xff]
        %v1602 = vld [vmem:[%s471 + $0x1618] sm:$0xff]
        %v1603 = vld [vmem:[%s471 + $0x1620] sm:$0xff]
        %v1604 = vld [vmem:[%s471 + $0x1628] sm:$0xff]
        %v1605 = vld [vmem:[%s471 + $0x1630] sm:$0xff]
        %v1606 = vld [vmem:[%s471 + $0x1638] sm:$0xff]
        %v1607 = vld [vmem:[%s471 + $0x1640] sm:$0xff]
        %v1608 = vld [vmem:[%s471 + $0x1648] sm:$0xff]
        %v1609 = vld [vmem:[%s471 + $0x1650] sm:$0xff]
        %v1610 = vld [vmem:[%s471 + $0x1658] sm:$0xff]
        %v1611 = vld [vmem:[%s471 + $0x1660] sm:$0xff]
        %v1612 = vld [vmem:[%s471 + $0x1668] sm:$0xff]
        %v1613 = vld [vmem:[%s471 + $0x1670] sm:$0xff]
        %v1614 = vld [vmem:[%s471 + $0x1678] sm:$0xff]
        %v1615 = vld [vmem:[%s471 + $0x1680] sm:$0xff]
        %v1616 = vld [vmem:[%s471 + $0x1688] sm:$0xff]
        %v1617 = vld [vmem:[%s471 + $0x1690] sm:$0xff]
        %v1618 = vld [vmem:[%s471 + $0x1698] sm:$0xff]
        %v1619 = vld [vmem:[%s471 + $0x16a0] sm:$0xff]
        %v1620 = vld [vmem:[%s471 + $0x16a8] sm:$0xff]
        %v1621 = vld [vmem:[%s471 + $0x16b0] sm:$0xff]
        %v1622 = vld [vmem:[%s471 + $0x16b8] sm:$0xff]
        %v1623 = vld [vmem:[%s471 + $0x16c0] sm:$0xff]
        %v1624 = vld [vmem:[%s471 + $0x16c8] sm:$0xff]
        %v1625 = vld [vmem:[%s471 + $0x16d0] sm:$0xff]
        %v1626 = vld [vmem:[%s471 + $0x16d8] sm:$0xff]
        %v1627 = vld [vmem:[%s471 + $0x16e0] sm:$0xff]
        %v1628 = vld [vmem:[%s471 + $0x16e8] sm:$0xff]
        %v1629 = vld [vmem:[%s471 + $0x16f0] sm:$0xff]
        %v1630 = vld [vmem:[%s471 + $0x16f8] sm:$0xff]
        %v1631 = vld [vmem:[%s471 + $0x1700] sm:$0xff]
        %v1632 = vld [vmem:[%s471 + $0x1708] sm:$0xff]
        %v1633 = vld [vmem:[%s471 + $0x1710] sm:$0xff]
        %v1634 = vld [vmem:[%s471 + $0x1718] sm:$0xff]
        %v1635 = vld [vmem:[%s471 + $0x1720] sm:$0xff]
        %v1636 = vld [vmem:[%s471 + $0x1728] sm:$0xff]
        %v1637 = vld [vmem:[%s471 + $0x1730] sm:$0xff]
        %v1638 = vld [vmem:[%s471 + $0x1738] sm:$0xff]
        %v1639 = vld [vmem:[%s471 + $0x1740] sm:$0xff]
        %v1640 = vld [vmem:[%s471 + $0x1748] sm:$0xff]
        %v1641 = vld [vmem:[%s471 + $0x1750] sm:$0xff]
        %v1642 = vld [vmem:[%s471 + $0x1758] sm:$0xff]
        %v1643 = vld [vmem:[%s471 + $0x1760] sm:$0xff]
        %v1644 = vld [vmem:[%s471 + $0x1768] sm:$0xff]
        %v1645 = vld [vmem:[%s471 + $0x1770] sm:$0xff]
        %v1646 = vld [vmem:[%s471 + $0x1778] sm:$0xff]
        %v1647 = vld [vmem:[%s471 + $0x1780] sm:$0xff]
        %v1648 = vld [vmem:[%s471 + $0x1788] sm:$0xff]
        %v1649 = vld [vmem:[%s471 + $0x1790] sm:$0xff]
        %v1650 = vld [vmem:[%s471 + $0x1798] sm:$0xff]
        %v1651 = vld [vmem:[%s471 + $0x17a0] sm:$0xff]
        %v1652 = vld [vmem:[%s471 + $0x17a8] sm:$0xff]
        %v1653 = vld [vmem:[%s471 + $0x17b0] sm:$0xff]
        %v1654 = vld [vmem:[%s471 + $0x17b8] sm:$0xff]
        %v1655 = vld [vmem:[%s471 + $0x17c0] sm:$0xff]
        %v1656 = vld [vmem:[%s471 + $0x17c8] sm:$0xff]
        %v1657 = vld [vmem:[%s471 + $0x17d0] sm:$0xff]
        %v1658 = vld [vmem:[%s471 + $0x17d8] sm:$0xff]
        %v1659 = vld [vmem:[%s471 + $0x17e0] sm:$0xff]
        %v1660 = vld [vmem:[%s471 + $0x17e8] sm:$0xff]
        %v1661 = vld [vmem:[%s471 + $0x17f0] sm:$0xff]
        %v1662 = vld [vmem:[%s471 + $0x17f8] sm:$0xff]
        %v1663 = vld [vmem:[%s471 + $0x1800] sm:$0xff]
        %v1664 = vld [vmem:[%s471 + $0x1808] sm:$0xff]
        %v1665 = vld [vmem:[%s471 + $0x1810] sm:$0xff]
        %v1666 = vld [vmem:[%s471 + $0x1818] sm:$0xff]
        %v1667 = vld [vmem:[%s471 + $0x1820] sm:$0xff]
        %v1668 = vld [vmem:[%s471 + $0x1828] sm:$0xff]
        %v1669 = vld [vmem:[%s471 + $0x1830] sm:$0xff]
        %v1670 = vld [vmem:[%s471 + $0x1838] sm:$0xff]
        %v1671 = vld [vmem:[%s471 + $0x1840] sm:$0xff]
        %v1672 = vld [vmem:[%s471 + $0x1848] sm:$0xff]
        %v1673 = vld [vmem:[%s471 + $0x1850] sm:$0xff]
        %v1674 = vld [vmem:[%s471 + $0x1858] sm:$0xff]
        %v1675 = vld [vmem:[%s471 + $0x1860] sm:$0xff]
        %v1676 = vld [vmem:[%s471 + $0x1868] sm:$0xff]
        %v1677 = vld [vmem:[%s471 + $0x1870] sm:$0xff]
        %v1678 = vld [vmem:[%s471 + $0x1878] sm:$0xff]
        %v1679 = vld [vmem:[%s471 + $0x1880] sm:$0xff]
        %v1680 = vld [vmem:[%s471 + $0x1888] sm:$0xff]
        %v1681 = vld [vmem:[%s471 + $0x1890] sm:$0xff]
        %v1682 = vld [vmem:[%s471 + $0x1898] sm:$0xff]
        %v1683 = vld [vmem:[%s471 + $0x18a0] sm:$0xff]
        %v1684 = vld [vmem:[%s471 + $0x18a8] sm:$0xff]
        %v1685 = vld [vmem:[%s471 + $0x18b0] sm:$0xff]
        %v1686 = vld [vmem:[%s471 + $0x18b8] sm:$0xff]
        %v1687 = vld [vmem:[%s471 + $0x18c0] sm:$0xff]
        %v1688 = vld [vmem:[%s471 + $0x18c8] sm:$0xff]
        %v1689 = vld [vmem:[%s471 + $0x18d0] sm:$0xff]
        %v1690 = vld [vmem:[%s471 + $0x18d8] sm:$0xff]
        %v1691 = vld [vmem:[%s471 + $0x18e0] sm:$0xff]
        %v1692 = vld [vmem:[%s471 + $0x18e8] sm:$0xff]
        %v1693 = vld [vmem:[%s471 + $0x18f0] sm:$0xff]
        %v1694 = vld [vmem:[%s471 + $0x18f8] sm:$0xff]
        %v1695 = vld [vmem:[%s471 + $0x1900] sm:$0xff]
        %v1696 = vld [vmem:[%s471 + $0x1908] sm:$0xff]
        %v1697 = vld [vmem:[%s471 + $0x1910] sm:$0xff]
        %v1698 = vld [vmem:[%s471 + $0x1918] sm:$0xff]
        %v1699 = vld [vmem:[%s471 + $0x1920] sm:$0xff]
        %v1700 = vld [vmem:[%s471 + $0x1928] sm:$0xff]
        %v1701 = vld [vmem:[%s471 + $0x1930] sm:$0xff]
        %v1702 = vld [vmem:[%s471 + $0x1938] sm:$0xff]
        %v1703 = vld [vmem:[%s471 + $0x1940] sm:$0xff]
        %v1704 = vld [vmem:[%s471 + $0x1948] sm:$0xff]
        %v1705 = vld [vmem:[%s471 + $0x1950] sm:$0xff]
        %v1706 = vld [vmem:[%s471 + $0x1958] sm:$0xff]
        %v1707 = vld [vmem:[%s471 + $0x1960] sm:$0xff]
        %v1708 = vld [vmem:[%s471 + $0x1968] sm:$0xff]
        %v1709 = vld [vmem:[%s471 + $0x1970] sm:$0xff]
        %v1710 = vld [vmem:[%s471 + $0x1978] sm:$0xff]
        %v1711 = vld [vmem:[%s471 + $0x1980] sm:$0xff]
        %v1712 = vld [vmem:[%s471 + $0x1988] sm:$0xff]
        %v1713 = vld [vmem:[%s471 + $0x1990] sm:$0xff]
        %v1714 = vld [vmem:[%s471 + $0x1998] sm:$0xff]
        %v1715 = vld [vmem:[%s471 + $0x19a0] sm:$0xff]
        %v1716 = vld [vmem:[%s471 + $0x19a8] sm:$0xff]
        %v1717 = vld [vmem:[%s471 + $0x19b0] sm:$0xff]
        %v1718 = vld [vmem:[%s471 + $0x19b8] sm:$0xff]
        %v1719 = vld [vmem:[%s471 + $0x19c0] sm:$0xff]
        %v1720 = vld [vmem:[%s471 + $0x19c8] sm:$0xff]
        %v1721 = vld [vmem:[%s471 + $0x19d0] sm:$0xff]
        %v1722 = vld [vmem:[%s471 + $0x19d8] sm:$0xff]
        %v1723 = vld [vmem:[%s471 + $0x19e0] sm:$0xff]
        %v1724 = vld [vmem:[%s471 + $0x19e8] sm:$0xff]
        %v1725 = vld [vmem:[%s471 + $0x19f0] sm:$0xff]
        %v1726 = vld [vmem:[%s471 + $0x19f8] sm:$0xff]
        %v1727 = vld [vmem:[%s471 + $0x1a00] sm:$0xff]
        %v1728 = vld [vmem:[%s471 + $0x1a08] sm:$0xff]
        %v1729 = vld [vmem:[%s471 + $0x1a10] sm:$0xff]
        %v1730 = vld [vmem:[%s471 + $0x1a18] sm:$0xff]
        %v1731 = vld [vmem:[%s471 + $0x1a20] sm:$0xff]
        %v1732 = vld [vmem:[%s471 + $0x1a28] sm:$0xff]
        %v1733 = vld [vmem:[%s471 + $0x1a30] sm:$0xff]
        %v1734 = vld [vmem:[%s471 + $0x1a38] sm:$0xff]
        %v1735 = vld [vmem:[%s471 + $0x1a40] sm:$0xff]
        %v1736 = vld [vmem:[%s471 + $0x1a48] sm:$0xff]
        %v1737 = vld [vmem:[%s471 + $0x1a50] sm:$0xff]
        %v1738 = vld [vmem:[%s471 + $0x1a58] sm:$0xff]
        %v1739 = vld [vmem:[%s471 + $0x1a60] sm:$0xff]
        %v1740 = vld [vmem:[%s471 + $0x1a68] sm:$0xff]
        %v1741 = vld [vmem:[%s471 + $0x1a70] sm:$0xff]
        %v1742 = vld [vmem:[%s471 + $0x1a78] sm:$0xff]
        %v1743 = vld [vmem:[%s471 + $0x1a80] sm:$0xff]
        %v1744 = vld [vmem:[%s471 + $0x1a88] sm:$0xff]
        %v1745 = vld [vmem:[%s471 + $0x1a90] sm:$0xff]
        %v1746 = vld [vmem:[%s471 + $0x1a98] sm:$0xff]
        %v1747 = vld [vmem:[%s471 + $0x1aa0] sm:$0xff]
        %v1748 = vld [vmem:[%s471 + $0x1aa8] sm:$0xff]
        %v1749 = vld [vmem:[%s471 + $0x1ab0] sm:$0xff]
        %v1750 = vld [vmem:[%s471 + $0x1ab8] sm:$0xff]
        %v1751 = vld [vmem:[%s471 + $0x1ac0] sm:$0xff]
        %v1752 = vld [vmem:[%s471 + $0x1ac8] sm:$0xff]
        %v1753 = vld [vmem:[%s471 + $0x1ad0] sm:$0xff]
        %v1754 = vld [vmem:[%s471 + $0x1ad8] sm:$0xff]
        %v1755 = vld [vmem:[%s471 + $0x1ae0] sm:$0xff]
        %v1756 = vld [vmem:[%s471 + $0x1ae8] sm:$0xff]
        %v1757 = vld [vmem:[%s471 + $0x1af0] sm:$0xff]
        %v1758 = vld [vmem:[%s471 + $0x1af8] sm:$0xff]
        %v1759 = vld [vmem:[%s471 + $0x1b00] sm:$0xff]
        %v1760 = vld [vmem:[%s471 + $0x1b08] sm:$0xff]
        %v1761 = vld [vmem:[%s471 + $0x1b10] sm:$0xff]
        %v1762 = vld [vmem:[%s471 + $0x1b18] sm:$0xff]
        %v1763 = vld [vmem:[%s471 + $0x1b20] sm:$0xff]
        %v1764 = vld [vmem:[%s471 + $0x1b28] sm:$0xff]
        %v1765 = vld [vmem:[%s471 + $0x1b30] sm:$0xff]
        %v1766 = vld [vmem:[%s471 + $0x1b38] sm:$0xff]
        %v1767 = vld [vmem:[%s471 + $0x1b40] sm:$0xff]
        %v1768 = vld [vmem:[%s471 + $0x1b48] sm:$0xff]
        %v1769 = vld [vmem:[%s471 + $0x1b50] sm:$0xff]
        %v1770 = vld [vmem:[%s471 + $0x1b58] sm:$0xff]
        %v1771 = vld [vmem:[%s471 + $0x1b60] sm:$0xff]
        %v1772 = vld [vmem:[%s471 + $0x1b68] sm:$0xff]
        %v1773 = vld [vmem:[%s471 + $0x1b70] sm:$0xff]
        %v1774 = vld [vmem:[%s471 + $0x1b78] sm:$0xff]
        %v1775 = vld [vmem:[%s471 + $0x1b80] sm:$0xff]
        %v1776 = vld [vmem:[%s471 + $0x1b88] sm:$0xff]
        %v1777 = vld [vmem:[%s471 + $0x1b90] sm:$0xff]
        %v1778 = vld [vmem:[%s471 + $0x1b98] sm:$0xff]
        %v1779 = vld [vmem:[%s471 + $0x1ba0] sm:$0xff]
        %v1780 = vld [vmem:[%s471 + $0x1ba8] sm:$0xff]
        %v1781 = vld [vmem:[%s471 + $0x1bb0] sm:$0xff]
        %v1782 = vld [vmem:[%s471 + $0x1bb8] sm:$0xff]
        %v1783 = vld [vmem:[%s471 + $0x1bc0] sm:$0xff]
        %v1784 = vld [vmem:[%s471 + $0x1bc8] sm:$0xff]
        %v1785 = vld [vmem:[%s471 + $0x1bd0] sm:$0xff]
        %v1786 = vld [vmem:[%s471 + $0x1bd8] sm:$0xff]
        %v1787 = vld [vmem:[%s471 + $0x1be0] sm:$0xff]
        %v1788 = vld [vmem:[%s471 + $0x1be8] sm:$0xff]
        %v1789 = vld [vmem:[%s471 + $0x1bf0] sm:$0xff]
        %v1790 = vld [vmem:[%s471 + $0x1bf8] sm:$0xff]
        %v1791 = vld [vmem:[%s471 + $0x1c00] sm:$0xff]
        %v1792 = vld [vmem:[%s471 + $0x1c08] sm:$0xff]
        %v1793 = vld [vmem:[%s471 + $0x1c10] sm:$0xff]
        %v1794 = vld [vmem:[%s471 + $0x1c18] sm:$0xff]
        %v1795 = vld [vmem:[%s471 + $0x1c20] sm:$0xff]
        %v1796 = vld [vmem:[%s471 + $0x1c28] sm:$0xff]
        %v1797 = vld [vmem:[%s471 + $0x1c30] sm:$0xff]
        %v1798 = vld [vmem:[%s471 + $0x1c38] sm:$0xff]
        %v1799 = vld [vmem:[%s471 + $0x1c40] sm:$0xff]
        %v1800 = vld [vmem:[%s471 + $0x1c48] sm:$0xff]
        %v1801 = vld [vmem:[%s471 + $0x1c50] sm:$0xff]
        %v1802 = vld [vmem:[%s471 + $0x1c58] sm:$0xff]
        %v1803 = vld [vmem:[%s471 + $0x1c60] sm:$0xff]
        %v1804 = vld [vmem:[%s471 + $0x1c68] sm:$0xff]
        %v1805 = vld [vmem:[%s471 + $0x1c70] sm:$0xff]
        %v1806 = vld [vmem:[%s471 + $0x1c78] sm:$0xff]
        %v1807 = vld [vmem:[%s471 + $0x1c80] sm:$0xff]
        %v1808 = vld [vmem:[%s471 + $0x1c88] sm:$0xff]
        %v1809 = vld [vmem:[%s471 + $0x1c90] sm:$0xff]
        %v1810 = vld [vmem:[%s471 + $0x1c98] sm:$0xff]
        %v1811 = vld [vmem:[%s471 + $0x1ca0] sm:$0xff]
        %v1812 = vld [vmem:[%s471 + $0x1ca8] sm:$0xff]
        %v1813 = vld [vmem:[%s471 + $0x1cb0] sm:$0xff]
        %v1814 = vld [vmem:[%s471 + $0x1cb8] sm:$0xff]
        %v1815 = vld [vmem:[%s471 + $0x1cc0] sm:$0xff]
        %v1816 = vld [vmem:[%s471 + $0x1cc8] sm:$0xff]
        %v1817 = vld [vmem:[%s471 + $0x1cd0] sm:$0xff]
        %v1818 = vld [vmem:[%s471 + $0x1cd8] sm:$0xff]
        %v1819 = vld [vmem:[%s471 + $0x1ce0] sm:$0xff]
        %v1820 = vld [vmem:[%s471 + $0x1ce8] sm:$0xff]
        %v1821 = vld [vmem:[%s471 + $0x1cf0] sm:$0xff]
        %v1822 = vld [vmem:[%s471 + $0x1cf8] sm:$0xff]
        %v1823 = vld [vmem:[%s471 + $0x1d00] sm:$0xff]
        %v1824 = vld [vmem:[%s471 + $0x1d08] sm:$0xff]
        %v1825 = vld [vmem:[%s471 + $0x1d10] sm:$0xff]
        %v1826 = vld [vmem:[%s471 + $0x1d18] sm:$0xff]
        %v1827 = vld [vmem:[%s471 + $0x1d20] sm:$0xff]
        %v1828 = vld [vmem:[%s471 + $0x1d28] sm:$0xff]
        %v1829 = vld [vmem:[%s471 + $0x1d30] sm:$0xff]
        %v1830 = vld [vmem:[%s471 + $0x1d38] sm:$0xff]
        %v1831 = vld [vmem:[%s471 + $0x1d40] sm:$0xff]
        %v1832 = vld [vmem:[%s471 + $0x1d48] sm:$0xff]
        %v1833 = vld [vmem:[%s471 + $0x1d50] sm:$0xff]
        %v1834 = vld [vmem:[%s471 + $0x1d58] sm:$0xff]
        %v1835 = vld [vmem:[%s471 + $0x1d60] sm:$0xff]
        %v1836 = vld [vmem:[%s471 + $0x1d68] sm:$0xff]
        %v1837 = vld [vmem:[%s471 + $0x1d70] sm:$0xff]
        %v1838 = vld [vmem:[%s471 + $0x1d78] sm:$0xff]
        %v1839 = vld [vmem:[%s471 + $0x1d80] sm:$0xff]
        %v1840 = vld [vmem:[%s471 + $0x1d88] sm:$0xff]
        %v1841 = vld [vmem:[%s471 + $0x1d90] sm:$0xff]
        %v1842 = vld [vmem:[%s471 + $0x1d98] sm:$0xff]
        %v1843 = vld [vmem:[%s471 + $0x1da0] sm:$0xff]
        %v1844 = vld [vmem:[%s471 + $0x1da8] sm:$0xff]
        %v1845 = vld [vmem:[%s471 + $0x1db0] sm:$0xff]
        %v1846 = vld [vmem:[%s471 + $0x1db8] sm:$0xff]
        %v1847 = vld [vmem:[%s471 + $0x1dc0] sm:$0xff]
        %v1848 = vld [vmem:[%s471 + $0x1dc8] sm:$0xff]
        %v1849 = vld [vmem:[%s471 + $0x1dd0] sm:$0xff]
        %v1850 = vld [vmem:[%s471 + $0x1dd8] sm:$0xff]
        %v1851 = vld [vmem:[%s471 + $0x1de0] sm:$0xff]
        %v1852 = vld [vmem:[%s471 + $0x1de8] sm:$0xff]
        %v1853 = vld [vmem:[%s471 + $0x1df0] sm:$0xff]
        %v1854 = vld [vmem:[%s471 + $0x1df8] sm:$0xff]
        %v1855 = vld [vmem:[%s471 + $0x1e00] sm:$0xff]
        %v1856 = vld [vmem:[%s471 + $0x1e08] sm:$0xff]
        %v1857 = vld [vmem:[%s471 + $0x1e10] sm:$0xff]
        %v1858 = vld [vmem:[%s471 + $0x1e18] sm:$0xff]
        %v1859 = vld [vmem:[%s471 + $0x1e20] sm:$0xff]
        %v1860 = vld [vmem:[%s471 + $0x1e28] sm:$0xff]
        %v1861 = vld [vmem:[%s471 + $0x1e30] sm:$0xff]
        %v1862 = vld [vmem:[%s471 + $0x1e38] sm:$0xff]
        %v1863 = vld [vmem:[%s471 + $0x1e40] sm:$0xff]
        %v1864 = vld [vmem:[%s471 + $0x1e48] sm:$0xff]
        %v1865 = vld [vmem:[%s471 + $0x1e50] sm:$0xff]
        %v1866 = vld [vmem:[%s471 + $0x1e58] sm:$0xff]
        %v1867 = vld [vmem:[%s471 + $0x1e60] sm:$0xff]
        %v1868 = vld [vmem:[%s471 + $0x1e68] sm:$0xff]
        %v1869 = vld [vmem:[%s471 + $0x1e70] sm:$0xff]
        %v1870 = vld [vmem:[%s471 + $0x1e78] sm:$0xff]
        %v1871 = vld [vmem:[%s471 + $0x1e80] sm:$0xff]
        %v1872 = vld [vmem:[%s471 + $0x1e88] sm:$0xff]
        %v1873 = vld [vmem:[%s471 + $0x1e90] sm:$0xff]
        %v1874 = vld [vmem:[%s471 + $0x1e98] sm:$0xff]
        %v1875 = vld [vmem:[%s471 + $0x1ea0] sm:$0xff]
        %v1876 = vld [vmem:[%s471 + $0x1ea8] sm:$0xff]
        %v1877 = vld [vmem:[%s471 + $0x1eb0] sm:$0xff]
        %v1878 = vld [vmem:[%s471 + $0x1eb8] sm:$0xff]
        %v1879 = vld [vmem:[%s471 + $0x1ec0] sm:$0xff]
        %v1880 = vld [vmem:[%s471 + $0x1ec8] sm:$0xff]
        %v1881 = vld [vmem:[%s471 + $0x1ed0] sm:$0xff]
        %v1882 = vld [vmem:[%s471 + $0x1ed8] sm:$0xff]
        %v1883 = vld [vmem:[%s471 + $0x1ee0] sm:$0xff]
        %v1884 = vld [vmem:[%s471 + $0x1ee8] sm:$0xff]
        %v1885 = vld [vmem:[%s471 + $0x1ef0] sm:$0xff]
        %v1886 = vld [vmem:[%s471 + $0x1ef8] sm:$0xff]
        %v1887 = vld [vmem:[%s471 + $0x1f00] sm:$0xff]
        %v1888 = vld [vmem:[%s471 + $0x1f08] sm:$0xff]
        %v1889 = vld [vmem:[%s471 + $0x1f10] sm:$0xff]
        %v1890 = vld [vmem:[%s471 + $0x1f18] sm:$0xff]
        %v1891 = vld [vmem:[%s471 + $0x1f20] sm:$0xff]
        %v1892 = vld [vmem:[%s471 + $0x1f28] sm:$0xff]
        %v1893 = vld [vmem:[%s471 + $0x1f30] sm:$0xff]
        %v1894 = vld [vmem:[%s471 + $0x1f38] sm:$0xff]
        %v1895 = vld [vmem:[%s471 + $0x1f40] sm:$0xff]
        %v1896 = vld [vmem:[%s471 + $0x1f48] sm:$0xff]
        %v1897 = vld [vmem:[%s471 + $0x1f50] sm:$0xff]
        %v1898 = vld [vmem:[%s471 + $0x1f58] sm:$0xff]
        %v1899 = vld [vmem:[%s471 + $0x1f60] sm:$0xff]
        %v1900 = vld [vmem:[%s471 + $0x1f68] sm:$0xff]
        %v1901 = vld [vmem:[%s471 + $0x1f70] sm:$0xff]
        %v1902 = vld [vmem:[%s471 + $0x1f78] sm:$0xff]
        %v1903 = vld [vmem:[%s471 + $0x1f80] sm:$0xff]
        %v1904 = vld [vmem:[%s471 + $0x1f88] sm:$0xff]
        %v1905 = vld [vmem:[%s471 + $0x1f90] sm:$0xff]
        %v1906 = vld [vmem:[%s471 + $0x1f98] sm:$0xff]
        %v1907 = vld [vmem:[%s471 + $0x1fa0] sm:$0xff]
        %v1908 = vld [vmem:[%s471 + $0x1fa8] sm:$0xff]
        %v1909 = vld [vmem:[%s471 + $0x1fb0] sm:$0xff]
        %v1910 = vld [vmem:[%s471 + $0x1fb8] sm:$0xff]
        %v1911 = vld [vmem:[%s471 + $0x1fc0] sm:$0xff]
        %v1912 = vld [vmem:[%s471 + $0x1fc8] sm:$0xff]
        %v1913 = vld [vmem:[%s471 + $0x1fd0] sm:$0xff]
        %v1914 = vld [vmem:[%s471 + $0x1fd8] sm:$0xff]
        %v1915 = vld [vmem:[%s471 + $0x1fe0] sm:$0xff]
        %v1916 = vld [vmem:[%s471 + $0x1fe8] sm:$0xff]
        %v1917 = vld [vmem:[%s471 + $0x1ff0] sm:$0xff]
        %v1918 = vld [vmem:[%s471 + $0x1ff8] sm:$0xff]
        %v1919 = vld [vmem:[%s480] sm:$0xf]
        %v1921 = vlaneseq
        %v1922 = vshrl.u32 %v1921, 7
        %v1923 = vsub.s32 0, %v1922
        %v1924 = vrot.slane %v1919, %v1923
        %v1925 = vlaneseq
        %v1926 = vshrl.u32 %v1925, 7
        %v1927 = vsub.s32 1, %v1926
        %v1928 = vrot.slane %v1919, %v1927
        %v1929 = vlaneseq
        %v1930 = vshrl.u32 %v1929, 7
        %v1931 = vsub.s32 2, %v1930
        %v1932 = vrot.slane %v1919, %v1931
        %v1933 = vlaneseq
        %v1934 = vshrl.u32 %v1933, 7
        %v1935 = vsub.s32 3, %v1934
        %v1936 = vrot.slane %v1919, %v1935
        %v1945 = vcombine.high %v891, %v891
        %v1947 = vunpack.c.l.s4 1983009808
        %v1948 = vunpack.c.0.s8 %v1947
        %v1949 = vlaneseq
        %v1950 = vshrl.u32 %v1949, 7
        %v1951 = vsub.s32 %v1948, %v1950
        %v1952 = vrot.slane %v891, %v1951
        %v1954 = vunpack.c.l.s4 1983009808
        %v1955 = vunpack.c.0.s8 %v1954
        %v1956 = vlaneseq
        %v1957 = vshrl.u32 %v1956, 7
        %v1958 = vsub.s32 %v1955, %v1957
        %v1959 = vrot.slane %v1945, %v1958
        %v1960 = vcombine.high %v1952, %v1952
        %v1961 = vcombine.high %v1959, %v1959
        %v1962 = vcombine.high %v892, %v892
        %v1964 = vunpack.c.l.s4 1983009808
        %v1965 = vunpack.c.0.s8 %v1964
        %v1966 = vlaneseq
        %v1967 = vshrl.u32 %v1966, 7
        %v1968 = vsub.s32 %v1965, %v1967
        %v1969 = vrot.slane %v892, %v1968
        %v1971 = vunpack.c.l.s4 1983009808
        %v1972 = vunpack.c.0.s8 %v1971
        %v1973 = vlaneseq
        %v1974 = vshrl.u32 %v1973, 7
        %v1975 = vsub.s32 %v1972, %v1974
        %v1976 = vrot.slane %v1962, %v1975
        %v1977 = vcombine.high %v1969, %v1969
        %v1978 = vcombine.high %v1976, %v1976
        %v1979 = vcombine.high %v893, %v893
        %v1981 = vunpack.c.l.s4 1983009808
        %v1982 = vunpack.c.0.s8 %v1981
        %v1983 = vlaneseq
        %v1984 = vshrl.u32 %v1983, 7
        %v1985 = vsub.s32 %v1982, %v1984
        %v1986 = vrot.slane %v893, %v1985
        %v1988 = vunpack.c.l.s4 1983009808
        %v1989 = vunpack.c.0.s8 %v1988
        %v1990 = vlaneseq
        %v1991 = vshrl.u32 %v1990, 7
        %v1992 = vsub.s32 %v1989, %v1991
        %v1993 = vrot.slane %v1979, %v1992
        %v1994 = vcombine.high %v1986, %v1986
        %v1995 = vcombine.high %v1993, %v1993
        %v1996 = vcombine.high %v894, %v894
        %v1998 = vunpack.c.l.s4 1983009808
        %v1999 = vunpack.c.0.s8 %v1998
        %v2000 = vlaneseq
        %v2001 = vshrl.u32 %v2000, 7
        %v2002 = vsub.s32 %v1999, %v2001
        %v2003 = vrot.slane %v894, %v2002
        %v2005 = vunpack.c.l.s4 1983009808
        %v2006 = vunpack.c.0.s8 %v2005
        %v2007 = vlaneseq
        %v2008 = vshrl.u32 %v2007, 7
        %v2009 = vsub.s32 %v2006, %v2008
        %v2010 = vrot.slane %v1996, %v2009
        %v2011 = vcombine.high %v2003, %v2003
        %v2012 = vcombine.high %v2010, %v2010
        %2029 = vmatprep.subr.mxu0 %v896
        %2030 = vmatpush1.msra.mxu0 %v895
        %2031 = vmatprep.subr.mxu0 %v900
        %2032 = vmatpush1.msra.mxu0 %v899
        %2033 = vmatprep.subr.mxu0 %v904
        %2034 = vmatpush1.msra.mxu0 %v903
        %2035 = vmatprep.subr.mxu0 %v908
        %2036 = vmatpush1.msra.mxu0 %v907
        %2037 = vmatprep.subr.mxu0 %v912
        %2038 = vmatpush1.msra.mxu0 %v911
        %2039 = vmatprep.subr.mxu0 %v916
        %2040 = vmatpush1.msra.mxu0 %v915
        %2041 = vmatprep.subr.mxu0 %v920
        %2042 = vmatpush1.msra.mxu0 %v919
        %2043 = vmatprep.subr.mxu0 %v924
        %2044 = vmatpush1.msra.mxu0 %v923
        %2045 = vmatprep.subr.mxu0 %v928
        %2046 = vmatpush1.msra.mxu0 %v927
        %2047 = vmatprep.subr.mxu0 %v932
        %2048 = vmatpush1.msra.mxu0 %v931
        %2049 = vmatprep.subr.mxu0 %v936
        %2050 = vmatpush1.msra.mxu0 %v935
        %2051 = vmatprep.subr.mxu0 %v940
        %2052 = vmatpush1.msra.mxu0 %v939
        %2053 = vmatprep.subr.mxu0 %v944
        %2054 = vmatpush1.msra.mxu0 %v943
        %2055 = vmatprep.subr.mxu0 %v948
        %2056 = vmatpush1.msra.mxu0 %v947
        %2057 = vmatprep.subr.mxu0 %v952
        %2058 = vmatpush1.msra.mxu0 %v951
        %2059 = vmatprep.subr.mxu0 %v956
        %2060 = vmatpush1.msra.mxu0 %v955
        %2061 = vmatprep.subr.mxu0 %v960
        %2062 = vmatpush1.msra.mxu0 %v959
        %2063 = vmatprep.subr.mxu0 %v964
        %2064 = vmatpush1.msra.mxu0 %v963
        %2065 = vmatprep.subr.mxu0 %v968
        %2066 = vmatpush1.msra.mxu0 %v967
        %2067 = vmatprep.subr.mxu0 %v972
        %2068 = vmatpush1.msra.mxu0 %v971
        %2069 = vmatprep.subr.mxu0 %v976
        %2070 = vmatpush1.msra.mxu0 %v975
        %2071 = vmatprep.subr.mxu0 %v980
        %2072 = vmatpush1.msra.mxu0 %v979
        %2073 = vmatprep.subr.mxu0 %v984
        %2074 = vmatpush1.msra.mxu0 %v983
        %2075 = vmatprep.subr.mxu0 %v988
        %2076 = vmatpush1.msra.mxu0 %v987
        %2077 = vmatprep.subr.mxu0 %v992
        %2078 = vmatpush1.msra.mxu0 %v991
        %2079 = vmatprep.subr.mxu0 %v996
        %2080 = vmatpush1.msra.mxu0 %v995
        %2081 = vmatprep.subr.mxu0 %v1000
        %2082 = vmatpush1.msra.mxu0 %v999
        %2083 = vmatprep.subr.mxu0 %v1004
        %2084 = vmatpush1.msra.mxu0 %v1003
        %2085 = vmatprep.subr.mxu0 %v1008
        %2086 = vmatpush1.msra.mxu0 %v1007
        %2087 = vmatprep.subr.mxu0 %v1012
        %2088 = vmatpush1.msra.mxu0 %v1011
        %2089 = vmatprep.subr.mxu0 %v1016
        %2090 = vmatpush1.msra.mxu0 %v1015
        %2091 = vmatprep.subr.mxu0 %v1020
        %2092 = vmatpush1.msra.mxu0 %v1019
        %2093 = vmatprep.mubr.f32.mxu0 %v1960
        %2094 = vmatmul.mubr.f32.gmra.mrb[0].mxu0 %v1952
        %v2095 = vpop.f32.mrb[0].mxu0
        %v2096 = vadd.f32 %v1924, %v2095
        %v2097 = vpop.f32.mrb[0].mxu0
        %v2098 = vadd.f32 %v1928, %v2097
        %2099 = vdwg.mxu0
        %2100 = vmatprep.subr.mxu0 %v1024
        %2101 = vmatpush1.msra.mxu0 %v1023
        %2102 = vmatprep.subr.mxu0 %v1028
        %2103 = vmatpush1.msra.mxu0 %v1027
        %2104 = vmatprep.subr.mxu0 %v1032
        %2105 = vmatpush1.msra.mxu0 %v1031
        %2106 = vmatprep.subr.mxu0 %v1036
        %2107 = vmatpush1.msra.mxu0 %v1035
        %2108 = vmatprep.subr.mxu0 %v1040
        %2109 = vmatpush1.msra.mxu0 %v1039
        %2110 = vmatprep.subr.mxu0 %v1044
        %2111 = vmatpush1.msra.mxu0 %v1043
        %2112 = vmatprep.subr.mxu0 %v1048
        %2113 = vmatpush1.msra.mxu0 %v1047
        %2114 = vmatprep.subr.mxu0 %v1052
        %2115 = vmatpush1.msra.mxu0 %v1051
        %2116 = vmatprep.subr.mxu0 %v1056
        %2117 = vmatpush1.msra.mxu0 %v1055
        %2118 = vmatprep.subr.mxu0 %v1060
        %2119 = vmatpush1.msra.mxu0 %v1059
        %2120 = vmatprep.subr.mxu0 %v1064
        %2121 = vmatpush1.msra.mxu0 %v1063
        %2122 = vmatprep.subr.mxu0 %v1068
        %2123 = vmatpush1.msra.mxu0 %v1067
        %2124 = vmatprep.subr.mxu0 %v1072
        %2125 = vmatpush1.msra.mxu0 %v1071
        %2126 = vmatprep.subr.mxu0 %v1076
        %2127 = vmatpush1.msra.mxu0 %v1075
        %2128 = vmatprep.subr.mxu0 %v1080
        %2129 = vmatpush1.msra.mxu0 %v1079
        %2130 = vmatprep.subr.mxu0 %v1084
        %2131 = vmatpush1.msra.mxu0 %v1083
        %2132 = vmatprep.subr.mxu0 %v1088
        %2133 = vmatpush1.msra.mxu0 %v1087
        %2134 = vmatprep.subr.mxu0 %v1092
        %2135 = vmatpush1.msra.mxu0 %v1091
        %2136 = vmatprep.subr.mxu0 %v1096
        %2137 = vmatpush1.msra.mxu0 %v1095
        %2138 = vmatprep.subr.mxu0 %v1100
        %2139 = vmatpush1.msra.mxu0 %v1099
        %2140 = vmatprep.subr.mxu0 %v1104
        %2141 = vmatpush1.msra.mxu0 %v1103
        %2142 = vmatprep.subr.mxu0 %v1108
        %2143 = vmatpush1.msra.mxu0 %v1107
        %2144 = vmatprep.subr.mxu0 %v1112
        %2145 = vmatpush1.msra.mxu0 %v1111
        %2146 = vmatprep.subr.mxu0 %v1116
        %2147 = vmatpush1.msra.mxu0 %v1115
        %2148 = vmatprep.subr.mxu0 %v1120
        %2149 = vmatpush1.msra.mxu0 %v1119
        %2150 = vmatprep.subr.mxu0 %v1124
        %2151 = vmatpush1.msra.mxu0 %v1123
        %2152 = vmatprep.subr.mxu0 %v1128
        %2153 = vmatpush1.msra.mxu0 %v1127
        %2154 = vmatprep.subr.mxu0 %v1132
        %2155 = vmatpush1.msra.mxu0 %v1131
        %2156 = vmatprep.subr.mxu0 %v1136
        %2157 = vmatpush1.msra.mxu0 %v1135
        %2158 = vmatprep.subr.mxu0 %v1140
        %2159 = vmatpush1.msra.mxu0 %v1139
        %2160 = vmatprep.subr.mxu0 %v1144
        %2161 = vmatpush1.msra.mxu0 %v1143
        %2162 = vmatprep.subr.mxu0 %v1148
        %2163 = vmatpush1.msra.mxu0 %v1147
        %2164 = vmatprep.mubr.f32.mxu0 %v1961
        %2165 = vmatmul.mubr.f32.gmra.mrb[0].mxu0 %v1959
        %v2166 = vpop.f32.mrb[0].mxu0
        %v2167 = vadd.f32 %v2096, %v2166
        %v2168 = vpop.f32.mrb[0].mxu0
        %v2169 = vadd.f32 %v2098, %v2168
        %2170 = vdwg.mxu0
        %2171 = vmatprep.subr.mxu0 %v1152
        %2172 = vmatpush1.msra.mxu0 %v1151
        %2173 = vmatprep.subr.mxu0 %v1156
        %2174 = vmatpush1.msra.mxu0 %v1155
        %2175 = vmatprep.subr.mxu0 %v1160
        %2176 = vmatpush1.msra.mxu0 %v1159
        %2177 = vmatprep.subr.mxu0 %v1164
        %2178 = vmatpush1.msra.mxu0 %v1163
        %2179 = vmatprep.subr.mxu0 %v1168
        %2180 = vmatpush1.msra.mxu0 %v1167
        %2181 = vmatprep.subr.mxu0 %v1172
        %2182 = vmatpush1.msra.mxu0 %v1171
        %2183 = vmatprep.subr.mxu0 %v1176
        %2184 = vmatpush1.msra.mxu0 %v1175
        %2185 = vmatprep.subr.mxu0 %v1180
        %2186 = vmatpush1.msra.mxu0 %v1179
        %2187 = vmatprep.subr.mxu0 %v1184
        %2188 = vmatpush1.msra.mxu0 %v1183
        %2189 = vmatprep.subr.mxu0 %v1188
        %2190 = vmatpush1.msra.mxu0 %v1187
        %2191 = vmatprep.subr.mxu0 %v1192
        %2192 = vmatpush1.msra.mxu0 %v1191
        %2193 = vmatprep.subr.mxu0 %v1196
        %2194 = vmatpush1.msra.mxu0 %v1195
        %2195 = vmatprep.subr.mxu0 %v1200
        %2196 = vmatpush1.msra.mxu0 %v1199
        %2197 = vmatprep.subr.mxu0 %v1204
        %2198 = vmatpush1.msra.mxu0 %v1203
        %2199 = vmatprep.subr.mxu0 %v1208
        %2200 = vmatpush1.msra.mxu0 %v1207
        %2201 = vmatprep.subr.mxu0 %v1212
        %2202 = vmatpush1.msra.mxu0 %v1211
        %2203 = vmatprep.subr.mxu0 %v1216
        %2204 = vmatpush1.msra.mxu0 %v1215
        %2205 = vmatprep.subr.mxu0 %v1220
        %2206 = vmatpush1.msra.mxu0 %v1219
        %2207 = vmatprep.subr.mxu0 %v1224
        %2208 = vmatpush1.msra.mxu0 %v1223
        %2209 = vmatprep.subr.mxu0 %v1228
        %2210 = vmatpush1.msra.mxu0 %v1227
        %2211 = vmatprep.subr.mxu0 %v1232
        %2212 = vmatpush1.msra.mxu0 %v1231
        %2213 = vmatprep.subr.mxu0 %v1236
        %2214 = vmatpush1.msra.mxu0 %v1235
        %2215 = vmatprep.subr.mxu0 %v1240
        %2216 = vmatpush1.msra.mxu0 %v1239
        %2217 = vmatprep.subr.mxu0 %v1244
        %2218 = vmatpush1.msra.mxu0 %v1243
        %2219 = vmatprep.subr.mxu0 %v1248
        %2220 = vmatpush1.msra.mxu0 %v1247
        %2221 = vmatprep.subr.mxu0 %v1252
        %2222 = vmatpush1.msra.mxu0 %v1251
        %2223 = vmatprep.subr.mxu0 %v1256
        %2224 = vmatpush1.msra.mxu0 %v1255
        %2225 = vmatprep.subr.mxu0 %v1260
        %2226 = vmatpush1.msra.mxu0 %v1259
        %2227 = vmatprep.subr.mxu0 %v1264
        %2228 = vmatpush1.msra.mxu0 %v1263
        %2229 = vmatprep.subr.mxu0 %v1268
        %2230 = vmatpush1.msra.mxu0 %v1267
        %2231 = vmatprep.subr.mxu0 %v1272
        %2232 = vmatpush1.msra.mxu0 %v1271
        %2233 = vmatprep.subr.mxu0 %v1276
        %2234 = vmatpush1.msra.mxu0 %v1275
        %2235 = vmatprep.mubr.f32.mxu0 %v1977
        %2236 = vmatmul.mubr.f32.gmra.mrb[0].mxu0 %v1969
        %v2237 = vpop.f32.mrb[0].mxu0
        %v2238 = vadd.f32 %v2167, %v2237
        %v2239 = vpop.f32.mrb[0].mxu0
        %v2240 = vadd.f32 %v2169, %v2239
        %2241 = vdwg.mxu0
        %2242 = vmatprep.subr.mxu0 %v1280
        %2243 = vmatpush1.msra.mxu0 %v1279
        %2244 = vmatprep.subr.mxu0 %v1284
        %2245 = vmatpush1.msra.mxu0 %v1283
        %2246 = vmatprep.subr.mxu0 %v1288
        %2247 = vmatpush1.msra.mxu0 %v1287
        %2248 = vmatprep.subr.mxu0 %v1292
        %2249 = vmatpush1.msra.mxu0 %v1291
        %2250 = vmatprep.subr.mxu0 %v1296
        %2251 = vmatpush1.msra.mxu0 %v1295
        %2252 = vmatprep.subr.mxu0 %v1300
        %2253 = vmatpush1.msra.mxu0 %v1299
        %2254 = vmatprep.subr.mxu0 %v1304
        %2255 = vmatpush1.msra.mxu0 %v1303
        %2256 = vmatprep.subr.mxu0 %v1308
        %2257 = vmatpush1.msra.mxu0 %v1307
        %2258 = vmatprep.subr.mxu0 %v1312
        %2259 = vmatpush1.msra.mxu0 %v1311
        %2260 = vmatprep.subr.mxu0 %v1316
        %2261 = vmatpush1.msra.mxu0 %v1315
        %2262 = vmatprep.subr.mxu0 %v1320
        %2263 = vmatpush1.msra.mxu0 %v1319
        %2264 = vmatprep.subr.mxu0 %v1324
        %2265 = vmatpush1.msra.mxu0 %v1323
        %2266 = vmatprep.subr.mxu0 %v1328
        %2267 = vmatpush1.msra.mxu0 %v1327
        %2268 = vmatprep.subr.mxu0 %v1332
        %2269 = vmatpush1.msra.mxu0 %v1331
        %2270 = vmatprep.subr.mxu0 %v1336
        %2271 = vmatpush1.msra.mxu0 %v1335
        %2272 = vmatprep.subr.mxu0 %v1340
        %2273 = vmatpush1.msra.mxu0 %v1339
        %2274 = vmatprep.subr.mxu0 %v1344
        %2275 = vmatpush1.msra.mxu0 %v1343
        %2276 = vmatprep.subr.mxu0 %v1348
        %2277 = vmatpush1.msra.mxu0 %v1347
        %2278 = vmatprep.subr.mxu0 %v1352
        %2279 = vmatpush1.msra.mxu0 %v1351
        %2280 = vmatprep.subr.mxu0 %v1356
        %2281 = vmatpush1.msra.mxu0 %v1355
        %2282 = vmatprep.subr.mxu0 %v1360
        %2283 = vmatpush1.msra.mxu0 %v1359
        %2284 = vmatprep.subr.mxu0 %v1364
        %2285 = vmatpush1.msra.mxu0 %v1363
        %2286 = vmatprep.subr.mxu0 %v1368
        %2287 = vmatpush1.msra.mxu0 %v1367
        %2288 = vmatprep.subr.mxu0 %v1372
        %2289 = vmatpush1.msra.mxu0 %v1371
        %2290 = vmatprep.subr.mxu0 %v1376
        %2291 = vmatpush1.msra.mxu0 %v1375
        %2292 = vmatprep.subr.mxu0 %v1380
        %2293 = vmatpush1.msra.mxu0 %v1379
        %2294 = vmatprep.subr.mxu0 %v1384
        %2295 = vmatpush1.msra.mxu0 %v1383
        %2296 = vmatprep.subr.mxu0 %v1388
        %2297 = vmatpush1.msra.mxu0 %v1387
        %2298 = vmatprep.subr.mxu0 %v1392
        %2299 = vmatpush1.msra.mxu0 %v1391
        %2300 = vmatprep.subr.mxu0 %v1396
        %2301 = vmatpush1.msra.mxu0 %v1395
        %2302 = vmatprep.subr.mxu0 %v1400
        %2303 = vmatpush1.msra.mxu0 %v1399
        %2304 = vmatprep.subr.mxu0 %v1404
        %2305 = vmatpush1.msra.mxu0 %v1403
        %2306 = vmatprep.mubr.f32.mxu0 %v1978
        %2307 = vmatmul.mubr.f32.gmra.mrb[0].mxu0 %v1976
        %v2308 = vpop.f32.mrb[0].mxu0
        %v2309 = vadd.f32 %v2238, %v2308
        %v2310 = vpop.f32.mrb[0].mxu0
        %v2311 = vadd.f32 %v2240, %v2310
        %2312 = vdwg.mxu0
        %2313 = vmatprep.subr.mxu0 %v1408
        %2314 = vmatpush1.msra.mxu0 %v1407
        %2315 = vmatprep.subr.mxu0 %v1412
        %2316 = vmatpush1.msra.mxu0 %v1411
        %2317 = vmatprep.subr.mxu0 %v1416
        %2318 = vmatpush1.msra.mxu0 %v1415
        %2319 = vmatprep.subr.mxu0 %v1420
        %2320 = vmatpush1.msra.mxu0 %v1419
        %2321 = vmatprep.subr.mxu0 %v1424
        %2322 = vmatpush1.msra.mxu0 %v1423
        %2323 = vmatprep.subr.mxu0 %v1428
        %2324 = vmatpush1.msra.mxu0 %v1427
        %2325 = vmatprep.subr.mxu0 %v1432
        %2326 = vmatpush1.msra.mxu0 %v1431
        %2327 = vmatprep.subr.mxu0 %v1436
        %2328 = vmatpush1.msra.mxu0 %v1435
        %2329 = vmatprep.subr.mxu0 %v1440
        %2330 = vmatpush1.msra.mxu0 %v1439
        %2331 = vmatprep.subr.mxu0 %v1444
        %2332 = vmatpush1.msra.mxu0 %v1443
        %2333 = vmatprep.subr.mxu0 %v1448
        %2334 = vmatpush1.msra.mxu0 %v1447
        %2335 = vmatprep.subr.mxu0 %v1452
        %2336 = vmatpush1.msra.mxu0 %v1451
        %2337 = vmatprep.subr.mxu0 %v1456
        %2338 = vmatpush1.msra.mxu0 %v1455
        %2339 = vmatprep.subr.mxu0 %v1460
        %2340 = vmatpush1.msra.mxu0 %v1459
        %2341 = vmatprep.subr.mxu0 %v1464
        %2342 = vmatpush1.msra.mxu0 %v1463
        %2343 = vmatprep.subr.mxu0 %v1468
        %2344 = vmatpush1.msra.mxu0 %v1467
        %2345 = vmatprep.subr.mxu0 %v1472
        %2346 = vmatpush1.msra.mxu0 %v1471
        %2347 = vmatprep.subr.mxu0 %v1476
        %2348 = vmatpush1.msra.mxu0 %v1475
        %2349 = vmatprep.subr.mxu0 %v1480
        %2350 = vmatpush1.msra.mxu0 %v1479
        %2351 = vmatprep.subr.mxu0 %v1484
        %2352 = vmatpush1.msra.mxu0 %v1483
        %2353 = vmatprep.subr.mxu0 %v1488
        %2354 = vmatpush1.msra.mxu0 %v1487
        %2355 = vmatprep.subr.mxu0 %v1492
        %2356 = vmatpush1.msra.mxu0 %v1491
        %2357 = vmatprep.subr.mxu0 %v1496
        %2358 = vmatpush1.msra.mxu0 %v1495
        %2359 = vmatprep.subr.mxu0 %v1500
        %2360 = vmatpush1.msra.mxu0 %v1499
        %2361 = vmatprep.subr.mxu0 %v1504
        %2362 = vmatpush1.msra.mxu0 %v1503
        %2363 = vmatprep.subr.mxu0 %v1508
        %2364 = vmatpush1.msra.mxu0 %v1507
        %2365 = vmatprep.subr.mxu0 %v1512
        %2366 = vmatpush1.msra.mxu0 %v1511
        %2367 = vmatprep.subr.mxu0 %v1516
        %2368 = vmatpush1.msra.mxu0 %v1515
        %2369 = vmatprep.subr.mxu0 %v1520
        %2370 = vmatpush1.msra.mxu0 %v1519
        %2371 = vmatprep.subr.mxu0 %v1524
        %2372 = vmatpush1.msra.mxu0 %v1523
        %2373 = vmatprep.subr.mxu0 %v1528
        %2374 = vmatpush1.msra.mxu0 %v1527
        %2375 = vmatprep.subr.mxu0 %v1532
        %2376 = vmatpush1.msra.mxu0 %v1531
        %2377 = vmatprep.mubr.f32.mxu0 %v1994
        %2378 = vmatmul.mubr.f32.gmra.mrb[0].mxu0 %v1986
        %v2379 = vpop.f32.mrb[0].mxu0
        %v2380 = vadd.f32 %v2309, %v2379
        %v2381 = vpop.f32.mrb[0].mxu0
        %v2382 = vadd.f32 %v2311, %v2381
        %2383 = vdwg.mxu0
        %2384 = vmatprep.subr.mxu0 %v1536
        %2385 = vmatpush1.msra.mxu0 %v1535
        %2386 = vmatprep.subr.mxu0 %v1540
        %2387 = vmatpush1.msra.mxu0 %v1539
        %2388 = vmatprep.subr.mxu0 %v1544
        %2389 = vmatpush1.msra.mxu0 %v1543
        %2390 = vmatprep.subr.mxu0 %v1548
        %2391 = vmatpush1.msra.mxu0 %v1547
        %2392 = vmatprep.subr.mxu0 %v1552
        %2393 = vmatpush1.msra.mxu0 %v1551
        %2394 = vmatprep.subr.mxu0 %v1556
        %2395 = vmatpush1.msra.mxu0 %v1555
        %2396 = vmatprep.subr.mxu0 %v1560
        %2397 = vmatpush1.msra.mxu0 %v1559
        %2398 = vmatprep.subr.mxu0 %v1564
        %2399 = vmatpush1.msra.mxu0 %v1563
        %2400 = vmatprep.subr.mxu0 %v1568
        %2401 = vmatpush1.msra.mxu0 %v1567
        %2402 = vmatprep.subr.mxu0 %v1572
        %2403 = vmatpush1.msra.mxu0 %v1571
        %2404 = vmatprep.subr.mxu0 %v1576
        %2405 = vmatpush1.msra.mxu0 %v1575
        %2406 = vmatprep.subr.mxu0 %v1580
        %2407 = vmatpush1.msra.mxu0 %v1579
        %2408 = vmatprep.subr.mxu0 %v1584
        %2409 = vmatpush1.msra.mxu0 %v1583
        %2410 = vmatprep.subr.mxu0 %v1588
        %2411 = vmatpush1.msra.mxu0 %v1587
        %2412 = vmatprep.subr.mxu0 %v1592
        %2413 = vmatpush1.msra.mxu0 %v1591
        %2414 = vmatprep.subr.mxu0 %v1596
        %2415 = vmatpush1.msra.mxu0 %v1595
        %2416 = vmatprep.subr.mxu0 %v1600
        %2417 = vmatpush1.msra.mxu0 %v1599
        %2418 = vmatprep.subr.mxu0 %v1604
        %2419 = vmatpush1.msra.mxu0 %v1603
        %2420 = vmatprep.subr.mxu0 %v1608
        %2421 = vmatpush1.msra.mxu0 %v1607
        %2422 = vmatprep.subr.mxu0 %v1612
        %2423 = vmatpush1.msra.mxu0 %v1611
        %2424 = vmatprep.subr.mxu0 %v1616
        %2425 = vmatpush1.msra.mxu0 %v1615
        %2426 = vmatprep.subr.mxu0 %v1620
        %2427 = vmatpush1.msra.mxu0 %v1619
        %2428 = vmatprep.subr.mxu0 %v1624
        %2429 = vmatpush1.msra.mxu0 %v1623
        %2430 = vmatprep.subr.mxu0 %v1628
        %2431 = vmatpush1.msra.mxu0 %v1627
        %2432 = vmatprep.subr.mxu0 %v1632
        %2433 = vmatpush1.msra.mxu0 %v1631
        %2434 = vmatprep.subr.mxu0 %v1636
        %2435 = vmatpush1.msra.mxu0 %v1635
        %2436 = vmatprep.subr.mxu0 %v1640
        %2437 = vmatpush1.msra.mxu0 %v1639
        %2438 = vmatprep.subr.mxu0 %v1644
        %2439 = vmatpush1.msra.mxu0 %v1643
        %2440 = vmatprep.subr.mxu0 %v1648
        %2441 = vmatpush1.msra.mxu0 %v1647
        %2442 = vmatprep.subr.mxu0 %v1652
        %2443 = vmatpush1.msra.mxu0 %v1651
        %2444 = vmatprep.subr.mxu0 %v1656
        %2445 = vmatpush1.msra.mxu0 %v1655
        %2446 = vmatprep.subr.mxu0 %v1660
        %2447 = vmatpush1.msra.mxu0 %v1659
        %2448 = vmatprep.mubr.f32.mxu0 %v1995
        %2449 = vmatmul.mubr.f32.gmra.mrb[0].mxu0 %v1993
        %v2450 = vpop.f32.mrb[0].mxu0
        %v2451 = vadd.f32 %v2380, %v2450
        %v2452 = vpop.f32.mrb[0].mxu0
        %v2453 = vadd.f32 %v2382, %v2452
        %2454 = vdwg.mxu0
        %2455 = vmatprep.subr.mxu0 %v1664
        %2456 = vmatpush1.msra.mxu0 %v1663
        %2457 = vmatprep.subr.mxu0 %v1668
        %2458 = vmatpush1.msra.mxu0 %v1667
        %2459 = vmatprep.subr.mxu0 %v1672
        %2460 = vmatpush1.msra.mxu0 %v1671
        %2461 = vmatprep.subr.mxu0 %v1676
        %2462 = vmatpush1.msra.mxu0 %v1675
        %2463 = vmatprep.subr.mxu0 %v1680
        %2464 = vmatpush1.msra.mxu0 %v1679
        %2465 = vmatprep.subr.mxu0 %v1684
        %2466 = vmatpush1.msra.mxu0 %v1683
        %2467 = vmatprep.subr.mxu0 %v1688
        %2468 = vmatpush1.msra.mxu0 %v1687
        %2469 = vmatprep.subr.mxu0 %v1692
        %2470 = vmatpush1.msra.mxu0 %v1691
        %2471 = vmatprep.subr.mxu0 %v1696
        %2472 = vmatpush1.msra.mxu0 %v1695
        %2473 = vmatprep.subr.mxu0 %v1700
        %2474 = vmatpush1.msra.mxu0 %v1699
        %2475 = vmatprep.subr.mxu0 %v1704
        %2476 = vmatpush1.msra.mxu0 %v1703
        %2477 = vmatprep.subr.mxu0 %v1708
        %2478 = vmatpush1.msra.mxu0 %v1707
        %2479 = vmatprep.subr.mxu0 %v1712
        %2480 = vmatpush1.msra.mxu0 %v1711
        %2481 = vmatprep.subr.mxu0 %v1716
        %2482 = vmatpush1.msra.mxu0 %v1715
        %2483 = vmatprep.subr.mxu0 %v1720
        %2484 = vmatpush1.msra.mxu0 %v1719
        %2485 = vmatprep.subr.mxu0 %v1724
        %2486 = vmatpush1.msra.mxu0 %v1723
        %2487 = vmatprep.subr.mxu0 %v1728
        %2488 = vmatpush1.msra.mxu0 %v1727
        %2489 = vmatprep.subr.mxu0 %v1732
        %2490 = vmatpush1.msra.mxu0 %v1731
        %2491 = vmatprep.subr.mxu0 %v1736
        %2492 = vmatpush1.msra.mxu0 %v1735
        %2493 = vmatprep.subr.mxu0 %v1740
        %2494 = vmatpush1.msra.mxu0 %v1739
        %2495 = vmatprep.subr.mxu0 %v1744
        %2496 = vmatpush1.msra.mxu0 %v1743
        %2497 = vmatprep.subr.mxu0 %v1748
        %2498 = vmatpush1.msra.mxu0 %v1747
        %2499 = vmatprep.subr.mxu0 %v1752
        %2500 = vmatpush1.msra.mxu0 %v1751
        %2501 = vmatprep.subr.mxu0 %v1756
        %2502 = vmatpush1.msra.mxu0 %v1755
        %2503 = vmatprep.subr.mxu0 %v1760
        %2504 = vmatpush1.msra.mxu0 %v1759
        %2505 = vmatprep.subr.mxu0 %v1764
        %2506 = vmatpush1.msra.mxu0 %v1763
        %2507 = vmatprep.subr.mxu0 %v1768
        %2508 = vmatpush1.msra.mxu0 %v1767
        %2509 = vmatprep.subr.mxu0 %v1772
        %2510 = vmatpush1.msra.mxu0 %v1771
        %2511 = vmatprep.subr.mxu0 %v1776
        %2512 = vmatpush1.msra.mxu0 %v1775
        %2513 = vmatprep.subr.mxu0 %v1780
        %2514 = vmatpush1.msra.mxu0 %v1779
        %2515 = vmatprep.subr.mxu0 %v1784
        %2516 = vmatpush1.msra.mxu0 %v1783
        %2517 = vmatprep.subr.mxu0 %v1788
        %2518 = vmatpush1.msra.mxu0 %v1787
        %2519 = vmatprep.mubr.f32.mxu0 %v2011
        %2520 = vmatmul.mubr.f32.gmra.mrb[0].mxu0 %v2003
        %v2521 = vpop.f32.mrb[0].mxu0
        %v2522 = vadd.f32 %v2451, %v2521
        %v2523 = vpop.f32.mrb[0].mxu0
        %v2524 = vadd.f32 %v2453, %v2523
        %2525 = vdwg.mxu0
        %2526 = vmatprep.subr.mxu0 %v1792
        %2527 = vmatpush1.msra.mxu0 %v1791
        %2528 = vmatprep.subr.mxu0 %v1796
        %2529 = vmatpush1.msra.mxu0 %v1795
        %2530 = vmatprep.subr.mxu0 %v1800
        %2531 = vmatpush1.msra.mxu0 %v1799
        %2532 = vmatprep.subr.mxu0 %v1804
        %2533 = vmatpush1.msra.mxu0 %v1803
        %2534 = vmatprep.subr.mxu0 %v1808
        %2535 = vmatpush1.msra.mxu0 %v1807
        %2536 = vmatprep.subr.mxu0 %v1812
        %2537 = vmatpush1.msra.mxu0 %v1811
        %2538 = vmatprep.subr.mxu0 %v1816
        %2539 = vmatpush1.msra.mxu0 %v1815
        %2540 = vmatprep.subr.mxu0 %v1820
        %2541 = vmatpush1.msra.mxu0 %v1819
        %2542 = vmatprep.subr.mxu0 %v1824
        %2543 = vmatpush1.msra.mxu0 %v1823
        %2544 = vmatprep.subr.mxu0 %v1828
        %2545 = vmatpush1.msra.mxu0 %v1827
        %2546 = vmatprep.subr.mxu0 %v1832
        %2547 = vmatpush1.msra.mxu0 %v1831
        %2548 = vmatprep.subr.mxu0 %v1836
        %2549 = vmatpush1.msra.mxu0 %v1835
        %2550 = vmatprep.subr.mxu0 %v1840
        %2551 = vmatpush1.msra.mxu0 %v1839
        %2552 = vmatprep.subr.mxu0 %v1844
        %2553 = vmatpush1.msra.mxu0 %v1843
        %2554 = vmatprep.subr.mxu0 %v1848
        %2555 = vmatpush1.msra.mxu0 %v1847
        %2556 = vmatprep.subr.mxu0 %v1852
        %2557 = vmatpush1.msra.mxu0 %v1851
        %2558 = vmatprep.subr.mxu0 %v1856
        %2559 = vmatpush1.msra.mxu0 %v1855
        %2560 = vmatprep.subr.mxu0 %v1860
        %2561 = vmatpush1.msra.mxu0 %v1859
        %2562 = vmatprep.subr.mxu0 %v1864
        %2563 = vmatpush1.msra.mxu0 %v1863
        %2564 = vmatprep.subr.mxu0 %v1868
        %2565 = vmatpush1.msra.mxu0 %v1867
        %2566 = vmatprep.subr.mxu0 %v1872
        %2567 = vmatpush1.msra.mxu0 %v1871
        %2568 = vmatprep.subr.mxu0 %v1876
        %2569 = vmatpush1.msra.mxu0 %v1875
        %2570 = vmatprep.subr.mxu0 %v1880
        %2571 = vmatpush1.msra.mxu0 %v1879
        %2572 = vmatprep.subr.mxu0 %v1884
        %2573 = vmatpush1.msra.mxu0 %v1883
        %2574 = vmatprep.subr.mxu0 %v1888
        %2575 = vmatpush1.msra.mxu0 %v1887
        %2576 = vmatprep.subr.mxu0 %v1892
        %2577 = vmatpush1.msra.mxu0 %v1891
        %2578 = vmatprep.subr.mxu0 %v1896
        %2579 = vmatpush1.msra.mxu0 %v1895
        %2580 = vmatprep.subr.mxu0 %v1900
        %2581 = vmatpush1.msra.mxu0 %v1899
        %2582 = vmatprep.subr.mxu0 %v1904
        %2583 = vmatpush1.msra.mxu0 %v1903
        %2584 = vmatprep.subr.mxu0 %v1908
        %2585 = vmatpush1.msra.mxu0 %v1907
        %2586 = vmatprep.subr.mxu0 %v1912
        %2587 = vmatpush1.msra.mxu0 %v1911
        %2588 = vmatprep.subr.mxu0 %v1916
        %2589 = vmatpush1.msra.mxu0 %v1915
        %2590 = vmatprep.mubr.f32.mxu0 %v2012
        %2591 = vmatmul.mubr.f32.gmra.mrb[0].mxu0 %v2010
        %v2592 = vpop.f32.mrb[0].mxu0
        %v2593 = vadd.f32 %v2522, %v2592
        %v2594 = vpop.f32.mrb[0].mxu0
        %v2595 = vadd.f32 %v2524, %v2594
        %2596 = vdwg.mxu0
        %2597 = vmatprep.subr.mxu0 %v898
        %2598 = vmatpush1.msra.mxu0 %v897
        %2599 = vmatprep.subr.mxu0 %v902
        %2600 = vmatpush1.msra.mxu0 %v901
        %2601 = vmatprep.subr.mxu0 %v906
        %2602 = vmatpush1.msra.mxu0 %v905
        %2603 = vmatprep.subr.mxu0 %v910
        %2604 = vmatpush1.msra.mxu0 %v909
        %2605 = vmatprep.subr.mxu0 %v914
        %2606 = vmatpush1.msra.mxu0 %v913
        %2607 = vmatprep.subr.mxu0 %v918
        %2608 = vmatpush1.msra.mxu0 %v917
        %2609 = vmatprep.subr.mxu0 %v922
        %2610 = vmatpush1.msra.mxu0 %v921
        %2611 = vmatprep.subr.mxu0 %v926
        %2612 = vmatpush1.msra.mxu0 %v925
        %2613 = vmatprep.subr.mxu0 %v930
        %2614 = vmatpush1.msra.mxu0 %v929
        %2615 = vmatprep.subr.mxu0 %v934
        %2616 = vmatpush1.msra.mxu0 %v933
        %2617 = vmatprep.subr.mxu0 %v938
        %2618 = vmatpush1.msra.mxu0 %v937
        %2619 = vmatprep.subr.mxu0 %v942
        %2620 = vmatpush1.msra.mxu0 %v941
        %2621 = vmatprep.subr.mxu0 %v946
        %2622 = vmatpush1.msra.mxu0 %v945
        %2623 = vmatprep.subr.mxu0 %v950
        %2624 = vmatpush1.msra.mxu0 %v949
        %2625 = vmatprep.subr.mxu0 %v954
        %2626 = vmatpush1.msra.mxu0 %v953
        %2627 = vmatprep.subr.mxu0 %v958
        %2628 = vmatpush1.msra.mxu0 %v957
        %2629 = vmatprep.subr.mxu0 %v962
        %2630 = vmatpush1.msra.mxu0 %v961
        %2631 = vmatprep.subr.mxu0 %v966
        %2632 = vmatpush1.msra.mxu0 %v965
        %2633 = vmatprep.subr.mxu0 %v970
        %2634 = vmatpush1.msra.mxu0 %v969
        %2635 = vmatprep.subr.mxu0 %v974
        %2636 = vmatpush1.msra.mxu0 %v973
        %2637 = vmatprep.subr.mxu0 %v978
        %2638 = vmatpush1.msra.mxu0 %v977
        %2639 = vmatprep.subr.mxu0 %v982
        %2640 = vmatpush1.msra.mxu0 %v981
        %2641 = vmatprep.subr.mxu0 %v986
        %2642 = vmatpush1.msra.mxu0 %v985
        %2643 = vmatprep.subr.mxu0 %v990
        %2644 = vmatpush1.msra.mxu0 %v989
        %2645 = vmatprep.subr.mxu0 %v994
        %2646 = vmatpush1.msra.mxu0 %v993
        %2647 = vmatprep.subr.mxu0 %v998
        %2648 = vmatpush1.msra.mxu0 %v997
        %2649 = vmatprep.subr.mxu0 %v1002
        %2650 = vmatpush1.msra.mxu0 %v1001
        %2651 = vmatprep.subr.mxu0 %v1006
        %2652 = vmatpush1.msra.mxu0 %v1005
        %2653 = vmatprep.subr.mxu0 %v1010
        %2654 = vmatpush1.msra.mxu0 %v1009
        %2655 = vmatprep.subr.mxu0 %v1014
        %2656 = vmatpush1.msra.mxu0 %v1013
        %2657 = vmatprep.subr.mxu0 %v1018
        %2658 = vmatpush1.msra.mxu0 %v1017
        %2659 = vmatprep.subr.mxu0 %v1022
        %2660 = vmatpush1.msra.mxu0 %v1021
        %2661 = vmatprep.mubr.f32.mxu0 %v1960
        %2662 = vmatmul.mubr.f32.gmra.mrb[0].mxu0 %v1952
        %v2663 = vpop.f32.mrb[0].mxu0
        %v2664 = vadd.f32 %v1932, %v2663
        %v2665 = vpop.f32.mrb[0].mxu0
        %v2666 = vadd.f32 %v1936, %v2665
        %2667 = vdwg.mxu0
        %2668 = vmatprep.subr.mxu0 %v1026
        %2669 = vmatpush1.msra.mxu0 %v1025
        %2670 = vmatprep.subr.mxu0 %v1030
        %2671 = vmatpush1.msra.mxu0 %v1029
        %2672 = vmatprep.subr.mxu0 %v1034
        %2673 = vmatpush1.msra.mxu0 %v1033
        %2674 = vmatprep.subr.mxu0 %v1038
        %2675 = vmatpush1.msra.mxu0 %v1037
        %2676 = vmatprep.subr.mxu0 %v1042
        %2677 = vmatpush1.msra.mxu0 %v1041
        %2678 = vmatprep.subr.mxu0 %v1046
        %2679 = vmatpush1.msra.mxu0 %v1045
        %2680 = vmatprep.subr.mxu0 %v1050
        %2681 = vmatpush1.msra.mxu0 %v1049
        %2682 = vmatprep.subr.mxu0 %v1054
        %2683 = vmatpush1.msra.mxu0 %v1053
        %2684 = vmatprep.subr.mxu0 %v1058
        %2685 = vmatpush1.msra.mxu0 %v1057
        %2686 = vmatprep.subr.mxu0 %v1062
        %2687 = vmatpush1.msra.mxu0 %v1061
        %2688 = vmatprep.subr.mxu0 %v1066
        %2689 = vmatpush1.msra.mxu0 %v1065
        %2690 = vmatprep.subr.mxu0 %v1070
        %2691 = vmatpush1.msra.mxu0 %v1069
        %2692 = vmatprep.subr.mxu0 %v1074
        %2693 = vmatpush1.msra.mxu0 %v1073
        %2694 = vmatprep.subr.mxu0 %v1078
        %2695 = vmatpush1.msra.mxu0 %v1077
        %2696 = vmatprep.subr.mxu0 %v1082
        %2697 = vmatpush1.msra.mxu0 %v1081
        %2698 = vmatprep.subr.mxu0 %v1086
        %2699 = vmatpush1.msra.mxu0 %v1085
        %2700 = vmatprep.subr.mxu0 %v1090
        %2701 = vmatpush1.msra.mxu0 %v1089
        %2702 = vmatprep.subr.mxu0 %v1094
        %2703 = vmatpush1.msra.mxu0 %v1093
        %2704 = vmatprep.subr.mxu0 %v1098
        %2705 = vmatpush1.msra.mxu0 %v1097
        %2706 = vmatprep.subr.mxu0 %v1102
        %2707 = vmatpush1.msra.mxu0 %v1101
        %2708 = vmatprep.subr.mxu0 %v1106
        %2709 = vmatpush1.msra.mxu0 %v1105
        %2710 = vmatprep.subr.mxu0 %v1110
        %2711 = vmatpush1.msra.mxu0 %v1109
        %2712 = vmatprep.subr.mxu0 %v1114
        %2713 = vmatpush1.msra.mxu0 %v1113
        %2714 = vmatprep.subr.mxu0 %v1118
        %2715 = vmatpush1.msra.mxu0 %v1117
        %2716 = vmatprep.subr.mxu0 %v1122
        %2717 = vmatpush1.msra.mxu0 %v1121
        %2718 = vmatprep.subr.mxu0 %v1126
        %2719 = vmatpush1.msra.mxu0 %v1125
        %2720 = vmatprep.subr.mxu0 %v1130
        %2721 = vmatpush1.msra.mxu0 %v1129
        %2722 = vmatprep.subr.mxu0 %v1134
        %2723 = vmatpush1.msra.mxu0 %v1133
        %2724 = vmatprep.subr.mxu0 %v1138
        %2725 = vmatpush1.msra.mxu0 %v1137
        %2726 = vmatprep.subr.mxu0 %v1142
        %2727 = vmatpush1.msra.mxu0 %v1141
        %2728 = vmatprep.subr.mxu0 %v1146
        %2729 = vmatpush1.msra.mxu0 %v1145
        %2730 = vmatprep.subr.mxu0 %v1150
        %2731 = vmatpush1.msra.mxu0 %v1149
        %2732 = vmatprep.mubr.f32.mxu0 %v1961
        %2733 = vmatmul.mubr.f32.gmra.mrb[0].mxu0 %v1959
        %v2734 = vpop.f32.mrb[0].mxu0
        %v2735 = vadd.f32 %v2664, %v2734
        %v2736 = vpop.f32.mrb[0].mxu0
        %v2737 = vadd.f32 %v2666, %v2736
        %2738 = vdwg.mxu0
        %2739 = vmatprep.subr.mxu0 %v1154
        %2740 = vmatpush1.msra.mxu0 %v1153
        %2741 = vmatprep.subr.mxu0 %v1158
        %2742 = vmatpush1.msra.mxu0 %v1157
        %2743 = vmatprep.subr.mxu0 %v1162
        %2744 = vmatpush1.msra.mxu0 %v1161
        %2745 = vmatprep.subr.mxu0 %v1166
        %2746 = vmatpush1.msra.mxu0 %v1165
        %2747 = vmatprep.subr.mxu0 %v1170
        %2748 = vmatpush1.msra.mxu0 %v1169
        %2749 = vmatprep.subr.mxu0 %v1174
        %2750 = vmatpush1.msra.mxu0 %v1173
        %2751 = vmatprep.subr.mxu0 %v1178
        %2752 = vmatpush1.msra.mxu0 %v1177
        %2753 = vmatprep.subr.mxu0 %v1182
        %2754 = vmatpush1.msra.mxu0 %v1181
        %2755 = vmatprep.subr.mxu0 %v1186
        %2756 = vmatpush1.msra.mxu0 %v1185
        %2757 = vmatprep.subr.mxu0 %v1190
        %2758 = vmatpush1.msra.mxu0 %v1189
        %2759 = vmatprep.subr.mxu0 %v1194
        %2760 = vmatpush1.msra.mxu0 %v1193
        %2761 = vmatprep.subr.mxu0 %v1198
        %2762 = vmatpush1.msra.mxu0 %v1197
        %2763 = vmatprep.subr.mxu0 %v1202
        %2764 = vmatpush1.msra.mxu0 %v1201
        %2765 = vmatprep.subr.mxu0 %v1206
        %2766 = vmatpush1.msra.mxu0 %v1205
        %2767 = vmatprep.subr.mxu0 %v1210
        %2768 = vmatpush1.msra.mxu0 %v1209
        %2769 = vmatprep.subr.mxu0 %v1214
        %2770 = vmatpush1.msra.mxu0 %v1213
        %2771 = vmatprep.subr.mxu0 %v1218
        %2772 = vmatpush1.msra.mxu0 %v1217
        %2773 = vmatprep.subr.mxu0 %v1222
        %2774 = vmatpush1.msra.mxu0 %v1221
        %2775 = vmatprep.subr.mxu0 %v1226
        %2776 = vmatpush1.msra.mxu0 %v1225
        %2777 = vmatprep.subr.mxu0 %v1230
        %2778 = vmatpush1.msra.mxu0 %v1229
        %2779 = vmatprep.subr.mxu0 %v1234
        %2780 = vmatpush1.msra.mxu0 %v1233
        %2781 = vmatprep.subr.mxu0 %v1238
        %2782 = vmatpush1.msra.mxu0 %v1237
        %2783 = vmatprep.subr.mxu0 %v1242
        %2784 = vmatpush1.msra.mxu0 %v1241
        %2785 = vmatprep.subr.mxu0 %v1246
        %2786 = vmatpush1.msra.mxu0 %v1245
        %2787 = vmatprep.subr.mxu0 %v1250
        %2788 = vmatpush1.msra.mxu0 %v1249
        %2789 = vmatprep.subr.mxu0 %v1254
        %2790 = vmatpush1.msra.mxu0 %v1253
        %2791 = vmatprep.subr.mxu0 %v1258
        %2792 = vmatpush1.msra.mxu0 %v1257
        %2793 = vmatprep.subr.mxu0 %v1262
        %2794 = vmatpush1.msra.mxu0 %v1261
        %2795 = vmatprep.subr.mxu0 %v1266
        %2796 = vmatpush1.msra.mxu0 %v1265
        %2797 = vmatprep.subr.mxu0 %v1270
        %2798 = vmatpush1.msra.mxu0 %v1269
        %2799 = vmatprep.subr.mxu0 %v1274
        %2800 = vmatpush1.msra.mxu0 %v1273
        %2801 = vmatprep.subr.mxu0 %v1278
        %2802 = vmatpush1.msra.mxu0 %v1277
        %2803 = vmatprep.mubr.f32.mxu0 %v1977
        %2804 = vmatmul.mubr.f32.gmra.mrb[0].mxu0 %v1969
        %v2805 = vpop.f32.mrb[0].mxu0
        %v2806 = vadd.f32 %v2735, %v2805
        %v2807 = vpop.f32.mrb[0].mxu0
        %v2808 = vadd.f32 %v2737, %v2807
        %2809 = vdwg.mxu0
        %2810 = vmatprep.subr.mxu0 %v1282
        %2811 = vmatpush1.msra.mxu0 %v1281
        %2812 = vmatprep.subr.mxu0 %v1286
        %2813 = vmatpush1.msra.mxu0 %v1285
        %2814 = vmatprep.subr.mxu0 %v1290
        %2815 = vmatpush1.msra.mxu0 %v1289
        %2816 = vmatprep.subr.mxu0 %v1294
        %2817 = vmatpush1.msra.mxu0 %v1293
        %2818 = vmatprep.subr.mxu0 %v1298
        %2819 = vmatpush1.msra.mxu0 %v1297
        %2820 = vmatprep.subr.mxu0 %v1302
        %2821 = vmatpush1.msra.mxu0 %v1301
        %2822 = vmatprep.subr.mxu0 %v1306
        %2823 = vmatpush1.msra.mxu0 %v1305
        %2824 = vmatprep.subr.mxu0 %v1310
        %2825 = vmatpush1.msra.mxu0 %v1309
        %2826 = vmatprep.subr.mxu0 %v1314
        %2827 = vmatpush1.msra.mxu0 %v1313
        %2828 = vmatprep.subr.mxu0 %v1318
        %2829 = vmatpush1.msra.mxu0 %v1317
        %2830 = vmatprep.subr.mxu0 %v1322
        %2831 = vmatpush1.msra.mxu0 %v1321
        %2832 = vmatprep.subr.mxu0 %v1326
        %2833 = vmatpush1.msra.mxu0 %v1325
        %2834 = vmatprep.subr.mxu0 %v1330
        %2835 = vmatpush1.msra.mxu0 %v1329
        %2836 = vmatprep.subr.mxu0 %v1334
        %2837 = vmatpush1.msra.mxu0 %v1333
        %2838 = vmatprep.subr.mxu0 %v1338
        %2839 = vmatpush1.msra.mxu0 %v1337
        %2840 = vmatprep.subr.mxu0 %v1342
        %2841 = vmatpush1.msra.mxu0 %v1341
        %2842 = vmatprep.subr.mxu0 %v1346
        %2843 = vmatpush1.msra.mxu0 %v1345
        %2844 = vmatprep.subr.mxu0 %v1350
        %2845 = vmatpush1.msra.mxu0 %v1349
        %2846 = vmatprep.subr.mxu0 %v1354
        %2847 = vmatpush1.msra.mxu0 %v1353
        %2848 = vmatprep.subr.mxu0 %v1358
        %2849 = vmatpush1.msra.mxu0 %v1357
        %2850 = vmatprep.subr.mxu0 %v1362
        %2851 = vmatpush1.msra.mxu0 %v1361
        %2852 = vmatprep.subr.mxu0 %v1366
        %2853 = vmatpush1.msra.mxu0 %v1365
        %2854 = vmatprep.subr.mxu0 %v1370
        %2855 = vmatpush1.msra.mxu0 %v1369
        %2856 = vmatprep.subr.mxu0 %v1374
        %2857 = vmatpush1.msra.mxu0 %v1373
        %2858 = vmatprep.subr.mxu0 %v1378
        %2859 = vmatpush1.msra.mxu0 %v1377
        %2860 = vmatprep.subr.mxu0 %v1382
        %2861 = vmatpush1.msra.mxu0 %v1381
        %2862 = vmatprep.subr.mxu0 %v1386
        %2863 = vmatpush1.msra.mxu0 %v1385
        %2864 = vmatprep.subr.mxu0 %v1390
        %2865 = vmatpush1.msra.mxu0 %v1389
        %2866 = vmatprep.subr.mxu0 %v1394
        %2867 = vmatpush1.msra.mxu0 %v1393
        %2868 = vmatprep.subr.mxu0 %v1398
        %2869 = vmatpush1.msra.mxu0 %v1397
        %2870 = vmatprep.subr.mxu0 %v1402
        %2871 = vmatpush1.msra.mxu0 %v1401
        %2872 = vmatprep.subr.mxu0 %v1406
        %2873 = vmatpush1.msra.mxu0 %v1405
        %2874 = vmatprep.mubr.f32.mxu0 %v1978
        %2875 = vmatmul.mubr.f32.gmra.mrb[0].mxu0 %v1976
        %v2876 = vpop.f32.mrb[0].mxu0
        %v2877 = vadd.f32 %v2806, %v2876
        %v2878 = vpop.f32.mrb[0].mxu0
        %v2879 = vadd.f32 %v2808, %v2878
        %2880 = vdwg.mxu0
        %2881 = vmatprep.subr.mxu0 %v1410
        %2882 = vmatpush1.msra.mxu0 %v1409
        %2883 = vmatprep.subr.mxu0 %v1414
        %2884 = vmatpush1.msra.mxu0 %v1413
        %2885 = vmatprep.subr.mxu0 %v1418
        %2886 = vmatpush1.msra.mxu0 %v1417
        %2887 = vmatprep.subr.mxu0 %v1422
        %2888 = vmatpush1.msra.mxu0 %v1421
        %2889 = vmatprep.subr.mxu0 %v1426
        %2890 = vmatpush1.msra.mxu0 %v1425
        %2891 = vmatprep.subr.mxu0 %v1430
        %2892 = vmatpush1.msra.mxu0 %v1429
        %2893 = vmatprep.subr.mxu0 %v1434
        %2894 = vmatpush1.msra.mxu0 %v1433
        %2895 = vmatprep.subr.mxu0 %v1438
        %2896 = vmatpush1.msra.mxu0 %v1437
        %2897 = vmatprep.subr.mxu0 %v1442
        %2898 = vmatpush1.msra.mxu0 %v1441
        %2899 = vmatprep.subr.mxu0 %v1446
        %2900 = vmatpush1.msra.mxu0 %v1445
        %2901 = vmatprep.subr.mxu0 %v1450
        %2902 = vmatpush1.msra.mxu0 %v1449
        %2903 = vmatprep.subr.mxu0 %v1454
        %2904 = vmatpush1.msra.mxu0 %v1453
        %2905 = vmatprep.subr.mxu0 %v1458
        %2906 = vmatpush1.msra.mxu0 %v1457
        %2907 = vmatprep.subr.mxu0 %v1462
        %2908 = vmatpush1.msra.mxu0 %v1461
        %2909 = vmatprep.subr.mxu0 %v1466
        %2910 = vmatpush1.msra.mxu0 %v1465
        %2911 = vmatprep.subr.mxu0 %v1470
        %2912 = vmatpush1.msra.mxu0 %v1469
        %2913 = vmatprep.subr.mxu0 %v1474
        %2914 = vmatpush1.msra.mxu0 %v1473
        %2915 = vmatprep.subr.mxu0 %v1478
        %2916 = vmatpush1.msra.mxu0 %v1477
        %2917 = vmatprep.subr.mxu0 %v1482
        %2918 = vmatpush1.msra.mxu0 %v1481
        %2919 = vmatprep.subr.mxu0 %v1486
        %2920 = vmatpush1.msra.mxu0 %v1485
        %2921 = vmatprep.subr.mxu0 %v1490
        %2922 = vmatpush1.msra.mxu0 %v1489
        %2923 = vmatprep.subr.mxu0 %v1494
        %2924 = vmatpush1.msra.mxu0 %v1493
        %2925 = vmatprep.subr.mxu0 %v1498
        %2926 = vmatpush1.msra.mxu0 %v1497
        %2927 = vmatprep.subr.mxu0 %v1502
        %2928 = vmatpush1.msra.mxu0 %v1501
        %2929 = vmatprep.subr.mxu0 %v1506
        %2930 = vmatpush1.msra.mxu0 %v1505
        %2931 = vmatprep.subr.mxu0 %v1510
        %2932 = vmatpush1.msra.mxu0 %v1509
        %2933 = vmatprep.subr.mxu0 %v1514
        %2934 = vmatpush1.msra.mxu0 %v1513
        %2935 = vmatprep.subr.mxu0 %v1518
        %2936 = vmatpush1.msra.mxu0 %v1517
        %2937 = vmatprep.subr.mxu0 %v1522
        %2938 = vmatpush1.msra.mxu0 %v1521
        %2939 = vmatprep.subr.mxu0 %v1526
        %2940 = vmatpush1.msra.mxu0 %v1525
        %2941 = vmatprep.subr.mxu0 %v1530
        %2942 = vmatpush1.msra.mxu0 %v1529
        %2943 = vmatprep.subr.mxu0 %v1534
        %2944 = vmatpush1.msra.mxu0 %v1533
        %2945 = vmatprep.mubr.f32.mxu0 %v1994
        %2946 = vmatmul.mubr.f32.gmra.mrb[0].mxu0 %v1986
        %v2947 = vpop.f32.mrb[0].mxu0
        %v2948 = vadd.f32 %v2877, %v2947
        %v2949 = vpop.f32.mrb[0].mxu0
        %v2950 = vadd.f32 %v2879, %v2949
        %2951 = vdwg.mxu0
        %2952 = vmatprep.subr.mxu0 %v1538
        %2953 = vmatpush1.msra.mxu0 %v1537
        %2954 = vmatprep.subr.mxu0 %v1542
        %2955 = vmatpush1.msra.mxu0 %v1541
        %2956 = vmatprep.subr.mxu0 %v1546
        %2957 = vmatpush1.msra.mxu0 %v1545
        %2958 = vmatprep.subr.mxu0 %v1550
        %2959 = vmatpush1.msra.mxu0 %v1549
        %2960 = vmatprep.subr.mxu0 %v1554
        %2961 = vmatpush1.msra.mxu0 %v1553
        %2962 = vmatprep.subr.mxu0 %v1558
        %2963 = vmatpush1.msra.mxu0 %v1557
        %2964 = vmatprep.subr.mxu0 %v1562
        %2965 = vmatpush1.msra.mxu0 %v1561
        %2966 = vmatprep.subr.mxu0 %v1566
        %2967 = vmatpush1.msra.mxu0 %v1565
        %2968 = vmatprep.subr.mxu0 %v1570
        %2969 = vmatpush1.msra.mxu0 %v1569
        %2970 = vmatprep.subr.mxu0 %v1574
        %2971 = vmatpush1.msra.mxu0 %v1573
        %2972 = vmatprep.subr.mxu0 %v1578
        %2973 = vmatpush1.msra.mxu0 %v1577
        %2974 = vmatprep.subr.mxu0 %v1582
        %2975 = vmatpush1.msra.mxu0 %v1581
        %2976 = vmatprep.subr.mxu0 %v1586
        %2977 = vmatpush1.msra.mxu0 %v1585
        %2978 = vmatprep.subr.mxu0 %v1590
        %2979 = vmatpush1.msra.mxu0 %v1589
        %2980 = vmatprep.subr.mxu0 %v1594
        %2981 = vmatpush1.msra.mxu0 %v1593
        %2982 = vmatprep.subr.mxu0 %v1598
        %2983 = vmatpush1.msra.mxu0 %v1597
        %2984 = vmatprep.subr.mxu0 %v1602
        %2985 = vmatpush1.msra.mxu0 %v1601
        %2986 = vmatprep.subr.mxu0 %v1606
        %2987 = vmatpush1.msra.mxu0 %v1605
        %2988 = vmatprep.subr.mxu0 %v1610
        %2989 = vmatpush1.msra.mxu0 %v1609
        %2990 = vmatprep.subr.mxu0 %v1614
        %2991 = vmatpush1.msra.mxu0 %v1613
        %2992 = vmatprep.subr.mxu0 %v1618
        %2993 = vmatpush1.msra.mxu0 %v1617
        %2994 = vmatprep.subr.mxu0 %v1622
        %2995 = vmatpush1.msra.mxu0 %v1621
        %2996 = vmatprep.subr.mxu0 %v1626
        %2997 = vmatpush1.msra.mxu0 %v1625
        %2998 = vmatprep.subr.mxu0 %v1630
        %2999 = vmatpush1.msra.mxu0 %v1629
        %3000 = vmatprep.subr.mxu0 %v1634
        %3001 = vmatpush1.msra.mxu0 %v1633
        %3002 = vmatprep.subr.mxu0 %v1638
        %3003 = vmatpush1.msra.mxu0 %v1637
        %3004 = vmatprep.subr.mxu0 %v1642
        %3005 = vmatpush1.msra.mxu0 %v1641
        %3006 = vmatprep.subr.mxu0 %v1646
        %3007 = vmatpush1.msra.mxu0 %v1645
        %3008 = vmatprep.subr.mxu0 %v1650
        %3009 = vmatpush1.msra.mxu0 %v1649
        %3010 = vmatprep.subr.mxu0 %v1654
        %3011 = vmatpush1.msra.mxu0 %v1653
        %3012 = vmatprep.subr.mxu0 %v1658
        %3013 = vmatpush1.msra.mxu0 %v1657
        %3014 = vmatprep.subr.mxu0 %v1662
        %3015 = vmatpush1.msra.mxu0 %v1661
        %3016 = vmatprep.mubr.f32.mxu0 %v1995
        %3017 = vmatmul.mubr.f32.gmra.mrb[0].mxu0 %v1993
        %v3018 = vpop.f32.mrb[0].mxu0
        %v3019 = vadd.f32 %v2948, %v3018
        %v3020 = vpop.f32.mrb[0].mxu0
        %v3021 = vadd.f32 %v2950, %v3020
        %3022 = vdwg.mxu0
        %3023 = vmatprep.subr.mxu0 %v1666
        %3024 = vmatpush1.msra.mxu0 %v1665
        %3025 = vmatprep.subr.mxu0 %v1670
        %3026 = vmatpush1.msra.mxu0 %v1669
        %3027 = vmatprep.subr.mxu0 %v1674
        %3028 = vmatpush1.msra.mxu0 %v1673
        %3029 = vmatprep.subr.mxu0 %v1678
        %3030 = vmatpush1.msra.mxu0 %v1677
        %3031 = vmatprep.subr.mxu0 %v1682
        %3032 = vmatpush1.msra.mxu0 %v1681
        %3033 = vmatprep.subr.mxu0 %v1686
        %3034 = vmatpush1.msra.mxu0 %v1685
        %3035 = vmatprep.subr.mxu0 %v1690
        %3036 = vmatpush1.msra.mxu0 %v1689
        %3037 = vmatprep.subr.mxu0 %v1694
        %3038 = vmatpush1.msra.mxu0 %v1693
        %3039 = vmatprep.subr.mxu0 %v1698
        %3040 = vmatpush1.msra.mxu0 %v1697
        %3041 = vmatprep.subr.mxu0 %v1702
        %3042 = vmatpush1.msra.mxu0 %v1701
        %3043 = vmatprep.subr.mxu0 %v1706
        %3044 = vmatpush1.msra.mxu0 %v1705
        %3045 = vmatprep.subr.mxu0 %v1710
        %3046 = vmatpush1.msra.mxu0 %v1709
        %3047 = vmatprep.subr.mxu0 %v1714
        %3048 = vmatpush1.msra.mxu0 %v1713
        %3049 = vmatprep.subr.mxu0 %v1718
        %3050 = vmatpush1.msra.mxu0 %v1717
        %3051 = vmatprep.subr.mxu0 %v1722
        %3052 = vmatpush1.msra.mxu0 %v1721
        %3053 = vmatprep.subr.mxu0 %v1726
        %3054 = vmatpush1.msra.mxu0 %v1725
        %3055 = vmatprep.subr.mxu0 %v1730
        %3056 = vmatpush1.msra.mxu0 %v1729
        %3057 = vmatprep.subr.mxu0 %v1734
        %3058 = vmatpush1.msra.mxu0 %v1733
        %3059 = vmatprep.subr.mxu0 %v1738
        %3060 = vmatpush1.msra.mxu0 %v1737
        %3061 = vmatprep.subr.mxu0 %v1742
        %3062 = vmatpush1.msra.mxu0 %v1741
        %3063 = vmatprep.subr.mxu0 %v1746
        %3064 = vmatpush1.msra.mxu0 %v1745
        %3065 = vmatprep.subr.mxu0 %v1750
        %3066 = vmatpush1.msra.mxu0 %v1749
        %3067 = vmatprep.subr.mxu0 %v1754
        %3068 = vmatpush1.msra.mxu0 %v1753
        %3069 = vmatprep.subr.mxu0 %v1758
        %3070 = vmatpush1.msra.mxu0 %v1757
        %3071 = vmatprep.subr.mxu0 %v1762
        %3072 = vmatpush1.msra.mxu0 %v1761
        %3073 = vmatprep.subr.mxu0 %v1766
        %3074 = vmatpush1.msra.mxu0 %v1765
        %3075 = vmatprep.subr.mxu0 %v1770
        %3076 = vmatpush1.msra.mxu0 %v1769
        %3077 = vmatprep.subr.mxu0 %v1774
        %3078 = vmatpush1.msra.mxu0 %v1773
        %3079 = vmatprep.subr.mxu0 %v1778
        %3080 = vmatpush1.msra.mxu0 %v1777
        %3081 = vmatprep.subr.mxu0 %v1782
        %3082 = vmatpush1.msra.mxu0 %v1781
        %3083 = vmatprep.subr.mxu0 %v1786
        %3084 = vmatpush1.msra.mxu0 %v1785
        %3085 = vmatprep.subr.mxu0 %v1790
        %3086 = vmatpush1.msra.mxu0 %v1789
        %3087 = vmatprep.mubr.f32.mxu0 %v2011
        %3088 = vmatmul.mubr.f32.gmra.mrb[0].mxu0 %v2003
        %v3089 = vpop.f32.mrb[0].mxu0
        %v3090 = vadd.f32 %v3019, %v3089
        %v3091 = vpop.f32.mrb[0].mxu0
        %v3092 = vadd.f32 %v3021, %v3091
        %3093 = vdwg.mxu0
        %3094 = vmatprep.subr.mxu0 %v1794
        %3095 = vmatpush1.msra.mxu0 %v1793
        %3096 = vmatprep.subr.mxu0 %v1798
        %3097 = vmatpush1.msra.mxu0 %v1797
        %3098 = vmatprep.subr.mxu0 %v1802
        %3099 = vmatpush1.msra.mxu0 %v1801
        %3100 = vmatprep.subr.mxu0 %v1806
        %3101 = vmatpush1.msra.mxu0 %v1805
        %3102 = vmatprep.subr.mxu0 %v1810
        %3103 = vmatpush1.msra.mxu0 %v1809
        %3104 = vmatprep.subr.mxu0 %v1814
        %3105 = vmatpush1.msra.mxu0 %v1813
        %3106 = vmatprep.subr.mxu0 %v1818
        %3107 = vmatpush1.msra.mxu0 %v1817
        %3108 = vmatprep.subr.mxu0 %v1822
        %3109 = vmatpush1.msra.mxu0 %v1821
        %3110 = vmatprep.subr.mxu0 %v1826
        %3111 = vmatpush1.msra.mxu0 %v1825
        %3112 = vmatprep.subr.mxu0 %v1830
        %3113 = vmatpush1.msra.mxu0 %v1829
        %3114 = vmatprep.subr.mxu0 %v1834
        %3115 = vmatpush1.msra.mxu0 %v1833
        %3116 = vmatprep.subr.mxu0 %v1838
        %3117 = vmatpush1.msra.mxu0 %v1837
        %3118 = vmatprep.subr.mxu0 %v1842
        %3119 = vmatpush1.msra.mxu0 %v1841
        %3120 = vmatprep.subr.mxu0 %v1846
        %3121 = vmatpush1.msra.mxu0 %v1845
        %3122 = vmatprep.subr.mxu0 %v1850
        %3123 = vmatpush1.msra.mxu0 %v1849
        %3124 = vmatprep.subr.mxu0 %v1854
        %3125 = vmatpush1.msra.mxu0 %v1853
        %3126 = vmatprep.subr.mxu0 %v1858
        %3127 = vmatpush1.msra.mxu0 %v1857
        %3128 = vmatprep.subr.mxu0 %v1862
        %3129 = vmatpush1.msra.mxu0 %v1861
        %3130 = vmatprep.subr.mxu0 %v1866
        %3131 = vmatpush1.msra.mxu0 %v1865
        %3132 = vmatprep.subr.mxu0 %v1870
        %3133 = vmatpush1.msra.mxu0 %v1869
        %3134 = vmatprep.subr.mxu0 %v1874
        %3135 = vmatpush1.msra.mxu0 %v1873
        %3136 = vmatprep.subr.mxu0 %v1878
        %3137 = vmatpush1.msra.mxu0 %v1877
        %3138 = vmatprep.subr.mxu0 %v1882
        %3139 = vmatpush1.msra.mxu0 %v1881
        %3140 = vmatprep.subr.mxu0 %v1886
        %3141 = vmatpush1.msra.mxu0 %v1885
        %3142 = vmatprep.subr.mxu0 %v1890
        %3143 = vmatpush1.msra.mxu0 %v1889
        %3144 = vmatprep.subr.mxu0 %v1894
        %3145 = vmatpush1.msra.mxu0 %v1893
        %3146 = vmatprep.subr.mxu0 %v1898
        %3147 = vmatpush1.msra.mxu0 %v1897
        %3148 = vmatprep.subr.mxu0 %v1902
        %3149 = vmatpush1.msra.mxu0 %v1901
        %3150 = vmatprep.subr.mxu0 %v1906
        %3151 = vmatpush1.msra.mxu0 %v1905
        %3152 = vmatprep.subr.mxu0 %v1910
        %3153 = vmatpush1.msra.mxu0 %v1909
        %3154 = vmatprep.subr.mxu0 %v1914
        %3155 = vmatpush1.msra.mxu0 %v1913
        %3156 = vmatprep.subr.mxu0 %v1918
        %3157 = vmatpush1.msra.mxu0 %v1917
        %3158 = vmatprep.mubr.f32.mxu0 %v2012
        %3159 = vmatmul.mubr.f32.gmra.mrb[0].mxu0 %v2010
        %v3160 = vpop.f32.mrb[0].mxu0
        %v3161 = vadd.f32 %v3090, %v3160
        %v3162 = vpop.f32.mrb[0].mxu0
        %v3163 = vadd.f32 %v3092, %v3162
        %3164 = vdwg.mxu0
        %v3165 = vsub.f32 0.0, %v2593
        %v3166 = vsub.f32 0.0, %v2595
        %v3167 = vsub.f32 0.0, %v3161
        %v3168 = vsub.f32 0.0, %v3163
        %v3169 = vmul.f32 %v3165, 1.442695
        %v3170 = vpow.pop %v3169
        %v3171 = vmul.f32 %v3166, 1.442695
        %v3172 = vpow.pop %v3171
        %v3173 = vmul.f32 %v3167, 1.442695
        %v3174 = vpow.pop %v3173
        %v3175 = vmul.f32 %v3168, 1.442695
        %v3176 = vpow.pop %v3175
        %v3177 = vadd.f32 %v3170, 1.0
        %v3178 = vadd.f32 %v3172, 1.0
        %v3179 = vadd.f32 %v3174, 1.0
        %v3180 = vadd.f32 %v3176, 1.0
        %v3181 = vrcp.pop %v3177
        %v3182 = vmul.f32 %v2593, %v3181
        %v3183 = vrcp.pop %v3178
        %v3184 = vmul.f32 %v2595, %v3183
        %v3185 = vrcp.pop %v3179
        %v3186 = vmul.f32 %v3161, %v3185
        %v3187 = vrcp.pop %v3180
        %v3188 = vmul.f32 %v3163, %v3187
        %v3189 = vld [vmem:[%s489] sm:$0xff]
        %v3190 = vld [vmem:[%s489 + $0x8] sm:$0xff]
        %v3191 = vld [vmem:[%s489 + $0x10] sm:$0xff]
        %v3192 = vld [vmem:[%s489 + $0x18] sm:$0xff]
        %v3193 = vld [vmem:[%s489 + $0x20] sm:$0xff]
        %v3194 = vld [vmem:[%s489 + $0x28] sm:$0xff]
        %v3195 = vld [vmem:[%s489 + $0x30] sm:$0xff]
        %v3196 = vld [vmem:[%s489 + $0x38] sm:$0xff]
        %v3197 = vld [vmem:[%s489 + $0x40] sm:$0xff]
        %v3198 = vld [vmem:[%s489 + $0x48] sm:$0xff]
        %v3199 = vld [vmem:[%s489 + $0x50] sm:$0xff]
        %v3200 = vld [vmem:[%s489 + $0x58] sm:$0xff]
        %v3201 = vld [vmem:[%s489 + $0x60] sm:$0xff]
        %v3202 = vld [vmem:[%s489 + $0x68] sm:$0xff]
        %v3203 = vld [vmem:[%s489 + $0x70] sm:$0xff]
        %v3204 = vld [vmem:[%s489 + $0x78] sm:$0xff]
        %v3205 = vld [vmem:[%s489 + $0x80] sm:$0xff]
        %v3206 = vld [vmem:[%s489 + $0x88] sm:$0xff]
        %v3207 = vld [vmem:[%s489 + $0x90] sm:$0xff]
        %v3208 = vld [vmem:[%s489 + $0x98] sm:$0xff]
        %v3209 = vld [vmem:[%s489 + $0xa0] sm:$0xff]
        %v3210 = vld [vmem:[%s489 + $0xa8] sm:$0xff]
        %v3211 = vld [vmem:[%s489 + $0xb0] sm:$0xff]
        %v3212 = vld [vmem:[%s489 + $0xb8] sm:$0xff]
        %v3213 = vld [vmem:[%s489 + $0xc0] sm:$0xff]
        %v3214 = vld [vmem:[%s489 + $0xc8] sm:$0xff]
        %v3215 = vld [vmem:[%s489 + $0xd0] sm:$0xff]
        %v3216 = vld [vmem:[%s489 + $0xd8] sm:$0xff]
        %v3217 = vld [vmem:[%s489 + $0xe0] sm:$0xff]
        %v3218 = vld [vmem:[%s489 + $0xe8] sm:$0xff]
        %v3219 = vld [vmem:[%s489 + $0xf0] sm:$0xff]
        %v3220 = vld [vmem:[%s489 + $0xf8] sm:$0xff]
        %v3221 = vld [vmem:[%s489 + $0x100] sm:$0xff]
        %v3222 = vld [vmem:[%s489 + $0x108] sm:$0xff]
        %v3223 = vld [vmem:[%s489 + $0x110] sm:$0xff]
        %v3224 = vld [vmem:[%s489 + $0x118] sm:$0xff]
        %v3225 = vld [vmem:[%s489 + $0x120] sm:$0xff]
        %v3226 = vld [vmem:[%s489 + $0x128] sm:$0xff]
        %v3227 = vld [vmem:[%s489 + $0x130] sm:$0xff]
        %v3228 = vld [vmem:[%s489 + $0x138] sm:$0xff]
        %v3229 = vld [vmem:[%s489 + $0x140] sm:$0xff]
        %v3230 = vld [vmem:[%s489 + $0x148] sm:$0xff]
        %v3231 = vld [vmem:[%s489 + $0x150] sm:$0xff]
        %v3232 = vld [vmem:[%s489 + $0x158] sm:$0xff]
        %v3233 = vld [vmem:[%s489 + $0x160] sm:$0xff]
        %v3234 = vld [vmem:[%s489 + $0x168] sm:$0xff]
        %v3235 = vld [vmem:[%s489 + $0x170] sm:$0xff]
        %v3236 = vld [vmem:[%s489 + $0x178] sm:$0xff]
        %v3237 = vld [vmem:[%s489 + $0x180] sm:$0xff]
        %v3238 = vld [vmem:[%s489 + $0x188] sm:$0xff]
        %v3239 = vld [vmem:[%s489 + $0x190] sm:$0xff]
        %v3240 = vld [vmem:[%s489 + $0x198] sm:$0xff]
        %v3241 = vld [vmem:[%s489 + $0x1a0] sm:$0xff]
        %v3242 = vld [vmem:[%s489 + $0x1a8] sm:$0xff]
        %v3243 = vld [vmem:[%s489 + $0x1b0] sm:$0xff]
        %v3244 = vld [vmem:[%s489 + $0x1b8] sm:$0xff]
        %v3245 = vld [vmem:[%s489 + $0x1c0] sm:$0xff]
        %v3246 = vld [vmem:[%s489 + $0x1c8] sm:$0xff]
        %v3247 = vld [vmem:[%s489 + $0x1d0] sm:$0xff]
        %v3248 = vld [vmem:[%s489 + $0x1d8] sm:$0xff]
        %v3249 = vld [vmem:[%s489 + $0x1e0] sm:$0xff]
        %v3250 = vld [vmem:[%s489 + $0x1e8] sm:$0xff]
        %v3251 = vld [vmem:[%s489 + $0x1f0] sm:$0xff]
        %v3252 = vld [vmem:[%s489 + $0x1f8] sm:$0xff]
        %v3253 = vld [vmem:[%s489 + $0x200] sm:$0xff]
        %v3254 = vld [vmem:[%s489 + $0x208] sm:$0xff]
        %v3255 = vld [vmem:[%s489 + $0x210] sm:$0xff]
        %v3256 = vld [vmem:[%s489 + $0x218] sm:$0xff]
        %v3257 = vld [vmem:[%s489 + $0x220] sm:$0xff]
        %v3258 = vld [vmem:[%s489 + $0x228] sm:$0xff]
        %v3259 = vld [vmem:[%s489 + $0x230] sm:$0xff]
        %v3260 = vld [vmem:[%s489 + $0x238] sm:$0xff]
        %v3261 = vld [vmem:[%s489 + $0x240] sm:$0xff]
        %v3262 = vld [vmem:[%s489 + $0x248] sm:$0xff]
        %v3263 = vld [vmem:[%s489 + $0x250] sm:$0xff]
        %v3264 = vld [vmem:[%s489 + $0x258] sm:$0xff]
        %v3265 = vld [vmem:[%s489 + $0x260] sm:$0xff]
        %v3266 = vld [vmem:[%s489 + $0x268] sm:$0xff]
        %v3267 = vld [vmem:[%s489 + $0x270] sm:$0xff]
        %v3268 = vld [vmem:[%s489 + $0x278] sm:$0xff]
        %v3269 = vld [vmem:[%s489 + $0x280] sm:$0xff]
        %v3270 = vld [vmem:[%s489 + $0x288] sm:$0xff]
        %v3271 = vld [vmem:[%s489 + $0x290] sm:$0xff]
        %v3272 = vld [vmem:[%s489 + $0x298] sm:$0xff]
        %v3273 = vld [vmem:[%s489 + $0x2a0] sm:$0xff]
        %v3274 = vld [vmem:[%s489 + $0x2a8] sm:$0xff]
        %v3275 = vld [vmem:[%s489 + $0x2b0] sm:$0xff]
        %v3276 = vld [vmem:[%s489 + $0x2b8] sm:$0xff]
        %v3277 = vld [vmem:[%s489 + $0x2c0] sm:$0xff]
        %v3278 = vld [vmem:[%s489 + $0x2c8] sm:$0xff]
        %v3279 = vld [vmem:[%s489 + $0x2d0] sm:$0xff]
        %v3280 = vld [vmem:[%s489 + $0x2d8] sm:$0xff]
        %v3281 = vld [vmem:[%s489 + $0x2e0] sm:$0xff]
        %v3282 = vld [vmem:[%s489 + $0x2e8] sm:$0xff]
        %v3283 = vld [vmem:[%s489 + $0x2f0] sm:$0xff]
        %v3284 = vld [vmem:[%s489 + $0x2f8] sm:$0xff]
        %v3285 = vld [vmem:[%s489 + $0x300] sm:$0xff]
        %v3286 = vld [vmem:[%s489 + $0x308] sm:$0xff]
        %v3287 = vld [vmem:[%s489 + $0x310] sm:$0xff]
        %v3288 = vld [vmem:[%s489 + $0x318] sm:$0xff]
        %v3289 = vld [vmem:[%s489 + $0x320] sm:$0xff]
        %v3290 = vld [vmem:[%s489 + $0x328] sm:$0xff]
        %v3291 = vld [vmem:[%s489 + $0x330] sm:$0xff]
        %v3292 = vld [vmem:[%s489 + $0x338] sm:$0xff]
        %v3293 = vld [vmem:[%s489 + $0x340] sm:$0xff]
        %v3294 = vld [vmem:[%s489 + $0x348] sm:$0xff]
        %v3295 = vld [vmem:[%s489 + $0x350] sm:$0xff]
        %v3296 = vld [vmem:[%s489 + $0x358] sm:$0xff]
        %v3297 = vld [vmem:[%s489 + $0x360] sm:$0xff]
        %v3298 = vld [vmem:[%s489 + $0x368] sm:$0xff]
        %v3299 = vld [vmem:[%s489 + $0x370] sm:$0xff]
        %v3300 = vld [vmem:[%s489 + $0x378] sm:$0xff]
        %v3301 = vld [vmem:[%s489 + $0x380] sm:$0xff]
        %v3302 = vld [vmem:[%s489 + $0x388] sm:$0xff]
        %v3303 = vld [vmem:[%s489 + $0x390] sm:$0xff]
        %v3304 = vld [vmem:[%s489 + $0x398] sm:$0xff]
        %v3305 = vld [vmem:[%s489 + $0x3a0] sm:$0xff]
        %v3306 = vld [vmem:[%s489 + $0x3a8] sm:$0xff]
        %v3307 = vld [vmem:[%s489 + $0x3b0] sm:$0xff]
        %v3308 = vld [vmem:[%s489 + $0x3b8] sm:$0xff]
        %v3309 = vld [vmem:[%s489 + $0x3c0] sm:$0xff]
        %v3310 = vld [vmem:[%s489 + $0x3c8] sm:$0xff]
        %v3311 = vld [vmem:[%s489 + $0x3d0] sm:$0xff]
        %v3312 = vld [vmem:[%s489 + $0x3d8] sm:$0xff]
        %v3313 = vld [vmem:[%s489 + $0x3e0] sm:$0xff]
        %v3314 = vld [vmem:[%s489 + $0x3e8] sm:$0xff]
        %v3315 = vld [vmem:[%s489 + $0x3f0] sm:$0xff]
        %v3316 = vld [vmem:[%s489 + $0x3f8] sm:$0xff]
        %v3317 = vld [vmem:[%s489 + $0x400] sm:$0xff]
        %v3318 = vld [vmem:[%s489 + $0x408] sm:$0xff]
        %v3319 = vld [vmem:[%s489 + $0x410] sm:$0xff]
        %v3320 = vld [vmem:[%s489 + $0x418] sm:$0xff]
        %v3321 = vld [vmem:[%s489 + $0x420] sm:$0xff]
        %v3322 = vld [vmem:[%s489 + $0x428] sm:$0xff]
        %v3323 = vld [vmem:[%s489 + $0x430] sm:$0xff]
        %v3324 = vld [vmem:[%s489 + $0x438] sm:$0xff]
        %v3325 = vld [vmem:[%s489 + $0x440] sm:$0xff]
        %v3326 = vld [vmem:[%s489 + $0x448] sm:$0xff]
        %v3327 = vld [vmem:[%s489 + $0x450] sm:$0xff]
        %v3328 = vld [vmem:[%s489 + $0x458] sm:$0xff]
        %v3329 = vld [vmem:[%s489 + $0x460] sm:$0xff]
        %v3330 = vld [vmem:[%s489 + $0x468] sm:$0xff]
        %v3331 = vld [vmem:[%s489 + $0x470] sm:$0xff]
        %v3332 = vld [vmem:[%s489 + $0x478] sm:$0xff]
        %v3333 = vld [vmem:[%s489 + $0x480] sm:$0xff]
        %v3334 = vld [vmem:[%s489 + $0x488] sm:$0xff]
        %v3335 = vld [vmem:[%s489 + $0x490] sm:$0xff]
        %v3336 = vld [vmem:[%s489 + $0x498] sm:$0xff]
        %v3337 = vld [vmem:[%s489 + $0x4a0] sm:$0xff]
        %v3338 = vld [vmem:[%s489 + $0x4a8] sm:$0xff]
        %v3339 = vld [vmem:[%s489 + $0x4b0] sm:$0xff]
        %v3340 = vld [vmem:[%s489 + $0x4b8] sm:$0xff]
        %v3341 = vld [vmem:[%s489 + $0x4c0] sm:$0xff]
        %v3342 = vld [vmem:[%s489 + $0x4c8] sm:$0xff]
        %v3343 = vld [vmem:[%s489 + $0x4d0] sm:$0xff]
        %v3344 = vld [vmem:[%s489 + $0x4d8] sm:$0xff]
        %v3345 = vld [vmem:[%s489 + $0x4e0] sm:$0xff]
        %v3346 = vld [vmem:[%s489 + $0x4e8] sm:$0xff]
        %v3347 = vld [vmem:[%s489 + $0x4f0] sm:$0xff]
        %v3348 = vld [vmem:[%s489 + $0x4f8] sm:$0xff]
        %v3349 = vld [vmem:[%s489 + $0x500] sm:$0xff]
        %v3350 = vld [vmem:[%s489 + $0x508] sm:$0xff]
        %v3351 = vld [vmem:[%s489 + $0x510] sm:$0xff]
        %v3352 = vld [vmem:[%s489 + $0x518] sm:$0xff]
        %v3353 = vld [vmem:[%s489 + $0x520] sm:$0xff]
        %v3354 = vld [vmem:[%s489 + $0x528] sm:$0xff]
        %v3355 = vld [vmem:[%s489 + $0x530] sm:$0xff]
        %v3356 = vld [vmem:[%s489 + $0x538] sm:$0xff]
        %v3357 = vld [vmem:[%s489 + $0x540] sm:$0xff]
        %v3358 = vld [vmem:[%s489 + $0x548] sm:$0xff]
        %v3359 = vld [vmem:[%s489 + $0x550] sm:$0xff]
        %v3360 = vld [vmem:[%s489 + $0x558] sm:$0xff]
        %v3361 = vld [vmem:[%s489 + $0x560] sm:$0xff]
        %v3362 = vld [vmem:[%s489 + $0x568] sm:$0xff]
        %v3363 = vld [vmem:[%s489 + $0x570] sm:$0xff]
        %v3364 = vld [vmem:[%s489 + $0x578] sm:$0xff]
        %v3365 = vld [vmem:[%s489 + $0x580] sm:$0xff]
        %v3366 = vld [vmem:[%s489 + $0x588] sm:$0xff]
        %v3367 = vld [vmem:[%s489 + $0x590] sm:$0xff]
        %v3368 = vld [vmem:[%s489 + $0x598] sm:$0xff]
        %v3369 = vld [vmem:[%s489 + $0x5a0] sm:$0xff]
        %v3370 = vld [vmem:[%s489 + $0x5a8] sm:$0xff]
        %v3371 = vld [vmem:[%s489 + $0x5b0] sm:$0xff]
        %v3372 = vld [vmem:[%s489 + $0x5b8] sm:$0xff]
        %v3373 = vld [vmem:[%s489 + $0x5c0] sm:$0xff]
        %v3374 = vld [vmem:[%s489 + $0x5c8] sm:$0xff]
        %v3375 = vld [vmem:[%s489 + $0x5d0] sm:$0xff]
        %v3376 = vld [vmem:[%s489 + $0x5d8] sm:$0xff]
        %v3377 = vld [vmem:[%s489 + $0x5e0] sm:$0xff]
        %v3378 = vld [vmem:[%s489 + $0x5e8] sm:$0xff]
        %v3379 = vld [vmem:[%s489 + $0x5f0] sm:$0xff]
        %v3380 = vld [vmem:[%s489 + $0x5f8] sm:$0xff]
        %v3381 = vld [vmem:[%s489 + $0x600] sm:$0xff]
        %v3382 = vld [vmem:[%s489 + $0x608] sm:$0xff]
        %v3383 = vld [vmem:[%s489 + $0x610] sm:$0xff]
        %v3384 = vld [vmem:[%s489 + $0x618] sm:$0xff]
        %v3385 = vld [vmem:[%s489 + $0x620] sm:$0xff]
        %v3386 = vld [vmem:[%s489 + $0x628] sm:$0xff]
        %v3387 = vld [vmem:[%s489 + $0x630] sm:$0xff]
        %v3388 = vld [vmem:[%s489 + $0x638] sm:$0xff]
        %v3389 = vld [vmem:[%s489 + $0x640] sm:$0xff]
        %v3390 = vld [vmem:[%s489 + $0x648] sm:$0xff]
        %v3391 = vld [vmem:[%s489 + $0x650] sm:$0xff]
        %v3392 = vld [vmem:[%s489 + $0x658] sm:$0xff]
        %v3393 = vld [vmem:[%s489 + $0x660] sm:$0xff]
        %v3394 = vld [vmem:[%s489 + $0x668] sm:$0xff]
        %v3395 = vld [vmem:[%s489 + $0x670] sm:$0xff]
        %v3396 = vld [vmem:[%s489 + $0x678] sm:$0xff]
        %v3397 = vld [vmem:[%s489 + $0x680] sm:$0xff]
        %v3398 = vld [vmem:[%s489 + $0x688] sm:$0xff]
        %v3399 = vld [vmem:[%s489 + $0x690] sm:$0xff]
        %v3400 = vld [vmem:[%s489 + $0x698] sm:$0xff]
        %v3401 = vld [vmem:[%s489 + $0x6a0] sm:$0xff]
        %v3402 = vld [vmem:[%s489 + $0x6a8] sm:$0xff]
        %v3403 = vld [vmem:[%s489 + $0x6b0] sm:$0xff]
        %v3404 = vld [vmem:[%s489 + $0x6b8] sm:$0xff]
        %v3405 = vld [vmem:[%s489 + $0x6c0] sm:$0xff]
        %v3406 = vld [vmem:[%s489 + $0x6c8] sm:$0xff]
        %v3407 = vld [vmem:[%s489 + $0x6d0] sm:$0xff]
        %v3408 = vld [vmem:[%s489 + $0x6d8] sm:$0xff]
        %v3409 = vld [vmem:[%s489 + $0x6e0] sm:$0xff]
        %v3410 = vld [vmem:[%s489 + $0x6e8] sm:$0xff]
        %v3411 = vld [vmem:[%s489 + $0x6f0] sm:$0xff]
        %v3412 = vld [vmem:[%s489 + $0x6f8] sm:$0xff]
        %v3413 = vld [vmem:[%s489 + $0x700] sm:$0xff]
        %v3414 = vld [vmem:[%s489 + $0x708] sm:$0xff]
        %v3415 = vld [vmem:[%s489 + $0x710] sm:$0xff]
        %v3416 = vld [vmem:[%s489 + $0x718] sm:$0xff]
        %v3417 = vld [vmem:[%s489 + $0x720] sm:$0xff]
        %v3418 = vld [vmem:[%s489 + $0x728] sm:$0xff]
        %v3419 = vld [vmem:[%s489 + $0x730] sm:$0xff]
        %v3420 = vld [vmem:[%s489 + $0x738] sm:$0xff]
        %v3421 = vld [vmem:[%s489 + $0x740] sm:$0xff]
        %v3422 = vld [vmem:[%s489 + $0x748] sm:$0xff]
        %v3423 = vld [vmem:[%s489 + $0x750] sm:$0xff]
        %v3424 = vld [vmem:[%s489 + $0x758] sm:$0xff]
        %v3425 = vld [vmem:[%s489 + $0x760] sm:$0xff]
        %v3426 = vld [vmem:[%s489 + $0x768] sm:$0xff]
        %v3427 = vld [vmem:[%s489 + $0x770] sm:$0xff]
        %v3428 = vld [vmem:[%s489 + $0x778] sm:$0xff]
        %v3429 = vld [vmem:[%s489 + $0x780] sm:$0xff]
        %v3430 = vld [vmem:[%s489 + $0x788] sm:$0xff]
        %v3431 = vld [vmem:[%s489 + $0x790] sm:$0xff]
        %v3432 = vld [vmem:[%s489 + $0x798] sm:$0xff]
        %v3433 = vld [vmem:[%s489 + $0x7a0] sm:$0xff]
        %v3434 = vld [vmem:[%s489 + $0x7a8] sm:$0xff]
        %v3435 = vld [vmem:[%s489 + $0x7b0] sm:$0xff]
        %v3436 = vld [vmem:[%s489 + $0x7b8] sm:$0xff]
        %v3437 = vld [vmem:[%s489 + $0x7c0] sm:$0xff]
        %v3438 = vld [vmem:[%s489 + $0x7c8] sm:$0xff]
        %v3439 = vld [vmem:[%s489 + $0x7d0] sm:$0xff]
        %v3440 = vld [vmem:[%s489 + $0x7d8] sm:$0xff]
        %v3441 = vld [vmem:[%s489 + $0x7e0] sm:$0xff]
        %v3442 = vld [vmem:[%s489 + $0x7e8] sm:$0xff]
        %v3443 = vld [vmem:[%s489 + $0x7f0] sm:$0xff]
        %v3444 = vld [vmem:[%s489 + $0x7f8] sm:$0xff]
        %v3445 = vld [vmem:[%s489 + $0x800] sm:$0xff]
        %v3446 = vld [vmem:[%s489 + $0x808] sm:$0xff]
        %v3447 = vld [vmem:[%s489 + $0x810] sm:$0xff]
        %v3448 = vld [vmem:[%s489 + $0x818] sm:$0xff]
        %v3449 = vld [vmem:[%s489 + $0x820] sm:$0xff]
        %v3450 = vld [vmem:[%s489 + $0x828] sm:$0xff]
        %v3451 = vld [vmem:[%s489 + $0x830] sm:$0xff]
        %v3452 = vld [vmem:[%s489 + $0x838] sm:$0xff]
        %v3453 = vld [vmem:[%s489 + $0x840] sm:$0xff]
        %v3454 = vld [vmem:[%s489 + $0x848] sm:$0xff]
        %v3455 = vld [vmem:[%s489 + $0x850] sm:$0xff]
        %v3456 = vld [vmem:[%s489 + $0x858] sm:$0xff]
        %v3457 = vld [vmem:[%s489 + $0x860] sm:$0xff]
        %v3458 = vld [vmem:[%s489 + $0x868] sm:$0xff]
        %v3459 = vld [vmem:[%s489 + $0x870] sm:$0xff]
        %v3460 = vld [vmem:[%s489 + $0x878] sm:$0xff]
        %v3461 = vld [vmem:[%s489 + $0x880] sm:$0xff]
        %v3462 = vld [vmem:[%s489 + $0x888] sm:$0xff]
        %v3463 = vld [vmem:[%s489 + $0x890] sm:$0xff]
        %v3464 = vld [vmem:[%s489 + $0x898] sm:$0xff]
        %v3465 = vld [vmem:[%s489 + $0x8a0] sm:$0xff]
        %v3466 = vld [vmem:[%s489 + $0x8a8] sm:$0xff]
        %v3467 = vld [vmem:[%s489 + $0x8b0] sm:$0xff]
        %v3468 = vld [vmem:[%s489 + $0x8b8] sm:$0xff]
        %v3469 = vld [vmem:[%s489 + $0x8c0] sm:$0xff]
        %v3470 = vld [vmem:[%s489 + $0x8c8] sm:$0xff]
        %v3471 = vld [vmem:[%s489 + $0x8d0] sm:$0xff]
        %v3472 = vld [vmem:[%s489 + $0x8d8] sm:$0xff]
        %v3473 = vld [vmem:[%s489 + $0x8e0] sm:$0xff]
        %v3474 = vld [vmem:[%s489 + $0x8e8] sm:$0xff]
        %v3475 = vld [vmem:[%s489 + $0x8f0] sm:$0xff]
        %v3476 = vld [vmem:[%s489 + $0x8f8] sm:$0xff]
        %v3477 = vld [vmem:[%s489 + $0x900] sm:$0xff]
        %v3478 = vld [vmem:[%s489 + $0x908] sm:$0xff]
        %v3479 = vld [vmem:[%s489 + $0x910] sm:$0xff]
        %v3480 = vld [vmem:[%s489 + $0x918] sm:$0xff]
        %v3481 = vld [vmem:[%s489 + $0x920] sm:$0xff]
        %v3482 = vld [vmem:[%s489 + $0x928] sm:$0xff]
        %v3483 = vld [vmem:[%s489 + $0x930] sm:$0xff]
        %v3484 = vld [vmem:[%s489 + $0x938] sm:$0xff]
        %v3485 = vld [vmem:[%s489 + $0x940] sm:$0xff]
        %v3486 = vld [vmem:[%s489 + $0x948] sm:$0xff]
        %v3487 = vld [vmem:[%s489 + $0x950] sm:$0xff]
        %v3488 = vld [vmem:[%s489 + $0x958] sm:$0xff]
        %v3489 = vld [vmem:[%s489 + $0x960] sm:$0xff]
        %v3490 = vld [vmem:[%s489 + $0x968] sm:$0xff]
        %v3491 = vld [vmem:[%s489 + $0x970] sm:$0xff]
        %v3492 = vld [vmem:[%s489 + $0x978] sm:$0xff]
        %v3493 = vld [vmem:[%s489 + $0x980] sm:$0xff]
        %v3494 = vld [vmem:[%s489 + $0x988] sm:$0xff]
        %v3495 = vld [vmem:[%s489 + $0x990] sm:$0xff]
        %v3496 = vld [vmem:[%s489 + $0x998] sm:$0xff]
        %v3497 = vld [vmem:[%s489 + $0x9a0] sm:$0xff]
        %v3498 = vld [vmem:[%s489 + $0x9a8] sm:$0xff]
        %v3499 = vld [vmem:[%s489 + $0x9b0] sm:$0xff]
        %v3500 = vld [vmem:[%s489 + $0x9b8] sm:$0xff]
        %v3501 = vld [vmem:[%s489 + $0x9c0] sm:$0xff]
        %v3502 = vld [vmem:[%s489 + $0x9c8] sm:$0xff]
        %v3503 = vld [vmem:[%s489 + $0x9d0] sm:$0xff]
        %v3504 = vld [vmem:[%s489 + $0x9d8] sm:$0xff]
        %v3505 = vld [vmem:[%s489 + $0x9e0] sm:$0xff]
        %v3506 = vld [vmem:[%s489 + $0x9e8] sm:$0xff]
        %v3507 = vld [vmem:[%s489 + $0x9f0] sm:$0xff]
        %v3508 = vld [vmem:[%s489 + $0x9f8] sm:$0xff]
        %v3509 = vld [vmem:[%s489 + $0xa00] sm:$0xff]
        %v3510 = vld [vmem:[%s489 + $0xa08] sm:$0xff]
        %v3511 = vld [vmem:[%s489 + $0xa10] sm:$0xff]
        %v3512 = vld [vmem:[%s489 + $0xa18] sm:$0xff]
        %v3513 = vld [vmem:[%s489 + $0xa20] sm:$0xff]
        %v3514 = vld [vmem:[%s489 + $0xa28] sm:$0xff]
        %v3515 = vld [vmem:[%s489 + $0xa30] sm:$0xff]
        %v3516 = vld [vmem:[%s489 + $0xa38] sm:$0xff]
        %v3517 = vld [vmem:[%s489 + $0xa40] sm:$0xff]
        %v3518 = vld [vmem:[%s489 + $0xa48] sm:$0xff]
        %v3519 = vld [vmem:[%s489 + $0xa50] sm:$0xff]
        %v3520 = vld [vmem:[%s489 + $0xa58] sm:$0xff]
        %v3521 = vld [vmem:[%s489 + $0xa60] sm:$0xff]
        %v3522 = vld [vmem:[%s489 + $0xa68] sm:$0xff]
        %v3523 = vld [vmem:[%s489 + $0xa70] sm:$0xff]
        %v3524 = vld [vmem:[%s489 + $0xa78] sm:$0xff]
        %v3525 = vld [vmem:[%s489 + $0xa80] sm:$0xff]
        %v3526 = vld [vmem:[%s489 + $0xa88] sm:$0xff]
        %v3527 = vld [vmem:[%s489 + $0xa90] sm:$0xff]
        %v3528 = vld [vmem:[%s489 + $0xa98] sm:$0xff]
        %v3529 = vld [vmem:[%s489 + $0xaa0] sm:$0xff]
        %v3530 = vld [vmem:[%s489 + $0xaa8] sm:$0xff]
        %v3531 = vld [vmem:[%s489 + $0xab0] sm:$0xff]
        %v3532 = vld [vmem:[%s489 + $0xab8] sm:$0xff]
        %v3533 = vld [vmem:[%s489 + $0xac0] sm:$0xff]
        %v3534 = vld [vmem:[%s489 + $0xac8] sm:$0xff]
        %v3535 = vld [vmem:[%s489 + $0xad0] sm:$0xff]
        %v3536 = vld [vmem:[%s489 + $0xad8] sm:$0xff]
        %v3537 = vld [vmem:[%s489 + $0xae0] sm:$0xff]
        %v3538 = vld [vmem:[%s489 + $0xae8] sm:$0xff]
        %v3539 = vld [vmem:[%s489 + $0xaf0] sm:$0xff]
        %v3540 = vld [vmem:[%s489 + $0xaf8] sm:$0xff]
        %v3541 = vld [vmem:[%s489 + $0xb00] sm:$0xff]
        %v3542 = vld [vmem:[%s489 + $0xb08] sm:$0xff]
        %v3543 = vld [vmem:[%s489 + $0xb10] sm:$0xff]
        %v3544 = vld [vmem:[%s489 + $0xb18] sm:$0xff]
        %v3545 = vld [vmem:[%s489 + $0xb20] sm:$0xff]
        %v3546 = vld [vmem:[%s489 + $0xb28] sm:$0xff]
        %v3547 = vld [vmem:[%s489 + $0xb30] sm:$0xff]
        %v3548 = vld [vmem:[%s489 + $0xb38] sm:$0xff]
        %v3549 = vld [vmem:[%s489 + $0xb40] sm:$0xff]
        %v3550 = vld [vmem:[%s489 + $0xb48] sm:$0xff]
        %v3551 = vld [vmem:[%s489 + $0xb50] sm:$0xff]
        %v3552 = vld [vmem:[%s489 + $0xb58] sm:$0xff]
        %v3553 = vld [vmem:[%s489 + $0xb60] sm:$0xff]
        %v3554 = vld [vmem:[%s489 + $0xb68] sm:$0xff]
        %v3555 = vld [vmem:[%s489 + $0xb70] sm:$0xff]
        %v3556 = vld [vmem:[%s489 + $0xb78] sm:$0xff]
        %v3557 = vld [vmem:[%s489 + $0xb80] sm:$0xff]
        %v3558 = vld [vmem:[%s489 + $0xb88] sm:$0xff]
        %v3559 = vld [vmem:[%s489 + $0xb90] sm:$0xff]
        %v3560 = vld [vmem:[%s489 + $0xb98] sm:$0xff]
        %v3561 = vld [vmem:[%s489 + $0xba0] sm:$0xff]
        %v3562 = vld [vmem:[%s489 + $0xba8] sm:$0xff]
        %v3563 = vld [vmem:[%s489 + $0xbb0] sm:$0xff]
        %v3564 = vld [vmem:[%s489 + $0xbb8] sm:$0xff]
        %v3565 = vld [vmem:[%s489 + $0xbc0] sm:$0xff]
        %v3566 = vld [vmem:[%s489 + $0xbc8] sm:$0xff]
        %v3567 = vld [vmem:[%s489 + $0xbd0] sm:$0xff]
        %v3568 = vld [vmem:[%s489 + $0xbd8] sm:$0xff]
        %v3569 = vld [vmem:[%s489 + $0xbe0] sm:$0xff]
        %v3570 = vld [vmem:[%s489 + $0xbe8] sm:$0xff]
        %v3571 = vld [vmem:[%s489 + $0xbf0] sm:$0xff]
        %v3572 = vld [vmem:[%s489 + $0xbf8] sm:$0xff]
        %v3573 = vld [vmem:[%s489 + $0xc00] sm:$0xff]
        %v3574 = vld [vmem:[%s489 + $0xc08] sm:$0xff]
        %v3575 = vld [vmem:[%s489 + $0xc10] sm:$0xff]
        %v3576 = vld [vmem:[%s489 + $0xc18] sm:$0xff]
        %v3577 = vld [vmem:[%s489 + $0xc20] sm:$0xff]
        %v3578 = vld [vmem:[%s489 + $0xc28] sm:$0xff]
        %v3579 = vld [vmem:[%s489 + $0xc30] sm:$0xff]
        %v3580 = vld [vmem:[%s489 + $0xc38] sm:$0xff]
        %v3581 = vld [vmem:[%s489 + $0xc40] sm:$0xff]
        %v3582 = vld [vmem:[%s489 + $0xc48] sm:$0xff]
        %v3583 = vld [vmem:[%s489 + $0xc50] sm:$0xff]
        %v3584 = vld [vmem:[%s489 + $0xc58] sm:$0xff]
        %v3585 = vld [vmem:[%s489 + $0xc60] sm:$0xff]
        %v3586 = vld [vmem:[%s489 + $0xc68] sm:$0xff]
        %v3587 = vld [vmem:[%s489 + $0xc70] sm:$0xff]
        %v3588 = vld [vmem:[%s489 + $0xc78] sm:$0xff]
        %v3589 = vld [vmem:[%s489 + $0xc80] sm:$0xff]
        %v3590 = vld [vmem:[%s489 + $0xc88] sm:$0xff]
        %v3591 = vld [vmem:[%s489 + $0xc90] sm:$0xff]
        %v3592 = vld [vmem:[%s489 + $0xc98] sm:$0xff]
        %v3593 = vld [vmem:[%s489 + $0xca0] sm:$0xff]
        %v3594 = vld [vmem:[%s489 + $0xca8] sm:$0xff]
        %v3595 = vld [vmem:[%s489 + $0xcb0] sm:$0xff]
        %v3596 = vld [vmem:[%s489 + $0xcb8] sm:$0xff]
        %v3597 = vld [vmem:[%s489 + $0xcc0] sm:$0xff]
        %v3598 = vld [vmem:[%s489 + $0xcc8] sm:$0xff]
        %v3599 = vld [vmem:[%s489 + $0xcd0] sm:$0xff]
        %v3600 = vld [vmem:[%s489 + $0xcd8] sm:$0xff]
        %v3601 = vld [vmem:[%s489 + $0xce0] sm:$0xff]
        %v3602 = vld [vmem:[%s489 + $0xce8] sm:$0xff]
        %v3603 = vld [vmem:[%s489 + $0xcf0] sm:$0xff]
        %v3604 = vld [vmem:[%s489 + $0xcf8] sm:$0xff]
        %v3605 = vld [vmem:[%s489 + $0xd00] sm:$0xff]
        %v3606 = vld [vmem:[%s489 + $0xd08] sm:$0xff]
        %v3607 = vld [vmem:[%s489 + $0xd10] sm:$0xff]
        %v3608 = vld [vmem:[%s489 + $0xd18] sm:$0xff]
        %v3609 = vld [vmem:[%s489 + $0xd20] sm:$0xff]
        %v3610 = vld [vmem:[%s489 + $0xd28] sm:$0xff]
        %v3611 = vld [vmem:[%s489 + $0xd30] sm:$0xff]
        %v3612 = vld [vmem:[%s489 + $0xd38] sm:$0xff]
        %v3613 = vld [vmem:[%s489 + $0xd40] sm:$0xff]
        %v3614 = vld [vmem:[%s489 + $0xd48] sm:$0xff]
        %v3615 = vld [vmem:[%s489 + $0xd50] sm:$0xff]
        %v3616 = vld [vmem:[%s489 + $0xd58] sm:$0xff]
        %v3617 = vld [vmem:[%s489 + $0xd60] sm:$0xff]
        %v3618 = vld [vmem:[%s489 + $0xd68] sm:$0xff]
        %v3619 = vld [vmem:[%s489 + $0xd70] sm:$0xff]
        %v3620 = vld [vmem:[%s489 + $0xd78] sm:$0xff]
        %v3621 = vld [vmem:[%s489 + $0xd80] sm:$0xff]
        %v3622 = vld [vmem:[%s489 + $0xd88] sm:$0xff]
        %v3623 = vld [vmem:[%s489 + $0xd90] sm:$0xff]
        %v3624 = vld [vmem:[%s489 + $0xd98] sm:$0xff]
        %v3625 = vld [vmem:[%s489 + $0xda0] sm:$0xff]
        %v3626 = vld [vmem:[%s489 + $0xda8] sm:$0xff]
        %v3627 = vld [vmem:[%s489 + $0xdb0] sm:$0xff]
        %v3628 = vld [vmem:[%s489 + $0xdb8] sm:$0xff]
        %v3629 = vld [vmem:[%s489 + $0xdc0] sm:$0xff]
        %v3630 = vld [vmem:[%s489 + $0xdc8] sm:$0xff]
        %v3631 = vld [vmem:[%s489 + $0xdd0] sm:$0xff]
        %v3632 = vld [vmem:[%s489 + $0xdd8] sm:$0xff]
        %v3633 = vld [vmem:[%s489 + $0xde0] sm:$0xff]
        %v3634 = vld [vmem:[%s489 + $0xde8] sm:$0xff]
        %v3635 = vld [vmem:[%s489 + $0xdf0] sm:$0xff]
        %v3636 = vld [vmem:[%s489 + $0xdf8] sm:$0xff]
        %v3637 = vld [vmem:[%s489 + $0xe00] sm:$0xff]
        %v3638 = vld [vmem:[%s489 + $0xe08] sm:$0xff]
        %v3639 = vld [vmem:[%s489 + $0xe10] sm:$0xff]
        %v3640 = vld [vmem:[%s489 + $0xe18] sm:$0xff]
        %v3641 = vld [vmem:[%s489 + $0xe20] sm:$0xff]
        %v3642 = vld [vmem:[%s489 + $0xe28] sm:$0xff]
        %v3643 = vld [vmem:[%s489 + $0xe30] sm:$0xff]
        %v3644 = vld [vmem:[%s489 + $0xe38] sm:$0xff]
        %v3645 = vld [vmem:[%s489 + $0xe40] sm:$0xff]
        %v3646 = vld [vmem:[%s489 + $0xe48] sm:$0xff]
        %v3647 = vld [vmem:[%s489 + $0xe50] sm:$0xff]
        %v3648 = vld [vmem:[%s489 + $0xe58] sm:$0xff]
        %v3649 = vld [vmem:[%s489 + $0xe60] sm:$0xff]
        %v3650 = vld [vmem:[%s489 + $0xe68] sm:$0xff]
        %v3651 = vld [vmem:[%s489 + $0xe70] sm:$0xff]
        %v3652 = vld [vmem:[%s489 + $0xe78] sm:$0xff]
        %v3653 = vld [vmem:[%s489 + $0xe80] sm:$0xff]
        %v3654 = vld [vmem:[%s489 + $0xe88] sm:$0xff]
        %v3655 = vld [vmem:[%s489 + $0xe90] sm:$0xff]
        %v3656 = vld [vmem:[%s489 + $0xe98] sm:$0xff]
        %v3657 = vld [vmem:[%s489 + $0xea0] sm:$0xff]
        %v3658 = vld [vmem:[%s489 + $0xea8] sm:$0xff]
        %v3659 = vld [vmem:[%s489 + $0xeb0] sm:$0xff]
        %v3660 = vld [vmem:[%s489 + $0xeb8] sm:$0xff]
        %v3661 = vld [vmem:[%s489 + $0xec0] sm:$0xff]
        %v3662 = vld [vmem:[%s489 + $0xec8] sm:$0xff]
        %v3663 = vld [vmem:[%s489 + $0xed0] sm:$0xff]
        %v3664 = vld [vmem:[%s489 + $0xed8] sm:$0xff]
        %v3665 = vld [vmem:[%s489 + $0xee0] sm:$0xff]
        %v3666 = vld [vmem:[%s489 + $0xee8] sm:$0xff]
        %v3667 = vld [vmem:[%s489 + $0xef0] sm:$0xff]
        %v3668 = vld [vmem:[%s489 + $0xef8] sm:$0xff]
        %v3669 = vld [vmem:[%s489 + $0xf00] sm:$0xff]
        %v3670 = vld [vmem:[%s489 + $0xf08] sm:$0xff]
        %v3671 = vld [vmem:[%s489 + $0xf10] sm:$0xff]
        %v3672 = vld [vmem:[%s489 + $0xf18] sm:$0xff]
        %v3673 = vld [vmem:[%s489 + $0xf20] sm:$0xff]
        %v3674 = vld [vmem:[%s489 + $0xf28] sm:$0xff]
        %v3675 = vld [vmem:[%s489 + $0xf30] sm:$0xff]
        %v3676 = vld [vmem:[%s489 + $0xf38] sm:$0xff]
        %v3677 = vld [vmem:[%s489 + $0xf40] sm:$0xff]
        %v3678 = vld [vmem:[%s489 + $0xf48] sm:$0xff]
        %v3679 = vld [vmem:[%s489 + $0xf50] sm:$0xff]
        %v3680 = vld [vmem:[%s489 + $0xf58] sm:$0xff]
        %v3681 = vld [vmem:[%s489 + $0xf60] sm:$0xff]
        %v3682 = vld [vmem:[%s489 + $0xf68] sm:$0xff]
        %v3683 = vld [vmem:[%s489 + $0xf70] sm:$0xff]
        %v3684 = vld [vmem:[%s489 + $0xf78] sm:$0xff]
        %v3685 = vld [vmem:[%s489 + $0xf80] sm:$0xff]
        %v3686 = vld [vmem:[%s489 + $0xf88] sm:$0xff]
        %v3687 = vld [vmem:[%s489 + $0xf90] sm:$0xff]
        %v3688 = vld [vmem:[%s489 + $0xf98] sm:$0xff]
        %v3689 = vld [vmem:[%s489 + $0xfa0] sm:$0xff]
        %v3690 = vld [vmem:[%s489 + $0xfa8] sm:$0xff]
        %v3691 = vld [vmem:[%s489 + $0xfb0] sm:$0xff]
        %v3692 = vld [vmem:[%s489 + $0xfb8] sm:$0xff]
        %v3693 = vld [vmem:[%s489 + $0xfc0] sm:$0xff]
        %v3694 = vld [vmem:[%s489 + $0xfc8] sm:$0xff]
        %v3695 = vld [vmem:[%s489 + $0xfd0] sm:$0xff]
        %v3696 = vld [vmem:[%s489 + $0xfd8] sm:$0xff]
        %v3697 = vld [vmem:[%s489 + $0xfe0] sm:$0xff]
        %v3698 = vld [vmem:[%s489 + $0xfe8] sm:$0xff]
        %v3699 = vld [vmem:[%s489 + $0xff0] sm:$0xff]
        %v3700 = vld [vmem:[%s489 + $0xff8] sm:$0xff]
        %v3701 = vld [vmem:[%s489 + $0x1000] sm:$0xff]
        %v3702 = vld [vmem:[%s489 + $0x1008] sm:$0xff]
        %v3703 = vld [vmem:[%s489 + $0x1010] sm:$0xff]
        %v3704 = vld [vmem:[%s489 + $0x1018] sm:$0xff]
        %v3705 = vld [vmem:[%s489 + $0x1020] sm:$0xff]
        %v3706 = vld [vmem:[%s489 + $0x1028] sm:$0xff]
        %v3707 = vld [vmem:[%s489 + $0x1030] sm:$0xff]
        %v3708 = vld [vmem:[%s489 + $0x1038] sm:$0xff]
        %v3709 = vld [vmem:[%s489 + $0x1040] sm:$0xff]
        %v3710 = vld [vmem:[%s489 + $0x1048] sm:$0xff]
        %v3711 = vld [vmem:[%s489 + $0x1050] sm:$0xff]
        %v3712 = vld [vmem:[%s489 + $0x1058] sm:$0xff]
        %v3713 = vld [vmem:[%s489 + $0x1060] sm:$0xff]
        %v3714 = vld [vmem:[%s489 + $0x1068] sm:$0xff]
        %v3715 = vld [vmem:[%s489 + $0x1070] sm:$0xff]
        %v3716 = vld [vmem:[%s489 + $0x1078] sm:$0xff]
        %v3717 = vld [vmem:[%s489 + $0x1080] sm:$0xff]
        %v3718 = vld [vmem:[%s489 + $0x1088] sm:$0xff]
        %v3719 = vld [vmem:[%s489 + $0x1090] sm:$0xff]
        %v3720 = vld [vmem:[%s489 + $0x1098] sm:$0xff]
        %v3721 = vld [vmem:[%s489 + $0x10a0] sm:$0xff]
        %v3722 = vld [vmem:[%s489 + $0x10a8] sm:$0xff]
        %v3723 = vld [vmem:[%s489 + $0x10b0] sm:$0xff]
        %v3724 = vld [vmem:[%s489 + $0x10b8] sm:$0xff]
        %v3725 = vld [vmem:[%s489 + $0x10c0] sm:$0xff]
        %v3726 = vld [vmem:[%s489 + $0x10c8] sm:$0xff]
        %v3727 = vld [vmem:[%s489 + $0x10d0] sm:$0xff]
        %v3728 = vld [vmem:[%s489 + $0x10d8] sm:$0xff]
        %v3729 = vld [vmem:[%s489 + $0x10e0] sm:$0xff]
        %v3730 = vld [vmem:[%s489 + $0x10e8] sm:$0xff]
        %v3731 = vld [vmem:[%s489 + $0x10f0] sm:$0xff]
        %v3732 = vld [vmem:[%s489 + $0x10f8] sm:$0xff]
        %v3733 = vld [vmem:[%s489 + $0x1100] sm:$0xff]
        %v3734 = vld [vmem:[%s489 + $0x1108] sm:$0xff]
        %v3735 = vld [vmem:[%s489 + $0x1110] sm:$0xff]
        %v3736 = vld [vmem:[%s489 + $0x1118] sm:$0xff]
        %v3737 = vld [vmem:[%s489 + $0x1120] sm:$0xff]
        %v3738 = vld [vmem:[%s489 + $0x1128] sm:$0xff]
        %v3739 = vld [vmem:[%s489 + $0x1130] sm:$0xff]
        %v3740 = vld [vmem:[%s489 + $0x1138] sm:$0xff]
        %v3741 = vld [vmem:[%s489 + $0x1140] sm:$0xff]
        %v3742 = vld [vmem:[%s489 + $0x1148] sm:$0xff]
        %v3743 = vld [vmem:[%s489 + $0x1150] sm:$0xff]
        %v3744 = vld [vmem:[%s489 + $0x1158] sm:$0xff]
        %v3745 = vld [vmem:[%s489 + $0x1160] sm:$0xff]
        %v3746 = vld [vmem:[%s489 + $0x1168] sm:$0xff]
        %v3747 = vld [vmem:[%s489 + $0x1170] sm:$0xff]
        %v3748 = vld [vmem:[%s489 + $0x1178] sm:$0xff]
        %v3749 = vld [vmem:[%s489 + $0x1180] sm:$0xff]
        %v3750 = vld [vmem:[%s489 + $0x1188] sm:$0xff]
        %v3751 = vld [vmem:[%s489 + $0x1190] sm:$0xff]
        %v3752 = vld [vmem:[%s489 + $0x1198] sm:$0xff]
        %v3753 = vld [vmem:[%s489 + $0x11a0] sm:$0xff]
        %v3754 = vld [vmem:[%s489 + $0x11a8] sm:$0xff]
        %v3755 = vld [vmem:[%s489 + $0x11b0] sm:$0xff]
        %v3756 = vld [vmem:[%s489 + $0x11b8] sm:$0xff]
        %v3757 = vld [vmem:[%s489 + $0x11c0] sm:$0xff]
        %v3758 = vld [vmem:[%s489 + $0x11c8] sm:$0xff]
        %v3759 = vld [vmem:[%s489 + $0x11d0] sm:$0xff]
        %v3760 = vld [vmem:[%s489 + $0x11d8] sm:$0xff]
        %v3761 = vld [vmem:[%s489 + $0x11e0] sm:$0xff]
        %v3762 = vld [vmem:[%s489 + $0x11e8] sm:$0xff]
        %v3763 = vld [vmem:[%s489 + $0x11f0] sm:$0xff]
        %v3764 = vld [vmem:[%s489 + $0x11f8] sm:$0xff]
        %v3765 = vld [vmem:[%s489 + $0x1200] sm:$0xff]
        %v3766 = vld [vmem:[%s489 + $0x1208] sm:$0xff]
        %v3767 = vld [vmem:[%s489 + $0x1210] sm:$0xff]
        %v3768 = vld [vmem:[%s489 + $0x1218] sm:$0xff]
        %v3769 = vld [vmem:[%s489 + $0x1220] sm:$0xff]
        %v3770 = vld [vmem:[%s489 + $0x1228] sm:$0xff]
        %v3771 = vld [vmem:[%s489 + $0x1230] sm:$0xff]
        %v3772 = vld [vmem:[%s489 + $0x1238] sm:$0xff]
        %v3773 = vld [vmem:[%s489 + $0x1240] sm:$0xff]
        %v3774 = vld [vmem:[%s489 + $0x1248] sm:$0xff]
        %v3775 = vld [vmem:[%s489 + $0x1250] sm:$0xff]
        %v3776 = vld [vmem:[%s489 + $0x1258] sm:$0xff]
        %v3777 = vld [vmem:[%s489 + $0x1260] sm:$0xff]
        %v3778 = vld [vmem:[%s489 + $0x1268] sm:$0xff]
        %v3779 = vld [vmem:[%s489 + $0x1270] sm:$0xff]
        %v3780 = vld [vmem:[%s489 + $0x1278] sm:$0xff]
        %v3781 = vld [vmem:[%s489 + $0x1280] sm:$0xff]
        %v3782 = vld [vmem:[%s489 + $0x1288] sm:$0xff]
        %v3783 = vld [vmem:[%s489 + $0x1290] sm:$0xff]
        %v3784 = vld [vmem:[%s489 + $0x1298] sm:$0xff]
        %v3785 = vld [vmem:[%s489 + $0x12a0] sm:$0xff]
        %v3786 = vld [vmem:[%s489 + $0x12a8] sm:$0xff]
        %v3787 = vld [vmem:[%s489 + $0x12b0] sm:$0xff]
        %v3788 = vld [vmem:[%s489 + $0x12b8] sm:$0xff]
        %v3789 = vld [vmem:[%s489 + $0x12c0] sm:$0xff]
        %v3790 = vld [vmem:[%s489 + $0x12c8] sm:$0xff]
        %v3791 = vld [vmem:[%s489 + $0x12d0] sm:$0xff]
        %v3792 = vld [vmem:[%s489 + $0x12d8] sm:$0xff]
        %v3793 = vld [vmem:[%s489 + $0x12e0] sm:$0xff]
        %v3794 = vld [vmem:[%s489 + $0x12e8] sm:$0xff]
        %v3795 = vld [vmem:[%s489 + $0x12f0] sm:$0xff]
        %v3796 = vld [vmem:[%s489 + $0x12f8] sm:$0xff]
        %v3797 = vld [vmem:[%s489 + $0x1300] sm:$0xff]
        %v3798 = vld [vmem:[%s489 + $0x1308] sm:$0xff]
        %v3799 = vld [vmem:[%s489 + $0x1310] sm:$0xff]
        %v3800 = vld [vmem:[%s489 + $0x1318] sm:$0xff]
        %v3801 = vld [vmem:[%s489 + $0x1320] sm:$0xff]
        %v3802 = vld [vmem:[%s489 + $0x1328] sm:$0xff]
        %v3803 = vld [vmem:[%s489 + $0x1330] sm:$0xff]
        %v3804 = vld [vmem:[%s489 + $0x1338] sm:$0xff]
        %v3805 = vld [vmem:[%s489 + $0x1340] sm:$0xff]
        %v3806 = vld [vmem:[%s489 + $0x1348] sm:$0xff]
        %v3807 = vld [vmem:[%s489 + $0x1350] sm:$0xff]
        %v3808 = vld [vmem:[%s489 + $0x1358] sm:$0xff]
        %v3809 = vld [vmem:[%s489 + $0x1360] sm:$0xff]
        %v3810 = vld [vmem:[%s489 + $0x1368] sm:$0xff]
        %v3811 = vld [vmem:[%s489 + $0x1370] sm:$0xff]
        %v3812 = vld [vmem:[%s489 + $0x1378] sm:$0xff]
        %v3813 = vld [vmem:[%s489 + $0x1380] sm:$0xff]
        %v3814 = vld [vmem:[%s489 + $0x1388] sm:$0xff]
        %v3815 = vld [vmem:[%s489 + $0x1390] sm:$0xff]
        %v3816 = vld [vmem:[%s489 + $0x1398] sm:$0xff]
        %v3817 = vld [vmem:[%s489 + $0x13a0] sm:$0xff]
        %v3818 = vld [vmem:[%s489 + $0x13a8] sm:$0xff]
        %v3819 = vld [vmem:[%s489 + $0x13b0] sm:$0xff]
        %v3820 = vld [vmem:[%s489 + $0x13b8] sm:$0xff]
        %v3821 = vld [vmem:[%s489 + $0x13c0] sm:$0xff]
        %v3822 = vld [vmem:[%s489 + $0x13c8] sm:$0xff]
        %v3823 = vld [vmem:[%s489 + $0x13d0] sm:$0xff]
        %v3824 = vld [vmem:[%s489 + $0x13d8] sm:$0xff]
        %v3825 = vld [vmem:[%s489 + $0x13e0] sm:$0xff]
        %v3826 = vld [vmem:[%s489 + $0x13e8] sm:$0xff]
        %v3827 = vld [vmem:[%s489 + $0x13f0] sm:$0xff]
        %v3828 = vld [vmem:[%s489 + $0x13f8] sm:$0xff]
        %v3829 = vld [vmem:[%s489 + $0x1400] sm:$0xff]
        %v3830 = vld [vmem:[%s489 + $0x1408] sm:$0xff]
        %v3831 = vld [vmem:[%s489 + $0x1410] sm:$0xff]
        %v3832 = vld [vmem:[%s489 + $0x1418] sm:$0xff]
        %v3833 = vld [vmem:[%s489 + $0x1420] sm:$0xff]
        %v3834 = vld [vmem:[%s489 + $0x1428] sm:$0xff]
        %v3835 = vld [vmem:[%s489 + $0x1430] sm:$0xff]
        %v3836 = vld [vmem:[%s489 + $0x1438] sm:$0xff]
        %v3837 = vld [vmem:[%s489 + $0x1440] sm:$0xff]
        %v3838 = vld [vmem:[%s489 + $0x1448] sm:$0xff]
        %v3839 = vld [vmem:[%s489 + $0x1450] sm:$0xff]
        %v3840 = vld [vmem:[%s489 + $0x1458] sm:$0xff]
        %v3841 = vld [vmem:[%s489 + $0x1460] sm:$0xff]
        %v3842 = vld [vmem:[%s489 + $0x1468] sm:$0xff]
        %v3843 = vld [vmem:[%s489 + $0x1470] sm:$0xff]
        %v3844 = vld [vmem:[%s489 + $0x1478] sm:$0xff]
        %v3845 = vld [vmem:[%s489 + $0x1480] sm:$0xff]
        %v3846 = vld [vmem:[%s489 + $0x1488] sm:$0xff]
        %v3847 = vld [vmem:[%s489 + $0x1490] sm:$0xff]
        %v3848 = vld [vmem:[%s489 + $0x1498] sm:$0xff]
        %v3849 = vld [vmem:[%s489 + $0x14a0] sm:$0xff]
        %v3850 = vld [vmem:[%s489 + $0x14a8] sm:$0xff]
        %v3851 = vld [vmem:[%s489 + $0x14b0] sm:$0xff]
        %v3852 = vld [vmem:[%s489 + $0x14b8] sm:$0xff]
        %v3853 = vld [vmem:[%s489 + $0x14c0] sm:$0xff]
        %v3854 = vld [vmem:[%s489 + $0x14c8] sm:$0xff]
        %v3855 = vld [vmem:[%s489 + $0x14d0] sm:$0xff]
        %v3856 = vld [vmem:[%s489 + $0x14d8] sm:$0xff]
        %v3857 = vld [vmem:[%s489 + $0x14e0] sm:$0xff]
        %v3858 = vld [vmem:[%s489 + $0x14e8] sm:$0xff]
        %v3859 = vld [vmem:[%s489 + $0x14f0] sm:$0xff]
        %v3860 = vld [vmem:[%s489 + $0x14f8] sm:$0xff]
        %v3861 = vld [vmem:[%s489 + $0x1500] sm:$0xff]
        %v3862 = vld [vmem:[%s489 + $0x1508] sm:$0xff]
        %v3863 = vld [vmem:[%s489 + $0x1510] sm:$0xff]
        %v3864 = vld [vmem:[%s489 + $0x1518] sm:$0xff]
        %v3865 = vld [vmem:[%s489 + $0x1520] sm:$0xff]
        %v3866 = vld [vmem:[%s489 + $0x1528] sm:$0xff]
        %v3867 = vld [vmem:[%s489 + $0x1530] sm:$0xff]
        %v3868 = vld [vmem:[%s489 + $0x1538] sm:$0xff]
        %v3869 = vld [vmem:[%s489 + $0x1540] sm:$0xff]
        %v3870 = vld [vmem:[%s489 + $0x1548] sm:$0xff]
        %v3871 = vld [vmem:[%s489 + $0x1550] sm:$0xff]
        %v3872 = vld [vmem:[%s489 + $0x1558] sm:$0xff]
        %v3873 = vld [vmem:[%s489 + $0x1560] sm:$0xff]
        %v3874 = vld [vmem:[%s489 + $0x1568] sm:$0xff]
        %v3875 = vld [vmem:[%s489 + $0x1570] sm:$0xff]
        %v3876 = vld [vmem:[%s489 + $0x1578] sm:$0xff]
        %v3877 = vld [vmem:[%s489 + $0x1580] sm:$0xff]
        %v3878 = vld [vmem:[%s489 + $0x1588] sm:$0xff]
        %v3879 = vld [vmem:[%s489 + $0x1590] sm:$0xff]
        %v3880 = vld [vmem:[%s489 + $0x1598] sm:$0xff]
        %v3881 = vld [vmem:[%s489 + $0x15a0] sm:$0xff]
        %v3882 = vld [vmem:[%s489 + $0x15a8] sm:$0xff]
        %v3883 = vld [vmem:[%s489 + $0x15b0] sm:$0xff]
        %v3884 = vld [vmem:[%s489 + $0x15b8] sm:$0xff]
        %v3885 = vld [vmem:[%s489 + $0x15c0] sm:$0xff]
        %v3886 = vld [vmem:[%s489 + $0x15c8] sm:$0xff]
        %v3887 = vld [vmem:[%s489 + $0x15d0] sm:$0xff]
        %v3888 = vld [vmem:[%s489 + $0x15d8] sm:$0xff]
        %v3889 = vld [vmem:[%s489 + $0x15e0] sm:$0xff]
        %v3890 = vld [vmem:[%s489 + $0x15e8] sm:$0xff]
        %v3891 = vld [vmem:[%s489 + $0x15f0] sm:$0xff]
        %v3892 = vld [vmem:[%s489 + $0x15f8] sm:$0xff]
        %v3893 = vld [vmem:[%s489 + $0x1600] sm:$0xff]
        %v3894 = vld [vmem:[%s489 + $0x1608] sm:$0xff]
        %v3895 = vld [vmem:[%s489 + $0x1610] sm:$0xff]
        %v3896 = vld [vmem:[%s489 + $0x1618] sm:$0xff]
        %v3897 = vld [vmem:[%s489 + $0x1620] sm:$0xff]
        %v3898 = vld [vmem:[%s489 + $0x1628] sm:$0xff]
        %v3899 = vld [vmem:[%s489 + $0x1630] sm:$0xff]
        %v3900 = vld [vmem:[%s489 + $0x1638] sm:$0xff]
        %v3901 = vld [vmem:[%s489 + $0x1640] sm:$0xff]
        %v3902 = vld [vmem:[%s489 + $0x1648] sm:$0xff]
        %v3903 = vld [vmem:[%s489 + $0x1650] sm:$0xff]
        %v3904 = vld [vmem:[%s489 + $0x1658] sm:$0xff]
        %v3905 = vld [vmem:[%s489 + $0x1660] sm:$0xff]
        %v3906 = vld [vmem:[%s489 + $0x1668] sm:$0xff]
        %v3907 = vld [vmem:[%s489 + $0x1670] sm:$0xff]
        %v3908 = vld [vmem:[%s489 + $0x1678] sm:$0xff]
        %v3909 = vld [vmem:[%s489 + $0x1680] sm:$0xff]
        %v3910 = vld [vmem:[%s489 + $0x1688] sm:$0xff]
        %v3911 = vld [vmem:[%s489 + $0x1690] sm:$0xff]
        %v3912 = vld [vmem:[%s489 + $0x1698] sm:$0xff]
        %v3913 = vld [vmem:[%s489 + $0x16a0] sm:$0xff]
        %v3914 = vld [vmem:[%s489 + $0x16a8] sm:$0xff]
        %v3915 = vld [vmem:[%s489 + $0x16b0] sm:$0xff]
        %v3916 = vld [vmem:[%s489 + $0x16b8] sm:$0xff]
        %v3917 = vld [vmem:[%s489 + $0x16c0] sm:$0xff]
        %v3918 = vld [vmem:[%s489 + $0x16c8] sm:$0xff]
        %v3919 = vld [vmem:[%s489 + $0x16d0] sm:$0xff]
        %v3920 = vld [vmem:[%s489 + $0x16d8] sm:$0xff]
        %v3921 = vld [vmem:[%s489 + $0x16e0] sm:$0xff]
        %v3922 = vld [vmem:[%s489 + $0x16e8] sm:$0xff]
        %v3923 = vld [vmem:[%s489 + $0x16f0] sm:$0xff]
        %v3924 = vld [vmem:[%s489 + $0x16f8] sm:$0xff]
        %v3925 = vld [vmem:[%s489 + $0x1700] sm:$0xff]
        %v3926 = vld [vmem:[%s489 + $0x1708] sm:$0xff]
        %v3927 = vld [vmem:[%s489 + $0x1710] sm:$0xff]
        %v3928 = vld [vmem:[%s489 + $0x1718] sm:$0xff]
        %v3929 = vld [vmem:[%s489 + $0x1720] sm:$0xff]
        %v3930 = vld [vmem:[%s489 + $0x1728] sm:$0xff]
        %v3931 = vld [vmem:[%s489 + $0x1730] sm:$0xff]
        %v3932 = vld [vmem:[%s489 + $0x1738] sm:$0xff]
        %v3933 = vld [vmem:[%s489 + $0x1740] sm:$0xff]
        %v3934 = vld [vmem:[%s489 + $0x1748] sm:$0xff]
        %v3935 = vld [vmem:[%s489 + $0x1750] sm:$0xff]
        %v3936 = vld [vmem:[%s489 + $0x1758] sm:$0xff]
        %v3937 = vld [vmem:[%s489 + $0x1760] sm:$0xff]
        %v3938 = vld [vmem:[%s489 + $0x1768] sm:$0xff]
        %v3939 = vld [vmem:[%s489 + $0x1770] sm:$0xff]
        %v3940 = vld [vmem:[%s489 + $0x1778] sm:$0xff]
        %v3941 = vld [vmem:[%s489 + $0x1780] sm:$0xff]
        %v3942 = vld [vmem:[%s489 + $0x1788] sm:$0xff]
        %v3943 = vld [vmem:[%s489 + $0x1790] sm:$0xff]
        %v3944 = vld [vmem:[%s489 + $0x1798] sm:$0xff]
        %v3945 = vld [vmem:[%s489 + $0x17a0] sm:$0xff]
        %v3946 = vld [vmem:[%s489 + $0x17a8] sm:$0xff]
        %v3947 = vld [vmem:[%s489 + $0x17b0] sm:$0xff]
        %v3948 = vld [vmem:[%s489 + $0x17b8] sm:$0xff]
        %v3949 = vld [vmem:[%s489 + $0x17c0] sm:$0xff]
        %v3950 = vld [vmem:[%s489 + $0x17c8] sm:$0xff]
        %v3951 = vld [vmem:[%s489 + $0x17d0] sm:$0xff]
        %v3952 = vld [vmem:[%s489 + $0x17d8] sm:$0xff]
        %v3953 = vld [vmem:[%s489 + $0x17e0] sm:$0xff]
        %v3954 = vld [vmem:[%s489 + $0x17e8] sm:$0xff]
        %v3955 = vld [vmem:[%s489 + $0x17f0] sm:$0xff]
        %v3956 = vld [vmem:[%s489 + $0x17f8] sm:$0xff]
        %v3957 = vld [vmem:[%s498] sm:$0xff]
        %v3958 = vld [vmem:[%s498 + $0x8] sm:$0xff]
        %v3959 = vld [vmem:[%s498 + $0x10] sm:$0xff]
        %v3960 = vld [vmem:[%s498 + $0x18] sm:$0xff]
        %v3961 = vld [vmem:[%s498 + $0x20] sm:$0xff]
        %v3962 = vld [vmem:[%s498 + $0x28] sm:$0xff]
        %v3963 = vld [vmem:[%s498 + $0x30] sm:$0xff]
        %v3964 = vld [vmem:[%s498 + $0x38] sm:$0xff]
        %v3965 = vld [vmem:[%s498 + $0x40] sm:$0xff]
        %v3966 = vld [vmem:[%s498 + $0x48] sm:$0xff]
        %v3967 = vld [vmem:[%s498 + $0x50] sm:$0xff]
        %v3968 = vld [vmem:[%s498 + $0x58] sm:$0xff]
        %v3969 = vld [vmem:[%s498 + $0x60] sm:$0xff]
        %v3970 = vld [vmem:[%s498 + $0x68] sm:$0xff]
        %v3971 = vld [vmem:[%s498 + $0x70] sm:$0xff]
        %v3972 = vld [vmem:[%s498 + $0x78] sm:$0xff]
        %v3973 = vld [vmem:[%s498 + $0x80] sm:$0xff]
        %v3974 = vld [vmem:[%s498 + $0x88] sm:$0xff]
        %v3975 = vld [vmem:[%s498 + $0x90] sm:$0xff]
        %v3976 = vld [vmem:[%s498 + $0x98] sm:$0xff]
        %v3977 = vld [vmem:[%s498 + $0xa0] sm:$0xff]
        %v3978 = vld [vmem:[%s498 + $0xa8] sm:$0xff]
        %v3979 = vld [vmem:[%s498 + $0xb0] sm:$0xff]
        %v3980 = vld [vmem:[%s498 + $0xb8] sm:$0xff]
        %v3981 = vld [vmem:[%s498 + $0xc0] sm:$0xff]
        %v3982 = vld [vmem:[%s498 + $0xc8] sm:$0xff]
        %v3983 = vld [vmem:[%s498 + $0xd0] sm:$0xff]
        %v3984 = vld [vmem:[%s498 + $0xd8] sm:$0xff]
        %v3985 = vld [vmem:[%s498 + $0xe0] sm:$0xff]
        %v3986 = vld [vmem:[%s498 + $0xe8] sm:$0xff]
        %v3987 = vld [vmem:[%s498 + $0xf0] sm:$0xff]
        %v3988 = vld [vmem:[%s498 + $0xf8] sm:$0xff]
        %v3989 = vld [vmem:[%s498 + $0x100] sm:$0xff]
        %v3990 = vld [vmem:[%s498 + $0x108] sm:$0xff]
        %v3991 = vld [vmem:[%s498 + $0x110] sm:$0xff]
        %v3992 = vld [vmem:[%s498 + $0x118] sm:$0xff]
        %v3993 = vld [vmem:[%s498 + $0x120] sm:$0xff]
        %v3994 = vld [vmem:[%s498 + $0x128] sm:$0xff]
        %v3995 = vld [vmem:[%s498 + $0x130] sm:$0xff]
        %v3996 = vld [vmem:[%s498 + $0x138] sm:$0xff]
        %v3997 = vld [vmem:[%s498 + $0x140] sm:$0xff]
        %v3998 = vld [vmem:[%s498 + $0x148] sm:$0xff]
        %v3999 = vld [vmem:[%s498 + $0x150] sm:$0xff]
        %v4000 = vld [vmem:[%s498 + $0x158] sm:$0xff]
        %v4001 = vld [vmem:[%s498 + $0x160] sm:$0xff]
        %v4002 = vld [vmem:[%s498 + $0x168] sm:$0xff]
        %v4003 = vld [vmem:[%s498 + $0x170] sm:$0xff]
        %v4004 = vld [vmem:[%s498 + $0x178] sm:$0xff]
        %v4005 = vld [vmem:[%s498 + $0x180] sm:$0xff]
        %v4006 = vld [vmem:[%s498 + $0x188] sm:$0xff]
        %v4007 = vld [vmem:[%s498 + $0x190] sm:$0xff]
        %v4008 = vld [vmem:[%s498 + $0x198] sm:$0xff]
        %v4009 = vld [vmem:[%s498 + $0x1a0] sm:$0xff]
        %v4010 = vld [vmem:[%s498 + $0x1a8] sm:$0xff]
        %v4011 = vld [vmem:[%s498 + $0x1b0] sm:$0xff]
        %v4012 = vld [vmem:[%s498 + $0x1b8] sm:$0xff]
        %v4013 = vld [vmem:[%s498 + $0x1c0] sm:$0xff]
        %v4014 = vld [vmem:[%s498 + $0x1c8] sm:$0xff]
        %v4015 = vld [vmem:[%s498 + $0x1d0] sm:$0xff]
        %v4016 = vld [vmem:[%s498 + $0x1d8] sm:$0xff]
        %v4017 = vld [vmem:[%s498 + $0x1e0] sm:$0xff]
        %v4018 = vld [vmem:[%s498 + $0x1e8] sm:$0xff]
        %v4019 = vld [vmem:[%s498 + $0x1f0] sm:$0xff]
        %v4020 = vld [vmem:[%s498 + $0x1f8] sm:$0xff]
        %v4021 = vld [vmem:[%s498 + $0x200] sm:$0xff]
        %v4022 = vld [vmem:[%s498 + $0x208] sm:$0xff]
        %v4023 = vld [vmem:[%s498 + $0x210] sm:$0xff]
        %v4024 = vld [vmem:[%s498 + $0x218] sm:$0xff]
        %v4025 = vld [vmem:[%s498 + $0x220] sm:$0xff]
        %v4026 = vld [vmem:[%s498 + $0x228] sm:$0xff]
        %v4027 = vld [vmem:[%s498 + $0x230] sm:$0xff]
        %v4028 = vld [vmem:[%s498 + $0x238] sm:$0xff]
        %v4029 = vld [vmem:[%s498 + $0x240] sm:$0xff]
        %v4030 = vld [vmem:[%s498 + $0x248] sm:$0xff]
        %v4031 = vld [vmem:[%s498 + $0x250] sm:$0xff]
        %v4032 = vld [vmem:[%s498 + $0x258] sm:$0xff]
        %v4033 = vld [vmem:[%s498 + $0x260] sm:$0xff]
        %v4034 = vld [vmem:[%s498 + $0x268] sm:$0xff]
        %v4035 = vld [vmem:[%s498 + $0x270] sm:$0xff]
        %v4036 = vld [vmem:[%s498 + $0x278] sm:$0xff]
        %v4037 = vld [vmem:[%s498 + $0x280] sm:$0xff]
        %v4038 = vld [vmem:[%s498 + $0x288] sm:$0xff]
        %v4039 = vld [vmem:[%s498 + $0x290] sm:$0xff]
        %v4040 = vld [vmem:[%s498 + $0x298] sm:$0xff]
        %v4041 = vld [vmem:[%s498 + $0x2a0] sm:$0xff]
        %v4042 = vld [vmem:[%s498 + $0x2a8] sm:$0xff]
        %v4043 = vld [vmem:[%s498 + $0x2b0] sm:$0xff]
        %v4044 = vld [vmem:[%s498 + $0x2b8] sm:$0xff]
        %v4045 = vld [vmem:[%s498 + $0x2c0] sm:$0xff]
        %v4046 = vld [vmem:[%s498 + $0x2c8] sm:$0xff]
        %v4047 = vld [vmem:[%s498 + $0x2d0] sm:$0xff]
        %v4048 = vld [vmem:[%s498 + $0x2d8] sm:$0xff]
        %v4049 = vld [vmem:[%s498 + $0x2e0] sm:$0xff]
        %v4050 = vld [vmem:[%s498 + $0x2e8] sm:$0xff]
        %v4051 = vld [vmem:[%s498 + $0x2f0] sm:$0xff]
        %v4052 = vld [vmem:[%s498 + $0x2f8] sm:$0xff]
        %v4053 = vld [vmem:[%s498 + $0x300] sm:$0xff]
        %v4054 = vld [vmem:[%s498 + $0x308] sm:$0xff]
        %v4055 = vld [vmem:[%s498 + $0x310] sm:$0xff]
        %v4056 = vld [vmem:[%s498 + $0x318] sm:$0xff]
        %v4057 = vld [vmem:[%s498 + $0x320] sm:$0xff]
        %v4058 = vld [vmem:[%s498 + $0x328] sm:$0xff]
        %v4059 = vld [vmem:[%s498 + $0x330] sm:$0xff]
        %v4060 = vld [vmem:[%s498 + $0x338] sm:$0xff]
        %v4061 = vld [vmem:[%s498 + $0x340] sm:$0xff]
        %v4062 = vld [vmem:[%s498 + $0x348] sm:$0xff]
        %v4063 = vld [vmem:[%s498 + $0x350] sm:$0xff]
        %v4064 = vld [vmem:[%s498 + $0x358] sm:$0xff]
        %v4065 = vld [vmem:[%s498 + $0x360] sm:$0xff]
        %v4066 = vld [vmem:[%s498 + $0x368] sm:$0xff]
        %v4067 = vld [vmem:[%s498 + $0x370] sm:$0xff]
        %v4068 = vld [vmem:[%s498 + $0x378] sm:$0xff]
        %v4069 = vld [vmem:[%s498 + $0x380] sm:$0xff]
        %v4070 = vld [vmem:[%s498 + $0x388] sm:$0xff]
        %v4071 = vld [vmem:[%s498 + $0x390] sm:$0xff]
        %v4072 = vld [vmem:[%s498 + $0x398] sm:$0xff]
        %v4073 = vld [vmem:[%s498 + $0x3a0] sm:$0xff]
        %v4074 = vld [vmem:[%s498 + $0x3a8] sm:$0xff]
        %v4075 = vld [vmem:[%s498 + $0x3b0] sm:$0xff]
        %v4076 = vld [vmem:[%s498 + $0x3b8] sm:$0xff]
        %v4077 = vld [vmem:[%s498 + $0x3c0] sm:$0xff]
        %v4078 = vld [vmem:[%s498 + $0x3c8] sm:$0xff]
        %v4079 = vld [vmem:[%s498 + $0x3d0] sm:$0xff]
        %v4080 = vld [vmem:[%s498 + $0x3d8] sm:$0xff]
        %v4081 = vld [vmem:[%s498 + $0x3e0] sm:$0xff]
        %v4082 = vld [vmem:[%s498 + $0x3e8] sm:$0xff]
        %v4083 = vld [vmem:[%s498 + $0x3f0] sm:$0xff]
        %v4084 = vld [vmem:[%s498 + $0x3f8] sm:$0xff]
        %v4085 = vld [vmem:[%s498 + $0x400] sm:$0xff]
        %v4086 = vld [vmem:[%s498 + $0x408] sm:$0xff]
        %v4087 = vld [vmem:[%s498 + $0x410] sm:$0xff]
        %v4088 = vld [vmem:[%s498 + $0x418] sm:$0xff]
        %v4089 = vld [vmem:[%s498 + $0x420] sm:$0xff]
        %v4090 = vld [vmem:[%s498 + $0x428] sm:$0xff]
        %v4091 = vld [vmem:[%s498 + $0x430] sm:$0xff]
        %v4092 = vld [vmem:[%s498 + $0x438] sm:$0xff]
        %v4093 = vld [vmem:[%s498 + $0x440] sm:$0xff]
        %v4094 = vld [vmem:[%s498 + $0x448] sm:$0xff]
        %v4095 = vld [vmem:[%s498 + $0x450] sm:$0xff]
        %v4096 = vld [vmem:[%s498 + $0x458] sm:$0xff]
        %v4097 = vld [vmem:[%s498 + $0x460] sm:$0xff]
        %v4098 = vld [vmem:[%s498 + $0x468] sm:$0xff]
        %v4099 = vld [vmem:[%s498 + $0x470] sm:$0xff]
        %v4100 = vld [vmem:[%s498 + $0x478] sm:$0xff]
        %v4101 = vld [vmem:[%s498 + $0x480] sm:$0xff]
        %v4102 = vld [vmem:[%s498 + $0x488] sm:$0xff]
        %v4103 = vld [vmem:[%s498 + $0x490] sm:$0xff]
        %v4104 = vld [vmem:[%s498 + $0x498] sm:$0xff]
        %v4105 = vld [vmem:[%s498 + $0x4a0] sm:$0xff]
        %v4106 = vld [vmem:[%s498 + $0x4a8] sm:$0xff]
        %v4107 = vld [vmem:[%s498 + $0x4b0] sm:$0xff]
        %v4108 = vld [vmem:[%s498 + $0x4b8] sm:$0xff]
        %v4109 = vld [vmem:[%s498 + $0x4c0] sm:$0xff]
        %v4110 = vld [vmem:[%s498 + $0x4c8] sm:$0xff]
        %v4111 = vld [vmem:[%s498 + $0x4d0] sm:$0xff]
        %v4112 = vld [vmem:[%s498 + $0x4d8] sm:$0xff]
        %v4113 = vld [vmem:[%s498 + $0x4e0] sm:$0xff]
        %v4114 = vld [vmem:[%s498 + $0x4e8] sm:$0xff]
        %v4115 = vld [vmem:[%s498 + $0x4f0] sm:$0xff]
        %v4116 = vld [vmem:[%s498 + $0x4f8] sm:$0xff]
        %v4117 = vld [vmem:[%s498 + $0x500] sm:$0xff]
        %v4118 = vld [vmem:[%s498 + $0x508] sm:$0xff]
        %v4119 = vld [vmem:[%s498 + $0x510] sm:$0xff]
        %v4120 = vld [vmem:[%s498 + $0x518] sm:$0xff]
        %v4121 = vld [vmem:[%s498 + $0x520] sm:$0xff]
        %v4122 = vld [vmem:[%s498 + $0x528] sm:$0xff]
        %v4123 = vld [vmem:[%s498 + $0x530] sm:$0xff]
        %v4124 = vld [vmem:[%s498 + $0x538] sm:$0xff]
        %v4125 = vld [vmem:[%s498 + $0x540] sm:$0xff]
        %v4126 = vld [vmem:[%s498 + $0x548] sm:$0xff]
        %v4127 = vld [vmem:[%s498 + $0x550] sm:$0xff]
        %v4128 = vld [vmem:[%s498 + $0x558] sm:$0xff]
        %v4129 = vld [vmem:[%s498 + $0x560] sm:$0xff]
        %v4130 = vld [vmem:[%s498 + $0x568] sm:$0xff]
        %v4131 = vld [vmem:[%s498 + $0x570] sm:$0xff]
        %v4132 = vld [vmem:[%s498 + $0x578] sm:$0xff]
        %v4133 = vld [vmem:[%s498 + $0x580] sm:$0xff]
        %v4134 = vld [vmem:[%s498 + $0x588] sm:$0xff]
        %v4135 = vld [vmem:[%s498 + $0x590] sm:$0xff]
        %v4136 = vld [vmem:[%s498 + $0x598] sm:$0xff]
        %v4137 = vld [vmem:[%s498 + $0x5a0] sm:$0xff]
        %v4138 = vld [vmem:[%s498 + $0x5a8] sm:$0xff]
        %v4139 = vld [vmem:[%s498 + $0x5b0] sm:$0xff]
        %v4140 = vld [vmem:[%s498 + $0x5b8] sm:$0xff]
        %v4141 = vld [vmem:[%s498 + $0x5c0] sm:$0xff]
        %v4142 = vld [vmem:[%s498 + $0x5c8] sm:$0xff]
        %v4143 = vld [vmem:[%s498 + $0x5d0] sm:$0xff]
        %v4144 = vld [vmem:[%s498 + $0x5d8] sm:$0xff]
        %v4145 = vld [vmem:[%s498 + $0x5e0] sm:$0xff]
        %v4146 = vld [vmem:[%s498 + $0x5e8] sm:$0xff]
        %v4147 = vld [vmem:[%s498 + $0x5f0] sm:$0xff]
        %v4148 = vld [vmem:[%s498 + $0x5f8] sm:$0xff]
        %v4149 = vld [vmem:[%s498 + $0x600] sm:$0xff]
        %v4150 = vld [vmem:[%s498 + $0x608] sm:$0xff]
        %v4151 = vld [vmem:[%s498 + $0x610] sm:$0xff]
        %v4152 = vld [vmem:[%s498 + $0x618] sm:$0xff]
        %v4153 = vld [vmem:[%s498 + $0x620] sm:$0xff]
        %v4154 = vld [vmem:[%s498 + $0x628] sm:$0xff]
        %v4155 = vld [vmem:[%s498 + $0x630] sm:$0xff]
        %v4156 = vld [vmem:[%s498 + $0x638] sm:$0xff]
        %v4157 = vld [vmem:[%s498 + $0x640] sm:$0xff]
        %v4158 = vld [vmem:[%s498 + $0x648] sm:$0xff]
        %v4159 = vld [vmem:[%s498 + $0x650] sm:$0xff]
        %v4160 = vld [vmem:[%s498 + $0x658] sm:$0xff]
        %v4161 = vld [vmem:[%s498 + $0x660] sm:$0xff]
        %v4162 = vld [vmem:[%s498 + $0x668] sm:$0xff]
        %v4163 = vld [vmem:[%s498 + $0x670] sm:$0xff]
        %v4164 = vld [vmem:[%s498 + $0x678] sm:$0xff]
        %v4165 = vld [vmem:[%s498 + $0x680] sm:$0xff]
        %v4166 = vld [vmem:[%s498 + $0x688] sm:$0xff]
        %v4167 = vld [vmem:[%s498 + $0x690] sm:$0xff]
        %v4168 = vld [vmem:[%s498 + $0x698] sm:$0xff]
        %v4169 = vld [vmem:[%s498 + $0x6a0] sm:$0xff]
        %v4170 = vld [vmem:[%s498 + $0x6a8] sm:$0xff]
        %v4171 = vld [vmem:[%s498 + $0x6b0] sm:$0xff]
        %v4172 = vld [vmem:[%s498 + $0x6b8] sm:$0xff]
        %v4173 = vld [vmem:[%s498 + $0x6c0] sm:$0xff]
        %v4174 = vld [vmem:[%s498 + $0x6c8] sm:$0xff]
        %v4175 = vld [vmem:[%s498 + $0x6d0] sm:$0xff]
        %v4176 = vld [vmem:[%s498 + $0x6d8] sm:$0xff]
        %v4177 = vld [vmem:[%s498 + $0x6e0] sm:$0xff]
        %v4178 = vld [vmem:[%s498 + $0x6e8] sm:$0xff]
        %v4179 = vld [vmem:[%s498 + $0x6f0] sm:$0xff]
        %v4180 = vld [vmem:[%s498 + $0x6f8] sm:$0xff]
        %v4181 = vld [vmem:[%s498 + $0x700] sm:$0xff]
        %v4182 = vld [vmem:[%s498 + $0x708] sm:$0xff]
        %v4183 = vld [vmem:[%s498 + $0x710] sm:$0xff]
        %v4184 = vld [vmem:[%s498 + $0x718] sm:$0xff]
        %v4185 = vld [vmem:[%s498 + $0x720] sm:$0xff]
        %v4186 = vld [vmem:[%s498 + $0x728] sm:$0xff]
        %v4187 = vld [vmem:[%s498 + $0x730] sm:$0xff]
        %v4188 = vld [vmem:[%s498 + $0x738] sm:$0xff]
        %v4189 = vld [vmem:[%s498 + $0x740] sm:$0xff]
        %v4190 = vld [vmem:[%s498 + $0x748] sm:$0xff]
        %v4191 = vld [vmem:[%s498 + $0x750] sm:$0xff]
        %v4192 = vld [vmem:[%s498 + $0x758] sm:$0xff]
        %v4193 = vld [vmem:[%s498 + $0x760] sm:$0xff]
        %v4194 = vld [vmem:[%s498 + $0x768] sm:$0xff]
        %v4195 = vld [vmem:[%s498 + $0x770] sm:$0xff]
        %v4196 = vld [vmem:[%s498 + $0x778] sm:$0xff]
        %v4197 = vld [vmem:[%s498 + $0x780] sm:$0xff]
        %v4198 = vld [vmem:[%s498 + $0x788] sm:$0xff]
        %v4199 = vld [vmem:[%s498 + $0x790] sm:$0xff]
        %v4200 = vld [vmem:[%s498 + $0x798] sm:$0xff]
        %v4201 = vld [vmem:[%s498 + $0x7a0] sm:$0xff]
        %v4202 = vld [vmem:[%s498 + $0x7a8] sm:$0xff]
        %v4203 = vld [vmem:[%s498 + $0x7b0] sm:$0xff]
        %v4204 = vld [vmem:[%s498 + $0x7b8] sm:$0xff]
        %v4205 = vld [vmem:[%s498 + $0x7c0] sm:$0xff]
        %v4206 = vld [vmem:[%s498 + $0x7c8] sm:$0xff]
        %v4207 = vld [vmem:[%s498 + $0x7d0] sm:$0xff]
        %v4208 = vld [vmem:[%s498 + $0x7d8] sm:$0xff]
        %v4209 = vld [vmem:[%s498 + $0x7e0] sm:$0xff]
        %v4210 = vld [vmem:[%s498 + $0x7e8] sm:$0xff]
        %v4211 = vld [vmem:[%s498 + $0x7f0] sm:$0xff]
        %v4212 = vld [vmem:[%s498 + $0x7f8] sm:$0xff]
        %v4213 = vld [vmem:[%s498 + $0x800] sm:$0xff]
        %v4214 = vld [vmem:[%s498 + $0x808] sm:$0xff]
        %v4215 = vld [vmem:[%s498 + $0x810] sm:$0xff]
        %v4216 = vld [vmem:[%s498 + $0x818] sm:$0xff]
        %v4217 = vld [vmem:[%s498 + $0x820] sm:$0xff]
        %v4218 = vld [vmem:[%s498 + $0x828] sm:$0xff]
        %v4219 = vld [vmem:[%s498 + $0x830] sm:$0xff]
        %v4220 = vld [vmem:[%s498 + $0x838] sm:$0xff]
        %v4221 = vld [vmem:[%s498 + $0x840] sm:$0xff]
        %v4222 = vld [vmem:[%s498 + $0x848] sm:$0xff]
        %v4223 = vld [vmem:[%s498 + $0x850] sm:$0xff]
        %v4224 = vld [vmem:[%s498 + $0x858] sm:$0xff]
        %v4225 = vld [vmem:[%s498 + $0x860] sm:$0xff]
        %v4226 = vld [vmem:[%s498 + $0x868] sm:$0xff]
        %v4227 = vld [vmem:[%s498 + $0x870] sm:$0xff]
        %v4228 = vld [vmem:[%s498 + $0x878] sm:$0xff]
        %v4229 = vld [vmem:[%s498 + $0x880] sm:$0xff]
        %v4230 = vld [vmem:[%s498 + $0x888] sm:$0xff]
        %v4231 = vld [vmem:[%s498 + $0x890] sm:$0xff]
        %v4232 = vld [vmem:[%s498 + $0x898] sm:$0xff]
        %v4233 = vld [vmem:[%s498 + $0x8a0] sm:$0xff]
        %v4234 = vld [vmem:[%s498 + $0x8a8] sm:$0xff]
        %v4235 = vld [vmem:[%s498 + $0x8b0] sm:$0xff]
        %v4236 = vld [vmem:[%s498 + $0x8b8] sm:$0xff]
        %v4237 = vld [vmem:[%s498 + $0x8c0] sm:$0xff]
        %v4238 = vld [vmem:[%s498 + $0x8c8] sm:$0xff]
        %v4239 = vld [vmem:[%s498 + $0x8d0] sm:$0xff]
        %v4240 = vld [vmem:[%s498 + $0x8d8] sm:$0xff]
        %v4241 = vld [vmem:[%s498 + $0x8e0] sm:$0xff]
        %v4242 = vld [vmem:[%s498 + $0x8e8] sm:$0xff]
        %v4243 = vld [vmem:[%s498 + $0x8f0] sm:$0xff]
        %v4244 = vld [vmem:[%s498 + $0x8f8] sm:$0xff]
        %v4245 = vld [vmem:[%s498 + $0x900] sm:$0xff]
        %v4246 = vld [vmem:[%s498 + $0x908] sm:$0xff]
        %v4247 = vld [vmem:[%s498 + $0x910] sm:$0xff]
        %v4248 = vld [vmem:[%s498 + $0x918] sm:$0xff]
        %v4249 = vld [vmem:[%s498 + $0x920] sm:$0xff]
        %v4250 = vld [vmem:[%s498 + $0x928] sm:$0xff]
        %v4251 = vld [vmem:[%s498 + $0x930] sm:$0xff]
        %v4252 = vld [vmem:[%s498 + $0x938] sm:$0xff]
        %v4253 = vld [vmem:[%s498 + $0x940] sm:$0xff]
        %v4254 = vld [vmem:[%s498 + $0x948] sm:$0xff]
        %v4255 = vld [vmem:[%s498 + $0x950] sm:$0xff]
        %v4256 = vld [vmem:[%s498 + $0x958] sm:$0xff]
        %v4257 = vld [vmem:[%s498 + $0x960] sm:$0xff]
        %v4258 = vld [vmem:[%s498 + $0x968] sm:$0xff]
        %v4259 = vld [vmem:[%s498 + $0x970] sm:$0xff]
        %v4260 = vld [vmem:[%s498 + $0x978] sm:$0xff]
        %v4261 = vld [vmem:[%s498 + $0x980] sm:$0xff]
        %v4262 = vld [vmem:[%s498 + $0x988] sm:$0xff]
        %v4263 = vld [vmem:[%s498 + $0x990] sm:$0xff]
        %v4264 = vld [vmem:[%s498 + $0x998] sm:$0xff]
        %v4265 = vld [vmem:[%s498 + $0x9a0] sm:$0xff]
        %v4266 = vld [vmem:[%s498 + $0x9a8] sm:$0xff]
        %v4267 = vld [vmem:[%s498 + $0x9b0] sm:$0xff]
        %v4268 = vld [vmem:[%s498 + $0x9b8] sm:$0xff]
        %v4269 = vld [vmem:[%s498 + $0x9c0] sm:$0xff]
        %v4270 = vld [vmem:[%s498 + $0x9c8] sm:$0xff]
        %v4271 = vld [vmem:[%s498 + $0x9d0] sm:$0xff]
        %v4272 = vld [vmem:[%s498 + $0x9d8] sm:$0xff]
        %v4273 = vld [vmem:[%s498 + $0x9e0] sm:$0xff]
        %v4274 = vld [vmem:[%s498 + $0x9e8] sm:$0xff]
        %v4275 = vld [vmem:[%s498 + $0x9f0] sm:$0xff]
        %v4276 = vld [vmem:[%s498 + $0x9f8] sm:$0xff]
        %v4277 = vld [vmem:[%s498 + $0xa00] sm:$0xff]
        %v4278 = vld [vmem:[%s498 + $0xa08] sm:$0xff]
        %v4279 = vld [vmem:[%s498 + $0xa10] sm:$0xff]
        %v4280 = vld [vmem:[%s498 + $0xa18] sm:$0xff]
        %v4281 = vld [vmem:[%s498 + $0xa20] sm:$0xff]
        %v4282 = vld [vmem:[%s498 + $0xa28] sm:$0xff]
        %v4283 = vld [vmem:[%s498 + $0xa30] sm:$0xff]
        %v4284 = vld [vmem:[%s498 + $0xa38] sm:$0xff]
        %v4285 = vld [vmem:[%s498 + $0xa40] sm:$0xff]
        %v4286 = vld [vmem:[%s498 + $0xa48] sm:$0xff]
        %v4287 = vld [vmem:[%s498 + $0xa50] sm:$0xff]
        %v4288 = vld [vmem:[%s498 + $0xa58] sm:$0xff]
        %v4289 = vld [vmem:[%s498 + $0xa60] sm:$0xff]
        %v4290 = vld [vmem:[%s498 + $0xa68] sm:$0xff]
        %v4291 = vld [vmem:[%s498 + $0xa70] sm:$0xff]
        %v4292 = vld [vmem:[%s498 + $0xa78] sm:$0xff]
        %v4293 = vld [vmem:[%s498 + $0xa80] sm:$0xff]
        %v4294 = vld [vmem:[%s498 + $0xa88] sm:$0xff]
        %v4295 = vld [vmem:[%s498 + $0xa90] sm:$0xff]
        %v4296 = vld [vmem:[%s498 + $0xa98] sm:$0xff]
        %v4297 = vld [vmem:[%s498 + $0xaa0] sm:$0xff]
        %v4298 = vld [vmem:[%s498 + $0xaa8] sm:$0xff]
        %v4299 = vld [vmem:[%s498 + $0xab0] sm:$0xff]
        %v4300 = vld [vmem:[%s498 + $0xab8] sm:$0xff]
        %v4301 = vld [vmem:[%s498 + $0xac0] sm:$0xff]
        %v4302 = vld [vmem:[%s498 + $0xac8] sm:$0xff]
        %v4303 = vld [vmem:[%s498 + $0xad0] sm:$0xff]
        %v4304 = vld [vmem:[%s498 + $0xad8] sm:$0xff]
        %v4305 = vld [vmem:[%s498 + $0xae0] sm:$0xff]
        %v4306 = vld [vmem:[%s498 + $0xae8] sm:$0xff]
        %v4307 = vld [vmem:[%s498 + $0xaf0] sm:$0xff]
        %v4308 = vld [vmem:[%s498 + $0xaf8] sm:$0xff]
        %v4309 = vld [vmem:[%s498 + $0xb00] sm:$0xff]
        %v4310 = vld [vmem:[%s498 + $0xb08] sm:$0xff]
        %v4311 = vld [vmem:[%s498 + $0xb10] sm:$0xff]
        %v4312 = vld [vmem:[%s498 + $0xb18] sm:$0xff]
        %v4313 = vld [vmem:[%s498 + $0xb20] sm:$0xff]
        %v4314 = vld [vmem:[%s498 + $0xb28] sm:$0xff]
        %v4315 = vld [vmem:[%s498 + $0xb30] sm:$0xff]
        %v4316 = vld [vmem:[%s498 + $0xb38] sm:$0xff]
        %v4317 = vld [vmem:[%s498 + $0xb40] sm:$0xff]
        %v4318 = vld [vmem:[%s498 + $0xb48] sm:$0xff]
        %v4319 = vld [vmem:[%s498 + $0xb50] sm:$0xff]
        %v4320 = vld [vmem:[%s498 + $0xb58] sm:$0xff]
        %v4321 = vld [vmem:[%s498 + $0xb60] sm:$0xff]
        %v4322 = vld [vmem:[%s498 + $0xb68] sm:$0xff]
        %v4323 = vld [vmem:[%s498 + $0xb70] sm:$0xff]
        %v4324 = vld [vmem:[%s498 + $0xb78] sm:$0xff]
        %v4325 = vld [vmem:[%s498 + $0xb80] sm:$0xff]
        %v4326 = vld [vmem:[%s498 + $0xb88] sm:$0xff]
        %v4327 = vld [vmem:[%s498 + $0xb90] sm:$0xff]
        %v4328 = vld [vmem:[%s498 + $0xb98] sm:$0xff]
        %v4329 = vld [vmem:[%s498 + $0xba0] sm:$0xff]
        %v4330 = vld [vmem:[%s498 + $0xba8] sm:$0xff]
        %v4331 = vld [vmem:[%s498 + $0xbb0] sm:$0xff]
        %v4332 = vld [vmem:[%s498 + $0xbb8] sm:$0xff]
        %v4333 = vld [vmem:[%s498 + $0xbc0] sm:$0xff]
        %v4334 = vld [vmem:[%s498 + $0xbc8] sm:$0xff]
        %v4335 = vld [vmem:[%s498 + $0xbd0] sm:$0xff]
        %v4336 = vld [vmem:[%s498 + $0xbd8] sm:$0xff]
        %v4337 = vld [vmem:[%s498 + $0xbe0] sm:$0xff]
        %v4338 = vld [vmem:[%s498 + $0xbe8] sm:$0xff]
        %v4339 = vld [vmem:[%s498 + $0xbf0] sm:$0xff]
        %v4340 = vld [vmem:[%s498 + $0xbf8] sm:$0xff]
        %v4341 = vld [vmem:[%s498 + $0xc00] sm:$0xff]
        %v4342 = vld [vmem:[%s498 + $0xc08] sm:$0xff]
        %v4343 = vld [vmem:[%s498 + $0xc10] sm:$0xff]
        %v4344 = vld [vmem:[%s498 + $0xc18] sm:$0xff]
        %v4345 = vld [vmem:[%s498 + $0xc20] sm:$0xff]
        %v4346 = vld [vmem:[%s498 + $0xc28] sm:$0xff]
        %v4347 = vld [vmem:[%s498 + $0xc30] sm:$0xff]
        %v4348 = vld [vmem:[%s498 + $0xc38] sm:$0xff]
        %v4349 = vld [vmem:[%s498 + $0xc40] sm:$0xff]
        %v4350 = vld [vmem:[%s498 + $0xc48] sm:$0xff]
        %v4351 = vld [vmem:[%s498 + $0xc50] sm:$0xff]
        %v4352 = vld [vmem:[%s498 + $0xc58] sm:$0xff]
        %v4353 = vld [vmem:[%s498 + $0xc60] sm:$0xff]
        %v4354 = vld [vmem:[%s498 + $0xc68] sm:$0xff]
        %v4355 = vld [vmem:[%s498 + $0xc70] sm:$0xff]
        %v4356 = vld [vmem:[%s498 + $0xc78] sm:$0xff]
        %v4357 = vld [vmem:[%s498 + $0xc80] sm:$0xff]
        %v4358 = vld [vmem:[%s498 + $0xc88] sm:$0xff]
        %v4359 = vld [vmem:[%s498 + $0xc90] sm:$0xff]
        %v4360 = vld [vmem:[%s498 + $0xc98] sm:$0xff]
        %v4361 = vld [vmem:[%s498 + $0xca0] sm:$0xff]
        %v4362 = vld [vmem:[%s498 + $0xca8] sm:$0xff]
        %v4363 = vld [vmem:[%s498 + $0xcb0] sm:$0xff]
        %v4364 = vld [vmem:[%s498 + $0xcb8] sm:$0xff]
        %v4365 = vld [vmem:[%s498 + $0xcc0] sm:$0xff]
        %v4366 = vld [vmem:[%s498 + $0xcc8] sm:$0xff]
        %v4367 = vld [vmem:[%s498 + $0xcd0] sm:$0xff]
        %v4368 = vld [vmem:[%s498 + $0xcd8] sm:$0xff]
        %v4369 = vld [vmem:[%s498 + $0xce0] sm:$0xff]
        %v4370 = vld [vmem:[%s498 + $0xce8] sm:$0xff]
        %v4371 = vld [vmem:[%s498 + $0xcf0] sm:$0xff]
        %v4372 = vld [vmem:[%s498 + $0xcf8] sm:$0xff]
        %v4373 = vld [vmem:[%s498 + $0xd00] sm:$0xff]
        %v4374 = vld [vmem:[%s498 + $0xd08] sm:$0xff]
        %v4375 = vld [vmem:[%s498 + $0xd10] sm:$0xff]
        %v4376 = vld [vmem:[%s498 + $0xd18] sm:$0xff]
        %v4377 = vld [vmem:[%s498 + $0xd20] sm:$0xff]
        %v4378 = vld [vmem:[%s498 + $0xd28] sm:$0xff]
        %v4379 = vld [vmem:[%s498 + $0xd30] sm:$0xff]
        %v4380 = vld [vmem:[%s498 + $0xd38] sm:$0xff]
        %v4381 = vld [vmem:[%s498 + $0xd40] sm:$0xff]
        %v4382 = vld [vmem:[%s498 + $0xd48] sm:$0xff]
        %v4383 = vld [vmem:[%s498 + $0xd50] sm:$0xff]
        %v4384 = vld [vmem:[%s498 + $0xd58] sm:$0xff]
        %v4385 = vld [vmem:[%s498 + $0xd60] sm:$0xff]
        %v4386 = vld [vmem:[%s498 + $0xd68] sm:$0xff]
        %v4387 = vld [vmem:[%s498 + $0xd70] sm:$0xff]
        %v4388 = vld [vmem:[%s498 + $0xd78] sm:$0xff]
        %v4389 = vld [vmem:[%s498 + $0xd80] sm:$0xff]
        %v4390 = vld [vmem:[%s498 + $0xd88] sm:$0xff]
        %v4391 = vld [vmem:[%s498 + $0xd90] sm:$0xff]
        %v4392 = vld [vmem:[%s498 + $0xd98] sm:$0xff]
        %v4393 = vld [vmem:[%s498 + $0xda0] sm:$0xff]
        %v4394 = vld [vmem:[%s498 + $0xda8] sm:$0xff]
        %v4395 = vld [vmem:[%s498 + $0xdb0] sm:$0xff]
        %v4396 = vld [vmem:[%s498 + $0xdb8] sm:$0xff]
        %v4397 = vld [vmem:[%s498 + $0xdc0] sm:$0xff]
        %v4398 = vld [vmem:[%s498 + $0xdc8] sm:$0xff]
        %v4399 = vld [vmem:[%s498 + $0xdd0] sm:$0xff]
        %v4400 = vld [vmem:[%s498 + $0xdd8] sm:$0xff]
        %v4401 = vld [vmem:[%s498 + $0xde0] sm:$0xff]
        %v4402 = vld [vmem:[%s498 + $0xde8] sm:$0xff]
        %v4403 = vld [vmem:[%s498 + $0xdf0] sm:$0xff]
        %v4404 = vld [vmem:[%s498 + $0xdf8] sm:$0xff]
        %v4405 = vld [vmem:[%s498 + $0xe00] sm:$0xff]
        %v4406 = vld [vmem:[%s498 + $0xe08] sm:$0xff]
        %v4407 = vld [vmem:[%s498 + $0xe10] sm:$0xff]
        %v4408 = vld [vmem:[%s498 + $0xe18] sm:$0xff]
        %v4409 = vld [vmem:[%s498 + $0xe20] sm:$0xff]
        %v4410 = vld [vmem:[%s498 + $0xe28] sm:$0xff]
        %v4411 = vld [vmem:[%s498 + $0xe30] sm:$0xff]
        %v4412 = vld [vmem:[%s498 + $0xe38] sm:$0xff]
        %v4413 = vld [vmem:[%s498 + $0xe40] sm:$0xff]
        %v4414 = vld [vmem:[%s498 + $0xe48] sm:$0xff]
        %v4415 = vld [vmem:[%s498 + $0xe50] sm:$0xff]
        %v4416 = vld [vmem:[%s498 + $0xe58] sm:$0xff]
        %v4417 = vld [vmem:[%s498 + $0xe60] sm:$0xff]
        %v4418 = vld [vmem:[%s498 + $0xe68] sm:$0xff]
        %v4419 = vld [vmem:[%s498 + $0xe70] sm:$0xff]
        %v4420 = vld [vmem:[%s498 + $0xe78] sm:$0xff]
        %v4421 = vld [vmem:[%s498 + $0xe80] sm:$0xff]
        %v4422 = vld [vmem:[%s498 + $0xe88] sm:$0xff]
        %v4423 = vld [vmem:[%s498 + $0xe90] sm:$0xff]
        %v4424 = vld [vmem:[%s498 + $0xe98] sm:$0xff]
        %v4425 = vld [vmem:[%s498 + $0xea0] sm:$0xff]
        %v4426 = vld [vmem:[%s498 + $0xea8] sm:$0xff]
        %v4427 = vld [vmem:[%s498 + $0xeb0] sm:$0xff]
        %v4428 = vld [vmem:[%s498 + $0xeb8] sm:$0xff]
        %v4429 = vld [vmem:[%s498 + $0xec0] sm:$0xff]
        %v4430 = vld [vmem:[%s498 + $0xec8] sm:$0xff]
        %v4431 = vld [vmem:[%s498 + $0xed0] sm:$0xff]
        %v4432 = vld [vmem:[%s498 + $0xed8] sm:$0xff]
        %v4433 = vld [vmem:[%s498 + $0xee0] sm:$0xff]
        %v4434 = vld [vmem:[%s498 + $0xee8] sm:$0xff]
        %v4435 = vld [vmem:[%s498 + $0xef0] sm:$0xff]
        %v4436 = vld [vmem:[%s498 + $0xef8] sm:$0xff]
        %v4437 = vld [vmem:[%s498 + $0xf00] sm:$0xff]
        %v4438 = vld [vmem:[%s498 + $0xf08] sm:$0xff]
        %v4439 = vld [vmem:[%s498 + $0xf10] sm:$0xff]
        %v4440 = vld [vmem:[%s498 + $0xf18] sm:$0xff]
        %v4441 = vld [vmem:[%s498 + $0xf20] sm:$0xff]
        %v4442 = vld [vmem:[%s498 + $0xf28] sm:$0xff]
        %v4443 = vld [vmem:[%s498 + $0xf30] sm:$0xff]
        %v4444 = vld [vmem:[%s498 + $0xf38] sm:$0xff]
        %v4445 = vld [vmem:[%s498 + $0xf40] sm:$0xff]
        %v4446 = vld [vmem:[%s498 + $0xf48] sm:$0xff]
        %v4447 = vld [vmem:[%s498 + $0xf50] sm:$0xff]
        %v4448 = vld [vmem:[%s498 + $0xf58] sm:$0xff]
        %v4449 = vld [vmem:[%s498 + $0xf60] sm:$0xff]
        %v4450 = vld [vmem:[%s498 + $0xf68] sm:$0xff]
        %v4451 = vld [vmem:[%s498 + $0xf70] sm:$0xff]
        %v4452 = vld [vmem:[%s498 + $0xf78] sm:$0xff]
        %v4453 = vld [vmem:[%s498 + $0xf80] sm:$0xff]
        %v4454 = vld [vmem:[%s498 + $0xf88] sm:$0xff]
        %v4455 = vld [vmem:[%s498 + $0xf90] sm:$0xff]
        %v4456 = vld [vmem:[%s498 + $0xf98] sm:$0xff]
        %v4457 = vld [vmem:[%s498 + $0xfa0] sm:$0xff]
        %v4458 = vld [vmem:[%s498 + $0xfa8] sm:$0xff]
        %v4459 = vld [vmem:[%s498 + $0xfb0] sm:$0xff]
        %v4460 = vld [vmem:[%s498 + $0xfb8] sm:$0xff]
        %v4461 = vld [vmem:[%s498 + $0xfc0] sm:$0xff]
        %v4462 = vld [vmem:[%s498 + $0xfc8] sm:$0xff]
        %v4463 = vld [vmem:[%s498 + $0xfd0] sm:$0xff]
        %v4464 = vld [vmem:[%s498 + $0xfd8] sm:$0xff]
        %v4465 = vld [vmem:[%s498 + $0xfe0] sm:$0xff]
        %v4466 = vld [vmem:[%s498 + $0xfe8] sm:$0xff]
        %v4467 = vld [vmem:[%s498 + $0xff0] sm:$0xff]
        %v4468 = vld [vmem:[%s498 + $0xff8] sm:$0xff]
        %v4469 = vld [vmem:[%s498 + $0x1000] sm:$0xff]
        %v4470 = vld [vmem:[%s498 + $0x1008] sm:$0xff]
        %v4471 = vld [vmem:[%s498 + $0x1010] sm:$0xff]
        %v4472 = vld [vmem:[%s498 + $0x1018] sm:$0xff]
        %v4473 = vld [vmem:[%s498 + $0x1020] sm:$0xff]
        %v4474 = vld [vmem:[%s498 + $0x1028] sm:$0xff]
        %v4475 = vld [vmem:[%s498 + $0x1030] sm:$0xff]
        %v4476 = vld [vmem:[%s498 + $0x1038] sm:$0xff]
        %v4477 = vld [vmem:[%s498 + $0x1040] sm:$0xff]
        %v4478 = vld [vmem:[%s498 + $0x1048] sm:$0xff]
        %v4479 = vld [vmem:[%s498 + $0x1050] sm:$0xff]
        %v4480 = vld [vmem:[%s498 + $0x1058] sm:$0xff]
        %v4481 = vld [vmem:[%s498 + $0x1060] sm:$0xff]
        %v4482 = vld [vmem:[%s498 + $0x1068] sm:$0xff]
        %v4483 = vld [vmem:[%s498 + $0x1070] sm:$0xff]
        %v4484 = vld [vmem:[%s498 + $0x1078] sm:$0xff]
        %v4485 = vld [vmem:[%s498 + $0x1080] sm:$0xff]
        %v4486 = vld [vmem:[%s498 + $0x1088] sm:$0xff]
        %v4487 = vld [vmem:[%s498 + $0x1090] sm:$0xff]
        %v4488 = vld [vmem:[%s498 + $0x1098] sm:$0xff]
        %v4489 = vld [vmem:[%s498 + $0x10a0] sm:$0xff]
        %v4490 = vld [vmem:[%s498 + $0x10a8] sm:$0xff]
        %v4491 = vld [vmem:[%s498 + $0x10b0] sm:$0xff]
        %v4492 = vld [vmem:[%s498 + $0x10b8] sm:$0xff]
        %v4493 = vld [vmem:[%s498 + $0x10c0] sm:$0xff]
        %v4494 = vld [vmem:[%s498 + $0x10c8] sm:$0xff]
        %v4495 = vld [vmem:[%s498 + $0x10d0] sm:$0xff]
        %v4496 = vld [vmem:[%s498 + $0x10d8] sm:$0xff]
        %v4497 = vld [vmem:[%s498 + $0x10e0] sm:$0xff]
        %v4498 = vld [vmem:[%s498 + $0x10e8] sm:$0xff]
        %v4499 = vld [vmem:[%s498 + $0x10f0] sm:$0xff]
        %v4500 = vld [vmem:[%s498 + $0x10f8] sm:$0xff]
        %v4501 = vld [vmem:[%s498 + $0x1100] sm:$0xff]
        %v4502 = vld [vmem:[%s498 + $0x1108] sm:$0xff]
        %v4503 = vld [vmem:[%s498 + $0x1110] sm:$0xff]
        %v4504 = vld [vmem:[%s498 + $0x1118] sm:$0xff]
        %v4505 = vld [vmem:[%s498 + $0x1120] sm:$0xff]
        %v4506 = vld [vmem:[%s498 + $0x1128] sm:$0xff]
        %v4507 = vld [vmem:[%s498 + $0x1130] sm:$0xff]
        %v4508 = vld [vmem:[%s498 + $0x1138] sm:$0xff]
        %v4509 = vld [vmem:[%s498 + $0x1140] sm:$0xff]
        %v4510 = vld [vmem:[%s498 + $0x1148] sm:$0xff]
        %v4511 = vld [vmem:[%s498 + $0x1150] sm:$0xff]
        %v4512 = vld [vmem:[%s498 + $0x1158] sm:$0xff]
        %v4513 = vld [vmem:[%s498 + $0x1160] sm:$0xff]
        %v4514 = vld [vmem:[%s498 + $0x1168] sm:$0xff]
        %v4515 = vld [vmem:[%s498 + $0x1170] sm:$0xff]
        %v4516 = vld [vmem:[%s498 + $0x1178] sm:$0xff]
        %v4517 = vld [vmem:[%s498 + $0x1180] sm:$0xff]
        %v4518 = vld [vmem:[%s498 + $0x1188] sm:$0xff]
        %v4519 = vld [vmem:[%s498 + $0x1190] sm:$0xff]
        %v4520 = vld [vmem:[%s498 + $0x1198] sm:$0xff]
        %v4521 = vld [vmem:[%s498 + $0x11a0] sm:$0xff]
        %v4522 = vld [vmem:[%s498 + $0x11a8] sm:$0xff]
        %v4523 = vld [vmem:[%s498 + $0x11b0] sm:$0xff]
        %v4524 = vld [vmem:[%s498 + $0x11b8] sm:$0xff]
        %v4525 = vld [vmem:[%s498 + $0x11c0] sm:$0xff]
        %v4526 = vld [vmem:[%s498 + $0x11c8] sm:$0xff]
        %v4527 = vld [vmem:[%s498 + $0x11d0] sm:$0xff]
        %v4528 = vld [vmem:[%s498 + $0x11d8] sm:$0xff]
        %v4529 = vld [vmem:[%s498 + $0x11e0] sm:$0xff]
        %v4530 = vld [vmem:[%s498 + $0x11e8] sm:$0xff]
        %v4531 = vld [vmem:[%s498 + $0x11f0] sm:$0xff]
        %v4532 = vld [vmem:[%s498 + $0x11f8] sm:$0xff]
        %v4533 = vld [vmem:[%s498 + $0x1200] sm:$0xff]
        %v4534 = vld [vmem:[%s498 + $0x1208] sm:$0xff]
        %v4535 = vld [vmem:[%s498 + $0x1210] sm:$0xff]
        %v4536 = vld [vmem:[%s498 + $0x1218] sm:$0xff]
        %v4537 = vld [vmem:[%s498 + $0x1220] sm:$0xff]
        %v4538 = vld [vmem:[%s498 + $0x1228] sm:$0xff]
        %v4539 = vld [vmem:[%s498 + $0x1230] sm:$0xff]
        %v4540 = vld [vmem:[%s498 + $0x1238] sm:$0xff]
        %v4541 = vld [vmem:[%s498 + $0x1240] sm:$0xff]
        %v4542 = vld [vmem:[%s498 + $0x1248] sm:$0xff]
        %v4543 = vld [vmem:[%s498 + $0x1250] sm:$0xff]
        %v4544 = vld [vmem:[%s498 + $0x1258] sm:$0xff]
        %v4545 = vld [vmem:[%s498 + $0x1260] sm:$0xff]
        %v4546 = vld [vmem:[%s498 + $0x1268] sm:$0xff]
        %v4547 = vld [vmem:[%s498 + $0x1270] sm:$0xff]
        %v4548 = vld [vmem:[%s498 + $0x1278] sm:$0xff]
        %v4549 = vld [vmem:[%s498 + $0x1280] sm:$0xff]
        %v4550 = vld [vmem:[%s498 + $0x1288] sm:$0xff]
        %v4551 = vld [vmem:[%s498 + $0x1290] sm:$0xff]
        %v4552 = vld [vmem:[%s498 + $0x1298] sm:$0xff]
        %v4553 = vld [vmem:[%s498 + $0x12a0] sm:$0xff]
        %v4554 = vld [vmem:[%s498 + $0x12a8] sm:$0xff]
        %v4555 = vld [vmem:[%s498 + $0x12b0] sm:$0xff]
        %v4556 = vld [vmem:[%s498 + $0x12b8] sm:$0xff]
        %v4557 = vld [vmem:[%s498 + $0x12c0] sm:$0xff]
        %v4558 = vld [vmem:[%s498 + $0x12c8] sm:$0xff]
        %v4559 = vld [vmem:[%s498 + $0x12d0] sm:$0xff]
        %v4560 = vld [vmem:[%s498 + $0x12d8] sm:$0xff]
        %v4561 = vld [vmem:[%s498 + $0x12e0] sm:$0xff]
        %v4562 = vld [vmem:[%s498 + $0x12e8] sm:$0xff]
        %v4563 = vld [vmem:[%s498 + $0x12f0] sm:$0xff]
        %v4564 = vld [vmem:[%s498 + $0x12f8] sm:$0xff]
        %v4565 = vld [vmem:[%s498 + $0x1300] sm:$0xff]
        %v4566 = vld [vmem:[%s498 + $0x1308] sm:$0xff]
        %v4567 = vld [vmem:[%s498 + $0x1310] sm:$0xff]
        %v4568 = vld [vmem:[%s498 + $0x1318] sm:$0xff]
        %v4569 = vld [vmem:[%s498 + $0x1320] sm:$0xff]
        %v4570 = vld [vmem:[%s498 + $0x1328] sm:$0xff]
        %v4571 = vld [vmem:[%s498 + $0x1330] sm:$0xff]
        %v4572 = vld [vmem:[%s498 + $0x1338] sm:$0xff]
        %v4573 = vld [vmem:[%s498 + $0x1340] sm:$0xff]
        %v4574 = vld [vmem:[%s498 + $0x1348] sm:$0xff]
        %v4575 = vld [vmem:[%s498 + $0x1350] sm:$0xff]
        %v4576 = vld [vmem:[%s498 + $0x1358] sm:$0xff]
        %v4577 = vld [vmem:[%s498 + $0x1360] sm:$0xff]
        %v4578 = vld [vmem:[%s498 + $0x1368] sm:$0xff]
        %v4579 = vld [vmem:[%s498 + $0x1370] sm:$0xff]
        %v4580 = vld [vmem:[%s498 + $0x1378] sm:$0xff]
        %v4581 = vld [vmem:[%s498 + $0x1380] sm:$0xff]
        %v4582 = vld [vmem:[%s498 + $0x1388] sm:$0xff]
        %v4583 = vld [vmem:[%s498 + $0x1390] sm:$0xff]
        %v4584 = vld [vmem:[%s498 + $0x1398] sm:$0xff]
        %v4585 = vld [vmem:[%s498 + $0x13a0] sm:$0xff]
        %v4586 = vld [vmem:[%s498 + $0x13a8] sm:$0xff]
        %v4587 = vld [vmem:[%s498 + $0x13b0] sm:$0xff]
        %v4588 = vld [vmem:[%s498 + $0x13b8] sm:$0xff]
        %v4589 = vld [vmem:[%s498 + $0x13c0] sm:$0xff]
        %v4590 = vld [vmem:[%s498 + $0x13c8] sm:$0xff]
        %v4591 = vld [vmem:[%s498 + $0x13d0] sm:$0xff]
        %v4592 = vld [vmem:[%s498 + $0x13d8] sm:$0xff]
        %v4593 = vld [vmem:[%s498 + $0x13e0] sm:$0xff]
        %v4594 = vld [vmem:[%s498 + $0x13e8] sm:$0xff]
        %v4595 = vld [vmem:[%s498 + $0x13f0] sm:$0xff]
        %v4596 = vld [vmem:[%s498 + $0x13f8] sm:$0xff]
        %v4597 = vld [vmem:[%s498 + $0x1400] sm:$0xff]
        %v4598 = vld [vmem:[%s498 + $0x1408] sm:$0xff]
        %v4599 = vld [vmem:[%s498 + $0x1410] sm:$0xff]
        %v4600 = vld [vmem:[%s498 + $0x1418] sm:$0xff]
        %v4601 = vld [vmem:[%s498 + $0x1420] sm:$0xff]
        %v4602 = vld [vmem:[%s498 + $0x1428] sm:$0xff]
        %v4603 = vld [vmem:[%s498 + $0x1430] sm:$0xff]
        %v4604 = vld [vmem:[%s498 + $0x1438] sm:$0xff]
        %v4605 = vld [vmem:[%s498 + $0x1440] sm:$0xff]
        %v4606 = vld [vmem:[%s498 + $0x1448] sm:$0xff]
        %v4607 = vld [vmem:[%s498 + $0x1450] sm:$0xff]
        %v4608 = vld [vmem:[%s498 + $0x1458] sm:$0xff]
        %v4609 = vld [vmem:[%s498 + $0x1460] sm:$0xff]
        %v4610 = vld [vmem:[%s498 + $0x1468] sm:$0xff]
        %v4611 = vld [vmem:[%s498 + $0x1470] sm:$0xff]
        %v4612 = vld [vmem:[%s498 + $0x1478] sm:$0xff]
        %v4613 = vld [vmem:[%s498 + $0x1480] sm:$0xff]
        %v4614 = vld [vmem:[%s498 + $0x1488] sm:$0xff]
        %v4615 = vld [vmem:[%s498 + $0x1490] sm:$0xff]
        %v4616 = vld [vmem:[%s498 + $0x1498] sm:$0xff]
        %v4617 = vld [vmem:[%s498 + $0x14a0] sm:$0xff]
        %v4618 = vld [vmem:[%s498 + $0x14a8] sm:$0xff]
        %v4619 = vld [vmem:[%s498 + $0x14b0] sm:$0xff]
        %v4620 = vld [vmem:[%s498 + $0x14b8] sm:$0xff]
        %v4621 = vld [vmem:[%s498 + $0x14c0] sm:$0xff]
        %v4622 = vld [vmem:[%s498 + $0x14c8] sm:$0xff]
        %v4623 = vld [vmem:[%s498 + $0x14d0] sm:$0xff]
        %v4624 = vld [vmem:[%s498 + $0x14d8] sm:$0xff]
        %v4625 = vld [vmem:[%s498 + $0x14e0] sm:$0xff]
        %v4626 = vld [vmem:[%s498 + $0x14e8] sm:$0xff]
        %v4627 = vld [vmem:[%s498 + $0x14f0] sm:$0xff]
        %v4628 = vld [vmem:[%s498 + $0x14f8] sm:$0xff]
        %v4629 = vld [vmem:[%s498 + $0x1500] sm:$0xff]
        %v4630 = vld [vmem:[%s498 + $0x1508] sm:$0xff]
        %v4631 = vld [vmem:[%s498 + $0x1510] sm:$0xff]
        %v4632 = vld [vmem:[%s498 + $0x1518] sm:$0xff]
        %v4633 = vld [vmem:[%s498 + $0x1520] sm:$0xff]
        %v4634 = vld [vmem:[%s498 + $0x1528] sm:$0xff]
        %v4635 = vld [vmem:[%s498 + $0x1530] sm:$0xff]
        %v4636 = vld [vmem:[%s498 + $0x1538] sm:$0xff]
        %v4637 = vld [vmem:[%s498 + $0x1540] sm:$0xff]
        %v4638 = vld [vmem:[%s498 + $0x1548] sm:$0xff]
        %v4639 = vld [vmem:[%s498 + $0x1550] sm:$0xff]
        %v4640 = vld [vmem:[%s498 + $0x1558] sm:$0xff]
        %v4641 = vld [vmem:[%s498 + $0x1560] sm:$0xff]
        %v4642 = vld [vmem:[%s498 + $0x1568] sm:$0xff]
        %v4643 = vld [vmem:[%s498 + $0x1570] sm:$0xff]
        %v4644 = vld [vmem:[%s498 + $0x1578] sm:$0xff]
        %v4645 = vld [vmem:[%s498 + $0x1580] sm:$0xff]
        %v4646 = vld [vmem:[%s498 + $0x1588] sm:$0xff]
        %v4647 = vld [vmem:[%s498 + $0x1590] sm:$0xff]
        %v4648 = vld [vmem:[%s498 + $0x1598] sm:$0xff]
        %v4649 = vld [vmem:[%s498 + $0x15a0] sm:$0xff]
        %v4650 = vld [vmem:[%s498 + $0x15a8] sm:$0xff]
        %v4651 = vld [vmem:[%s498 + $0x15b0] sm:$0xff]
        %v4652 = vld [vmem:[%s498 + $0x15b8] sm:$0xff]
        %v4653 = vld [vmem:[%s498 + $0x15c0] sm:$0xff]
        %v4654 = vld [vmem:[%s498 + $0x15c8] sm:$0xff]
        %v4655 = vld [vmem:[%s498 + $0x15d0] sm:$0xff]
        %v4656 = vld [vmem:[%s498 + $0x15d8] sm:$0xff]
        %v4657 = vld [vmem:[%s498 + $0x15e0] sm:$0xff]
        %v4658 = vld [vmem:[%s498 + $0x15e8] sm:$0xff]
        %v4659 = vld [vmem:[%s498 + $0x15f0] sm:$0xff]
        %v4660 = vld [vmem:[%s498 + $0x15f8] sm:$0xff]
        %v4661 = vld [vmem:[%s498 + $0x1600] sm:$0xff]
        %v4662 = vld [vmem:[%s498 + $0x1608] sm:$0xff]
        %v4663 = vld [vmem:[%s498 + $0x1610] sm:$0xff]
        %v4664 = vld [vmem:[%s498 + $0x1618] sm:$0xff]
        %v4665 = vld [vmem:[%s498 + $0x1620] sm:$0xff]
        %v4666 = vld [vmem:[%s498 + $0x1628] sm:$0xff]
        %v4667 = vld [vmem:[%s498 + $0x1630] sm:$0xff]
        %v4668 = vld [vmem:[%s498 + $0x1638] sm:$0xff]
        %v4669 = vld [vmem:[%s498 + $0x1640] sm:$0xff]
        %v4670 = vld [vmem:[%s498 + $0x1648] sm:$0xff]
        %v4671 = vld [vmem:[%s498 + $0x1650] sm:$0xff]
        %v4672 = vld [vmem:[%s498 + $0x1658] sm:$0xff]
        %v4673 = vld [vmem:[%s498 + $0x1660] sm:$0xff]
        %v4674 = vld [vmem:[%s498 + $0x1668] sm:$0xff]
        %v4675 = vld [vmem:[%s498 + $0x1670] sm:$0xff]
        %v4676 = vld [vmem:[%s498 + $0x1678] sm:$0xff]
        %v4677 = vld [vmem:[%s498 + $0x1680] sm:$0xff]
        %v4678 = vld [vmem:[%s498 + $0x1688] sm:$0xff]
        %v4679 = vld [vmem:[%s498 + $0x1690] sm:$0xff]
        %v4680 = vld [vmem:[%s498 + $0x1698] sm:$0xff]
        %v4681 = vld [vmem:[%s498 + $0x16a0] sm:$0xff]
        %v4682 = vld [vmem:[%s498 + $0x16a8] sm:$0xff]
        %v4683 = vld [vmem:[%s498 + $0x16b0] sm:$0xff]
        %v4684 = vld [vmem:[%s498 + $0x16b8] sm:$0xff]
        %v4685 = vld [vmem:[%s498 + $0x16c0] sm:$0xff]
        %v4686 = vld [vmem:[%s498 + $0x16c8] sm:$0xff]
        %v4687 = vld [vmem:[%s498 + $0x16d0] sm:$0xff]
        %v4688 = vld [vmem:[%s498 + $0x16d8] sm:$0xff]
        %v4689 = vld [vmem:[%s498 + $0x16e0] sm:$0xff]
        %v4690 = vld [vmem:[%s498 + $0x16e8] sm:$0xff]
        %v4691 = vld [vmem:[%s498 + $0x16f0] sm:$0xff]
        %v4692 = vld [vmem:[%s498 + $0x16f8] sm:$0xff]
        %v4693 = vld [vmem:[%s498 + $0x1700] sm:$0xff]
        %v4694 = vld [vmem:[%s498 + $0x1708] sm:$0xff]
        %v4695 = vld [vmem:[%s498 + $0x1710] sm:$0xff]
        %v4696 = vld [vmem:[%s498 + $0x1718] sm:$0xff]
        %v4697 = vld [vmem:[%s498 + $0x1720] sm:$0xff]
        %v4698 = vld [vmem:[%s498 + $0x1728] sm:$0xff]
        %v4699 = vld [vmem:[%s498 + $0x1730] sm:$0xff]
        %v4700 = vld [vmem:[%s498 + $0x1738] sm:$0xff]
        %v4701 = vld [vmem:[%s498 + $0x1740] sm:$0xff]
        %v4702 = vld [vmem:[%s498 + $0x1748] sm:$0xff]
        %v4703 = vld [vmem:[%s498 + $0x1750] sm:$0xff]
        %v4704 = vld [vmem:[%s498 + $0x1758] sm:$0xff]
        %v4705 = vld [vmem:[%s498 + $0x1760] sm:$0xff]
        %v4706 = vld [vmem:[%s498 + $0x1768] sm:$0xff]
        %v4707 = vld [vmem:[%s498 + $0x1770] sm:$0xff]
        %v4708 = vld [vmem:[%s498 + $0x1778] sm:$0xff]
        %v4709 = vld [vmem:[%s498 + $0x1780] sm:$0xff]
        %v4710 = vld [vmem:[%s498 + $0x1788] sm:$0xff]
        %v4711 = vld [vmem:[%s498 + $0x1790] sm:$0xff]
        %v4712 = vld [vmem:[%s498 + $0x1798] sm:$0xff]
        %v4713 = vld [vmem:[%s498 + $0x17a0] sm:$0xff]
        %v4714 = vld [vmem:[%s498 + $0x17a8] sm:$0xff]
        %v4715 = vld [vmem:[%s498 + $0x17b0] sm:$0xff]
        %v4716 = vld [vmem:[%s498 + $0x17b8] sm:$0xff]
        %v4717 = vld [vmem:[%s498 + $0x17c0] sm:$0xff]
        %v4718 = vld [vmem:[%s498 + $0x17c8] sm:$0xff]
        %v4719 = vld [vmem:[%s498 + $0x17d0] sm:$0xff]
        %v4720 = vld [vmem:[%s498 + $0x17d8] sm:$0xff]
        %v4721 = vld [vmem:[%s498 + $0x17e0] sm:$0xff]
        %v4722 = vld [vmem:[%s498 + $0x17e8] sm:$0xff]
        %v4723 = vld [vmem:[%s498 + $0x17f0] sm:$0xff]
        %v4724 = vld [vmem:[%s498 + $0x17f8] sm:$0xff]
        %4725 = vmatprep.subr.mxu0 %v3958
        %4726 = vmatpush1.msra.mxu0 %v3957
        %4727 = vmatprep.subr.mxu0 %v3970
        %4728 = vmatpush1.msra.mxu0 %v3969
        %4729 = vmatprep.subr.mxu0 %v3982
        %4730 = vmatpush1.msra.mxu0 %v3981
        %4731 = vmatprep.subr.mxu0 %v3994
        %4732 = vmatpush1.msra.mxu0 %v3993
        %4733 = vmatprep.subr.mxu0 %v4006
        %4734 = vmatpush1.msra.mxu0 %v4005
        %4735 = vmatprep.subr.mxu0 %v4018
        %4736 = vmatpush1.msra.mxu0 %v4017
        %4737 = vmatprep.subr.mxu0 %v4030
        %4738 = vmatpush1.msra.mxu0 %v4029
        %4739 = vmatprep.subr.mxu0 %v4042
        %4740 = vmatpush1.msra.mxu0 %v4041
        %4741 = vmatprep.subr.mxu0 %v4054
        %4742 = vmatpush1.msra.mxu0 %v4053
        %4743 = vmatprep.subr.mxu0 %v4066
        %4744 = vmatpush1.msra.mxu0 %v4065
        %4745 = vmatprep.subr.mxu0 %v4078
        %4746 = vmatpush1.msra.mxu0 %v4077
        %4747 = vmatprep.subr.mxu0 %v4090
        %4748 = vmatpush1.msra.mxu0 %v4089
        %4749 = vmatprep.subr.mxu0 %v4102
        %4750 = vmatpush1.msra.mxu0 %v4101
        %4751 = vmatprep.subr.mxu0 %v4114
        %4752 = vmatpush1.msra.mxu0 %v4113
        %4753 = vmatprep.subr.mxu0 %v4126
        %4754 = vmatpush1.msra.mxu0 %v4125
        %4755 = vmatprep.subr.mxu0 %v4138
        %4756 = vmatpush1.msra.mxu0 %v4137
        %4757 = vmatprep.subr.mxu0 %v4150
        %4758 = vmatpush1.msra.mxu0 %v4149
        %4759 = vmatprep.subr.mxu0 %v4162
        %4760 = vmatpush1.msra.mxu0 %v4161
        %4761 = vmatprep.subr.mxu0 %v4174
        %4762 = vmatpush1.msra.mxu0 %v4173
        %4763 = vmatprep.subr.mxu0 %v4186
        %4764 = vmatpush1.msra.mxu0 %v4185
        %4765 = vmatprep.subr.mxu0 %v4198
        %4766 = vmatpush1.msra.mxu0 %v4197
        %4767 = vmatprep.subr.mxu0 %v4210
        %4768 = vmatpush1.msra.mxu0 %v4209
        %4769 = vmatprep.subr.mxu0 %v4222
        %4770 = vmatpush1.msra.mxu0 %v4221
        %4771 = vmatprep.subr.mxu0 %v4234
        %4772 = vmatpush1.msra.mxu0 %v4233
        %4773 = vmatprep.subr.mxu0 %v4246
        %4774 = vmatpush1.msra.mxu0 %v4245
        %4775 = vmatprep.subr.mxu0 %v4258
        %4776 = vmatpush1.msra.mxu0 %v4257
        %4777 = vmatprep.subr.mxu0 %v4270
        %4778 = vmatpush1.msra.mxu0 %v4269
        %4779 = vmatprep.subr.mxu0 %v4282
        %4780 = vmatpush1.msra.mxu0 %v4281
        %4781 = vmatprep.subr.mxu0 %v4294
        %4782 = vmatpush1.msra.mxu0 %v4293
        %4783 = vmatprep.subr.mxu0 %v4306
        %4784 = vmatpush1.msra.mxu0 %v4305
        %4785 = vmatprep.subr.mxu0 %v4318
        %4786 = vmatpush1.msra.mxu0 %v4317
        %4787 = vmatprep.subr.mxu0 %v4330
        %4788 = vmatpush1.msra.mxu0 %v4329
        %4789 = vmatprep.mubr.f32.mxu0 %v3184
        %4790 = vmatmul.mubr.f32.gmra.mrb[0].mxu0 %v3182
        %v4791 = vpop.f32.mrb[0].mxu0
        %v4792 = vadd.f32 0.0, %v4791
        %v4793 = vpop.f32.mrb[0].mxu0
        %v4794 = vadd.f32 0.0, %v4793
        %4795 = vdwg.mxu0
        %4796 = vmatprep.subr.mxu0 %v4342
        %4797 = vmatpush1.msra.mxu0 %v4341
        %4798 = vmatprep.subr.mxu0 %v4354
        %4799 = vmatpush1.msra.mxu0 %v4353
        %4800 = vmatprep.subr.mxu0 %v4366
        %4801 = vmatpush1.msra.mxu0 %v4365
        %4802 = vmatprep.subr.mxu0 %v4378
        %4803 = vmatpush1.msra.mxu0 %v4377
        %4804 = vmatprep.subr.mxu0 %v4390
        %4805 = vmatpush1.msra.mxu0 %v4389
        %4806 = vmatprep.subr.mxu0 %v4402
        %4807 = vmatpush1.msra.mxu0 %v4401
        %4808 = vmatprep.subr.mxu0 %v4414
        %4809 = vmatpush1.msra.mxu0 %v4413
        %4810 = vmatprep.subr.mxu0 %v4426
        %4811 = vmatpush1.msra.mxu0 %v4425
        %4812 = vmatprep.subr.mxu0 %v4438
        %4813 = vmatpush1.msra.mxu0 %v4437
        %4814 = vmatprep.subr.mxu0 %v4450
        %4815 = vmatpush1.msra.mxu0 %v4449
        %4816 = vmatprep.subr.mxu0 %v4462
        %4817 = vmatpush1.msra.mxu0 %v4461
        %4818 = vmatprep.subr.mxu0 %v4474
        %4819 = vmatpush1.msra.mxu0 %v4473
        %4820 = vmatprep.subr.mxu0 %v4486
        %4821 = vmatpush1.msra.mxu0 %v4485
        %4822 = vmatprep.subr.mxu0 %v4498
        %4823 = vmatpush1.msra.mxu0 %v4497
        %4824 = vmatprep.subr.mxu0 %v4510
        %4825 = vmatpush1.msra.mxu0 %v4509
        %4826 = vmatprep.subr.mxu0 %v4522
        %4827 = vmatpush1.msra.mxu0 %v4521
        %4828 = vmatprep.subr.mxu0 %v4534
        %4829 = vmatpush1.msra.mxu0 %v4533
        %4830 = vmatprep.subr.mxu0 %v4546
        %4831 = vmatpush1.msra.mxu0 %v4545
        %4832 = vmatprep.subr.mxu0 %v4558
        %4833 = vmatpush1.msra.mxu0 %v4557
        %4834 = vmatprep.subr.mxu0 %v4570
        %4835 = vmatpush1.msra.mxu0 %v4569
        %4836 = vmatprep.subr.mxu0 %v4582
        %4837 = vmatpush1.msra.mxu0 %v4581
        %4838 = vmatprep.subr.mxu0 %v4594
        %4839 = vmatpush1.msra.mxu0 %v4593
        %4840 = vmatprep.subr.mxu0 %v4606
        %4841 = vmatpush1.msra.mxu0 %v4605
        %4842 = vmatprep.subr.mxu0 %v4618
        %4843 = vmatpush1.msra.mxu0 %v4617
        %4844 = vmatprep.subr.mxu0 %v4630
        %4845 = vmatpush1.msra.mxu0 %v4629
        %4846 = vmatprep.subr.mxu0 %v4642
        %4847 = vmatpush1.msra.mxu0 %v4641
        %4848 = vmatprep.subr.mxu0 %v4654
        %4849 = vmatpush1.msra.mxu0 %v4653
        %4850 = vmatprep.subr.mxu0 %v4666
        %4851 = vmatpush1.msra.mxu0 %v4665
        %4852 = vmatprep.subr.mxu0 %v4678
        %4853 = vmatpush1.msra.mxu0 %v4677
        %4854 = vmatprep.subr.mxu0 %v4690
        %4855 = vmatpush1.msra.mxu0 %v4689
        %4856 = vmatprep.subr.mxu0 %v4702
        %4857 = vmatpush1.msra.mxu0 %v4701
        %4858 = vmatprep.subr.mxu0 %v4714
        %4859 = vmatpush1.msra.mxu0 %v4713
        %4860 = vmatprep.mubr.f32.mxu0 %v3188
        %4861 = vmatmul.mubr.f32.gmra.mrb[0].mxu0 %v3186
        %v4862 = vpop.f32.mrb[0].mxu0
        %v4863 = vadd.f32 %v4792, %v4862
        %v4864 = vpop.f32.mrb[0].mxu0
        %v4865 = vadd.f32 %v4794, %v4864
        %4866 = vdwg.mxu0
        %4867 = vmatprep.subr.mxu0 %v3960
        %4868 = vmatpush1.msra.mxu0 %v3959
        %4869 = vmatprep.subr.mxu0 %v3972
        %4870 = vmatpush1.msra.mxu0 %v3971
        %4871 = vmatprep.subr.mxu0 %v3984
        %4872 = vmatpush1.msra.mxu0 %v3983
        %4873 = vmatprep.subr.mxu0 %v3996
        %4874 = vmatpush1.msra.mxu0 %v3995
        %4875 = vmatprep.subr.mxu0 %v4008
        %4876 = vmatpush1.msra.mxu0 %v4007
        %4877 = vmatprep.subr.mxu0 %v4020
        %4878 = vmatpush1.msra.mxu0 %v4019
        %4879 = vmatprep.subr.mxu0 %v4032
        %4880 = vmatpush1.msra.mxu0 %v4031
        %4881 = vmatprep.subr.mxu0 %v4044
        %4882 = vmatpush1.msra.mxu0 %v4043
        %4883 = vmatprep.subr.mxu0 %v4056
        %4884 = vmatpush1.msra.mxu0 %v4055
        %4885 = vmatprep.subr.mxu0 %v4068
        %4886 = vmatpush1.msra.mxu0 %v4067
        %4887 = vmatprep.subr.mxu0 %v4080
        %4888 = vmatpush1.msra.mxu0 %v4079
        %4889 = vmatprep.subr.mxu0 %v4092
        %4890 = vmatpush1.msra.mxu0 %v4091
        %4891 = vmatprep.subr.mxu0 %v4104
        %4892 = vmatpush1.msra.mxu0 %v4103
        %4893 = vmatprep.subr.mxu0 %v4116
        %4894 = vmatpush1.msra.mxu0 %v4115
        %4895 = vmatprep.subr.mxu0 %v4128
        %4896 = vmatpush1.msra.mxu0 %v4127
        %4897 = vmatprep.subr.mxu0 %v4140
        %4898 = vmatpush1.msra.mxu0 %v4139
        %4899 = vmatprep.subr.mxu0 %v4152
        %4900 = vmatpush1.msra.mxu0 %v4151
        %4901 = vmatprep.subr.mxu0 %v4164
        %4902 = vmatpush1.msra.mxu0 %v4163
        %4903 = vmatprep.subr.mxu0 %v4176
        %4904 = vmatpush1.msra.mxu0 %v4175
        %4905 = vmatprep.subr.mxu0 %v4188
        %4906 = vmatpush1.msra.mxu0 %v4187
        %4907 = vmatprep.subr.mxu0 %v4200
        %4908 = vmatpush1.msra.mxu0 %v4199
        %4909 = vmatprep.subr.mxu0 %v4212
        %4910 = vmatpush1.msra.mxu0 %v4211
        %4911 = vmatprep.subr.mxu0 %v4224
        %4912 = vmatpush1.msra.mxu0 %v4223
        %4913 = vmatprep.subr.mxu0 %v4236
        %4914 = vmatpush1.msra.mxu0 %v4235
        %4915 = vmatprep.subr.mxu0 %v4248
        %4916 = vmatpush1.msra.mxu0 %v4247
        %4917 = vmatprep.subr.mxu0 %v4260
        %4918 = vmatpush1.msra.mxu0 %v4259
        %4919 = vmatprep.subr.mxu0 %v4272
        %4920 = vmatpush1.msra.mxu0 %v4271
        %4921 = vmatprep.subr.mxu0 %v4284
        %4922 = vmatpush1.msra.mxu0 %v4283
        %4923 = vmatprep.subr.mxu0 %v4296
        %4924 = vmatpush1.msra.mxu0 %v4295
        %4925 = vmatprep.subr.mxu0 %v4308
        %4926 = vmatpush1.msra.mxu0 %v4307
        %4927 = vmatprep.subr.mxu0 %v4320
        %4928 = vmatpush1.msra.mxu0 %v4319
        %4929 = vmatprep.subr.mxu0 %v4332
        %4930 = vmatpush1.msra.mxu0 %v4331
        %4931 = vmatprep.mubr.f32.mxu0 %v3184
        %4932 = vmatmul.mubr.f32.gmra.mrb[0].mxu0 %v3182
        %v4933 = vpop.f32.mrb[0].mxu0
        %v4934 = vadd.f32 0.0, %v4933
        %v4935 = vpop.f32.mrb[0].mxu0
        %v4936 = vadd.f32 0.0, %v4935
        %4937 = vdwg.mxu0
        %4938 = vmatprep.subr.mxu0 %v4344
        %4939 = vmatpush1.msra.mxu0 %v4343
        %4940 = vmatprep.subr.mxu0 %v4356
        %4941 = vmatpush1.msra.mxu0 %v4355
        %4942 = vmatprep.subr.mxu0 %v4368
        %4943 = vmatpush1.msra.mxu0 %v4367
        %4944 = vmatprep.subr.mxu0 %v4380
        %4945 = vmatpush1.msra.mxu0 %v4379
        %4946 = vmatprep.subr.mxu0 %v4392
        %4947 = vmatpush1.msra.mxu0 %v4391
        %4948 = vmatprep.subr.mxu0 %v4404
        %4949 = vmatpush1.msra.mxu0 %v4403
        %4950 = vmatprep.subr.mxu0 %v4416
        %4951 = vmatpush1.msra.mxu0 %v4415
        %4952 = vmatprep.subr.mxu0 %v4428
        %4953 = vmatpush1.msra.mxu0 %v4427
        %4954 = vmatprep.subr.mxu0 %v4440
        %4955 = vmatpush1.msra.mxu0 %v4439
        %4956 = vmatprep.subr.mxu0 %v4452
        %4957 = vmatpush1.msra.mxu0 %v4451
        %4958 = vmatprep.subr.mxu0 %v4464
        %4959 = vmatpush1.msra.mxu0 %v4463
        %4960 = vmatprep.subr.mxu0 %v4476
        %4961 = vmatpush1.msra.mxu0 %v4475
        %4962 = vmatprep.subr.mxu0 %v4488
        %4963 = vmatpush1.msra.mxu0 %v4487
        %4964 = vmatprep.subr.mxu0 %v4500
        %4965 = vmatpush1.msra.mxu0 %v4499
        %4966 = vmatprep.subr.mxu0 %v4512
        %4967 = vmatpush1.msra.mxu0 %v4511
        %4968 = vmatprep.subr.mxu0 %v4524
        %4969 = vmatpush1.msra.mxu0 %v4523
        %4970 = vmatprep.subr.mxu0 %v4536
        %4971 = vmatpush1.msra.mxu0 %v4535
        %4972 = vmatprep.subr.mxu0 %v4548
        %4973 = vmatpush1.msra.mxu0 %v4547
        %4974 = vmatprep.subr.mxu0 %v4560
        %4975 = vmatpush1.msra.mxu0 %v4559
        %4976 = vmatprep.subr.mxu0 %v4572
        %4977 = vmatpush1.msra.mxu0 %v4571
        %4978 = vmatprep.subr.mxu0 %v4584
        %4979 = vmatpush1.msra.mxu0 %v4583
        %4980 = vmatprep.subr.mxu0 %v4596
        %4981 = vmatpush1.msra.mxu0 %v4595
        %4982 = vmatprep.subr.mxu0 %v4608
        %4983 = vmatpush1.msra.mxu0 %v4607
        %4984 = vmatprep.subr.mxu0 %v4620
        %4985 = vmatpush1.msra.mxu0 %v4619
        %4986 = vmatprep.subr.mxu0 %v4632
        %4987 = vmatpush1.msra.mxu0 %v4631
        %4988 = vmatprep.subr.mxu0 %v4644
        %4989 = vmatpush1.msra.mxu0 %v4643
        %4990 = vmatprep.subr.mxu0 %v4656
        %4991 = vmatpush1.msra.mxu0 %v4655
        %4992 = vmatprep.subr.mxu0 %v4668
        %4993 = vmatpush1.msra.mxu0 %v4667
        %4994 = vmatprep.subr.mxu0 %v4680
        %4995 = vmatpush1.msra.mxu0 %v4679
        %4996 = vmatprep.subr.mxu0 %v4692
        %4997 = vmatpush1.msra.mxu0 %v4691
        %4998 = vmatprep.subr.mxu0 %v4704
        %4999 = vmatpush1.msra.mxu0 %v4703
        %5000 = vmatprep.subr.mxu0 %v4716
        %5001 = vmatpush1.msra.mxu0 %v4715
        %5002 = vmatprep.mubr.f32.mxu0 %v3188
        %5003 = vmatmul.mubr.f32.gmra.mrb[0].mxu0 %v3186
        %v5004 = vpop.f32.mrb[0].mxu0
        %v5005 = vadd.f32 %v4934, %v5004
        %v5006 = vpop.f32.mrb[0].mxu0
        %v5007 = vadd.f32 %v4936, %v5006
        %5008 = vdwg.mxu0
        %5009 = vmatprep.subr.mxu0 %v3962
        %5010 = vmatpush1.msra.mxu0 %v3961
        %5011 = vmatprep.subr.mxu0 %v3974
        %5012 = vmatpush1.msra.mxu0 %v3973
        %5013 = vmatprep.subr.mxu0 %v3986
        %5014 = vmatpush1.msra.mxu0 %v3985
        %5015 = vmatprep.subr.mxu0 %v3998
        %5016 = vmatpush1.msra.mxu0 %v3997
        %5017 = vmatprep.subr.mxu0 %v4010
        %5018 = vmatpush1.msra.mxu0 %v4009
        %5019 = vmatprep.subr.mxu0 %v4022
        %5020 = vmatpush1.msra.mxu0 %v4021
        %5021 = vmatprep.subr.mxu0 %v4034
        %5022 = vmatpush1.msra.mxu0 %v4033
        %5023 = vmatprep.subr.mxu0 %v4046
        %5024 = vmatpush1.msra.mxu0 %v4045
        %5025 = vmatprep.subr.mxu0 %v4058
        %5026 = vmatpush1.msra.mxu0 %v4057
        %5027 = vmatprep.subr.mxu0 %v4070
        %5028 = vmatpush1.msra.mxu0 %v4069
        %5029 = vmatprep.subr.mxu0 %v4082
        %5030 = vmatpush1.msra.mxu0 %v4081
        %5031 = vmatprep.subr.mxu0 %v4094
        %5032 = vmatpush1.msra.mxu0 %v4093
        %5033 = vmatprep.subr.mxu0 %v4106
        %5034 = vmatpush1.msra.mxu0 %v4105
        %5035 = vmatprep.subr.mxu0 %v4118
        %5036 = vmatpush1.msra.mxu0 %v4117
        %5037 = vmatprep.subr.mxu0 %v4130
        %5038 = vmatpush1.msra.mxu0 %v4129
        %5039 = vmatprep.subr.mxu0 %v4142
        %5040 = vmatpush1.msra.mxu0 %v4141
        %5041 = vmatprep.subr.mxu0 %v4154
        %5042 = vmatpush1.msra.mxu0 %v4153
        %5043 = vmatprep.subr.mxu0 %v4166
        %5044 = vmatpush1.msra.mxu0 %v4165
        %5045 = vmatprep.subr.mxu0 %v4178
        %5046 = vmatpush1.msra.mxu0 %v4177
        %5047 = vmatprep.subr.mxu0 %v4190
        %5048 = vmatpush1.msra.mxu0 %v4189
        %5049 = vmatprep.subr.mxu0 %v4202
        %5050 = vmatpush1.msra.mxu0 %v4201
        %5051 = vmatprep.subr.mxu0 %v4214
        %5052 = vmatpush1.msra.mxu0 %v4213
        %5053 = vmatprep.subr.mxu0 %v4226
        %5054 = vmatpush1.msra.mxu0 %v4225
        %5055 = vmatprep.subr.mxu0 %v4238
        %5056 = vmatpush1.msra.mxu0 %v4237
        %5057 = vmatprep.subr.mxu0 %v4250
        %5058 = vmatpush1.msra.mxu0 %v4249
        %5059 = vmatprep.subr.mxu0 %v4262
        %5060 = vmatpush1.msra.mxu0 %v4261
        %5061 = vmatprep.subr.mxu0 %v4274
        %5062 = vmatpush1.msra.mxu0 %v4273
        %5063 = vmatprep.subr.mxu0 %v4286
        %5064 = vmatpush1.msra.mxu0 %v4285
        %5065 = vmatprep.subr.mxu0 %v4298
        %5066 = vmatpush1.msra.mxu0 %v4297
        %5067 = vmatprep.subr.mxu0 %v4310
        %5068 = vmatpush1.msra.mxu0 %v4309
        %5069 = vmatprep.subr.mxu0 %v4322
        %5070 = vmatpush1.msra.mxu0 %v4321
        %5071 = vmatprep.subr.mxu0 %v4334
        %5072 = vmatpush1.msra.mxu0 %v4333
        %5073 = vmatprep.mubr.f32.mxu0 %v3184
        %5074 = vmatmul.mubr.f32.gmra.mrb[0].mxu0 %v3182
        %v5075 = vpop.f32.mrb[0].mxu0
        %v5076 = vadd.f32 0.0, %v5075
        %v5077 = vpop.f32.mrb[0].mxu0
        %v5078 = vadd.f32 0.0, %v5077
        %5079 = vdwg.mxu0
        %5080 = vmatprep.subr.mxu0 %v4346
        %5081 = vmatpush1.msra.mxu0 %v4345
        %5082 = vmatprep.subr.mxu0 %v4358
        %5083 = vmatpush1.msra.mxu0 %v4357
        %5084 = vmatprep.subr.mxu0 %v4370
        %5085 = vmatpush1.msra.mxu0 %v4369
        %5086 = vmatprep.subr.mxu0 %v4382
        %5087 = vmatpush1.msra.mxu0 %v4381
        %5088 = vmatprep.subr.mxu0 %v4394
        %5089 = vmatpush1.msra.mxu0 %v4393
        %5090 = vmatprep.subr.mxu0 %v4406
        %5091 = vmatpush1.msra.mxu0 %v4405
        %5092 = vmatprep.subr.mxu0 %v4418
        %5093 = vmatpush1.msra.mxu0 %v4417
        %5094 = vmatprep.subr.mxu0 %v4430
        %5095 = vmatpush1.msra.mxu0 %v4429
        %5096 = vmatprep.subr.mxu0 %v4442
        %5097 = vmatpush1.msra.mxu0 %v4441
        %5098 = vmatprep.subr.mxu0 %v4454
        %5099 = vmatpush1.msra.mxu0 %v4453
        %5100 = vmatprep.subr.mxu0 %v4466
        %5101 = vmatpush1.msra.mxu0 %v4465
        %5102 = vmatprep.subr.mxu0 %v4478
        %5103 = vmatpush1.msra.mxu0 %v4477
        %5104 = vmatprep.subr.mxu0 %v4490
        %5105 = vmatpush1.msra.mxu0 %v4489
        %5106 = vmatprep.subr.mxu0 %v4502
        %5107 = vmatpush1.msra.mxu0 %v4501
        %5108 = vmatprep.subr.mxu0 %v4514
        %5109 = vmatpush1.msra.mxu0 %v4513
        %5110 = vmatprep.subr.mxu0 %v4526
        %5111 = vmatpush1.msra.mxu0 %v4525
        %5112 = vmatprep.subr.mxu0 %v4538
        %5113 = vmatpush1.msra.mxu0 %v4537
        %5114 = vmatprep.subr.mxu0 %v4550
        %5115 = vmatpush1.msra.mxu0 %v4549
        %5116 = vmatprep.subr.mxu0 %v4562
        %5117 = vmatpush1.msra.mxu0 %v4561
        %5118 = vmatprep.subr.mxu0 %v4574
        %5119 = vmatpush1.msra.mxu0 %v4573
        %5120 = vmatprep.subr.mxu0 %v4586
        %5121 = vmatpush1.msra.mxu0 %v4585
        %5122 = vmatprep.subr.mxu0 %v4598
        %5123 = vmatpush1.msra.mxu0 %v4597
        %5124 = vmatprep.subr.mxu0 %v4610
        %5125 = vmatpush1.msra.mxu0 %v4609
        %5126 = vmatprep.subr.mxu0 %v4622
        %5127 = vmatpush1.msra.mxu0 %v4621
        %5128 = vmatprep.subr.mxu0 %v4634
        %5129 = vmatpush1.msra.mxu0 %v4633
        %5130 = vmatprep.subr.mxu0 %v4646
        %5131 = vmatpush1.msra.mxu0 %v4645
        %5132 = vmatprep.subr.mxu0 %v4658
        %5133 = vmatpush1.msra.mxu0 %v4657
        %5134 = vmatprep.subr.mxu0 %v4670
        %5135 = vmatpush1.msra.mxu0 %v4669
        %5136 = vmatprep.subr.mxu0 %v4682
        %5137 = vmatpush1.msra.mxu0 %v4681
        %5138 = vmatprep.subr.mxu0 %v4694
        %5139 = vmatpush1.msra.mxu0 %v4693
        %5140 = vmatprep.subr.mxu0 %v4706
        %5141 = vmatpush1.msra.mxu0 %v4705
        %5142 = vmatprep.subr.mxu0 %v4718
        %5143 = vmatpush1.msra.mxu0 %v4717
        %5144 = vmatprep.mubr.f32.mxu0 %v3188
        %5145 = vmatmul.mubr.f32.gmra.mrb[0].mxu0 %v3186
        %v5146 = vpop.f32.mrb[0].mxu0
        %v5147 = vadd.f32 %v5076, %v5146
        %v5148 = vpop.f32.mrb[0].mxu0
        %v5149 = vadd.f32 %v5078, %v5148
        %5150 = vdwg.mxu0
        %5151 = vmatprep.subr.mxu0 %v3964
        %5152 = vmatpush1.msra.mxu0 %v3963
        %5153 = vmatprep.subr.mxu0 %v3976
        %5154 = vmatpush1.msra.mxu0 %v3975
        %5155 = vmatprep.subr.mxu0 %v3988
        %5156 = vmatpush1.msra.mxu0 %v3987
        %5157 = vmatprep.subr.mxu0 %v4000
        %5158 = vmatpush1.msra.mxu0 %v3999
        %5159 = vmatprep.subr.mxu0 %v4012
        %5160 = vmatpush1.msra.mxu0 %v4011
        %5161 = vmatprep.subr.mxu0 %v4024
        %5162 = vmatpush1.msra.mxu0 %v4023
        %5163 = vmatprep.subr.mxu0 %v4036
        %5164 = vmatpush1.msra.mxu0 %v4035
        %5165 = vmatprep.subr.mxu0 %v4048
        %5166 = vmatpush1.msra.mxu0 %v4047
        %5167 = vmatprep.subr.mxu0 %v4060
        %5168 = vmatpush1.msra.mxu0 %v4059
        %5169 = vmatprep.subr.mxu0 %v4072
        %5170 = vmatpush1.msra.mxu0 %v4071
        %5171 = vmatprep.subr.mxu0 %v4084
        %5172 = vmatpush1.msra.mxu0 %v4083
        %5173 = vmatprep.subr.mxu0 %v4096
        %5174 = vmatpush1.msra.mxu0 %v4095
        %5175 = vmatprep.subr.mxu0 %v4108
        %5176 = vmatpush1.msra.mxu0 %v4107
        %5177 = vmatprep.subr.mxu0 %v4120
        %5178 = vmatpush1.msra.mxu0 %v4119
        %5179 = vmatprep.subr.mxu0 %v4132
        %5180 = vmatpush1.msra.mxu0 %v4131
        %5181 = vmatprep.subr.mxu0 %v4144
        %5182 = vmatpush1.msra.mxu0 %v4143
        %5183 = vmatprep.subr.mxu0 %v4156
        %5184 = vmatpush1.msra.mxu0 %v4155
        %5185 = vmatprep.subr.mxu0 %v4168
        %5186 = vmatpush1.msra.mxu0 %v4167
        %5187 = vmatprep.subr.mxu0 %v4180
        %5188 = vmatpush1.msra.mxu0 %v4179
        %5189 = vmatprep.subr.mxu0 %v4192
        %5190 = vmatpush1.msra.mxu0 %v4191
        %5191 = vmatprep.subr.mxu0 %v4204
        %5192 = vmatpush1.msra.mxu0 %v4203
        %5193 = vmatprep.subr.mxu0 %v4216
        %5194 = vmatpush1.msra.mxu0 %v4215
        %5195 = vmatprep.subr.mxu0 %v4228
        %5196 = vmatpush1.msra.mxu0 %v4227
        %5197 = vmatprep.subr.mxu0 %v4240
        %5198 = vmatpush1.msra.mxu0 %v4239
        %5199 = vmatprep.subr.mxu0 %v4252
        %5200 = vmatpush1.msra.mxu0 %v4251
        %5201 = vmatprep.subr.mxu0 %v4264
        %5202 = vmatpush1.msra.mxu0 %v4263
        %5203 = vmatprep.subr.mxu0 %v4276
        %5204 = vmatpush1.msra.mxu0 %v4275
        %5205 = vmatprep.subr.mxu0 %v4288
        %5206 = vmatpush1.msra.mxu0 %v4287
        %5207 = vmatprep.subr.mxu0 %v4300
        %5208 = vmatpush1.msra.mxu0 %v4299
        %5209 = vmatprep.subr.mxu0 %v4312
        %5210 = vmatpush1.msra.mxu0 %v4311
        %5211 = vmatprep.subr.mxu0 %v4324
        %5212 = vmatpush1.msra.mxu0 %v4323
        %5213 = vmatprep.subr.mxu0 %v4336
        %5214 = vmatpush1.msra.mxu0 %v4335
        %5215 = vmatprep.mubr.f32.mxu0 %v3184
        %5216 = vmatmul.mubr.f32.gmra.mrb[0].mxu0 %v3182
        %v5217 = vpop.f32.mrb[0].mxu0
        %v5218 = vadd.f32 0.0, %v5217
        %v5219 = vpop.f32.mrb[0].mxu0
        %v5220 = vadd.f32 0.0, %v5219
        %5221 = vdwg.mxu0
        %5222 = vmatprep.subr.mxu0 %v4348
        %5223 = vmatpush1.msra.mxu0 %v4347
        %5224 = vmatprep.subr.mxu0 %v4360
        %5225 = vmatpush1.msra.mxu0 %v4359
        %5226 = vmatprep.subr.mxu0 %v4372
        %5227 = vmatpush1.msra.mxu0 %v4371
        %5228 = vmatprep.subr.mxu0 %v4384
        %5229 = vmatpush1.msra.mxu0 %v4383
        %5230 = vmatprep.subr.mxu0 %v4396
        %5231 = vmatpush1.msra.mxu0 %v4395
        %5232 = vmatprep.subr.mxu0 %v4408
        %5233 = vmatpush1.msra.mxu0 %v4407
        %5234 = vmatprep.subr.mxu0 %v4420
        %5235 = vmatpush1.msra.mxu0 %v4419
        %5236 = vmatprep.subr.mxu0 %v4432
        %5237 = vmatpush1.msra.mxu0 %v4431
        %5238 = vmatprep.subr.mxu0 %v4444
        %5239 = vmatpush1.msra.mxu0 %v4443
        %5240 = vmatprep.subr.mxu0 %v4456
        %5241 = vmatpush1.msra.mxu0 %v4455
        %5242 = vmatprep.subr.mxu0 %v4468
        %5243 = vmatpush1.msra.mxu0 %v4467
        %5244 = vmatprep.subr.mxu0 %v4480
        %5245 = vmatpush1.msra.mxu0 %v4479
        %5246 = vmatprep.subr.mxu0 %v4492
        %5247 = vmatpush1.msra.mxu0 %v4491
        %5248 = vmatprep.subr.mxu0 %v4504
        %5249 = vmatpush1.msra.mxu0 %v4503
        %5250 = vmatprep.subr.mxu0 %v4516
        %5251 = vmatpush1.msra.mxu0 %v4515
        %5252 = vmatprep.subr.mxu0 %v4528
        %5253 = vmatpush1.msra.mxu0 %v4527
        %5254 = vmatprep.subr.mxu0 %v4540
        %5255 = vmatpush1.msra.mxu0 %v4539
        %5256 = vmatprep.subr.mxu0 %v4552
        %5257 = vmatpush1.msra.mxu0 %v4551
        %5258 = vmatprep.subr.mxu0 %v4564
        %5259 = vmatpush1.msra.mxu0 %v4563
        %5260 = vmatprep.subr.mxu0 %v4576
        %5261 = vmatpush1.msra.mxu0 %v4575
        %5262 = vmatprep.subr.mxu0 %v4588
        %5263 = vmatpush1.msra.mxu0 %v4587
        %5264 = vmatprep.subr.mxu0 %v4600
        %5265 = vmatpush1.msra.mxu0 %v4599
        %5266 = vmatprep.subr.mxu0 %v4612
        %5267 = vmatpush1.msra.mxu0 %v4611
        %5268 = vmatprep.subr.mxu0 %v4624
        %5269 = vmatpush1.msra.mxu0 %v4623
        %5270 = vmatprep.subr.mxu0 %v4636
        %5271 = vmatpush1.msra.mxu0 %v4635
        %5272 = vmatprep.subr.mxu0 %v4648
        %5273 = vmatpush1.msra.mxu0 %v4647
        %5274 = vmatprep.subr.mxu0 %v4660
        %5275 = vmatpush1.msra.mxu0 %v4659
        %5276 = vmatprep.subr.mxu0 %v4672
        %5277 = vmatpush1.msra.mxu0 %v4671
        %5278 = vmatprep.subr.mxu0 %v4684
        %5279 = vmatpush1.msra.mxu0 %v4683
        %5280 = vmatprep.subr.mxu0 %v4696
        %5281 = vmatpush1.msra.mxu0 %v4695
        %5282 = vmatprep.subr.mxu0 %v4708
        %5283 = vmatpush1.msra.mxu0 %v4707
        %5284 = vmatprep.subr.mxu0 %v4720
        %5285 = vmatpush1.msra.mxu0 %v4719
        %5286 = vmatprep.mubr.f32.mxu0 %v3188
        %5287 = vmatmul.mubr.f32.gmra.mrb[0].mxu0 %v3186
        %v5288 = vpop.f32.mrb[0].mxu0
        %v5289 = vadd.f32 %v5218, %v5288
        %v5290 = vpop.f32.mrb[0].mxu0
        %v5291 = vadd.f32 %v5220, %v5290
        %5292 = vdwg.mxu0
        %5293 = vmatprep.subr.mxu0 %v3966
        %5294 = vmatpush1.msra.mxu0 %v3965
        %5295 = vmatprep.subr.mxu0 %v3978
        %5296 = vmatpush1.msra.mxu0 %v3977
        %5297 = vmatprep.subr.mxu0 %v3990
        %5298 = vmatpush1.msra.mxu0 %v3989
        %5299 = vmatprep.subr.mxu0 %v4002
        %5300 = vmatpush1.msra.mxu0 %v4001
        %5301 = vmatprep.subr.mxu0 %v4014
        %5302 = vmatpush1.msra.mxu0 %v4013
        %5303 = vmatprep.subr.mxu0 %v4026
        %5304 = vmatpush1.msra.mxu0 %v4025
        %5305 = vmatprep.subr.mxu0 %v4038
        %5306 = vmatpush1.msra.mxu0 %v4037
        %5307 = vmatprep.subr.mxu0 %v4050
        %5308 = vmatpush1.msra.mxu0 %v4049
        %5309 = vmatprep.subr.mxu0 %v4062
        %5310 = vmatpush1.msra.mxu0 %v4061
        %5311 = vmatprep.subr.mxu0 %v4074
        %5312 = vmatpush1.msra.mxu0 %v4073
        %5313 = vmatprep.subr.mxu0 %v4086
        %5314 = vmatpush1.msra.mxu0 %v4085
        %5315 = vmatprep.subr.mxu0 %v4098
        %5316 = vmatpush1.msra.mxu0 %v4097
        %5317 = vmatprep.subr.mxu0 %v4110
        %5318 = vmatpush1.msra.mxu0 %v4109
        %5319 = vmatprep.subr.mxu0 %v4122
        %5320 = vmatpush1.msra.mxu0 %v4121
        %5321 = vmatprep.subr.mxu0 %v4134
        %5322 = vmatpush1.msra.mxu0 %v4133
        %5323 = vmatprep.subr.mxu0 %v4146
        %5324 = vmatpush1.msra.mxu0 %v4145
        %5325 = vmatprep.subr.mxu0 %v4158
        %5326 = vmatpush1.msra.mxu0 %v4157
        %5327 = vmatprep.subr.mxu0 %v4170
        %5328 = vmatpush1.msra.mxu0 %v4169
        %5329 = vmatprep.subr.mxu0 %v4182
        %5330 = vmatpush1.msra.mxu0 %v4181
        %5331 = vmatprep.subr.mxu0 %v4194
        %5332 = vmatpush1.msra.mxu0 %v4193
        %5333 = vmatprep.subr.mxu0 %v4206
        %5334 = vmatpush1.msra.mxu0 %v4205
        %5335 = vmatprep.subr.mxu0 %v4218
        %5336 = vmatpush1.msra.mxu0 %v4217
        %5337 = vmatprep.subr.mxu0 %v4230
        %5338 = vmatpush1.msra.mxu0 %v4229
        %5339 = vmatprep.subr.mxu0 %v4242
        %5340 = vmatpush1.msra.mxu0 %v4241
        %5341 = vmatprep.subr.mxu0 %v4254
        %5342 = vmatpush1.msra.mxu0 %v4253
        %5343 = vmatprep.subr.mxu0 %v4266
        %5344 = vmatpush1.msra.mxu0 %v4265
        %5345 = vmatprep.subr.mxu0 %v4278
        %5346 = vmatpush1.msra.mxu0 %v4277
        %5347 = vmatprep.subr.mxu0 %v4290
        %5348 = vmatpush1.msra.mxu0 %v4289
        %5349 = vmatprep.subr.mxu0 %v4302
        %5350 = vmatpush1.msra.mxu0 %v4301
        %5351 = vmatprep.subr.mxu0 %v4314
        %5352 = vmatpush1.msra.mxu0 %v4313
        %5353 = vmatprep.subr.mxu0 %v4326
        %5354 = vmatpush1.msra.mxu0 %v4325
        %5355 = vmatprep.subr.mxu0 %v4338
        %5356 = vmatpush1.msra.mxu0 %v4337
        %5357 = vmatprep.mubr.f32.mxu0 %v3184
        %5358 = vmatmul.mubr.f32.gmra.mrb[0].mxu0 %v3182
        %v5359 = vpop.f32.mrb[0].mxu0
        %v5360 = vadd.f32 0.0, %v5359
        %v5361 = vpop.f32.mrb[0].mxu0
        %v5362 = vadd.f32 0.0, %v5361
        %5363 = vdwg.mxu0
        %5364 = vmatprep.subr.mxu0 %v4350
        %5365 = vmatpush1.msra.mxu0 %v4349
        %5366 = vmatprep.subr.mxu0 %v4362
        %5367 = vmatpush1.msra.mxu0 %v4361
        %5368 = vmatprep.subr.mxu0 %v4374
        %5369 = vmatpush1.msra.mxu0 %v4373
        %5370 = vmatprep.subr.mxu0 %v4386
        %5371 = vmatpush1.msra.mxu0 %v4385
        %5372 = vmatprep.subr.mxu0 %v4398
        %5373 = vmatpush1.msra.mxu0 %v4397
        %5374 = vmatprep.subr.mxu0 %v4410
        %5375 = vmatpush1.msra.mxu0 %v4409
        %5376 = vmatprep.subr.mxu0 %v4422
        %5377 = vmatpush1.msra.mxu0 %v4421
        %5378 = vmatprep.subr.mxu0 %v4434
        %5379 = vmatpush1.msra.mxu0 %v4433
        %5380 = vmatprep.subr.mxu0 %v4446
        %5381 = vmatpush1.msra.mxu0 %v4445
        %5382 = vmatprep.subr.mxu0 %v4458
        %5383 = vmatpush1.msra.mxu0 %v4457
        %5384 = vmatprep.subr.mxu0 %v4470
        %5385 = vmatpush1.msra.mxu0 %v4469
        %5386 = vmatprep.subr.mxu0 %v4482
        %5387 = vmatpush1.msra.mxu0 %v4481
        %5388 = vmatprep.subr.mxu0 %v4494
        %5389 = vmatpush1.msra.mxu0 %v4493
        %5390 = vmatprep.subr.mxu0 %v4506
        %5391 = vmatpush1.msra.mxu0 %v4505
        %5392 = vmatprep.subr.mxu0 %v4518
        %5393 = vmatpush1.msra.mxu0 %v4517
        %5394 = vmatprep.subr.mxu0 %v4530
        %5395 = vmatpush1.msra.mxu0 %v4529
        %5396 = vmatprep.subr.mxu0 %v4542
        %5397 = vmatpush1.msra.mxu0 %v4541
        %5398 = vmatprep.subr.mxu0 %v4554
        %5399 = vmatpush1.msra.mxu0 %v4553
        %5400 = vmatprep.subr.mxu0 %v4566
        %5401 = vmatpush1.msra.mxu0 %v4565
        %5402 = vmatprep.subr.mxu0 %v4578
        %5403 = vmatpush1.msra.mxu0 %v4577
        %5404 = vmatprep.subr.mxu0 %v4590
        %5405 = vmatpush1.msra.mxu0 %v4589
        %5406 = vmatprep.subr.mxu0 %v4602
        %5407 = vmatpush1.msra.mxu0 %v4601
        %5408 = vmatprep.subr.mxu0 %v4614
        %5409 = vmatpush1.msra.mxu0 %v4613
        %5410 = vmatprep.subr.mxu0 %v4626
        %5411 = vmatpush1.msra.mxu0 %v4625
        %5412 = vmatprep.subr.mxu0 %v4638
        %5413 = vmatpush1.msra.mxu0 %v4637
        %5414 = vmatprep.subr.mxu0 %v4650
        %5415 = vmatpush1.msra.mxu0 %v4649
        %5416 = vmatprep.subr.mxu0 %v4662
        %5417 = vmatpush1.msra.mxu0 %v4661
        %5418 = vmatprep.subr.mxu0 %v4674
        %5419 = vmatpush1.msra.mxu0 %v4673
        %5420 = vmatprep.subr.mxu0 %v4686
        %5421 = vmatpush1.msra.mxu0 %v4685
        %5422 = vmatprep.subr.mxu0 %v4698
        %5423 = vmatpush1.msra.mxu0 %v4697
        %5424 = vmatprep.subr.mxu0 %v4710
        %5425 = vmatpush1.msra.mxu0 %v4709
        %5426 = vmatprep.subr.mxu0 %v4722
        %5427 = vmatpush1.msra.mxu0 %v4721
        %5428 = vmatprep.mubr.f32.mxu0 %v3188
        %5429 = vmatmul.mubr.f32.gmra.mrb[0].mxu0 %v3186
        %v5430 = vpop.f32.mrb[0].mxu0
        %v5431 = vadd.f32 %v5360, %v5430
        %v5432 = vpop.f32.mrb[0].mxu0
        %v5433 = vadd.f32 %v5362, %v5432
        %5434 = vdwg.mxu0
        %5435 = vmatprep.subr.mxu0 %v3968
        %5436 = vmatpush1.msra.mxu0 %v3967
        %5437 = vmatprep.subr.mxu0 %v3980
        %5438 = vmatpush1.msra.mxu0 %v3979
        %5439 = vmatprep.subr.mxu0 %v3992
        %5440 = vmatpush1.msra.mxu0 %v3991
        %5441 = vmatprep.subr.mxu0 %v4004
        %5442 = vmatpush1.msra.mxu0 %v4003
        %5443 = vmatprep.subr.mxu0 %v4016
        %5444 = vmatpush1.msra.mxu0 %v4015
        %5445 = vmatprep.subr.mxu0 %v4028
        %5446 = vmatpush1.msra.mxu0 %v4027
        %5447 = vmatprep.subr.mxu0 %v4040
        %5448 = vmatpush1.msra.mxu0 %v4039
        %5449 = vmatprep.subr.mxu0 %v4052
        %5450 = vmatpush1.msra.mxu0 %v4051
        %5451 = vmatprep.subr.mxu0 %v4064
        %5452 = vmatpush1.msra.mxu0 %v4063
        %5453 = vmatprep.subr.mxu0 %v4076
        %5454 = vmatpush1.msra.mxu0 %v4075
        %5455 = vmatprep.subr.mxu0 %v4088
        %5456 = vmatpush1.msra.mxu0 %v4087
        %5457 = vmatprep.subr.mxu0 %v4100
        %5458 = vmatpush1.msra.mxu0 %v4099
        %5459 = vmatprep.subr.mxu0 %v4112
        %5460 = vmatpush1.msra.mxu0 %v4111
        %5461 = vmatprep.subr.mxu0 %v4124
        %5462 = vmatpush1.msra.mxu0 %v4123
        %5463 = vmatprep.subr.mxu0 %v4136
        %5464 = vmatpush1.msra.mxu0 %v4135
        %5465 = vmatprep.subr.mxu0 %v4148
        %5466 = vmatpush1.msra.mxu0 %v4147
        %5467 = vmatprep.subr.mxu0 %v4160
        %5468 = vmatpush1.msra.mxu0 %v4159
        %5469 = vmatprep.subr.mxu0 %v4172
        %5470 = vmatpush1.msra.mxu0 %v4171
        %5471 = vmatprep.subr.mxu0 %v4184
        %5472 = vmatpush1.msra.mxu0 %v4183
        %5473 = vmatprep.subr.mxu0 %v4196
        %5474 = vmatpush1.msra.mxu0 %v4195
        %5475 = vmatprep.subr.mxu0 %v4208
        %5476 = vmatpush1.msra.mxu0 %v4207
        %5477 = vmatprep.subr.mxu0 %v4220
        %5478 = vmatpush1.msra.mxu0 %v4219
        %5479 = vmatprep.subr.mxu0 %v4232
        %5480 = vmatpush1.msra.mxu0 %v4231
        %5481 = vmatprep.subr.mxu0 %v4244
        %5482 = vmatpush1.msra.mxu0 %v4243
        %5483 = vmatprep.subr.mxu0 %v4256
        %5484 = vmatpush1.msra.mxu0 %v4255
        %5485 = vmatprep.subr.mxu0 %v4268
        %5486 = vmatpush1.msra.mxu0 %v4267
        %5487 = vmatprep.subr.mxu0 %v4280
        %5488 = vmatpush1.msra.mxu0 %v4279
        %5489 = vmatprep.subr.mxu0 %v4292
        %5490 = vmatpush1.msra.mxu0 %v4291
        %5491 = vmatprep.subr.mxu0 %v4304
        %5492 = vmatpush1.msra.mxu0 %v4303
        %5493 = vmatprep.subr.mxu0 %v4316
        %5494 = vmatpush1.msra.mxu0 %v4315
        %5495 = vmatprep.subr.mxu0 %v4328
        %5496 = vmatpush1.msra.mxu0 %v4327
        %5497 = vmatprep.subr.mxu0 %v4340
        %5498 = vmatpush1.msra.mxu0 %v4339
        %5499 = vmatprep.mubr.f32.mxu0 %v3184
        %5500 = vmatmul.mubr.f32.gmra.mrb[0].mxu0 %v3182
        %v5501 = vpop.f32.mrb[0].mxu0
        %v5502 = vadd.f32 0.0, %v5501
        %v5503 = vpop.f32.mrb[0].mxu0
        %v5504 = vadd.f32 0.0, %v5503
        %5505 = vdwg.mxu0
        %5506 = vmatprep.subr.mxu0 %v4352
        %5507 = vmatpush1.msra.mxu0 %v4351
        %5508 = vmatprep.subr.mxu0 %v4364
        %5509 = vmatpush1.msra.mxu0 %v4363
        %5510 = vmatprep.subr.mxu0 %v4376
        %5511 = vmatpush1.msra.mxu0 %v4375
        %5512 = vmatprep.subr.mxu0 %v4388
        %5513 = vmatpush1.msra.mxu0 %v4387
        %5514 = vmatprep.subr.mxu0 %v4400
        %5515 = vmatpush1.msra.mxu0 %v4399
        %5516 = vmatprep.subr.mxu0 %v4412
        %5517 = vmatpush1.msra.mxu0 %v4411
        %5518 = vmatprep.subr.mxu0 %v4424
        %5519 = vmatpush1.msra.mxu0 %v4423
        %5520 = vmatprep.subr.mxu0 %v4436
        %5521 = vmatpush1.msra.mxu0 %v4435
        %5522 = vmatprep.subr.mxu0 %v4448
        %5523 = vmatpush1.msra.mxu0 %v4447
        %5524 = vmatprep.subr.mxu0 %v4460
        %5525 = vmatpush1.msra.mxu0 %v4459
        %5526 = vmatprep.subr.mxu0 %v4472
        %5527 = vmatpush1.msra.mxu0 %v4471
        %5528 = vmatprep.subr.mxu0 %v4484
        %5529 = vmatpush1.msra.mxu0 %v4483
        %5530 = vmatprep.subr.mxu0 %v4496
        %5531 = vmatpush1.msra.mxu0 %v4495
        %5532 = vmatprep.subr.mxu0 %v4508
        %5533 = vmatpush1.msra.mxu0 %v4507
        %5534 = vmatprep.subr.mxu0 %v4520
        %5535 = vmatpush1.msra.mxu0 %v4519
        %5536 = vmatprep.subr.mxu0 %v4532
        %5537 = vmatpush1.msra.mxu0 %v4531
        %5538 = vmatprep.subr.mxu0 %v4544
        %5539 = vmatpush1.msra.mxu0 %v4543
        %5540 = vmatprep.subr.mxu0 %v4556
        %5541 = vmatpush1.msra.mxu0 %v4555
        %5542 = vmatprep.subr.mxu0 %v4568
        %5543 = vmatpush1.msra.mxu0 %v4567
        %5544 = vmatprep.subr.mxu0 %v4580
        %5545 = vmatpush1.msra.mxu0 %v4579
        %5546 = vmatprep.subr.mxu0 %v4592
        %5547 = vmatpush1.msra.mxu0 %v4591
        %5548 = vmatprep.subr.mxu0 %v4604
        %5549 = vmatpush1.msra.mxu0 %v4603
        %5550 = vmatprep.subr.mxu0 %v4616
        %5551 = vmatpush1.msra.mxu0 %v4615
        %5552 = vmatprep.subr.mxu0 %v4628
        %5553 = vmatpush1.msra.mxu0 %v4627
        %5554 = vmatprep.subr.mxu0 %v4640
        %5555 = vmatpush1.msra.mxu0 %v4639
        %5556 = vmatprep.subr.mxu0 %v4652
        %5557 = vmatpush1.msra.mxu0 %v4651
        %5558 = vmatprep.subr.mxu0 %v4664
        %5559 = vmatpush1.msra.mxu0 %v4663
        %5560 = vmatprep.subr.mxu0 %v4676
        %5561 = vmatpush1.msra.mxu0 %v4675
        %5562 = vmatprep.subr.mxu0 %v4688
        %5563 = vmatpush1.msra.mxu0 %v4687
        %5564 = vmatprep.subr.mxu0 %v4700
        %5565 = vmatpush1.msra.mxu0 %v4699
        %5566 = vmatprep.subr.mxu0 %v4712
        %5567 = vmatpush1.msra.mxu0 %v4711
        %5568 = vmatprep.subr.mxu0 %v4724
        %5569 = vmatpush1.msra.mxu0 %v4723
        %5570 = vmatprep.mubr.f32.mxu0 %v3188
        %5571 = vmatmul.mubr.f32.gmra.mrb[0].mxu0 %v3186
        %v5572 = vpop.f32.mrb[0].mxu0
        %v5573 = vadd.f32 %v5502, %v5572
        %v5574 = vpop.f32.mrb[0].mxu0
        %v5575 = vadd.f32 %v5504, %v5574
        %5576 = vdwg.mxu0
        %5577 = vmatprep.subr.mxu0 %v3190
        %5578 = vmatpush1.msra.mxu0 %v3189
        %5579 = vmatprep.subr.mxu0 %v3202
        %5580 = vmatpush1.msra.mxu0 %v3201
        %5581 = vmatprep.subr.mxu0 %v3214
        %5582 = vmatpush1.msra.mxu0 %v3213
        %5583 = vmatprep.subr.mxu0 %v3226
        %5584 = vmatpush1.msra.mxu0 %v3225
        %5585 = vmatprep.subr.mxu0 %v3238
        %5586 = vmatpush1.msra.mxu0 %v3237
        %5587 = vmatprep.subr.mxu0 %v3250
        %5588 = vmatpush1.msra.mxu0 %v3249
        %5589 = vmatprep.subr.mxu0 %v3262
        %5590 = vmatpush1.msra.mxu0 %v3261
        %5591 = vmatprep.subr.mxu0 %v3274
        %5592 = vmatpush1.msra.mxu0 %v3273
        %5593 = vmatprep.subr.mxu0 %v3286
        %5594 = vmatpush1.msra.mxu0 %v3285
        %5595 = vmatprep.subr.mxu0 %v3298
        %5596 = vmatpush1.msra.mxu0 %v3297
        %5597 = vmatprep.subr.mxu0 %v3310
        %5598 = vmatpush1.msra.mxu0 %v3309
        %5599 = vmatprep.subr.mxu0 %v3322
        %5600 = vmatpush1.msra.mxu0 %v3321
        %5601 = vmatprep.subr.mxu0 %v3334
        %5602 = vmatpush1.msra.mxu0 %v3333
        %5603 = vmatprep.subr.mxu0 %v3346
        %5604 = vmatpush1.msra.mxu0 %v3345
        %5605 = vmatprep.subr.mxu0 %v3358
        %5606 = vmatpush1.msra.mxu0 %v3357
        %5607 = vmatprep.subr.mxu0 %v3370
        %5608 = vmatpush1.msra.mxu0 %v3369
        %5609 = vmatprep.subr.mxu0 %v3382
        %5610 = vmatpush1.msra.mxu0 %v3381
        %5611 = vmatprep.subr.mxu0 %v3394
        %5612 = vmatpush1.msra.mxu0 %v3393
        %5613 = vmatprep.subr.mxu0 %v3406
        %5614 = vmatpush1.msra.mxu0 %v3405
        %5615 = vmatprep.subr.mxu0 %v3418
        %5616 = vmatpush1.msra.mxu0 %v3417
        %5617 = vmatprep.subr.mxu0 %v3430
        %5618 = vmatpush1.msra.mxu0 %v3429
        %5619 = vmatprep.subr.mxu0 %v3442
        %5620 = vmatpush1.msra.mxu0 %v3441
        %5621 = vmatprep.subr.mxu0 %v3454
        %5622 = vmatpush1.msra.mxu0 %v3453
        %5623 = vmatprep.subr.mxu0 %v3466
        %5624 = vmatpush1.msra.mxu0 %v3465
        %5625 = vmatprep.subr.mxu0 %v3478
        %5626 = vmatpush1.msra.mxu0 %v3477
        %5627 = vmatprep.subr.mxu0 %v3490
        %5628 = vmatpush1.msra.mxu0 %v3489
        %5629 = vmatprep.subr.mxu0 %v3502
        %5630 = vmatpush1.msra.mxu0 %v3501
        %5631 = vmatprep.subr.mxu0 %v3514
        %5632 = vmatpush1.msra.mxu0 %v3513
        %5633 = vmatprep.subr.mxu0 %v3526
        %5634 = vmatpush1.msra.mxu0 %v3525
        %5635 = vmatprep.subr.mxu0 %v3538
        %5636 = vmatpush1.msra.mxu0 %v3537
        %5637 = vmatprep.subr.mxu0 %v3550
        %5638 = vmatpush1.msra.mxu0 %v3549
        %5639 = vmatprep.subr.mxu0 %v3562
        %5640 = vmatpush1.msra.mxu0 %v3561
        %5641 = vmatprep.mubr.f32.mxu0 %v886
        %5642 = vmatmul.mubr.f32.gmra.mrb[0].mxu0 %v884
        %v5643 = vpop.f32.mrb[0].mxu0
        %v5644 = vadd.f32 %v4863, %v5643
        %v5645 = vpop.f32.mrb[0].mxu0
        %v5646 = vadd.f32 %v4865, %v5645
        %5647 = vdwg.mxu0
        %5648 = vmatprep.subr.mxu0 %v3574
        %5649 = vmatpush1.msra.mxu0 %v3573
        %5650 = vmatprep.subr.mxu0 %v3586
        %5651 = vmatpush1.msra.mxu0 %v3585
        %5652 = vmatprep.subr.mxu0 %v3598
        %5653 = vmatpush1.msra.mxu0 %v3597
        %5654 = vmatprep.subr.mxu0 %v3610
        %5655 = vmatpush1.msra.mxu0 %v3609
        %5656 = vmatprep.subr.mxu0 %v3622
        %5657 = vmatpush1.msra.mxu0 %v3621
        %5658 = vmatprep.subr.mxu0 %v3634
        %5659 = vmatpush1.msra.mxu0 %v3633
        %5660 = vmatprep.subr.mxu0 %v3646
        %5661 = vmatpush1.msra.mxu0 %v3645
        %5662 = vmatprep.subr.mxu0 %v3658
        %5663 = vmatpush1.msra.mxu0 %v3657
        %5664 = vmatprep.subr.mxu0 %v3670
        %5665 = vmatpush1.msra.mxu0 %v3669
        %5666 = vmatprep.subr.mxu0 %v3682
        %5667 = vmatpush1.msra.mxu0 %v3681
        %5668 = vmatprep.subr.mxu0 %v3694
        %5669 = vmatpush1.msra.mxu0 %v3693
        %5670 = vmatprep.subr.mxu0 %v3706
        %5671 = vmatpush1.msra.mxu0 %v3705
        %5672 = vmatprep.subr.mxu0 %v3718
        %5673 = vmatpush1.msra.mxu0 %v3717
        %5674 = vmatprep.subr.mxu0 %v3730
        %5675 = vmatpush1.msra.mxu0 %v3729
        %5676 = vmatprep.subr.mxu0 %v3742
        %5677 = vmatpush1.msra.mxu0 %v3741
        %5678 = vmatprep.subr.mxu0 %v3754
        %5679 = vmatpush1.msra.mxu0 %v3753
        %5680 = vmatprep.subr.mxu0 %v3766
        %5681 = vmatpush1.msra.mxu0 %v3765
        %5682 = vmatprep.subr.mxu0 %v3778
        %5683 = vmatpush1.msra.mxu0 %v3777
        %5684 = vmatprep.subr.mxu0 %v3790
        %5685 = vmatpush1.msra.mxu0 %v3789
        %5686 = vmatprep.subr.mxu0 %v3802
        %5687 = vmatpush1.msra.mxu0 %v3801
        %5688 = vmatprep.subr.mxu0 %v3814
        %5689 = vmatpush1.msra.mxu0 %v3813
        %5690 = vmatprep.subr.mxu0 %v3826
        %5691 = vmatpush1.msra.mxu0 %v3825
        %5692 = vmatprep.subr.mxu0 %v3838
        %5693 = vmatpush1.msra.mxu0 %v3837
        %5694 = vmatprep.subr.mxu0 %v3850
        %5695 = vmatpush1.msra.mxu0 %v3849
        %5696 = vmatprep.subr.mxu0 %v3862
        %5697 = vmatpush1.msra.mxu0 %v3861
        %5698 = vmatprep.subr.mxu0 %v3874
        %5699 = vmatpush1.msra.mxu0 %v3873
        %5700 = vmatprep.subr.mxu0 %v3886
        %5701 = vmatpush1.msra.mxu0 %v3885
        %5702 = vmatprep.subr.mxu0 %v3898
        %5703 = vmatpush1.msra.mxu0 %v3897
        %5704 = vmatprep.subr.mxu0 %v3910
        %5705 = vmatpush1.msra.mxu0 %v3909
        %5706 = vmatprep.subr.mxu0 %v3922
        %5707 = vmatpush1.msra.mxu0 %v3921
        %5708 = vmatprep.subr.mxu0 %v3934
        %5709 = vmatpush1.msra.mxu0 %v3933
        %5710 = vmatprep.subr.mxu0 %v3946
        %5711 = vmatpush1.msra.mxu0 %v3945
        %5712 = vmatprep.mubr.f32.mxu0 %v890
        %5713 = vmatmul.mubr.f32.gmra.mrb[0].mxu0 %v888
        %v5714 = vpop.f32.mrb[0].mxu0
        %v5715 = vadd.f32 %v5644, %v5714
        %v5716 = vpop.f32.mrb[0].mxu0
        %v5717 = vadd.f32 %v5646, %v5716
        %5718 = vdwg.mxu0
        %5719 = vmatprep.subr.mxu0 %v3192
        %5720 = vmatpush1.msra.mxu0 %v3191
        %5721 = vmatprep.subr.mxu0 %v3204
        %5722 = vmatpush1.msra.mxu0 %v3203
        %5723 = vmatprep.subr.mxu0 %v3216
        %5724 = vmatpush1.msra.mxu0 %v3215
        %5725 = vmatprep.subr.mxu0 %v3228
        %5726 = vmatpush1.msra.mxu0 %v3227
        %5727 = vmatprep.subr.mxu0 %v3240
        %5728 = vmatpush1.msra.mxu0 %v3239
        %5729 = vmatprep.subr.mxu0 %v3252
        %5730 = vmatpush1.msra.mxu0 %v3251
        %5731 = vmatprep.subr.mxu0 %v3264
        %5732 = vmatpush1.msra.mxu0 %v3263
        %5733 = vmatprep.subr.mxu0 %v3276
        %5734 = vmatpush1.msra.mxu0 %v3275
        %5735 = vmatprep.subr.mxu0 %v3288
        %5736 = vmatpush1.msra.mxu0 %v3287
        %5737 = vmatprep.subr.mxu0 %v3300
        %5738 = vmatpush1.msra.mxu0 %v3299
        %5739 = vmatprep.subr.mxu0 %v3312
        %5740 = vmatpush1.msra.mxu0 %v3311
        %5741 = vmatprep.subr.mxu0 %v3324
        %5742 = vmatpush1.msra.mxu0 %v3323
        %5743 = vmatprep.subr.mxu0 %v3336
        %5744 = vmatpush1.msra.mxu0 %v3335
        %5745 = vmatprep.subr.mxu0 %v3348
        %5746 = vmatpush1.msra.mxu0 %v3347
        %5747 = vmatprep.subr.mxu0 %v3360
        %5748 = vmatpush1.msra.mxu0 %v3359
        %5749 = vmatprep.subr.mxu0 %v3372
        %5750 = vmatpush1.msra.mxu0 %v3371
        %5751 = vmatprep.subr.mxu0 %v3384
        %5752 = vmatpush1.msra.mxu0 %v3383
        %5753 = vmatprep.subr.mxu0 %v3396
        %5754 = vmatpush1.msra.mxu0 %v3395
        %5755 = vmatprep.subr.mxu0 %v3408
        %5756 = vmatpush1.msra.mxu0 %v3407
        %5757 = vmatprep.subr.mxu0 %v3420
        %5758 = vmatpush1.msra.mxu0 %v3419
        %5759 = vmatprep.subr.mxu0 %v3432
        %5760 = vmatpush1.msra.mxu0 %v3431
        %5761 = vmatprep.subr.mxu0 %v3444
        %5762 = vmatpush1.msra.mxu0 %v3443
        %5763 = vmatprep.subr.mxu0 %v3456
        %5764 = vmatpush1.msra.mxu0 %v3455
        %5765 = vmatprep.subr.mxu0 %v3468
        %5766 = vmatpush1.msra.mxu0 %v3467
        %5767 = vmatprep.subr.mxu0 %v3480
        %5768 = vmatpush1.msra.mxu0 %v3479
        %5769 = vmatprep.subr.mxu0 %v3492
        %5770 = vmatpush1.msra.mxu0 %v3491
        %5771 = vmatprep.subr.mxu0 %v3504
        %5772 = vmatpush1.msra.mxu0 %v3503
        %5773 = vmatprep.subr.mxu0 %v3516
        %5774 = vmatpush1.msra.mxu0 %v3515
        %5775 = vmatprep.subr.mxu0 %v3528
        %5776 = vmatpush1.msra.mxu0 %v3527
        %5777 = vmatprep.subr.mxu0 %v3540
        %5778 = vmatpush1.msra.mxu0 %v3539
        %5779 = vmatprep.subr.mxu0 %v3552
        %5780 = vmatpush1.msra.mxu0 %v3551
        %5781 = vmatprep.subr.mxu0 %v3564
        %5782 = vmatpush1.msra.mxu0 %v3563
        %5783 = vmatprep.mubr.f32.mxu0 %v886
        %5784 = vmatmul.mubr.f32.gmra.mrb[0].mxu0 %v884
        %v5785 = vpop.f32.mrb[0].mxu0
        %v5786 = vadd.f32 %v5005, %v5785
        %v5787 = vpop.f32.mrb[0].mxu0
        %v5788 = vadd.f32 %v5007, %v5787
        %5789 = vdwg.mxu0
        %5790 = vmatprep.subr.mxu0 %v3576
        %5791 = vmatpush1.msra.mxu0 %v3575
        %5792 = vmatprep.subr.mxu0 %v3588
        %5793 = vmatpush1.msra.mxu0 %v3587
        %5794 = vmatprep.subr.mxu0 %v3600
        %5795 = vmatpush1.msra.mxu0 %v3599
        %5796 = vmatprep.subr.mxu0 %v3612
        %5797 = vmatpush1.msra.mxu0 %v3611
        %5798 = vmatprep.subr.mxu0 %v3624
        %5799 = vmatpush1.msra.mxu0 %v3623
        %5800 = vmatprep.subr.mxu0 %v3636
        %5801 = vmatpush1.msra.mxu0 %v3635
        %5802 = vmatprep.subr.mxu0 %v3648
        %5803 = vmatpush1.msra.mxu0 %v3647
        %5804 = vmatprep.subr.mxu0 %v3660
        %5805 = vmatpush1.msra.mxu0 %v3659
        %5806 = vmatprep.subr.mxu0 %v3672
        %5807 = vmatpush1.msra.mxu0 %v3671
        %5808 = vmatprep.subr.mxu0 %v3684
        %5809 = vmatpush1.msra.mxu0 %v3683
        %5810 = vmatprep.subr.mxu0 %v3696
        %5811 = vmatpush1.msra.mxu0 %v3695
        %5812 = vmatprep.subr.mxu0 %v3708
        %5813 = vmatpush1.msra.mxu0 %v3707
        %5814 = vmatprep.subr.mxu0 %v3720
        %5815 = vmatpush1.msra.mxu0 %v3719
        %5816 = vmatprep.subr.mxu0 %v3732
        %5817 = vmatpush1.msra.mxu0 %v3731
        %5818 = vmatprep.subr.mxu0 %v3744
        %5819 = vmatpush1.msra.mxu0 %v3743
        %5820 = vmatprep.subr.mxu0 %v3756
        %5821 = vmatpush1.msra.mxu0 %v3755
        %5822 = vmatprep.subr.mxu0 %v3768
        %5823 = vmatpush1.msra.mxu0 %v3767
        %5824 = vmatprep.subr.mxu0 %v3780
        %5825 = vmatpush1.msra.mxu0 %v3779
        %5826 = vmatprep.subr.mxu0 %v3792
        %5827 = vmatpush1.msra.mxu0 %v3791
        %5828 = vmatprep.subr.mxu0 %v3804
        %5829 = vmatpush1.msra.mxu0 %v3803
        %5830 = vmatprep.subr.mxu0 %v3816
        %5831 = vmatpush1.msra.mxu0 %v3815
        %5832 = vmatprep.subr.mxu0 %v3828
        %5833 = vmatpush1.msra.mxu0 %v3827
        %5834 = vmatprep.subr.mxu0 %v3840
        %5835 = vmatpush1.msra.mxu0 %v3839
        %5836 = vmatprep.subr.mxu0 %v3852
        %5837 = vmatpush1.msra.mxu0 %v3851
        %5838 = vmatprep.subr.mxu0 %v3864
        %5839 = vmatpush1.msra.mxu0 %v3863
        %5840 = vmatprep.subr.mxu0 %v3876
        %5841 = vmatpush1.msra.mxu0 %v3875
        %5842 = vmatprep.subr.mxu0 %v3888
        %5843 = vmatpush1.msra.mxu0 %v3887
        %5844 = vmatprep.subr.mxu0 %v3900
        %5845 = vmatpush1.msra.mxu0 %v3899
        %5846 = vmatprep.subr.mxu0 %v3912
        %5847 = vmatpush1.msra.mxu0 %v3911
        %5848 = vmatprep.subr.mxu0 %v3924
        %5849 = vmatpush1.msra.mxu0 %v3923
        %5850 = vmatprep.subr.mxu0 %v3936
        %5851 = vmatpush1.msra.mxu0 %v3935
        %5852 = vmatprep.subr.mxu0 %v3948
        %5853 = vmatpush1.msra.mxu0 %v3947
        %5854 = vmatprep.mubr.f32.mxu0 %v890
        %5855 = vmatmul.mubr.f32.gmra.mrb[0].mxu0 %v888
        %v5856 = vpop.f32.mrb[0].mxu0
        %v5857 = vadd.f32 %v5786, %v5856
        %v5858 = vpop.f32.mrb[0].mxu0
        %v5859 = vadd.f32 %v5788, %v5858
        %5860 = vdwg.mxu0
        %5861 = vmatprep.subr.mxu0 %v3194
        %5862 = vmatpush1.msra.mxu0 %v3193
        %5863 = vmatprep.subr.mxu0 %v3206
        %5864 = vmatpush1.msra.mxu0 %v3205
        %5865 = vmatprep.subr.mxu0 %v3218
        %5866 = vmatpush1.msra.mxu0 %v3217
        %5867 = vmatprep.subr.mxu0 %v3230
        %5868 = vmatpush1.msra.mxu0 %v3229
        %5869 = vmatprep.subr.mxu0 %v3242
        %5870 = vmatpush1.msra.mxu0 %v3241
        %5871 = vmatprep.subr.mxu0 %v3254
        %5872 = vmatpush1.msra.mxu0 %v3253
        %5873 = vmatprep.subr.mxu0 %v3266
        %5874 = vmatpush1.msra.mxu0 %v3265
        %5875 = vmatprep.subr.mxu0 %v3278
        %5876 = vmatpush1.msra.mxu0 %v3277
        %5877 = vmatprep.subr.mxu0 %v3290
        %5878 = vmatpush1.msra.mxu0 %v3289
        %5879 = vmatprep.subr.mxu0 %v3302
        %5880 = vmatpush1.msra.mxu0 %v3301
        %5881 = vmatprep.subr.mxu0 %v3314
        %5882 = vmatpush1.msra.mxu0 %v3313
        %5883 = vmatprep.subr.mxu0 %v3326
        %5884 = vmatpush1.msra.mxu0 %v3325
        %5885 = vmatprep.subr.mxu0 %v3338
        %5886 = vmatpush1.msra.mxu0 %v3337
        %5887 = vmatprep.subr.mxu0 %v3350
        %5888 = vmatpush1.msra.mxu0 %v3349
        %5889 = vmatprep.subr.mxu0 %v3362
        %5890 = vmatpush1.msra.mxu0 %v3361
        %5891 = vmatprep.subr.mxu0 %v3374
        %5892 = vmatpush1.msra.mxu0 %v3373
        %5893 = vmatprep.subr.mxu0 %v3386
        %5894 = vmatpush1.msra.mxu0 %v3385
        %5895 = vmatprep.subr.mxu0 %v3398
        %5896 = vmatpush1.msra.mxu0 %v3397
        %5897 = vmatprep.subr.mxu0 %v3410
        %5898 = vmatpush1.msra.mxu0 %v3409
        %5899 = vmatprep.subr.mxu0 %v3422
        %5900 = vmatpush1.msra.mxu0 %v3421
        %5901 = vmatprep.subr.mxu0 %v3434
        %5902 = vmatpush1.msra.mxu0 %v3433
        %5903 = vmatprep.subr.mxu0 %v3446
        %5904 = vmatpush1.msra.mxu0 %v3445
        %5905 = vmatprep.subr.mxu0 %v3458
        %5906 = vmatpush1.msra.mxu0 %v3457
        %5907 = vmatprep.subr.mxu0 %v3470
        %5908 = vmatpush1.msra.mxu0 %v3469
        %5909 = vmatprep.subr.mxu0 %v3482
        %5910 = vmatpush1.msra.mxu0 %v3481
        %5911 = vmatprep.subr.mxu0 %v3494
        %5912 = vmatpush1.msra.mxu0 %v3493
        %5913 = vmatprep.subr.mxu0 %v3506
        %5914 = vmatpush1.msra.mxu0 %v3505
        %5915 = vmatprep.subr.mxu0 %v3518
        %5916 = vmatpush1.msra.mxu0 %v3517
        %5917 = vmatprep.subr.mxu0 %v3530
        %5918 = vmatpush1.msra.mxu0 %v3529
        %5919 = vmatprep.subr.mxu0 %v3542
        %5920 = vmatpush1.msra.mxu0 %v3541
        %5921 = vmatprep.subr.mxu0 %v3554
        %5922 = vmatpush1.msra.mxu0 %v3553
        %5923 = vmatprep.subr.mxu0 %v3566
        %5924 = vmatpush1.msra.mxu0 %v3565
        %5925 = vmatprep.mubr.f32.mxu0 %v886
        %5926 = vmatmul.mubr.f32.gmra.mrb[0].mxu0 %v884
        %v5927 = vpop.f32.mrb[0].mxu0
        %v5928 = vadd.f32 %v5147, %v5927
        %v5929 = vpop.f32.mrb[0].mxu0
        %v5930 = vadd.f32 %v5149, %v5929
        %5931 = vdwg.mxu0
        %5932 = vmatprep.subr.mxu0 %v3578
        %5933 = vmatpush1.msra.mxu0 %v3577
        %5934 = vmatprep.subr.mxu0 %v3590
        %5935 = vmatpush1.msra.mxu0 %v3589
        %5936 = vmatprep.subr.mxu0 %v3602
        %5937 = vmatpush1.msra.mxu0 %v3601
        %5938 = vmatprep.subr.mxu0 %v3614
        %5939 = vmatpush1.msra.mxu0 %v3613
        %5940 = vmatprep.subr.mxu0 %v3626
        %5941 = vmatpush1.msra.mxu0 %v3625
        %5942 = vmatprep.subr.mxu0 %v3638
        %5943 = vmatpush1.msra.mxu0 %v3637
        %5944 = vmatprep.subr.mxu0 %v3650
        %5945 = vmatpush1.msra.mxu0 %v3649
        %5946 = vmatprep.subr.mxu0 %v3662
        %5947 = vmatpush1.msra.mxu0 %v3661
        %5948 = vmatprep.subr.mxu0 %v3674
        %5949 = vmatpush1.msra.mxu0 %v3673
        %5950 = vmatprep.subr.mxu0 %v3686
        %5951 = vmatpush1.msra.mxu0 %v3685
        %5952 = vmatprep.subr.mxu0 %v3698
        %5953 = vmatpush1.msra.mxu0 %v3697
        %5954 = vmatprep.subr.mxu0 %v3710
        %5955 = vmatpush1.msra.mxu0 %v3709
        %5956 = vmatprep.subr.mxu0 %v3722
        %5957 = vmatpush1.msra.mxu0 %v3721
        %5958 = vmatprep.subr.mxu0 %v3734
        %5959 = vmatpush1.msra.mxu0 %v3733
        %5960 = vmatprep.subr.mxu0 %v3746
        %5961 = vmatpush1.msra.mxu0 %v3745
        %5962 = vmatprep.subr.mxu0 %v3758
        %5963 = vmatpush1.msra.mxu0 %v3757
        %5964 = vmatprep.subr.mxu0 %v3770
        %5965 = vmatpush1.msra.mxu0 %v3769
        %5966 = vmatprep.subr.mxu0 %v3782
        %5967 = vmatpush1.msra.mxu0 %v3781
        %5968 = vmatprep.subr.mxu0 %v3794
        %5969 = vmatpush1.msra.mxu0 %v3793
        %5970 = vmatprep.subr.mxu0 %v3806
        %5971 = vmatpush1.msra.mxu0 %v3805
        %5972 = vmatprep.subr.mxu0 %v3818
        %5973 = vmatpush1.msra.mxu0 %v3817
        %5974 = vmatprep.subr.mxu0 %v3830
        %5975 = vmatpush1.msra.mxu0 %v3829
        %5976 = vmatprep.subr.mxu0 %v3842
        %5977 = vmatpush1.msra.mxu0 %v3841
        %5978 = vmatprep.subr.mxu0 %v3854
        %5979 = vmatpush1.msra.mxu0 %v3853
        %5980 = vmatprep.subr.mxu0 %v3866
        %5981 = vmatpush1.msra.mxu0 %v3865
        %5982 = vmatprep.subr.mxu0 %v3878
        %5983 = vmatpush1.msra.mxu0 %v3877
        %5984 = vmatprep.subr.mxu0 %v3890
        %5985 = vmatpush1.msra.mxu0 %v3889
        %5986 = vmatprep.subr.mxu0 %v3902
        %5987 = vmatpush1.msra.mxu0 %v3901
        %5988 = vmatprep.subr.mxu0 %v3914
        %5989 = vmatpush1.msra.mxu0 %v3913
        %5990 = vmatprep.subr.mxu0 %v3926
        %5991 = vmatpush1.msra.mxu0 %v3925
        %5992 = vmatprep.subr.mxu0 %v3938
        %5993 = vmatpush1.msra.mxu0 %v3937
        %5994 = vmatprep.subr.mxu0 %v3950
        %5995 = vmatpush1.msra.mxu0 %v3949
        %5996 = vmatprep.mubr.f32.mxu0 %v890
        %5997 = vmatmul.mubr.f32.gmra.mrb[0].mxu0 %v888
        %v5998 = vpop.f32.mrb[0].mxu0
        %v5999 = vadd.f32 %v5928, %v5998
        %v6000 = vpop.f32.mrb[0].mxu0
        %v6001 = vadd.f32 %v5930, %v6000
        %6002 = vdwg.mxu0
        %6003 = vmatprep.subr.mxu0 %v3196
        %6004 = vmatpush1.msra.mxu0 %v3195
        %6005 = vmatprep.subr.mxu0 %v3208
        %6006 = vmatpush1.msra.mxu0 %v3207
        %6007 = vmatprep.subr.mxu0 %v3220
        %6008 = vmatpush1.msra.mxu0 %v3219
        %6009 = vmatprep.subr.mxu0 %v3232
        %6010 = vmatpush1.msra.mxu0 %v3231
        %6011 = vmatprep.subr.mxu0 %v3244
        %6012 = vmatpush1.msra.mxu0 %v3243
        %6013 = vmatprep.subr.mxu0 %v3256
        %6014 = vmatpush1.msra.mxu0 %v3255
        %6015 = vmatprep.subr.mxu0 %v3268
        %6016 = vmatpush1.msra.mxu0 %v3267
        %6017 = vmatprep.subr.mxu0 %v3280
        %6018 = vmatpush1.msra.mxu0 %v3279
        %6019 = vmatprep.subr.mxu0 %v3292
        %6020 = vmatpush1.msra.mxu0 %v3291
        %6021 = vmatprep.subr.mxu0 %v3304
        %6022 = vmatpush1.msra.mxu0 %v3303
        %6023 = vmatprep.subr.mxu0 %v3316
        %6024 = vmatpush1.msra.mxu0 %v3315
        %6025 = vmatprep.subr.mxu0 %v3328
        %6026 = vmatpush1.msra.mxu0 %v3327
        %6027 = vmatprep.subr.mxu0 %v3340
        %6028 = vmatpush1.msra.mxu0 %v3339
        %6029 = vmatprep.subr.mxu0 %v3352
        %6030 = vmatpush1.msra.mxu0 %v3351
        %6031 = vmatprep.subr.mxu0 %v3364
        %6032 = vmatpush1.msra.mxu0 %v3363
        %6033 = vmatprep.subr.mxu0 %v3376
        %6034 = vmatpush1.msra.mxu0 %v3375
        %6035 = vmatprep.subr.mxu0 %v3388
        %6036 = vmatpush1.msra.mxu0 %v3387
        %6037 = vmatprep.subr.mxu0 %v3400
        %6038 = vmatpush1.msra.mxu0 %v3399
        %6039 = vmatprep.subr.mxu0 %v3412
        %6040 = vmatpush1.msra.mxu0 %v3411
        %6041 = vmatprep.subr.mxu0 %v3424
        %6042 = vmatpush1.msra.mxu0 %v3423
        %6043 = vmatprep.subr.mxu0 %v3436
        %6044 = vmatpush1.msra.mxu0 %v3435
        %6045 = vmatprep.subr.mxu0 %v3448
        %6046 = vmatpush1.msra.mxu0 %v3447
        %6047 = vmatprep.subr.mxu0 %v3460
        %6048 = vmatpush1.msra.mxu0 %v3459
        %6049 = vmatprep.subr.mxu0 %v3472
        %6050 = vmatpush1.msra.mxu0 %v3471
        %6051 = vmatprep.subr.mxu0 %v3484
        %6052 = vmatpush1.msra.mxu0 %v3483
        %6053 = vmatprep.subr.mxu0 %v3496
        %6054 = vmatpush1.msra.mxu0 %v3495
        %6055 = vmatprep.subr.mxu0 %v3508
        %6056 = vmatpush1.msra.mxu0 %v3507
        %6057 = vmatprep.subr.mxu0 %v3520
        %6058 = vmatpush1.msra.mxu0 %v3519
        %6059 = vmatprep.subr.mxu0 %v3532
        %6060 = vmatpush1.msra.mxu0 %v3531
        %6061 = vmatprep.subr.mxu0 %v3544
        %6062 = vmatpush1.msra.mxu0 %v3543
        %6063 = vmatprep.subr.mxu0 %v3556
        %6064 = vmatpush1.msra.mxu0 %v3555
        %6065 = vmatprep.subr.mxu0 %v3568
        %6066 = vmatpush1.msra.mxu0 %v3567
        %6067 = vmatprep.mubr.f32.mxu0 %v886
        %6068 = vmatmul.mubr.f32.gmra.mrb[0].mxu0 %v884
        %v6069 = vpop.f32.mrb[0].mxu0
        %v6070 = vadd.f32 %v5289, %v6069
        %v6071 = vpop.f32.mrb[0].mxu0
        %v6072 = vadd.f32 %v5291, %v6071
        %6073 = vdwg.mxu0
        %6074 = vmatprep.subr.mxu0 %v3580
        %6075 = vmatpush1.msra.mxu0 %v3579
        %6076 = vmatprep.subr.mxu0 %v3592
        %6077 = vmatpush1.msra.mxu0 %v3591
        %6078 = vmatprep.subr.mxu0 %v3604
        %6079 = vmatpush1.msra.mxu0 %v3603
        %6080 = vmatprep.subr.mxu0 %v3616
        %6081 = vmatpush1.msra.mxu0 %v3615
        %6082 = vmatprep.subr.mxu0 %v3628
        %6083 = vmatpush1.msra.mxu0 %v3627
        %6084 = vmatprep.subr.mxu0 %v3640
        %6085 = vmatpush1.msra.mxu0 %v3639
        %6086 = vmatprep.subr.mxu0 %v3652
        %6087 = vmatpush1.msra.mxu0 %v3651
        %6088 = vmatprep.subr.mxu0 %v3664
        %6089 = vmatpush1.msra.mxu0 %v3663
        %6090 = vmatprep.subr.mxu0 %v3676
        %6091 = vmatpush1.msra.mxu0 %v3675
        %6092 = vmatprep.subr.mxu0 %v3688
        %6093 = vmatpush1.msra.mxu0 %v3687
        %6094 = vmatprep.subr.mxu0 %v3700
        %6095 = vmatpush1.msra.mxu0 %v3699
        %6096 = vmatprep.subr.mxu0 %v3712
        %6097 = vmatpush1.msra.mxu0 %v3711
        %6098 = vmatprep.subr.mxu0 %v3724
        %6099 = vmatpush1.msra.mxu0 %v3723
        %6100 = vmatprep.subr.mxu0 %v3736
        %6101 = vmatpush1.msra.mxu0 %v3735
        %6102 = vmatprep.subr.mxu0 %v3748
        %6103 = vmatpush1.msra.mxu0 %v3747
        %6104 = vmatprep.subr.mxu0 %v3760
        %6105 = vmatpush1.msra.mxu0 %v3759
        %6106 = vmatprep.subr.mxu0 %v3772
        %6107 = vmatpush1.msra.mxu0 %v3771
        %6108 = vmatprep.subr.mxu0 %v3784
        %6109 = vmatpush1.msra.mxu0 %v3783
        %6110 = vmatprep.subr.mxu0 %v3796
        %6111 = vmatpush1.msra.mxu0 %v3795
        %6112 = vmatprep.subr.mxu0 %v3808
        %6113 = vmatpush1.msra.mxu0 %v3807
        %6114 = vmatprep.subr.mxu0 %v3820
        %6115 = vmatpush1.msra.mxu0 %v3819
        %6116 = vmatprep.subr.mxu0 %v3832
        %6117 = vmatpush1.msra.mxu0 %v3831
        %6118 = vmatprep.subr.mxu0 %v3844
        %6119 = vmatpush1.msra.mxu0 %v3843
        %6120 = vmatprep.subr.mxu0 %v3856
        %6121 = vmatpush1.msra.mxu0 %v3855
        %6122 = vmatprep.subr.mxu0 %v3868
        %6123 = vmatpush1.msra.mxu0 %v3867
        %6124 = vmatprep.subr.mxu0 %v3880
        %6125 = vmatpush1.msra.mxu0 %v3879
        %6126 = vmatprep.subr.mxu0 %v3892
        %6127 = vmatpush1.msra.mxu0 %v3891
        %6128 = vmatprep.subr.mxu0 %v3904
        %6129 = vmatpush1.msra.mxu0 %v3903
        %6130 = vmatprep.subr.mxu0 %v3916
        %6131 = vmatpush1.msra.mxu0 %v3915
        %6132 = vmatprep.subr.mxu0 %v3928
        %6133 = vmatpush1.msra.mxu0 %v3927
        %6134 = vmatprep.subr.mxu0 %v3940
        %6135 = vmatpush1.msra.mxu0 %v3939
        %6136 = vmatprep.subr.mxu0 %v3952
        %6137 = vmatpush1.msra.mxu0 %v3951
        %6138 = vmatprep.mubr.f32.mxu0 %v890
        %6139 = vmatmul.mubr.f32.gmra.mrb[0].mxu0 %v888
        %v6140 = vpop.f32.mrb[0].mxu0
        %v6141 = vadd.f32 %v6070, %v6140
        %v6142 = vpop.f32.mrb[0].mxu0
        %v6143 = vadd.f32 %v6072, %v6142
        %6144 = vdwg.mxu0
        %6145 = vmatprep.subr.mxu0 %v3198
        %6146 = vmatpush1.msra.mxu0 %v3197
        %6147 = vmatprep.subr.mxu0 %v3210
        %6148 = vmatpush1.msra.mxu0 %v3209
        %6149 = vmatprep.subr.mxu0 %v3222
        %6150 = vmatpush1.msra.mxu0 %v3221
        %6151 = vmatprep.subr.mxu0 %v3234
        %6152 = vmatpush1.msra.mxu0 %v3233
        %6153 = vmatprep.subr.mxu0 %v3246
        %6154 = vmatpush1.msra.mxu0 %v3245
        %6155 = vmatprep.subr.mxu0 %v3258
        %6156 = vmatpush1.msra.mxu0 %v3257
        %6157 = vmatprep.subr.mxu0 %v3270
        %6158 = vmatpush1.msra.mxu0 %v3269
        %6159 = vmatprep.subr.mxu0 %v3282
        %6160 = vmatpush1.msra.mxu0 %v3281
        %6161 = vmatprep.subr.mxu0 %v3294
        %6162 = vmatpush1.msra.mxu0 %v3293
        %6163 = vmatprep.subr.mxu0 %v3306
        %6164 = vmatpush1.msra.mxu0 %v3305
        %6165 = vmatprep.subr.mxu0 %v3318
        %6166 = vmatpush1.msra.mxu0 %v3317
        %6167 = vmatprep.subr.mxu0 %v3330
        %6168 = vmatpush1.msra.mxu0 %v3329
        %6169 = vmatprep.subr.mxu0 %v3342
        %6170 = vmatpush1.msra.mxu0 %v3341
        %6171 = vmatprep.subr.mxu0 %v3354
        %6172 = vmatpush1.msra.mxu0 %v3353
        %6173 = vmatprep.subr.mxu0 %v3366
        %6174 = vmatpush1.msra.mxu0 %v3365
        %6175 = vmatprep.subr.mxu0 %v3378
        %6176 = vmatpush1.msra.mxu0 %v3377
        %6177 = vmatprep.subr.mxu0 %v3390
        %6178 = vmatpush1.msra.mxu0 %v3389
        %6179 = vmatprep.subr.mxu0 %v3402
        %6180 = vmatpush1.msra.mxu0 %v3401
        %6181 = vmatprep.subr.mxu0 %v3414
        %6182 = vmatpush1.msra.mxu0 %v3413
        %6183 = vmatprep.subr.mxu0 %v3426
        %6184 = vmatpush1.msra.mxu0 %v3425
        %6185 = vmatprep.subr.mxu0 %v3438
        %6186 = vmatpush1.msra.mxu0 %v3437
        %6187 = vmatprep.subr.mxu0 %v3450
        %6188 = vmatpush1.msra.mxu0 %v3449
        %6189 = vmatprep.subr.mxu0 %v3462
        %6190 = vmatpush1.msra.mxu0 %v3461
        %6191 = vmatprep.subr.mxu0 %v3474
        %6192 = vmatpush1.msra.mxu0 %v3473
        %6193 = vmatprep.subr.mxu0 %v3486
        %6194 = vmatpush1.msra.mxu0 %v3485
        %6195 = vmatprep.subr.mxu0 %v3498
        %6196 = vmatpush1.msra.mxu0 %v3497
        %6197 = vmatprep.subr.mxu0 %v3510
        %6198 = vmatpush1.msra.mxu0 %v3509
        %6199 = vmatprep.subr.mxu0 %v3522
        %6200 = vmatpush1.msra.mxu0 %v3521
        %6201 = vmatprep.subr.mxu0 %v3534
        %6202 = vmatpush1.msra.mxu0 %v3533
        %6203 = vmatprep.subr.mxu0 %v3546
        %6204 = vmatpush1.msra.mxu0 %v3545
        %6205 = vmatprep.subr.mxu0 %v3558
        %6206 = vmatpush1.msra.mxu0 %v3557
        %6207 = vmatprep.subr.mxu0 %v3570
        %6208 = vmatpush1.msra.mxu0 %v3569
        %6209 = vmatprep.mubr.f32.mxu0 %v886
        %6210 = vmatmul.mubr.f32.gmra.mrb[0].mxu0 %v884
        %v6211 = vpop.f32.mrb[0].mxu0
        %v6212 = vadd.f32 %v5431, %v6211
        %v6213 = vpop.f32.mrb[0].mxu0
        %v6214 = vadd.f32 %v5433, %v6213
        %6215 = vdwg.mxu0
        %6216 = vmatprep.subr.mxu0 %v3582
        %6217 = vmatpush1.msra.mxu0 %v3581
        %6218 = vmatprep.subr.mxu0 %v3594
        %6219 = vmatpush1.msra.mxu0 %v3593
        %6220 = vmatprep.subr.mxu0 %v3606
        %6221 = vmatpush1.msra.mxu0 %v3605
        %6222 = vmatprep.subr.mxu0 %v3618
        %6223 = vmatpush1.msra.mxu0 %v3617
        %6224 = vmatprep.subr.mxu0 %v3630
        %6225 = vmatpush1.msra.mxu0 %v3629
        %6226 = vmatprep.subr.mxu0 %v3642
        %6227 = vmatpush1.msra.mxu0 %v3641
        %6228 = vmatprep.subr.mxu0 %v3654
        %6229 = vmatpush1.msra.mxu0 %v3653
        %6230 = vmatprep.subr.mxu0 %v3666
        %6231 = vmatpush1.msra.mxu0 %v3665
        %6232 = vmatprep.subr.mxu0 %v3678
        %6233 = vmatpush1.msra.mxu0 %v3677
        %6234 = vmatprep.subr.mxu0 %v3690
        %6235 = vmatpush1.msra.mxu0 %v3689
        %6236 = vmatprep.subr.mxu0 %v3702
        %6237 = vmatpush1.msra.mxu0 %v3701
        %6238 = vmatprep.subr.mxu0 %v3714
        %6239 = vmatpush1.msra.mxu0 %v3713
        %6240 = vmatprep.subr.mxu0 %v3726
        %6241 = vmatpush1.msra.mxu0 %v3725
        %6242 = vmatprep.subr.mxu0 %v3738
        %6243 = vmatpush1.msra.mxu0 %v3737
        %6244 = vmatprep.subr.mxu0 %v3750
        %6245 = vmatpush1.msra.mxu0 %v3749
        %6246 = vmatprep.subr.mxu0 %v3762
        %6247 = vmatpush1.msra.mxu0 %v3761
        %6248 = vmatprep.subr.mxu0 %v3774
        %6249 = vmatpush1.msra.mxu0 %v3773
        %6250 = vmatprep.subr.mxu0 %v3786
        %6251 = vmatpush1.msra.mxu0 %v3785
        %6252 = vmatprep.subr.mxu0 %v3798
        %6253 = vmatpush1.msra.mxu0 %v3797
        %6254 = vmatprep.subr.mxu0 %v3810
        %6255 = vmatpush1.msra.mxu0 %v3809
        %6256 = vmatprep.subr.mxu0 %v3822
        %6257 = vmatpush1.msra.mxu0 %v3821
        %6258 = vmatprep.subr.mxu0 %v3834
        %6259 = vmatpush1.msra.mxu0 %v3833
        %6260 = vmatprep.subr.mxu0 %v3846
        %6261 = vmatpush1.msra.mxu0 %v3845
        %6262 = vmatprep.subr.mxu0 %v3858
        %6263 = vmatpush1.msra.mxu0 %v3857
        %6264 = vmatprep.subr.mxu0 %v3870
        %6265 = vmatpush1.msra.mxu0 %v3869
        %6266 = vmatprep.subr.mxu0 %v3882
        %6267 = vmatpush1.msra.mxu0 %v3881
        %6268 = vmatprep.subr.mxu0 %v3894
        %6269 = vmatpush1.msra.mxu0 %v3893
        %6270 = vmatprep.subr.mxu0 %v3906
        %6271 = vmatpush1.msra.mxu0 %v3905
        %6272 = vmatprep.subr.mxu0 %v3918
        %6273 = vmatpush1.msra.mxu0 %v3917
        %6274 = vmatprep.subr.mxu0 %v3930
        %6275 = vmatpush1.msra.mxu0 %v3929
        %6276 = vmatprep.subr.mxu0 %v3942
        %6277 = vmatpush1.msra.mxu0 %v3941
        %6278 = vmatprep.subr.mxu0 %v3954
        %6279 = vmatpush1.msra.mxu0 %v3953
        %6280 = vmatprep.mubr.f32.mxu0 %v890
        %6281 = vmatmul.mubr.f32.gmra.mrb[0].mxu0 %v888
        %v6282 = vpop.f32.mrb[0].mxu0
        %v6283 = vadd.f32 %v6212, %v6282
        %v6284 = vpop.f32.mrb[0].mxu0
        %v6285 = vadd.f32 %v6214, %v6284
        %6286 = vdwg.mxu0
        %6287 = vmatprep.subr.mxu0 %v3200
        %6288 = vmatpush1.msra.mxu0 %v3199
        %6289 = vmatprep.subr.mxu0 %v3212
        %6290 = vmatpush1.msra.mxu0 %v3211
        %6291 = vmatprep.subr.mxu0 %v3224
        %6292 = vmatpush1.msra.mxu0 %v3223
        %6293 = vmatprep.subr.mxu0 %v3236
        %6294 = vmatpush1.msra.mxu0 %v3235
        %6295 = vmatprep.subr.mxu0 %v3248
        %6296 = vmatpush1.msra.mxu0 %v3247
        %6297 = vmatprep.subr.mxu0 %v3260
        %6298 = vmatpush1.msra.mxu0 %v3259
        %6299 = vmatprep.subr.mxu0 %v3272
        %6300 = vmatpush1.msra.mxu0 %v3271
        %6301 = vmatprep.subr.mxu0 %v3284
        %6302 = vmatpush1.msra.mxu0 %v3283
        %6303 = vmatprep.subr.mxu0 %v3296
        %6304 = vmatpush1.msra.mxu0 %v3295
        %6305 = vmatprep.subr.mxu0 %v3308
        %6306 = vmatpush1.msra.mxu0 %v3307
        %6307 = vmatprep.subr.mxu0 %v3320
        %6308 = vmatpush1.msra.mxu0 %v3319
        %6309 = vmatprep.subr.mxu0 %v3332
        %6310 = vmatpush1.msra.mxu0 %v3331
        %6311 = vmatprep.subr.mxu0 %v3344
        %6312 = vmatpush1.msra.mxu0 %v3343
        %6313 = vmatprep.subr.mxu0 %v3356
        %6314 = vmatpush1.msra.mxu0 %v3355
        %6315 = vmatprep.subr.mxu0 %v3368
        %6316 = vmatpush1.msra.mxu0 %v3367
        %6317 = vmatprep.subr.mxu0 %v3380
        %6318 = vmatpush1.msra.mxu0 %v3379
        %6319 = vmatprep.subr.mxu0 %v3392
        %6320 = vmatpush1.msra.mxu0 %v3391
        %6321 = vmatprep.subr.mxu0 %v3404
        %6322 = vmatpush1.msra.mxu0 %v3403
        %6323 = vmatprep.subr.mxu0 %v3416
        %6324 = vmatpush1.msra.mxu0 %v3415
        %6325 = vmatprep.subr.mxu0 %v3428
        %6326 = vmatpush1.msra.mxu0 %v3427
        %6327 = vmatprep.subr.mxu0 %v3440
        %6328 = vmatpush1.msra.mxu0 %v3439
        %6329 = vmatprep.subr.mxu0 %v3452
        %6330 = vmatpush1.msra.mxu0 %v3451
        %6331 = vmatprep.subr.mxu0 %v3464
        %6332 = vmatpush1.msra.mxu0 %v3463
        %6333 = vmatprep.subr.mxu0 %v3476
        %6334 = vmatpush1.msra.mxu0 %v3475
        %6335 = vmatprep.subr.mxu0 %v3488
        %6336 = vmatpush1.msra.mxu0 %v3487
        %6337 = vmatprep.subr.mxu0 %v3500
        %6338 = vmatpush1.msra.mxu0 %v3499
        %6339 = vmatprep.subr.mxu0 %v3512
        %6340 = vmatpush1.msra.mxu0 %v3511
        %6341 = vmatprep.subr.mxu0 %v3524
        %6342 = vmatpush1.msra.mxu0 %v3523
        %6343 = vmatprep.subr.mxu0 %v3536
        %6344 = vmatpush1.msra.mxu0 %v3535
        %6345 = vmatprep.subr.mxu0 %v3548
        %6346 = vmatpush1.msra.mxu0 %v3547
        %6347 = vmatprep.subr.mxu0 %v3560
        %6348 = vmatpush1.msra.mxu0 %v3559
        %6349 = vmatprep.subr.mxu0 %v3572
        %6350 = vmatpush1.msra.mxu0 %v3571
        %6351 = vmatprep.mubr.f32.mxu0 %v886
        %6352 = vmatmul.mubr.f32.gmra.mrb[0].mxu0 %v884
        %v6353 = vpop.f32.mrb[0].mxu0
        %v6354 = vadd.f32 %v5573, %v6353
        %v6355 = vpop.f32.mrb[0].mxu0
        %v6356 = vadd.f32 %v5575, %v6355
        %6357 = vdwg.mxu0
        %6358 = vmatprep.subr.mxu0 %v3584
        %6359 = vmatpush1.msra.mxu0 %v3583
        %6360 = vmatprep.subr.mxu0 %v3596
        %6361 = vmatpush1.msra.mxu0 %v3595
        %6362 = vmatprep.subr.mxu0 %v3608
        %6363 = vmatpush1.msra.mxu0 %v3607
        %6364 = vmatprep.subr.mxu0 %v3620
        %6365 = vmatpush1.msra.mxu0 %v3619
        %6366 = vmatprep.subr.mxu0 %v3632
        %6367 = vmatpush1.msra.mxu0 %v3631
        %6368 = vmatprep.subr.mxu0 %v3644
        %6369 = vmatpush1.msra.mxu0 %v3643
        %6370 = vmatprep.subr.mxu0 %v3656
        %6371 = vmatpush1.msra.mxu0 %v3655
        %6372 = vmatprep.subr.mxu0 %v3668
        %6373 = vmatpush1.msra.mxu0 %v3667
        %6374 = vmatprep.subr.mxu0 %v3680
        %6375 = vmatpush1.msra.mxu0 %v3679
        %6376 = vmatprep.subr.mxu0 %v3692
        %6377 = vmatpush1.msra.mxu0 %v3691
        %6378 = vmatprep.subr.mxu0 %v3704
        %6379 = vmatpush1.msra.mxu0 %v3703
        %6380 = vmatprep.subr.mxu0 %v3716
        %6381 = vmatpush1.msra.mxu0 %v3715
        %6382 = vmatprep.subr.mxu0 %v3728
        %6383 = vmatpush1.msra.mxu0 %v3727
        %6384 = vmatprep.subr.mxu0 %v3740
        %6385 = vmatpush1.msra.mxu0 %v3739
        %6386 = vmatprep.subr.mxu0 %v3752
        %6387 = vmatpush1.msra.mxu0 %v3751
        %6388 = vmatprep.subr.mxu0 %v3764
        %6389 = vmatpush1.msra.mxu0 %v3763
        %6390 = vmatprep.subr.mxu0 %v3776
        %6391 = vmatpush1.msra.mxu0 %v3775
        %6392 = vmatprep.subr.mxu0 %v3788
        %6393 = vmatpush1.msra.mxu0 %v3787
        %6394 = vmatprep.subr.mxu0 %v3800
        %6395 = vmatpush1.msra.mxu0 %v3799
        %6396 = vmatprep.subr.mxu0 %v3812
        %6397 = vmatpush1.msra.mxu0 %v3811
        %6398 = vmatprep.subr.mxu0 %v3824
        %6399 = vmatpush1.msra.mxu0 %v3823
        %6400 = vmatprep.subr.mxu0 %v3836
        %6401 = vmatpush1.msra.mxu0 %v3835
        %6402 = vmatprep.subr.mxu0 %v3848
        %6403 = vmatpush1.msra.mxu0 %v3847
        %6404 = vmatprep.subr.mxu0 %v3860
        %6405 = vmatpush1.msra.mxu0 %v3859
        %6406 = vmatprep.subr.mxu0 %v3872
        %6407 = vmatpush1.msra.mxu0 %v3871
        %6408 = vmatprep.subr.mxu0 %v3884
        %6409 = vmatpush1.msra.mxu0 %v3883
        %6410 = vmatprep.subr.mxu0 %v3896
        %6411 = vmatpush1.msra.mxu0 %v3895
        %6412 = vmatprep.subr.mxu0 %v3908
        %6413 = vmatpush1.msra.mxu0 %v3907
        %6414 = vmatprep.subr.mxu0 %v3920
        %6415 = vmatpush1.msra.mxu0 %v3919
        %6416 = vmatprep.subr.mxu0 %v3932
        %6417 = vmatpush1.msra.mxu0 %v3931
        %6418 = vmatprep.subr.mxu0 %v3944
        %6419 = vmatpush1.msra.mxu0 %v3943
        %6420 = vmatprep.subr.mxu0 %v3956
        %6421 = vmatpush1.msra.mxu0 %v3955
        %6422 = vmatprep.mubr.f32.mxu0 %v890
        %6423 = vmatmul.mubr.f32.gmra.mrb[0].mxu0 %v888
        %v6424 = vpop.f32.mrb[0].mxu0
        %v6425 = vadd.f32 %v6354, %v6424
        %v6426 = vpop.f32.mrb[0].mxu0
        %v6427 = vadd.f32 %v6356, %v6426
        %6428 = vdwg.mxu0
        %p6429 = scmp.eq.s32.totalorder %s23, 0
        // Predicated region
        $region93: #{tpu_custom_call.1} parent=55 // pred_check
          %p6430 = pneg %p6429
        $region94: #{tpu_custom_call.1} parent=55 // pred_check_branch
          %6432 = sbr.rel (%p6430) target = $region96
        $region95: #{tpu_custom_call.1} parent=55 // pred_region
          %v6433 = vld [vmem:[#allocation13] sm:$0xff]
          %v6434 = vld [vmem:[#allocation13 + $0x8] sm:$0xf]
          %v6437 = vlaneseq
          %v6438 = vshrl.u32 %v6437, 7
          %v6439 = vsub.s32 0, %v6438
          %v6440 = vrot.slane %v6433, %v6439
          %v6441 = vlaneseq
          %v6442 = vshrl.u32 %v6441, 7
          %v6443 = vsub.s32 1, %v6442
          %v6444 = vrot.slane %v6433, %v6443
          %v6445 = vlaneseq
          %v6446 = vshrl.u32 %v6445, 7
          %v6447 = vsub.s32 2, %v6446
          %v6448 = vrot.slane %v6433, %v6447
          %v6449 = vlaneseq
          %v6450 = vshrl.u32 %v6449, 7
          %v6451 = vsub.s32 3, %v6450
          %v6452 = vrot.slane %v6433, %v6451
          %v6453 = vlaneseq
          %v6454 = vshrl.u32 %v6453, 7
          %v6455 = vsub.s32 4, %v6454
          %v6456 = vrot.slane %v6433, %v6455
          %v6457 = vlaneseq
          %v6458 = vshrl.u32 %v6457, 7
          %v6459 = vsub.s32 5, %v6458
          %v6460 = vrot.slane %v6433, %v6459
          %v6461 = vlaneseq
          %v6462 = vshrl.u32 %v6461, 7
          %v6463 = vsub.s32 6, %v6462
          %v6464 = vrot.slane %v6433, %v6463
          %v6465 = vlaneseq
          %v6466 = vshrl.u32 %v6465, 7
          %v6467 = vsub.s32 7, %v6466
          %v6468 = vrot.slane %v6433, %v6467
          %v6469 = vlaneseq
          %v6470 = vshrl.u32 %v6469, 7
          %v6471 = vsub.s32 0, %v6470
          %v6472 = vrot.slane %v6434, %v6471
          %v6473 = vlaneseq
          %v6474 = vshrl.u32 %v6473, 7
          %v6475 = vsub.s32 1, %v6474
          %v6476 = vrot.slane %v6434, %v6475
          %v6477 = vlaneseq
          %v6478 = vshrl.u32 %v6477, 7
          %v6479 = vsub.s32 2, %v6478
          %v6480 = vrot.slane %v6434, %v6479
          %v6481 = vlaneseq
          %v6482 = vshrl.u32 %v6481, 7
          %v6483 = vsub.s32 3, %v6482
          %v6484 = vrot.slane %v6434, %v6483
          %v6485 = vcombine.low %v6440, %v6444
          %v6486 = vcombine.low %v6448, %v6452
          %v6488 = vunpack.c.l.s4 1983009808
          %v6489 = vunpack.c.0.s8 %v6488
          %v6490 = vlaneseq
          %v6491 = vshrl.u32 %v6490, 7
          %v6492 = vsub.s32 %v6489, %v6491
          %v6493 = vrot.slane %v6485, %v6492
          %v6495 = vunpack.c.l.s4 1983009808
          %v6496 = vunpack.c.0.s8 %v6495
          %v6497 = vlaneseq
          %v6498 = vshrl.u32 %v6497, 7
          %v6499 = vsub.s32 %v6496, %v6498
          %v6500 = vrot.slane %v6486, %v6499
          %v6501 = vcombine.low %v6493, %v6500
          %v6502 = vcombine.low %v6456, %v6460
          %v6503 = vcombine.low %v6464, %v6468
          %v6505 = vunpack.c.l.s4 1983009808
          %v6506 = vunpack.c.0.s8 %v6505
          %v6507 = vlaneseq
          %v6508 = vshrl.u32 %v6507, 7
          %v6509 = vsub.s32 %v6506, %v6508
          %v6510 = vrot.slane %v6502, %v6509
          %v6512 = vunpack.c.l.s4 1983009808
          %v6513 = vunpack.c.0.s8 %v6512
          %v6514 = vlaneseq
          %v6515 = vshrl.u32 %v6514, 7
          %v6516 = vsub.s32 %v6513, %v6515
          %v6517 = vrot.slane %v6503, %v6516
          %v6518 = vcombine.low %v6510, %v6517
          %v6519 = vcombine.low %v6472, %v6476
          %v6520 = vcombine.low %v6480, %v6484
          %v6522 = vunpack.c.l.s4 1983009808
          %v6523 = vunpack.c.0.s8 %v6522
          %v6524 = vlaneseq
          %v6525 = vshrl.u32 %v6524, 7
          %v6526 = vsub.s32 %v6523, %v6525
          %v6527 = vrot.slane %v6519, %v6526
          %v6529 = vunpack.c.l.s4 1983009808
          %v6530 = vunpack.c.0.s8 %v6529
          %v6531 = vlaneseq
          %v6532 = vshrl.u32 %v6531, 7
          %v6533 = vsub.s32 %v6530, %v6532
          %v6534 = vrot.slane %v6520, %v6533
          %v6535 = vcombine.low %v6527, %v6534
          %6539 = vst [vmem:[#allocation14] sm:$0xff] %v6501
          %6540 = vst [vmem:[#allocation14 + $0x8] sm:$0xff] %v6518
          %6541 = vst [vmem:[#allocation14 + $0x10] sm:$0xff] %v6535
        $region96: #{tpu_custom_call.1} parent=55 // pred_fallthru
          _
        %v6542 = vld [vmem:[#allocation14] sm:$0xff]
        %v6543 = vld [vmem:[#allocation14 + $0x8] sm:$0xff]
        %v6544 = vld [vmem:[#allocation14 + $0x10] sm:$0xff]
        %v6557 = vcombine.low %v5715, %v5717
        %v6558 = vcombine.low %v5857, %v5859
        %v6560 = vunpack.c.l.s4 1983009808
        %v6561 = vunpack.c.0.s8 %v6560
        %v6562 = vlaneseq
        %v6563 = vshrl.u32 %v6562, 7
        %v6564 = vsub.s32 %v6561, %v6563
        %v6565 = vrot.slane %v6557, %v6564
        %v6567 = vunpack.c.l.s4 1983009808
        %v6568 = vunpack.c.0.s8 %v6567
        %v6569 = vlaneseq
        %v6570 = vshrl.u32 %v6569, 7
        %v6571 = vsub.s32 %v6568, %v6570
        %v6572 = vrot.slane %v6558, %v6571
        %v6573 = vcombine.low %v6565, %v6572
        %v6574 = vcombine.low %v5999, %v6001
        %v6575 = vcombine.low %v6141, %v6143
        %v6577 = vunpack.c.l.s4 1983009808
        %v6578 = vunpack.c.0.s8 %v6577
        %v6579 = vlaneseq
        %v6580 = vshrl.u32 %v6579, 7
        %v6581 = vsub.s32 %v6578, %v6580
        %v6582 = vrot.slane %v6574, %v6581
        %v6584 = vunpack.c.l.s4 1983009808
        %v6585 = vunpack.c.0.s8 %v6584
        %v6586 = vlaneseq
        %v6587 = vshrl.u32 %v6586, 7
        %v6588 = vsub.s32 %v6585, %v6587
        %v6589 = vrot.slane %v6575, %v6588
        %v6590 = vcombine.low %v6582, %v6589
        %v6591 = vcombine.low %v6283, %v6285
        %v6592 = vcombine.low %v6425, %v6427
        %v6594 = vunpack.c.l.s4 1983009808
        %v6595 = vunpack.c.0.s8 %v6594
        %v6596 = vlaneseq
        %v6597 = vshrl.u32 %v6596, 7
        %v6598 = vsub.s32 %v6595, %v6597
        %v6599 = vrot.slane %v6591, %v6598
        %v6601 = vunpack.c.l.s4 1983009808
        %v6602 = vunpack.c.0.s8 %v6601
        %v6603 = vlaneseq
        %v6604 = vshrl.u32 %v6603, 7
        %v6605 = vsub.s32 %v6602, %v6604
        %v6606 = vrot.slane %v6592, %v6605
        %v6607 = vcombine.low %v6599, %v6606
        %v6611 = vadd.f32 %v6542, %v6573
        %v6612 = vadd.f32 %v6543, %v6590
        %v6613 = vadd.f32 %v6544, %v6607
        %6614 = vst [vmem:[#allocation14] sm:$0xff] %v6611
        %6615 = vst [vmem:[#allocation14 + $0x8] sm:$0xff] %v6612
        %6616 = vst [vmem:[#allocation14 + $0x10] sm:$0xff] %v6613
        // Predicated region
        $region97: #{tpu_custom_call.1} parent=55 // pred_check
          %p6617 = pneg %p255
        $region98: #{tpu_custom_call.1} parent=55 // pred_check_branch
          %6619 = sbr.rel (%p6617) target = $region100
        $region99: #{tpu_custom_call.1} parent=55 // pred_region
          %s6621 = ssub.s32 384, 384
          %6622 = vsyncadd [#allocation4], %s6621
          %s6624 = sshll.u32 [#allocation14], 4
          %s6625 = int_to_ptr.vmem [resolvable:$true] %s6624
          %6627 = dma.vmem_to_hbm [thread:$0]  %s6625, 384, %s9, [#allocation4]
        $region100: #{tpu_custom_call.1} parent=55 // pred_fallthru
          _
        // Predicated region
        $region101: #{tpu_custom_call.1} parent=55 // pred_check
          %p6628 = pneg %p255
        $region102: #{tpu_custom_call.1} parent=55 // pred_check_branch
          %6630 = sbr.rel (%p6628) target = $region104
        $region103: #{tpu_custom_call.1} parent=55 // pred_region
          %6631 = dma.done [#allocation4], 384
        $region104: #{tpu_custom_call.1} parent=55 // pred_fallthru
          _
      $region56: #{tpu_custom_call.1} parent=5 // pred_fallthru
        _
      %p6632 = scmp.le.s32.totalorder 2, %s18
      // Predicated region
      $region105: #{tpu_custom_call.1} parent=5 // pred_check
        %p6633 = pneg %p6632
      $region106: #{tpu_custom_call.1} parent=5 // pred_check_branch
        %6635 = sbr.rel (%p6633) target = $region108
      $region107: #{tpu_custom_call.1} parent=5 // pred_region
        %s6636 = ssub.s32 %s18, 2
      $region108: #{tpu_custom_call.1} parent=5 // pred_fallthru
        _
    $region6: #{tpu_custom_call.1} parent=1 // loop_footer
      %s22 = sadd.s32 1, %s18
    $region7: #{tpu_custom_call.1} parent=1 // loop_footer_branch
      %17 = sbr.rel target = $region3
    $region8: #{tpu_custom_call.1} parent=1 // loop_exit
      _
    %6637 = vsyncpa [#allocation3], 1
    %s6638 = scalar_lea.sflag [#allocation3], 1
    %6639 = vsyncpa %s6638, 1
    %6640 = vsyncpa [#allocation6], 1
    %6641 = vsyncpa [#allocation4], 1
    %s6642 = scalar_lea.sflag [#allocation4], 1
    %6643 = vsyncpa %s6642, 1

</llo_original>
